<compile_context>
chip_gen: v7x
topology: tpu7x:2x2x1
jax: 0.10.0
libtpu: 0.0.40
codegen_flags: <defaults>
</compile_context>

<pallas_src>
import functools

import jax
import jax.numpy as jnp
from jax.experimental import pallas as pl
from jax.experimental.pallas import tpu as pltpu


# ----------------------------------------------------------------------------
# Small helpers
# ----------------------------------------------------------------------------
def _round_up(x, m):
    return ((x + m - 1) // m) * m


def _vmem_capacity_bytes():
    """Physical VMEM of the local TPU generation (64 MiB on v7x, 128 MiB v5e/v6e)."""
    try:
        return int(pltpu.get_tpu_info().vmem_capacity_bytes)
    except Exception:
        return 128 * 1024 * 1024


def _padded_vmem_bytes(shape, dtype):
    """VMEM footprint of one buffer after (8,128) tile padding."""
    shape = tuple(int(d) for d in shape)
    if len(shape) == 1:
        shape = (1,) + shape
    lead = 1
    for d in shape[:-2]:
        lead *= d
    return (lead * _round_up(shape[-2], 8) * _round_up(shape[-1], 128)
            * jnp.dtype(dtype).itemsize)


# ----------------------------------------------------------------------------
# Fused single-call kernel (small / VMEM-resident shapes):
#   conv GEMM + ReLU + fc1 + ReLU + fc2 in one invocation.
#   fc1 contraction is a loop over spatial positions P so the conv output never
#   needs the (B*P,C)->(B,P*C) relayout and never touches HBM.
# ----------------------------------------------------------------------------
def _fused_small_kernel(p_ref, wc_ref, bc_ref, w1_ref, b1_ref, w2_ref, b2_ref,
                        o_ref):
    # p_ref:  (P, B, K)  bf16   im2col patches, spatial-major
    # wc_ref: (K, C)     bf16   conv weight; bc_ref: (1, C) f32
    # w1_ref: (P, C, H)  bf16   fc1 weight permuted to (p, c, j); b1_ref: (1, H) f32
    # w2_ref: (H, NCp)   bf16   fc2 weight, lane-padded; b2_ref: (1, NCp) f32
    P, B, _ = p_ref.shape
    H = w1_ref.shape[2]
    wc = wc_ref[...]
    bc = bc_ref[...]

    def body(p, h):
        cp = jnp.dot(p_ref[p], wc, preferred_element_type=jnp.float32) + bc
        cp = jnp.maximum(cp, 0.0).astype(w1_ref.dtype)            # (B, C)
        return h + jnp.dot(cp, w1_ref[p], preferred_element_type=jnp.float32)

    h = jax.lax.fori_loop(0, P, body, jnp.zeros((B, H), jnp.float32),
                          unroll=(P <= 128))
    h = jnp.maximum(h + b1_ref[...], 0.0)                          # (B, H)
    o = jnp.dot(h.astype(w2_ref.dtype), w2_ref[...],
                preferred_element_type=jnp.float32) + b2_ref[...]  # (B, NCp)
    o_ref[...] = o.astype(o_ref.dtype)


def mynet_fused_small(patches_pbk, wc, bc, w1, b1, w2, b2, *, vmem_limit):
    P, B, K = patches_pbk.shape
    C = wc.shape[1]
    H = w1.shape[2]
    NCp = w2.shape[1]
    cost = pl.CostEstimate(
        flops=2 * B * P * K * C + 2 * B * P * C * H + 2 * B * H * NCp,
        transcendentals=0,
        bytes_accessed=int(patches_pbk.size * 2 + wc.size * 2 + w1.size * 2
                           + w2.size * 2 + (bc.size + b1.size + b2.size) * 4
                           + B * NCp * 4),
    )
    return pl.pallas_call(
        _fused_small_kernel,
        out_shape=jax.ShapeDtypeStruct((B, NCp), jnp.float32),
        grid_spec=pltpu.PrefetchScalarGridSpec(
            num_scalar_prefetch=0,
            grid=(1,),
            in_specs=[
                pl.BlockSpec((P, B, K), lambda i: (0, 0, 0)),
                pl.BlockSpec((K, C), lambda i: (0, 0)),
                pl.BlockSpec((1, C), lambda i: (0, 0)),
                pl.BlockSpec((P, C, H), lambda i: (0, 0, 0)),
                pl.BlockSpec((1, H), lambda i: (0, 0)),
                pl.BlockSpec((H, NCp), lambda i: (0, 0)),
                pl.BlockSpec((1, NCp), lambda i: (0, 0)),
            ],
            out_specs=pl.BlockSpec((B, NCp), lambda i: (0, 0)),
        ),
        compiler_params=pltpu.CompilerParams(
            dimension_semantics=("arbitrary",),
            vmem_limit_bytes=int(vmem_limit)),
        cost_estimate=cost,
    )(patches_pbk, wc, bc, w1, b1, w2, b2)


# ----------------------------------------------------------------------------
# Fallback kernel 1 (large shapes): conv-as-GEMM (+bias+ReLU), tiled over rows.
# ----------------------------------------------------------------------------
def _conv_gemm_kernel(p_ref, w_ref, b_ref, o_ref):
    acc = jnp.dot(p_ref[...], w_ref[...], preferred_element_type=jnp.float32)
    o_ref[...] = jnp.maximum(acc + b_ref[...], 0.0).astype(o_ref.dtype)


def conv_gemm_relu(patches, w, b, *, vmem_limit):
    """relu(patches:(M,K) @ w:(K,N) + b:(1,N)); grid over rows ("parallel")."""
    M, K = patches.shape
    _, N = w.shape
    el = patches.dtype.itemsize
    budget = max(vmem_limit // 2, 4 << 20)
    # Largest power-of-two row tile whose double-buffered working set fits.
    tm = 1024
    while tm > 128 and 2 * tm * (K + N) * el + 2 * (K * N + N) * el > budget:
        tm //= 2
    if M <= tm:
        tm = _round_up(M, 8)
    elif M <= 2 * tm:
        tm = _round_up(pl.cdiv(M, 2), 8)   # >=2 blocks -> both v7x TensorCores work
    Mp = _round_up(M, tm)
    if Mp != M:
        patches = jnp.pad(patches, ((0, Mp - M), (0, 0)))
    grid = (Mp // tm,)
    cost = pl.CostEstimate(
        flops=2 * Mp * K * N + 2 * Mp * N, transcendentals=0,
        bytes_accessed=el * (Mp * K + K * N + Mp * N) + 4 * N)
    out = pl.pallas_call(
        _conv_gemm_kernel,
        out_shape=jax.ShapeDtypeStruct((Mp, N), patches.dtype),
        grid_spec=pltpu.PrefetchScalarGridSpec(
            num_scalar_prefetch=0,
            grid=grid,
            in_specs=[
                pl.BlockSpec((tm, K), lambda i: (i, 0)),
                pl.BlockSpec((K, N), lambda i: (0, 0)),
                pl.BlockSpec((1, N), lambda i: (0, 0)),
            ],
            out_specs=pl.BlockSpec((tm, N), lambda i: (i, 0)),
        ),
        compiler_params=pltpu.CompilerParams(
            dimension_semantics=("parallel",),
            vmem_limit_bytes=int(vmem_limit)),
        cost_estimate=cost,
    )(patches, w, b)
    return out[:M] if Mp != M else out


# ----------------------------------------------------------------------------
# Fallback kernel 2 (large shapes): fused fc1(+bias+ReLU) and fc2(+bias),
# fc1 reduction dim tiled over the grid with an f32 VMEM accumulator.
# ----------------------------------------------------------------------------
def _fc_fused_kernel(x_ref, w1_ref, b1_ref, w2_ref, b2_ref, o_ref, acc_ref):
    kk = pl.program_id(0)

    @pl.when(kk == 0)
    def _():
        acc_ref[...] = jnp.zeros_like(acc_ref)

    acc_ref[...] += jnp.dot(x_ref[...], w1_ref[...],
                            preferred_element_type=jnp.float32)

    @pl.when(kk == pl.num_programs(0) - 1)
    def _():
        h = jnp.maximum(acc_ref[...] + b1_ref[...], 0.0)
        o = jnp.dot(h.astype(w2_ref.dtype), w2_ref[...],
                    preferred_element_type=jnp.float32) + b2_ref[...]
        o_ref[...] = o.astype(o_ref.dtype)


def fc_fused(flat, w1, b1, w2, b2, *, vmem_limit):
    B, D1 = flat.shape
    _, H = w1.shape
    _, NCp = w2.shape
    el = flat.dtype.itemsize
    budget = max(vmem_limit // 2, 4 << 20)
    tk = 2048
    while tk > 256 and 2 * tk * (B + H) * el + 2 * H * NCp * el > budget:
        tk //= 2
    D1p = _round_up(D1, tk)
    if D1p != D1:   # zero padding contributes nothing to the accumulation
        flat = jnp.pad(flat, ((0, 0), (0, D1p - D1)))
        w1 = jnp.pad(w1, ((0, D1p - D1), (0, 0)))
    grid = (D1p // tk,)
    cost = pl.CostEstimate(
        flops=2 * B * D1p * H + 2 * B * H * NCp, transcendentals=0,
        bytes_accessed=el * (B * D1p + D1p * H + H * NCp) + 4 * (H + NCp + B * NCp))
    # NOTE: if xprof shows exposed DMA on the w1 stream, raise the buffer depth
    # with pipeline_mode=pl.Buffered(3) on the w1 BlockSpec instead of shrinking tk.
    return pl.pallas_call(
        _fc_fused_kernel,
        out_shape=jax.ShapeDtypeStruct((B, NCp), jnp.float32),
        grid_spec=pltpu.PrefetchScalarGridSpec(
            num_scalar_prefetch=0,
            grid=grid,
            in_specs=[
                pl.BlockSpec((B, tk), lambda kk: (0, kk)),
                pl.BlockSpec((tk, H), lambda kk: (kk, 0)),
                pl.BlockSpec((1, H), lambda kk: (0, 0)),
                pl.BlockSpec((H, NCp), lambda kk: (0, 0)),
                pl.BlockSpec((1, NCp), lambda kk: (0, 0)),
            ],
            out_specs=pl.BlockSpec((B, NCp), lambda kk: (0, 0)),
            scratch_shapes=[pltpu.VMEM((B, H), jnp.float32)],
        ),
        compiler_params=pltpu.CompilerParams(
            dimension_semantics=("arbitrary",),
            vmem_limit_bytes=int(vmem_limit)),
        cost_estimate=cost,
    )(flat, w1, b1, w2, b2)


# ----------------------------------------------------------------------------
# im2col (indexing-only glue; fused by XLA under jit)
# ----------------------------------------------------------------------------
def im2col(x, k, stride, pad):
    """x:(B,C,H,W) -> (B, Ho*Wo, C*k*k) with (c, kh, kw) feature ordering."""
    B, C, H, W = x.shape
    Ho = (H + 2 * pad - (k - 1) - 1) // stride + 1
    Wo = (W + 2 * pad - (k - 1) - 1) // stride + 1
    xp = jnp.pad(x, ((0, 0), (0, 0), (pad, pad), (pad, pad)))
    patches = []
    for kh in range(k):
        for kw in range(k):
            patches.append(
                xp[:, :, kh:kh + stride * Ho:stride, kw:kw + stride * Wo:stride])
    p = jnp.stack(patches, axis=2)                        # (B, C, k*k, Ho, Wo)
    p = jnp.transpose(p, (0, 3, 4, 1, 2)).reshape(B, Ho * Wo, C * k * k)
    return p, Ho, Wo


# ----------------------------------------------------------------------------
# Parameter prep: all transposes / permutations / dtype casts / padding ONCE.
# ----------------------------------------------------------------------------
def prepare_params(params, Ho, Wo, *, compute_dtype=jnp.bfloat16):
    w_conv, b_conv, w_fc1, b_fc1, w_fc2, b_fc2 = params
    Cout, Cin, kh, kw = w_conv.shape
    hidden = w_fc1.shape[0]
    n_class = w_fc2.shape[0]
    P = Ho * Wo
    assert w_fc1.shape[1] == Cout * P

    # Conv weight: (Cout, Cin, k, k) -> (Cin*k*k, Cout), bf16.
    wc = jnp.transpose(w_conv.reshape(Cout, Cin * kh * kw)).astype(compute_dtype)

    # fc1 weight: permute the input dim from PyTorch's channel-major flatten
    # (c*P + p) to conv-GEMM row-major (p, c) and keep it 3D as (P, C, H).
    w1 = w_fc1.reshape(hidden, Cout, P)
    w1 = jnp.transpose(w1, (2, 1, 0)).astype(compute_dtype)   # (P, Cout, hidden)

    # fc2: transpose + zero-pad output classes to a full 128-lane slab.
    ncp = _round_up(max(n_class, 1), 128)
    w2 = jnp.pad(jnp.transpose(w_fc2), ((0, 0), (0, ncp - n_class)))
    w2 = w2.astype(compute_dtype)                              # (hidden, ncp)
    b2 = jnp.pad(b_fc2, (0, ncp - n_class)).reshape(1, ncp).astype(jnp.float32)

    return (wc, b_conv.reshape(1, Cout).astype(jnp.float32),
            w1, b_fc1.reshape(1, hidden).astype(jnp.float32),
            w2, b2)


# ----------------------------------------------------------------------------
# Forward
# ----------------------------------------------------------------------------
@functools.partial(jax.jit, static_argnames=("k", "stride", "pad", "n_class"))
def mynet_forward(x, prepped, *, k=3, stride=2, pad=1, n_class=10):
    wc, bc, w1, b1, w2, b2 = prepped
    B = x.shape[0]
    patches, Ho, Wo = im2col(x, k, stride, pad)            # (B, P, K) f32
    patches = patches.astype(wc.dtype)                     # bf16 stream
    P = Ho * Wo
    K = patches.shape[-1]
    C = wc.shape[1]
    H = w1.shape[2]
    NCp = w2.shape[1]

    cap = _vmem_capacity_bytes()
    vmem_limit = int(min(3 * cap // 4, 100 << 20))         # v7x-safe (64 MiB part)

    fused_bytes = 2 * (_padded_vmem_bytes((P, B, K), wc.dtype)
                       + _padded_vmem_bytes((K, C), wc.dtype)
                       + _padded_vmem_bytes((P, C, H), w1.dtype)
                       + _padded_vmem_bytes((H, NCp), w2.dtype)
                       + _padded_vmem_bytes((B, NCp), jnp.float32)) + (1 << 20)
    use_fused = (fused_bytes <= vmem_limit // 2) and (P <= 1024)

    if use_fused:
        # Single kernel; conv intermediate never leaves VMEM.
        patches_pbk = jnp.transpose(patches, (1, 0, 2))    # (P, B, K)
        logits = mynet_fused_small(patches_pbk, wc, bc, w1, b1, w2, b2,
                                   vmem_limit=vmem_limit)
    else:
        # Streaming two-call path for large shapes.
        patches_2d = patches.reshape(B * P, K)
        conv = conv_gemm_relu(patches_2d, wc, bc, vmem_limit=vmem_limit)  # (B*P, C) bf16
        flat = conv.reshape(B, P * C)                       # contiguous bitcast
        w1_2d = w1.reshape(P * C, H)                        # free (leading-dim merge)
        logits = fc_fused(flat, w1_2d, b1, w2, b2, vmem_limit=vmem_limit)

    return logits[:, :n_class]


# Pure-JAX f32 reference (PyTorch semantics) for verification.
def mynet_forward_ref(x, params, *, k=3, stride=2, pad=1):
    w_conv, b_conv, w_fc1, b_fc1, w_fc2, b_fc2 = params
    conv = jax.lax.conv_general_dilated(
        x, w_conv, window_strides=(stride, stride),
        padding=((pad, pad), (pad, pad)),
        dimension_numbers=("NCHW", "OIHW", "NCHW"),
    ) + b_conv.reshape(1, -1, 1, 1)
    conv = jnp.maximum(conv, 0.0)
    flat = conv.reshape(x.shape[0], -1)                     # channel-major flatten
    h = jnp.maximum(flat @ w_fc1.T + b_fc1, 0.0)
    return h @ w_fc2.T + b_fc2


if __name__ == "__main__":
    # Small shapes consistent with the module's constructor:
    #   input_channel=4, input_size=16, conv_widths=[2] (scale_width -> 32 ch),
    #   kernel_sizes=[3], strides=[2], paddings=[1], linear_sizes=[32], n_class=10
    B, Cin, S = 2, 4, 16
    Cout = 2 * 16
    k, stride, pad = 3, 2, 1
    Ho = (S + 2 * pad - (k - 1) - 1) // stride + 1          # 8
    hidden = 32
    n_class = 10

    key = jax.random.PRNGKey(0)
    keys = jax.random.split(key, 7)
    x = jax.random.normal(keys[0], (B, Cin, S, S), dtype=jnp.float32)

    w_conv = 0.1 * jax.random.normal(keys[1], (Cout, Cin, k, k), jnp.float32)
    b_conv = 0.1 * jax.random.normal(keys[2], (Cout,), jnp.float32)
    fc1_in = Cout * Ho * Ho
    w_fc1 = 0.05 * jax.random.normal(keys[3], (hidden, fc1_in), jnp.float32)
    b_fc1 = 0.05 * jax.random.normal(keys[4], (hidden,), jnp.float32)
    w_fc2 = 0.05 * jax.random.normal(keys[5], (n_class, hidden), jnp.float32)
    b_fc2 = 0.05 * jax.random.normal(keys[6], (n_class,), jnp.float32)
    params = (w_conv, b_conv, w_fc1, b_fc1, w_fc2, b_fc2)

    prepped = prepare_params(params, Ho, Ho)                # one-time layout prep

    out = mynet_forward(x, prepped, k=k, stride=stride, pad=pad, n_class=n_class)
    out = jax.block_until_ready(out)

    ref = jax.block_until_ready(
        mynet_forward_ref(x, params, k=k, stride=stride, pad=pad))
    assert out.shape == (B, n_class), out.shape
    # bf16 streaming operands -> loosened tolerance vs the f32 reference.
    assert jnp.allclose(out, ref, rtol=5e-2, atol=5e-2), (
        "mismatch vs reference; max abs diff = "
        + str(float(jnp.max(jnp.abs(out - ref)))))

    print("KERNEL_OK")
</pallas_src>

<mosaic_0001>
module attributes {stable_mosaic.version = 11 : i64} {
  func.func @_fused_small_kernel(%arg0: i32, %arg1: memref<64x2x36xbf16, #tpu.memory_space<vmem>>, %arg2: memref<36x32xbf16, #tpu.memory_space<vmem>>, %arg3: memref<1x32xf32, #tpu.memory_space<vmem>>, %arg4: memref<64x32x32xbf16, #tpu.memory_space<vmem>>, %arg5: memref<1x32xf32, #tpu.memory_space<vmem>>, %arg6: memref<32x128xbf16, #tpu.memory_space<vmem>>, %arg7: memref<1x128xf32, #tpu.memory_space<vmem>>, %arg8: memref<2x128xf32, #tpu.memory_space<vmem>>) attributes {dimension_semantics = [#tpu.dimension_semantics<arbitrary>], iteration_bounds = array<i64: 1>, scalar_prefetch = 0 : i64, scratch_operands = 0 : i64, tpu.core_type = #tpu.core_type<tc>, window_params = [{pipeline_mode = #tpu.pipeline_mode<synchronous>, transform_indices = @transform_0, window_bounds = array<i64: 64, 2, 36>}, {pipeline_mode = #tpu.pipeline_mode<synchronous>, transform_indices = @transform_1, window_bounds = array<i64: 36, 32>}, {pipeline_mode = #tpu.pipeline_mode<synchronous>, transform_indices = @transform_2, window_bounds = array<i64: 1, 32>}, {pipeline_mode = #tpu.pipeline_mode<synchronous>, transform_indices = @transform_3, window_bounds = array<i64: 64, 32, 32>}, {pipeline_mode = #tpu.pipeline_mode<synchronous>, transform_indices = @transform_4, window_bounds = array<i64: 1, 32>}, {pipeline_mode = #tpu.pipeline_mode<synchronous>, transform_indices = @transform_5, window_bounds = array<i64: 32, 128>}, {pipeline_mode = #tpu.pipeline_mode<synchronous>, transform_indices = @transform_6, window_bounds = array<i64: 1, 128>}, {pipeline_mode = #tpu.pipeline_mode<synchronous>, transform_indices = @transform_7, window_bounds = array<i64: 2, 128>}]} {
    %c0 = arith.constant 0 : index
    %c0_0 = arith.constant 0 : index
    %0 = vector.load %arg2[%c0, %c0_0] : memref<36x32xbf16, #tpu.memory_space<vmem>>, vector<36x32xbf16>
    %c0_1 = arith.constant 0 : index
    %c0_2 = arith.constant 0 : index
    %1 = vector.load %arg3[%c0_1, %c0_2] : memref<1x32xf32, #tpu.memory_space<vmem>>, vector<1x32xf32>
    %cst = arith.constant 0.000000e+00 : f32
    %2 = vector.broadcast %cst : f32 to vector<2x32xf32>
    %c0_i32 = arith.constant 0 : i32
    %3 = arith.index_cast %c0_i32 : i32 to index
    %c0_3 = arith.constant 0 : index
    %c0_4 = arith.constant 0 : index
    %4 = vector.load %arg1[%3, %c0_3, %c0_4] : memref<64x2x36xbf16, #tpu.memory_space<vmem>>, vector<1x2x36xbf16>
    %5 = vector.shape_cast %4 : vector<1x2x36xbf16> to vector<2x36xbf16>
    %cst_5 = arith.constant dense<0.000000e+00> : vector<2x32xf32>
    %6 = tpu.matmul %5, %0, %cst_5 {dimension_numbers = #tpu.dot_dimension_numbers<[1], [0], [0], [1], [0, 0, 1, 1], [], []>} : vector<2x36xbf16>, vector<36x32xbf16>, vector<2x32xf32> -> vector<2x32xf32>
    %7 = vector.broadcast %1 : vector<1x32xf32> to vector<2x32xf32>
    %8 = arith.addf %6, %7 : vector<2x32xf32>
    %cst_6 = arith.constant 0.000000e+00 : f32
    %9 = vector.broadcast %cst_6 : f32 to vector<2x32xf32>
    %10 = arith.maximumf %8, %9 : vector<2x32xf32>
    %11 = arith.truncf %10 : vector<2x32xf32> to vector<2x32xbf16>
    %12 = arith.index_cast %c0_i32 : i32 to index
    %c0_7 = arith.constant 0 : index
    %c0_8 = arith.constant 0 : index
    %13 = vector.load %arg4[%12, %c0_7, %c0_8] : memref<64x32x32xbf16, #tpu.memory_space<vmem>>, vector<1x32x32xbf16>
    %14 = vector.shape_cast %13 : vector<1x32x32xbf16> to vector<32x32xbf16>
    %cst_9 = arith.constant dense<0.000000e+00> : vector<2x32xf32>
    %15 = tpu.matmul %11, %14, %cst_9 {dimension_numbers = #tpu.dot_dimension_numbers<[1], [0], [0], [1], [0, 0, 1, 1], [], []>} : vector<2x32xbf16>, vector<32x32xbf16>, vector<2x32xf32> -> vector<2x32xf32>
    %16 = arith.addf %2, %15 : vector<2x32xf32>
    %c1_i32 = arith.constant 1 : i32
    %17 = arith.index_cast %c1_i32 : i32 to index
    %c0_10 = arith.constant 0 : index
    %c0_11 = arith.constant 0 : index
    %18 = vector.load %arg1[%17, %c0_10, %c0_11] : memref<64x2x36xbf16, #tpu.memory_space<vmem>>, vector<1x2x36xbf16>
    %19 = vector.shape_cast %18 : vector<1x2x36xbf16> to vector<2x36xbf16>
    %cst_12 = arith.constant dense<0.000000e+00> : vector<2x32xf32>
    %20 = tpu.matmul %19, %0, %cst_12 {dimension_numbers = #tpu.dot_dimension_numbers<[1], [0], [0], [1], [0, 0, 1, 1], [], []>} : vector<2x36xbf16>, vector<36x32xbf16>, vector<2x32xf32> -> vector<2x32xf32>
    %21 = vector.broadcast %1 : vector<1x32xf32> to vector<2x32xf32>
    %22 = arith.addf %20, %21 : vector<2x32xf32>
    %cst_13 = arith.constant 0.000000e+00 : f32
    %23 = vector.broadcast %cst_13 : f32 to vector<2x32xf32>
    %24 = arith.maximumf %22, %23 : vector<2x32xf32>
    %25 = arith.truncf %24 : vector<2x32xf32> to vector<2x32xbf16>
    %26 = arith.index_cast %c1_i32 : i32 to index
    %c0_14 = arith.constant 0 : index
    %c0_15 = arith.constant 0 : index
    %27 = vector.load %arg4[%26, %c0_14, %c0_15] : memref<64x32x32xbf16, #tpu.memory_space<vmem>>, vector<1x32x32xbf16>
    %28 = vector.shape_cast %27 : vector<1x32x32xbf16> to vector<32x32xbf16>
    %cst_16 = arith.constant dense<0.000000e+00> : vector<2x32xf32>
    %29 = tpu.matmul %25, %28, %cst_16 {dimension_numbers = #tpu.dot_dimension_numbers<[1], [0], [0], [1], [0, 0, 1, 1], [], []>} : vector<2x32xbf16>, vector<32x32xbf16>, vector<2x32xf32> -> vector<2x32xf32>
    %30 = arith.addf %16, %29 : vector<2x32xf32>
    %c2_i32 = arith.constant 2 : i32
    %31 = arith.index_cast %c2_i32 : i32 to index
    %c0_17 = arith.constant 0 : index
    %c0_18 = arith.constant 0 : index
    %32 = vector.load %arg1[%31, %c0_17, %c0_18] : memref<64x2x36xbf16, #tpu.memory_space<vmem>>, vector<1x2x36xbf16>
    %33 = vector.shape_cast %32 : vector<1x2x36xbf16> to vector<2x36xbf16>
    %cst_19 = arith.constant dense<0.000000e+00> : vector<2x32xf32>
    %34 = tpu.matmul %33, %0, %cst_19 {dimension_numbers = #tpu.dot_dimension_numbers<[1], [0], [0], [1], [0, 0, 1, 1], [], []>} : vector<2x36xbf16>, vector<36x32xbf16>, vector<2x32xf32> -> vector<2x32xf32>
    %35 = vector.broadcast %1 : vector<1x32xf32> to vector<2x32xf32>
    %36 = arith.addf %34, %35 : vector<2x32xf32>
    %cst_20 = arith.constant 0.000000e+00 : f32
    %37 = vector.broadcast %cst_20 : f32 to vector<2x32xf32>
    %38 = arith.maximumf %36, %37 : vector<2x32xf32>
    %39 = arith.truncf %38 : vector<2x32xf32> to vector<2x32xbf16>
    %40 = arith.index_cast %c2_i32 : i32 to index
    %c0_21 = arith.constant 0 : index
    %c0_22 = arith.constant 0 : index
    %41 = vector.load %arg4[%40, %c0_21, %c0_22] : memref<64x32x32xbf16, #tpu.memory_space<vmem>>, vector<1x32x32xbf16>
    %42 = vector.shape_cast %41 : vector<1x32x32xbf16> to vector<32x32xbf16>
    %cst_23 = arith.constant dense<0.000000e+00> : vector<2x32xf32>
    %43 = tpu.matmul %39, %42, %cst_23 {dimension_numbers = #tpu.dot_dimension_numbers<[1], [0], [0], [1], [0, 0, 1, 1], [], []>} : vector<2x32xbf16>, vector<32x32xbf16>, vector<2x32xf32> -> vector<2x32xf32>
    %44 = arith.addf %30, %43 : vector<2x32xf32>
    %c3_i32 = arith.constant 3 : i32
    %45 = arith.index_cast %c3_i32 : i32 to index
    %c0_24 = arith.constant 0 : index
    %c0_25 = arith.constant 0 : index
    %46 = vector.load %arg1[%45, %c0_24, %c0_25] : memref<64x2x36xbf16, #tpu.memory_space<vmem>>, vector<1x2x36xbf16>
    %47 = vector.shape_cast %46 : vector<1x2x36xbf16> to vector<2x36xbf16>
    %cst_26 = arith.constant dense<0.000000e+00> : vector<2x32xf32>
    %48 = tpu.matmul %47, %0, %cst_26 {dimension_numbers = #tpu.dot_dimension_numbers<[1], [0], [0], [1], [0, 0, 1, 1], [], []>} : vector<2x36xbf16>, vector<36x32xbf16>, vector<2x32xf32> -> vector<2x32xf32>
    %49 = vector.broadcast %1 : vector<1x32xf32> to vector<2x32xf32>
    %50 = arith.addf %48, %49 : vector<2x32xf32>
    %cst_27 = arith.constant 0.000000e+00 : f32
    %51 = vector.broadcast %cst_27 : f32 to vector<2x32xf32>
    %52 = arith.maximumf %50, %51 : vector<2x32xf32>
    %53 = arith.truncf %52 : vector<2x32xf32> to vector<2x32xbf16>
    %54 = arith.index_cast %c3_i32 : i32 to index
    %c0_28 = arith.constant 0 : index
    %c0_29 = arith.constant 0 : index
    %55 = vector.load %arg4[%54, %c0_28, %c0_29] : memref<64x32x32xbf16, #tpu.memory_space<vmem>>, vector<1x32x32xbf16>
    %56 = vector.shape_cast %55 : vector<1x32x32xbf16> to vector<32x32xbf16>
    %cst_30 = arith.constant dense<0.000000e+00> : vector<2x32xf32>
    %57 = tpu.matmul %53, %56, %cst_30 {dimension_numbers = #tpu.dot_dimension_numbers<[1], [0], [0], [1], [0, 0, 1, 1], [], []>} : vector<2x32xbf16>, vector<32x32xbf16>, vector<2x32xf32> -> vector<2x32xf32>
    %58 = arith.addf %44, %57 : vector<2x32xf32>
    %c4_i32 = arith.constant 4 : i32
    %59 = arith.index_cast %c4_i32 : i32 to index
    %c0_31 = arith.constant 0 : index
    %c0_32 = arith.constant 0 : index
    %60 = vector.load %arg1[%59, %c0_31, %c0_32] : memref<64x2x36xbf16, #tpu.memory_space<vmem>>, vector<1x2x36xbf16>
    %61 = vector.shape_cast %60 : vector<1x2x36xbf16> to vector<2x36xbf16>
    %cst_33 = arith.constant dense<0.000000e+00> : vector<2x32xf32>
    %62 = tpu.matmul %61, %0, %cst_33 {dimension_numbers = #tpu.dot_dimension_numbers<[1], [0], [0], [1], [0, 0, 1, 1], [], []>} : vector<2x36xbf16>, vector<36x32xbf16>, vector<2x32xf32> -> vector<2x32xf32>
    %63 = vector.broadcast %1 : vector<1x32xf32> to vector<2x32xf32>
    %64 = arith.addf %62, %63 : vector<2x32xf32>
    %cst_34 = arith.constant 0.000000e+00 : f32
    %65 = vector.broadcast %cst_34 : f32 to vector<2x32xf32>
    %66 = arith.maximumf %64, %65 : vector<2x32xf32>
    %67 = arith.truncf %66 : vector<2x32xf32> to vector<2x32xbf16>
    %68 = arith.index_cast %c4_i32 : i32 to index
    %c0_35 = arith.constant 0 : index
    %c0_36 = arith.constant 0 : index
    %69 = vector.load %arg4[%68, %c0_35, %c0_36] : memref<64x32x32xbf16, #tpu.memory_space<vmem>>, vector<1x32x32xbf16>
    %70 = vector.shape_cast %69 : vector<1x32x32xbf16> to vector<32x32xbf16>
    %cst_37 = arith.constant dense<0.000000e+00> : vector<2x32xf32>
    %71 = tpu.matmul %67, %70, %cst_37 {dimension_numbers = #tpu.dot_dimension_numbers<[1], [0], [0], [1], [0, 0, 1, 1], [], []>} : vector<2x32xbf16>, vector<32x32xbf16>, vector<2x32xf32> -> vector<2x32xf32>
    %72 = arith.addf %58, %71 : vector<2x32xf32>
    %c5_i32 = arith.constant 5 : i32
    %73 = arith.index_cast %c5_i32 : i32 to index
    %c0_38 = arith.constant 0 : index
    %c0_39 = arith.constant 0 : index
    %74 = vector.load %arg1[%73, %c0_38, %c0_39] : memref<64x2x36xbf16, #tpu.memory_space<vmem>>, vector<1x2x36xbf16>
    %75 = vector.shape_cast %74 : vector<1x2x36xbf16> to vector<2x36xbf16>
    %cst_40 = arith.constant dense<0.000000e+00> : vector<2x32xf32>
    %76 = tpu.matmul %75, %0, %cst_40 {dimension_numbers = #tpu.dot_dimension_numbers<[1], [0], [0], [1], [0, 0, 1, 1], [], []>} : vector<2x36xbf16>, vector<36x32xbf16>, vector<2x32xf32> -> vector<2x32xf32>
    %77 = vector.broadcast %1 : vector<1x32xf32> to vector<2x32xf32>
    %78 = arith.addf %76, %77 : vector<2x32xf32>
    %cst_41 = arith.constant 0.000000e+00 : f32
    %79 = vector.broadcast %cst_41 : f32 to vector<2x32xf32>
    %80 = arith.maximumf %78, %79 : vector<2x32xf32>
    %81 = arith.truncf %80 : vector<2x32xf32> to vector<2x32xbf16>
    %82 = arith.index_cast %c5_i32 : i32 to index
    %c0_42 = arith.constant 0 : index
    %c0_43 = arith.constant 0 : index
    %83 = vector.load %arg4[%82, %c0_42, %c0_43] : memref<64x32x32xbf16, #tpu.memory_space<vmem>>, vector<1x32x32xbf16>
    %84 = vector.shape_cast %83 : vector<1x32x32xbf16> to vector<32x32xbf16>
    %cst_44 = arith.constant dense<0.000000e+00> : vector<2x32xf32>
    %85 = tpu.matmul %81, %84, %cst_44 {dimension_numbers = #tpu.dot_dimension_numbers<[1], [0], [0], [1], [0, 0, 1, 1], [], []>} : vector<2x32xbf16>, vector<32x32xbf16>, vector<2x32xf32> -> vector<2x32xf32>
    %86 = arith.addf %72, %85 : vector<2x32xf32>
    %c6_i32 = arith.constant 6 : i32
    %87 = arith.index_cast %c6_i32 : i32 to index
    %c0_45 = arith.constant 0 : index
    %c0_46 = arith.constant 0 : index
    %88 = vector.load %arg1[%87, %c0_45, %c0_46] : memref<64x2x36xbf16, #tpu.memory_space<vmem>>, vector<1x2x36xbf16>
    %89 = vector.shape_cast %88 : vector<1x2x36xbf16> to vector<2x36xbf16>
    %cst_47 = arith.constant dense<0.000000e+00> : vector<2x32xf32>
    %90 = tpu.matmul %89, %0, %cst_47 {dimension_numbers = #tpu.dot_dimension_numbers<[1], [0], [0], [1], [0, 0, 1, 1], [], []>} : vector<2x36xbf16>, vector<36x32xbf16>, vector<2x32xf32> -> vector<2x32xf32>
    %91 = vector.broadcast %1 : vector<1x32xf32> to vector<2x32xf32>
    %92 = arith.addf %90, %91 : vector<2x32xf32>
    %cst_48 = arith.constant 0.000000e+00 : f32
    %93 = vector.broadcast %cst_48 : f32 to vector<2x32xf32>
    %94 = arith.maximumf %92, %93 : vector<2x32xf32>
    %95 = arith.truncf %94 : vector<2x32xf32> to vector<2x32xbf16>
    %96 = arith.index_cast %c6_i32 : i32 to index
    %c0_49 = arith.constant 0 : index
    %c0_50 = arith.constant 0 : index
    %97 = vector.load %arg4[%96, %c0_49, %c0_50] : memref<64x32x32xbf16, #tpu.memory_space<vmem>>, vector<1x32x32xbf16>
    %98 = vector.shape_cast %97 : vector<1x32x32xbf16> to vector<32x32xbf16>
    %cst_51 = arith.constant dense<0.000000e+00> : vector<2x32xf32>
    %99 = tpu.matmul %95, %98, %cst_51 {dimension_numbers = #tpu.dot_dimension_numbers<[1], [0], [0], [1], [0, 0, 1, 1], [], []>} : vector<2x32xbf16>, vector<32x32xbf16>, vector<2x32xf32> -> vector<2x32xf32>
    %100 = arith.addf %86, %99 : vector<2x32xf32>
    %c7_i32 = arith.constant 7 : i32
    %101 = arith.index_cast %c7_i32 : i32 to index
    %c0_52 = arith.constant 0 : index
    %c0_53 = arith.constant 0 : index
    %102 = vector.load %arg1[%101, %c0_52, %c0_53] : memref<64x2x36xbf16, #tpu.memory_space<vmem>>, vector<1x2x36xbf16>
    %103 = vector.shape_cast %102 : vector<1x2x36xbf16> to vector<2x36xbf16>
    %cst_54 = arith.constant dense<0.000000e+00> : vector<2x32xf32>
    %104 = tpu.matmul %103, %0, %cst_54 {dimension_numbers = #tpu.dot_dimension_numbers<[1], [0], [0], [1], [0, 0, 1, 1], [], []>} : vector<2x36xbf16>, vector<36x32xbf16>, vector<2x32xf32> -> vector<2x32xf32>
    %105 = vector.broadcast %1 : vector<1x32xf32> to vector<2x32xf32>
    %106 = arith.addf %104, %105 : vector<2x32xf32>
    %cst_55 = arith.constant 0.000000e+00 : f32
    %107 = vector.broadcast %cst_55 : f32 to vector<2x32xf32>
    %108 = arith.maximumf %106, %107 : vector<2x32xf32>
    %109 = arith.truncf %108 : vector<2x32xf32> to vector<2x32xbf16>
    %110 = arith.index_cast %c7_i32 : i32 to index
    %c0_56 = arith.constant 0 : index
    %c0_57 = arith.constant 0 : index
    %111 = vector.load %arg4[%110, %c0_56, %c0_57] : memref<64x32x32xbf16, #tpu.memory_space<vmem>>, vector<1x32x32xbf16>
    %112 = vector.shape_cast %111 : vector<1x32x32xbf16> to vector<32x32xbf16>
    %cst_58 = arith.constant dense<0.000000e+00> : vector<2x32xf32>
    %113 = tpu.matmul %109, %112, %cst_58 {dimension_numbers = #tpu.dot_dimension_numbers<[1], [0], [0], [1], [0, 0, 1, 1], [], []>} : vector<2x32xbf16>, vector<32x32xbf16>, vector<2x32xf32> -> vector<2x32xf32>
    %114 = arith.addf %100, %113 : vector<2x32xf32>
    %c8_i32 = arith.constant 8 : i32
    %115 = arith.index_cast %c8_i32 : i32 to index
    %c0_59 = arith.constant 0 : index
    %c0_60 = arith.constant 0 : index
    %116 = vector.load %arg1[%115, %c0_59, %c0_60] : memref<64x2x36xbf16, #tpu.memory_space<vmem>>, vector<1x2x36xbf16>
    %117 = vector.shape_cast %116 : vector<1x2x36xbf16> to vector<2x36xbf16>
    %cst_61 = arith.constant dense<0.000000e+00> : vector<2x32xf32>
    %118 = tpu.matmul %117, %0, %cst_61 {dimension_numbers = #tpu.dot_dimension_numbers<[1], [0], [0], [1], [0, 0, 1, 1], [], []>} : vector<2x36xbf16>, vector<36x32xbf16>, vector<2x32xf32> -> vector<2x32xf32>
    %119 = vector.broadcast %1 : vector<1x32xf32> to vector<2x32xf32>
    %120 = arith.addf %118, %119 : vector<2x32xf32>
    %cst_62 = arith.constant 0.000000e+00 : f32
    %121 = vector.broadcast %cst_62 : f32 to vector<2x32xf32>
    %122 = arith.maximumf %120, %121 : vector<2x32xf32>
    %123 = arith.truncf %122 : vector<2x32xf32> to vector<2x32xbf16>
    %124 = arith.index_cast %c8_i32 : i32 to index
    %c0_63 = arith.constant 0 : index
    %c0_64 = arith.constant 0 : index
    %125 = vector.load %arg4[%124, %c0_63, %c0_64] : memref<64x32x32xbf16, #tpu.memory_space<vmem>>, vector<1x32x32xbf16>
    %126 = vector.shape_cast %125 : vector<1x32x32xbf16> to vector<32x32xbf16>
    %cst_65 = arith.constant dense<0.000000e+00> : vector<2x32xf32>
    %127 = tpu.matmul %123, %126, %cst_65 {dimension_numbers = #tpu.dot_dimension_numbers<[1], [0], [0], [1], [0, 0, 1, 1], [], []>} : vector<2x32xbf16>, vector<32x32xbf16>, vector<2x32xf32> -> vector<2x32xf32>
    %128 = arith.addf %114, %127 : vector<2x32xf32>
    %c9_i32 = arith.constant 9 : i32
    %129 = arith.index_cast %c9_i32 : i32 to index
    %c0_66 = arith.constant 0 : index
    %c0_67 = arith.constant 0 : index
    %130 = vector.load %arg1[%129, %c0_66, %c0_67] : memref<64x2x36xbf16, #tpu.memory_space<vmem>>, vector<1x2x36xbf16>
    %131 = vector.shape_cast %130 : vector<1x2x36xbf16> to vector<2x36xbf16>
    %cst_68 = arith.constant dense<0.000000e+00> : vector<2x32xf32>
    %132 = tpu.matmul %131, %0, %cst_68 {dimension_numbers = #tpu.dot_dimension_numbers<[1], [0], [0], [1], [0, 0, 1, 1], [], []>} : vector<2x36xbf16>, vector<36x32xbf16>, vector<2x32xf32> -> vector<2x32xf32>
    %133 = vector.broadcast %1 : vector<1x32xf32> to vector<2x32xf32>
    %134 = arith.addf %132, %133 : vector<2x32xf32>
    %cst_69 = arith.constant 0.000000e+00 : f32
    %135 = vector.broadcast %cst_69 : f32 to vector<2x32xf32>
    %136 = arith.maximumf %134, %135 : vector<2x32xf32>
    %137 = arith.truncf %136 : vector<2x32xf32> to vector<2x32xbf16>
    %138 = arith.index_cast %c9_i32 : i32 to index
    %c0_70 = arith.constant 0 : index
    %c0_71 = arith.constant 0 : index
    %139 = vector.load %arg4[%138, %c0_70, %c0_71] : memref<64x32x32xbf16, #tpu.memory_space<vmem>>, vector<1x32x32xbf16>
    %140 = vector.shape_cast %139 : vector<1x32x32xbf16> to vector<32x32xbf16>
    %cst_72 = arith.constant dense<0.000000e+00> : vector<2x32xf32>
    %141 = tpu.matmul %137, %140, %cst_72 {dimension_numbers = #tpu.dot_dimension_numbers<[1], [0], [0], [1], [0, 0, 1, 1], [], []>} : vector<2x32xbf16>, vector<32x32xbf16>, vector<2x32xf32> -> vector<2x32xf32>
    %142 = arith.addf %128, %141 : vector<2x32xf32>
    %c10_i32 = arith.constant 10 : i32
    %143 = arith.index_cast %c10_i32 : i32 to index
    %c0_73 = arith.constant 0 : index
    %c0_74 = arith.constant 0 : index
    %144 = vector.load %arg1[%143, %c0_73, %c0_74] : memref<64x2x36xbf16, #tpu.memory_space<vmem>>, vector<1x2x36xbf16>
    %145 = vector.shape_cast %144 : vector<1x2x36xbf16> to vector<2x36xbf16>
    %cst_75 = arith.constant dense<0.000000e+00> : vector<2x32xf32>
    %146 = tpu.matmul %145, %0, %cst_75 {dimension_numbers = #tpu.dot_dimension_numbers<[1], [0], [0], [1], [0, 0, 1, 1], [], []>} : vector<2x36xbf16>, vector<36x32xbf16>, vector<2x32xf32> -> vector<2x32xf32>
    %147 = vector.broadcast %1 : vector<1x32xf32> to vector<2x32xf32>
    %148 = arith.addf %146, %147 : vector<2x32xf32>
    %cst_76 = arith.constant 0.000000e+00 : f32
    %149 = vector.broadcast %cst_76 : f32 to vector<2x32xf32>
    %150 = arith.maximumf %148, %149 : vector<2x32xf32>
    %151 = arith.truncf %150 : vector<2x32xf32> to vector<2x32xbf16>
    %152 = arith.index_cast %c10_i32 : i32 to index
    %c0_77 = arith.constant 0 : index
    %c0_78 = arith.constant 0 : index
    %153 = vector.load %arg4[%152, %c0_77, %c0_78] : memref<64x32x32xbf16, #tpu.memory_space<vmem>>, vector<1x32x32xbf16>
    %154 = vector.shape_cast %153 : vector<1x32x32xbf16> to vector<32x32xbf16>
    %cst_79 = arith.constant dense<0.000000e+00> : vector<2x32xf32>
    %155 = tpu.matmul %151, %154, %cst_79 {dimension_numbers = #tpu.dot_dimension_numbers<[1], [0], [0], [1], [0, 0, 1, 1], [], []>} : vector<2x32xbf16>, vector<32x32xbf16>, vector<2x32xf32> -> vector<2x32xf32>
    %156 = arith.addf %142, %155 : vector<2x32xf32>
    %c11_i32 = arith.constant 11 : i32
    %157 = arith.index_cast %c11_i32 : i32 to index
    %c0_80 = arith.constant 0 : index
    %c0_81 = arith.constant 0 : index
    %158 = vector.load %arg1[%157, %c0_80, %c0_81] : memref<64x2x36xbf16, #tpu.memory_space<vmem>>, vector<1x2x36xbf16>
    %159 = vector.shape_cast %158 : vector<1x2x36xbf16> to vector<2x36xbf16>
    %cst_82 = arith.constant dense<0.000000e+00> : vector<2x32xf32>
    %160 = tpu.matmul %159, %0, %cst_82 {dimension_numbers = #tpu.dot_dimension_numbers<[1], [0], [0], [1], [0, 0, 1, 1], [], []>} : vector<2x36xbf16>, vector<36x32xbf16>, vector<2x32xf32> -> vector<2x32xf32>
    %161 = vector.broadcast %1 : vector<1x32xf32> to vector<2x32xf32>
    %162 = arith.addf %160, %161 : vector<2x32xf32>
    %cst_83 = arith.constant 0.000000e+00 : f32
    %163 = vector.broadcast %cst_83 : f32 to vector<2x32xf32>
    %164 = arith.maximumf %162, %163 : vector<2x32xf32>
    %165 = arith.truncf %164 : vector<2x32xf32> to vector<2x32xbf16>
    %166 = arith.index_cast %c11_i32 : i32 to index
    %c0_84 = arith.constant 0 : index
    %c0_85 = arith.constant 0 : index
    %167 = vector.load %arg4[%166, %c0_84, %c0_85] : memref<64x32x32xbf16, #tpu.memory_space<vmem>>, vector<1x32x32xbf16>
    %168 = vector.shape_cast %167 : vector<1x32x32xbf16> to vector<32x32xbf16>
    %cst_86 = arith.constant dense<0.000000e+00> : vector<2x32xf32>
    %169 = tpu.matmul %165, %168, %cst_86 {dimension_numbers = #tpu.dot_dimension_numbers<[1], [0], [0], [1], [0, 0, 1, 1], [], []>} : vector<2x32xbf16>, vector<32x32xbf16>, vector<2x32xf32> -> vector<2x32xf32>
    %170 = arith.addf %156, %169 : vector<2x32xf32>
    %c12_i32 = arith.constant 12 : i32
    %171 = arith.index_cast %c12_i32 : i32 to index
    %c0_87 = arith.constant 0 : index
    %c0_88 = arith.constant 0 : index
    %172 = vector.load %arg1[%171, %c0_87, %c0_88] : memref<64x2x36xbf16, #tpu.memory_space<vmem>>, vector<1x2x36xbf16>
    %173 = vector.shape_cast %172 : vector<1x2x36xbf16> to vector<2x36xbf16>
    %cst_89 = arith.constant dense<0.000000e+00> : vector<2x32xf32>
    %174 = tpu.matmul %173, %0, %cst_89 {dimension_numbers = #tpu.dot_dimension_numbers<[1], [0], [0], [1], [0, 0, 1, 1], [], []>} : vector<2x36xbf16>, vector<36x32xbf16>, vector<2x32xf32> -> vector<2x32xf32>
    %175 = vector.broadcast %1 : vector<1x32xf32> to vector<2x32xf32>
    %176 = arith.addf %174, %175 : vector<2x32xf32>
    %cst_90 = arith.constant 0.000000e+00 : f32
    %177 = vector.broadcast %cst_90 : f32 to vector<2x32xf32>
    %178 = arith.maximumf %176, %177 : vector<2x32xf32>
    %179 = arith.truncf %178 : vector<2x32xf32> to vector<2x32xbf16>
    %180 = arith.index_cast %c12_i32 : i32 to index
    %c0_91 = arith.constant 0 : index
    %c0_92 = arith.constant 0 : index
    %181 = vector.load %arg4[%180, %c0_91, %c0_92] : memref<64x32x32xbf16, #tpu.memory_space<vmem>>, vector<1x32x32xbf16>
    %182 = vector.shape_cast %181 : vector<1x32x32xbf16> to vector<32x32xbf16>
    %cst_93 = arith.constant dense<0.000000e+00> : vector<2x32xf32>
    %183 = tpu.matmul %179, %182, %cst_93 {dimension_numbers = #tpu.dot_dimension_numbers<[1], [0], [0], [1], [0, 0, 1, 1], [], []>} : vector<2x32xbf16>, vector<32x32xbf16>, vector<2x32xf32> -> vector<2x32xf32>
    %184 = arith.addf %170, %183 : vector<2x32xf32>
    %c13_i32 = arith.constant 13 : i32
    %185 = arith.index_cast %c13_i32 : i32 to index
    %c0_94 = arith.constant 0 : index
    %c0_95 = arith.constant 0 : index
    %186 = vector.load %arg1[%185, %c0_94, %c0_95] : memref<64x2x36xbf16, #tpu.memory_space<vmem>>, vector<1x2x36xbf16>
    %187 = vector.shape_cast %186 : vector<1x2x36xbf16> to vector<2x36xbf16>
    %cst_96 = arith.constant dense<0.000000e+00> : vector<2x32xf32>
    %188 = tpu.matmul %187, %0, %cst_96 {dimension_numbers = #tpu.dot_dimension_numbers<[1], [0], [0], [1], [0, 0, 1, 1], [], []>} : vector<2x36xbf16>, vector<36x32xbf16>, vector<2x32xf32> -> vector<2x32xf32>
    %189 = vector.broadcast %1 : vector<1x32xf32> to vector<2x32xf32>
    %190 = arith.addf %188, %189 : vector<2x32xf32>
    %cst_97 = arith.constant 0.000000e+00 : f32
    %191 = vector.broadcast %cst_97 : f32 to vector<2x32xf32>
    %192 = arith.maximumf %190, %191 : vector<2x32xf32>
    %193 = arith.truncf %192 : vector<2x32xf32> to vector<2x32xbf16>
    %194 = arith.index_cast %c13_i32 : i32 to index
    %c0_98 = arith.constant 0 : index
    %c0_99 = arith.constant 0 : index
    %195 = vector.load %arg4[%194, %c0_98, %c0_99] : memref<64x32x32xbf16, #tpu.memory_space<vmem>>, vector<1x32x32xbf16>
    %196 = vector.shape_cast %195 : vector<1x32x32xbf16> to vector<32x32xbf16>
    %cst_100 = arith.constant dense<0.000000e+00> : vector<2x32xf32>
    %197 = tpu.matmul %193, %196, %cst_100 {dimension_numbers = #tpu.dot_dimension_numbers<[1], [0], [0], [1], [0, 0, 1, 1], [], []>} : vector<2x32xbf16>, vector<32x32xbf16>, vector<2x32xf32> -> vector<2x32xf32>
    %198 = arith.addf %184, %197 : vector<2x32xf32>
    %c14_i32 = arith.constant 14 : i32
    %199 = arith.index_cast %c14_i32 : i32 to index
    %c0_101 = arith.constant 0 : index
    %c0_102 = arith.constant 0 : index
    %200 = vector.load %arg1[%199, %c0_101, %c0_102] : memref<64x2x36xbf16, #tpu.memory_space<vmem>>, vector<1x2x36xbf16>
    %201 = vector.shape_cast %200 : vector<1x2x36xbf16> to vector<2x36xbf16>
    %cst_103 = arith.constant dense<0.000000e+00> : vector<2x32xf32>
    %202 = tpu.matmul %201, %0, %cst_103 {dimension_numbers = #tpu.dot_dimension_numbers<[1], [0], [0], [1], [0, 0, 1, 1], [], []>} : vector<2x36xbf16>, vector<36x32xbf16>, vector<2x32xf32> -> vector<2x32xf32>
    %203 = vector.broadcast %1 : vector<1x32xf32> to vector<2x32xf32>
    %204 = arith.addf %202, %203 : vector<2x32xf32>
    %cst_104 = arith.constant 0.000000e+00 : f32
    %205 = vector.broadcast %cst_104 : f32 to vector<2x32xf32>
    %206 = arith.maximumf %204, %205 : vector<2x32xf32>
    %207 = arith.truncf %206 : vector<2x32xf32> to vector<2x32xbf16>
    %208 = arith.index_cast %c14_i32 : i32 to index
    %c0_105 = arith.constant 0 : index
    %c0_106 = arith.constant 0 : index
    %209 = vector.load %arg4[%208, %c0_105, %c0_106] : memref<64x32x32xbf16, #tpu.memory_space<vmem>>, vector<1x32x32xbf16>
    %210 = vector.shape_cast %209 : vector<1x32x32xbf16> to vector<32x32xbf16>
    %cst_107 = arith.constant dense<0.000000e+00> : vector<2x32xf32>
    %211 = tpu.matmul %207, %210, %cst_107 {dimension_numbers = #tpu.dot_dimension_numbers<[1], [0], [0], [1], [0, 0, 1, 1], [], []>} : vector<2x32xbf16>, vector<32x32xbf16>, vector<2x32xf32> -> vector<2x32xf32>
    %212 = arith.addf %198, %211 : vector<2x32xf32>
    %c15_i32 = arith.constant 15 : i32
    %213 = arith.index_cast %c15_i32 : i32 to index
    %c0_108 = arith.constant 0 : index
    %c0_109 = arith.constant 0 : index
    %214 = vector.load %arg1[%213, %c0_108, %c0_109] : memref<64x2x36xbf16, #tpu.memory_space<vmem>>, vector<1x2x36xbf16>
    %215 = vector.shape_cast %214 : vector<1x2x36xbf16> to vector<2x36xbf16>
    %cst_110 = arith.constant dense<0.000000e+00> : vector<2x32xf32>
    %216 = tpu.matmul %215, %0, %cst_110 {dimension_numbers = #tpu.dot_dimension_numbers<[1], [0], [0], [1], [0, 0, 1, 1], [], []>} : vector<2x36xbf16>, vector<36x32xbf16>, vector<2x32xf32> -> vector<2x32xf32>
    %217 = vector.broadcast %1 : vector<1x32xf32> to vector<2x32xf32>
    %218 = arith.addf %216, %217 : vector<2x32xf32>
    %cst_111 = arith.constant 0.000000e+00 : f32
    %219 = vector.broadcast %cst_111 : f32 to vector<2x32xf32>
    %220 = arith.maximumf %218, %219 : vector<2x32xf32>
    %221 = arith.truncf %220 : vector<2x32xf32> to vector<2x32xbf16>
    %222 = arith.index_cast %c15_i32 : i32 to index
    %c0_112 = arith.constant 0 : index
    %c0_113 = arith.constant 0 : index
    %223 = vector.load %arg4[%222, %c0_112, %c0_113] : memref<64x32x32xbf16, #tpu.memory_space<vmem>>, vector<1x32x32xbf16>
    %224 = vector.shape_cast %223 : vector<1x32x32xbf16> to vector<32x32xbf16>
    %cst_114 = arith.constant dense<0.000000e+00> : vector<2x32xf32>
    %225 = tpu.matmul %221, %224, %cst_114 {dimension_numbers = #tpu.dot_dimension_numbers<[1], [0], [0], [1], [0, 0, 1, 1], [], []>} : vector<2x32xbf16>, vector<32x32xbf16>, vector<2x32xf32> -> vector<2x32xf32>
    %226 = arith.addf %212, %225 : vector<2x32xf32>
    %c16_i32 = arith.constant 16 : i32
    %227 = arith.index_cast %c16_i32 : i32 to index
    %c0_115 = arith.constant 0 : index
    %c0_116 = arith.constant 0 : index
    %228 = vector.load %arg1[%227, %c0_115, %c0_116] : memref<64x2x36xbf16, #tpu.memory_space<vmem>>, vector<1x2x36xbf16>
    %229 = vector.shape_cast %228 : vector<1x2x36xbf16> to vector<2x36xbf16>
    %cst_117 = arith.constant dense<0.000000e+00> : vector<2x32xf32>
    %230 = tpu.matmul %229, %0, %cst_117 {dimension_numbers = #tpu.dot_dimension_numbers<[1], [0], [0], [1], [0, 0, 1, 1], [], []>} : vector<2x36xbf16>, vector<36x32xbf16>, vector<2x32xf32> -> vector<2x32xf32>
    %231 = vector.broadcast %1 : vector<1x32xf32> to vector<2x32xf32>
    %232 = arith.addf %230, %231 : vector<2x32xf32>
    %cst_118 = arith.constant 0.000000e+00 : f32
    %233 = vector.broadcast %cst_118 : f32 to vector<2x32xf32>
    %234 = arith.maximumf %232, %233 : vector<2x32xf32>
    %235 = arith.truncf %234 : vector<2x32xf32> to vector<2x32xbf16>
    %236 = arith.index_cast %c16_i32 : i32 to index
    %c0_119 = arith.constant 0 : index
    %c0_120 = arith.constant 0 : index
    %237 = vector.load %arg4[%236, %c0_119, %c0_120] : memref<64x32x32xbf16, #tpu.memory_space<vmem>>, vector<1x32x32xbf16>
    %238 = vector.shape_cast %237 : vector<1x32x32xbf16> to vector<32x32xbf16>
    %cst_121 = arith.constant dense<0.000000e+00> : vector<2x32xf32>
    %239 = tpu.matmul %235, %238, %cst_121 {dimension_numbers = #tpu.dot_dimension_numbers<[1], [0], [0], [1], [0, 0, 1, 1], [], []>} : vector<2x32xbf16>, vector<32x32xbf16>, vector<2x32xf32> -> vector<2x32xf32>
    %240 = arith.addf %226, %239 : vector<2x32xf32>
    %c17_i32 = arith.constant 17 : i32
    %241 = arith.index_cast %c17_i32 : i32 to index
    %c0_122 = arith.constant 0 : index
    %c0_123 = arith.constant 0 : index
    %242 = vector.load %arg1[%241, %c0_122, %c0_123] : memref<64x2x36xbf16, #tpu.memory_space<vmem>>, vector<1x2x36xbf16>
    %243 = vector.shape_cast %242 : vector<1x2x36xbf16> to vector<2x36xbf16>
    %cst_124 = arith.constant dense<0.000000e+00> : vector<2x32xf32>
    %244 = tpu.matmul %243, %0, %cst_124 {dimension_numbers = #tpu.dot_dimension_numbers<[1], [0], [0], [1], [0, 0, 1, 1], [], []>} : vector<2x36xbf16>, vector<36x32xbf16>, vector<2x32xf32> -> vector<2x32xf32>
    %245 = vector.broadcast %1 : vector<1x32xf32> to vector<2x32xf32>
    %246 = arith.addf %244, %245 : vector<2x32xf32>
    %cst_125 = arith.constant 0.000000e+00 : f32
    %247 = vector.broadcast %cst_125 : f32 to vector<2x32xf32>
    %248 = arith.maximumf %246, %247 : vector<2x32xf32>
    %249 = arith.truncf %248 : vector<2x32xf32> to vector<2x32xbf16>
    %250 = arith.index_cast %c17_i32 : i32 to index
    %c0_126 = arith.constant 0 : index
    %c0_127 = arith.constant 0 : index
    %251 = vector.load %arg4[%250, %c0_126, %c0_127] : memref<64x32x32xbf16, #tpu.memory_space<vmem>>, vector<1x32x32xbf16>
    %252 = vector.shape_cast %251 : vector<1x32x32xbf16> to vector<32x32xbf16>
    %cst_128 = arith.constant dense<0.000000e+00> : vector<2x32xf32>
    %253 = tpu.matmul %249, %252, %cst_128 {dimension_numbers = #tpu.dot_dimension_numbers<[1], [0], [0], [1], [0, 0, 1, 1], [], []>} : vector<2x32xbf16>, vector<32x32xbf16>, vector<2x32xf32> -> vector<2x32xf32>
    %254 = arith.addf %240, %253 : vector<2x32xf32>
    %c18_i32 = arith.constant 18 : i32
    %255 = arith.index_cast %c18_i32 : i32 to index
    %c0_129 = arith.constant 0 : index
    %c0_130 = arith.constant 0 : index
    %256 = vector.load %arg1[%255, %c0_129, %c0_130] : memref<64x2x36xbf16, #tpu.memory_space<vmem>>, vector<1x2x36xbf16>
    %257 = vector.shape_cast %256 : vector<1x2x36xbf16> to vector<2x36xbf16>
    %cst_131 = arith.constant dense<0.000000e+00> : vector<2x32xf32>
    %258 = tpu.matmul %257, %0, %cst_131 {dimension_numbers = #tpu.dot_dimension_numbers<[1], [0], [0], [1], [0, 0, 1, 1], [], []>} : vector<2x36xbf16>, vector<36x32xbf16>, vector<2x32xf32> -> vector<2x32xf32>
    %259 = vector.broadcast %1 : vector<1x32xf32> to vector<2x32xf32>
    %260 = arith.addf %258, %259 : vector<2x32xf32>
    %cst_132 = arith.constant 0.000000e+00 : f32
    %261 = vector.broadcast %cst_132 : f32 to vector<2x32xf32>
    %262 = arith.maximumf %260, %261 : vector<2x32xf32>
    %263 = arith.truncf %262 : vector<2x32xf32> to vector<2x32xbf16>
    %264 = arith.index_cast %c18_i32 : i32 to index
    %c0_133 = arith.constant 0 : index
    %c0_134 = arith.constant 0 : index
    %265 = vector.load %arg4[%264, %c0_133, %c0_134] : memref<64x32x32xbf16, #tpu.memory_space<vmem>>, vector<1x32x32xbf16>
    %266 = vector.shape_cast %265 : vector<1x32x32xbf16> to vector<32x32xbf16>
    %cst_135 = arith.constant dense<0.000000e+00> : vector<2x32xf32>
    %267 = tpu.matmul %263, %266, %cst_135 {dimension_numbers = #tpu.dot_dimension_numbers<[1], [0], [0], [1], [0, 0, 1, 1], [], []>} : vector<2x32xbf16>, vector<32x32xbf16>, vector<2x32xf32> -> vector<2x32xf32>
    %268 = arith.addf %254, %267 : vector<2x32xf32>
    %c19_i32 = arith.constant 19 : i32
    %269 = arith.index_cast %c19_i32 : i32 to index
    %c0_136 = arith.constant 0 : index
    %c0_137 = arith.constant 0 : index
    %270 = vector.load %arg1[%269, %c0_136, %c0_137] : memref<64x2x36xbf16, #tpu.memory_space<vmem>>, vector<1x2x36xbf16>
    %271 = vector.shape_cast %270 : vector<1x2x36xbf16> to vector<2x36xbf16>
    %cst_138 = arith.constant dense<0.000000e+00> : vector<2x32xf32>
    %272 = tpu.matmul %271, %0, %cst_138 {dimension_numbers = #tpu.dot_dimension_numbers<[1], [0], [0], [1], [0, 0, 1, 1], [], []>} : vector<2x36xbf16>, vector<36x32xbf16>, vector<2x32xf32> -> vector<2x32xf32>
    %273 = vector.broadcast %1 : vector<1x32xf32> to vector<2x32xf32>
    %274 = arith.addf %272, %273 : vector<2x32xf32>
    %cst_139 = arith.constant 0.000000e+00 : f32
    %275 = vector.broadcast %cst_139 : f32 to vector<2x32xf32>
    %276 = arith.maximumf %274, %275 : vector<2x32xf32>
    %277 = arith.truncf %276 : vector<2x32xf32> to vector<2x32xbf16>
    %278 = arith.index_cast %c19_i32 : i32 to index
    %c0_140 = arith.constant 0 : index
    %c0_141 = arith.constant 0 : index
    %279 = vector.load %arg4[%278, %c0_140, %c0_141] : memref<64x32x32xbf16, #tpu.memory_space<vmem>>, vector<1x32x32xbf16>
    %280 = vector.shape_cast %279 : vector<1x32x32xbf16> to vector<32x32xbf16>
    %cst_142 = arith.constant dense<0.000000e+00> : vector<2x32xf32>
    %281 = tpu.matmul %277, %280, %cst_142 {dimension_numbers = #tpu.dot_dimension_numbers<[1], [0], [0], [1], [0, 0, 1, 1], [], []>} : vector<2x32xbf16>, vector<32x32xbf16>, vector<2x32xf32> -> vector<2x32xf32>
    %282 = arith.addf %268, %281 : vector<2x32xf32>
    %c20_i32 = arith.constant 20 : i32
    %283 = arith.index_cast %c20_i32 : i32 to index
    %c0_143 = arith.constant 0 : index
    %c0_144 = arith.constant 0 : index
    %284 = vector.load %arg1[%283, %c0_143, %c0_144] : memref<64x2x36xbf16, #tpu.memory_space<vmem>>, vector<1x2x36xbf16>
    %285 = vector.shape_cast %284 : vector<1x2x36xbf16> to vector<2x36xbf16>
    %cst_145 = arith.constant dense<0.000000e+00> : vector<2x32xf32>
    %286 = tpu.matmul %285, %0, %cst_145 {dimension_numbers = #tpu.dot_dimension_numbers<[1], [0], [0], [1], [0, 0, 1, 1], [], []>} : vector<2x36xbf16>, vector<36x32xbf16>, vector<2x32xf32> -> vector<2x32xf32>
    %287 = vector.broadcast %1 : vector<1x32xf32> to vector<2x32xf32>
    %288 = arith.addf %286, %287 : vector<2x32xf32>
    %cst_146 = arith.constant 0.000000e+00 : f32
    %289 = vector.broadcast %cst_146 : f32 to vector<2x32xf32>
    %290 = arith.maximumf %288, %289 : vector<2x32xf32>
    %291 = arith.truncf %290 : vector<2x32xf32> to vector<2x32xbf16>
    %292 = arith.index_cast %c20_i32 : i32 to index
    %c0_147 = arith.constant 0 : index
    %c0_148 = arith.constant 0 : index
    %293 = vector.load %arg4[%292, %c0_147, %c0_148] : memref<64x32x32xbf16, #tpu.memory_space<vmem>>, vector<1x32x32xbf16>
    %294 = vector.shape_cast %293 : vector<1x32x32xbf16> to vector<32x32xbf16>
    %cst_149 = arith.constant dense<0.000000e+00> : vector<2x32xf32>
    %295 = tpu.matmul %291, %294, %cst_149 {dimension_numbers = #tpu.dot_dimension_numbers<[1], [0], [0], [1], [0, 0, 1, 1], [], []>} : vector<2x32xbf16>, vector<32x32xbf16>, vector<2x32xf32> -> vector<2x32xf32>
    %296 = arith.addf %282, %295 : vector<2x32xf32>
    %c21_i32 = arith.constant 21 : i32
    %297 = arith.index_cast %c21_i32 : i32 to index
    %c0_150 = arith.constant 0 : index
    %c0_151 = arith.constant 0 : index
    %298 = vector.load %arg1[%297, %c0_150, %c0_151] : memref<64x2x36xbf16, #tpu.memory_space<vmem>>, vector<1x2x36xbf16>
    %299 = vector.shape_cast %298 : vector<1x2x36xbf16> to vector<2x36xbf16>
    %cst_152 = arith.constant dense<0.000000e+00> : vector<2x32xf32>
    %300 = tpu.matmul %299, %0, %cst_152 {dimension_numbers = #tpu.dot_dimension_numbers<[1], [0], [0], [1], [0, 0, 1, 1], [], []>} : vector<2x36xbf16>, vector<36x32xbf16>, vector<2x32xf32> -> vector<2x32xf32>
    %301 = vector.broadcast %1 : vector<1x32xf32> to vector<2x32xf32>
    %302 = arith.addf %300, %301 : vector<2x32xf32>
    %cst_153 = arith.constant 0.000000e+00 : f32
    %303 = vector.broadcast %cst_153 : f32 to vector<2x32xf32>
    %304 = arith.maximumf %302, %303 : vector<2x32xf32>
    %305 = arith.truncf %304 : vector<2x32xf32> to vector<2x32xbf16>
    %306 = arith.index_cast %c21_i32 : i32 to index
    %c0_154 = arith.constant 0 : index
    %c0_155 = arith.constant 0 : index
    %307 = vector.load %arg4[%306, %c0_154, %c0_155] : memref<64x32x32xbf16, #tpu.memory_space<vmem>>, vector<1x32x32xbf16>
    %308 = vector.shape_cast %307 : vector<1x32x32xbf16> to vector<32x32xbf16>
    %cst_156 = arith.constant dense<0.000000e+00> : vector<2x32xf32>
    %309 = tpu.matmul %305, %308, %cst_156 {dimension_numbers = #tpu.dot_dimension_numbers<[1], [0], [0], [1], [0, 0, 1, 1], [], []>} : vector<2x32xbf16>, vector<32x32xbf16>, vector<2x32xf32> -> vector<2x32xf32>
    %310 = arith.addf %296, %309 : vector<2x32xf32>
    %c22_i32 = arith.constant 22 : i32
    %311 = arith.index_cast %c22_i32 : i32 to index
    %c0_157 = arith.constant 0 : index
    %c0_158 = arith.constant 0 : index
    %312 = vector.load %arg1[%311, %c0_157, %c0_158] : memref<64x2x36xbf16, #tpu.memory_space<vmem>>, vector<1x2x36xbf16>
    %313 = vector.shape_cast %312 : vector<1x2x36xbf16> to vector<2x36xbf16>
    %cst_159 = arith.constant dense<0.000000e+00> : vector<2x32xf32>
    %314 = tpu.matmul %313, %0, %cst_159 {dimension_numbers = #tpu.dot_dimension_numbers<[1], [0], [0], [1], [0, 0, 1, 1], [], []>} : vector<2x36xbf16>, vector<36x32xbf16>, vector<2x32xf32> -> vector<2x32xf32>
    %315 = vector.broadcast %1 : vector<1x32xf32> to vector<2x32xf32>
    %316 = arith.addf %314, %315 : vector<2x32xf32>
    %cst_160 = arith.constant 0.000000e+00 : f32
    %317 = vector.broadcast %cst_160 : f32 to vector<2x32xf32>
    %318 = arith.maximumf %316, %317 : vector<2x32xf32>
    %319 = arith.truncf %318 : vector<2x32xf32> to vector<2x32xbf16>
    %320 = arith.index_cast %c22_i32 : i32 to index
    %c0_161 = arith.constant 0 : index
    %c0_162 = arith.constant 0 : index
    %321 = vector.load %arg4[%320, %c0_161, %c0_162] : memref<64x32x32xbf16, #tpu.memory_space<vmem>>, vector<1x32x32xbf16>
    %322 = vector.shape_cast %321 : vector<1x32x32xbf16> to vector<32x32xbf16>
    %cst_163 = arith.constant dense<0.000000e+00> : vector<2x32xf32>
    %323 = tpu.matmul %319, %322, %cst_163 {dimension_numbers = #tpu.dot_dimension_numbers<[1], [0], [0], [1], [0, 0, 1, 1], [], []>} : vector<2x32xbf16>, vector<32x32xbf16>, vector<2x32xf32> -> vector<2x32xf32>
    %324 = arith.addf %310, %323 : vector<2x32xf32>
    %c23_i32 = arith.constant 23 : i32
    %325 = arith.index_cast %c23_i32 : i32 to index
    %c0_164 = arith.constant 0 : index
    %c0_165 = arith.constant 0 : index
    %326 = vector.load %arg1[%325, %c0_164, %c0_165] : memref<64x2x36xbf16, #tpu.memory_space<vmem>>, vector<1x2x36xbf16>
    %327 = vector.shape_cast %326 : vector<1x2x36xbf16> to vector<2x36xbf16>
    %cst_166 = arith.constant dense<0.000000e+00> : vector<2x32xf32>
    %328 = tpu.matmul %327, %0, %cst_166 {dimension_numbers = #tpu.dot_dimension_numbers<[1], [0], [0], [1], [0, 0, 1, 1], [], []>} : vector<2x36xbf16>, vector<36x32xbf16>, vector<2x32xf32> -> vector<2x32xf32>
    %329 = vector.broadcast %1 : vector<1x32xf32> to vector<2x32xf32>
    %330 = arith.addf %328, %329 : vector<2x32xf32>
    %cst_167 = arith.constant 0.000000e+00 : f32
    %331 = vector.broadcast %cst_167 : f32 to vector<2x32xf32>
    %332 = arith.maximumf %330, %331 : vector<2x32xf32>
    %333 = arith.truncf %332 : vector<2x32xf32> to vector<2x32xbf16>
    %334 = arith.index_cast %c23_i32 : i32 to index
    %c0_168 = arith.constant 0 : index
    %c0_169 = arith.constant 0 : index
    %335 = vector.load %arg4[%334, %c0_168, %c0_169] : memref<64x32x32xbf16, #tpu.memory_space<vmem>>, vector<1x32x32xbf16>
    %336 = vector.shape_cast %335 : vector<1x32x32xbf16> to vector<32x32xbf16>
    %cst_170 = arith.constant dense<0.000000e+00> : vector<2x32xf32>
    %337 = tpu.matmul %333, %336, %cst_170 {dimension_numbers = #tpu.dot_dimension_numbers<[1], [0], [0], [1], [0, 0, 1, 1], [], []>} : vector<2x32xbf16>, vector<32x32xbf16>, vector<2x32xf32> -> vector<2x32xf32>
    %338 = arith.addf %324, %337 : vector<2x32xf32>
    %c24_i32 = arith.constant 24 : i32
    %339 = arith.index_cast %c24_i32 : i32 to index
    %c0_171 = arith.constant 0 : index
    %c0_172 = arith.constant 0 : index
    %340 = vector.load %arg1[%339, %c0_171, %c0_172] : memref<64x2x36xbf16, #tpu.memory_space<vmem>>, vector<1x2x36xbf16>
    %341 = vector.shape_cast %340 : vector<1x2x36xbf16> to vector<2x36xbf16>
    %cst_173 = arith.constant dense<0.000000e+00> : vector<2x32xf32>
    %342 = tpu.matmul %341, %0, %cst_173 {dimension_numbers = #tpu.dot_dimension_numbers<[1], [0], [0], [1], [0, 0, 1, 1], [], []>} : vector<2x36xbf16>, vector<36x32xbf16>, vector<2x32xf32> -> vector<2x32xf32>
    %343 = vector.broadcast %1 : vector<1x32xf32> to vector<2x32xf32>
    %344 = arith.addf %342, %343 : vector<2x32xf32>
    %cst_174 = arith.constant 0.000000e+00 : f32
    %345 = vector.broadcast %cst_174 : f32 to vector<2x32xf32>
    %346 = arith.maximumf %344, %345 : vector<2x32xf32>
    %347 = arith.truncf %346 : vector<2x32xf32> to vector<2x32xbf16>
    %348 = arith.index_cast %c24_i32 : i32 to index
    %c0_175 = arith.constant 0 : index
    %c0_176 = arith.constant 0 : index
    %349 = vector.load %arg4[%348, %c0_175, %c0_176] : memref<64x32x32xbf16, #tpu.memory_space<vmem>>, vector<1x32x32xbf16>
    %350 = vector.shape_cast %349 : vector<1x32x32xbf16> to vector<32x32xbf16>
    %cst_177 = arith.constant dense<0.000000e+00> : vector<2x32xf32>
    %351 = tpu.matmul %347, %350, %cst_177 {dimension_numbers = #tpu.dot_dimension_numbers<[1], [0], [0], [1], [0, 0, 1, 1], [], []>} : vector<2x32xbf16>, vector<32x32xbf16>, vector<2x32xf32> -> vector<2x32xf32>
    %352 = arith.addf %338, %351 : vector<2x32xf32>
    %c25_i32 = arith.constant 25 : i32
    %353 = arith.index_cast %c25_i32 : i32 to index
    %c0_178 = arith.constant 0 : index
    %c0_179 = arith.constant 0 : index
    %354 = vector.load %arg1[%353, %c0_178, %c0_179] : memref<64x2x36xbf16, #tpu.memory_space<vmem>>, vector<1x2x36xbf16>
    %355 = vector.shape_cast %354 : vector<1x2x36xbf16> to vector<2x36xbf16>
    %cst_180 = arith.constant dense<0.000000e+00> : vector<2x32xf32>
    %356 = tpu.matmul %355, %0, %cst_180 {dimension_numbers = #tpu.dot_dimension_numbers<[1], [0], [0], [1], [0, 0, 1, 1], [], []>} : vector<2x36xbf16>, vector<36x32xbf16>, vector<2x32xf32> -> vector<2x32xf32>
    %357 = vector.broadcast %1 : vector<1x32xf32> to vector<2x32xf32>
    %358 = arith.addf %356, %357 : vector<2x32xf32>
    %cst_181 = arith.constant 0.000000e+00 : f32
    %359 = vector.broadcast %cst_181 : f32 to vector<2x32xf32>
    %360 = arith.maximumf %358, %359 : vector<2x32xf32>
    %361 = arith.truncf %360 : vector<2x32xf32> to vector<2x32xbf16>
    %362 = arith.index_cast %c25_i32 : i32 to index
    %c0_182 = arith.constant 0 : index
    %c0_183 = arith.constant 0 : index
    %363 = vector.load %arg4[%362, %c0_182, %c0_183] : memref<64x32x32xbf16, #tpu.memory_space<vmem>>, vector<1x32x32xbf16>
    %364 = vector.shape_cast %363 : vector<1x32x32xbf16> to vector<32x32xbf16>
    %cst_184 = arith.constant dense<0.000000e+00> : vector<2x32xf32>
    %365 = tpu.matmul %361, %364, %cst_184 {dimension_numbers = #tpu.dot_dimension_numbers<[1], [0], [0], [1], [0, 0, 1, 1], [], []>} : vector<2x32xbf16>, vector<32x32xbf16>, vector<2x32xf32> -> vector<2x32xf32>
    %366 = arith.addf %352, %365 : vector<2x32xf32>
    %c26_i32 = arith.constant 26 : i32
    %367 = arith.index_cast %c26_i32 : i32 to index
    %c0_185 = arith.constant 0 : index
    %c0_186 = arith.constant 0 : index
    %368 = vector.load %arg1[%367, %c0_185, %c0_186] : memref<64x2x36xbf16, #tpu.memory_space<vmem>>, vector<1x2x36xbf16>
    %369 = vector.shape_cast %368 : vector<1x2x36xbf16> to vector<2x36xbf16>
    %cst_187 = arith.constant dense<0.000000e+00> : vector<2x32xf32>
    %370 = tpu.matmul %369, %0, %cst_187 {dimension_numbers = #tpu.dot_dimension_numbers<[1], [0], [0], [1], [0, 0, 1, 1], [], []>} : vector<2x36xbf16>, vector<36x32xbf16>, vector<2x32xf32> -> vector<2x32xf32>
    %371 = vector.broadcast %1 : vector<1x32xf32> to vector<2x32xf32>
    %372 = arith.addf %370, %371 : vector<2x32xf32>
    %cst_188 = arith.constant 0.000000e+00 : f32
    %373 = vector.broadcast %cst_188 : f32 to vector<2x32xf32>
    %374 = arith.maximumf %372, %373 : vector<2x32xf32>
    %375 = arith.truncf %374 : vector<2x32xf32> to vector<2x32xbf16>
    %376 = arith.index_cast %c26_i32 : i32 to index
    %c0_189 = arith.constant 0 : index
    %c0_190 = arith.constant 0 : index
    %377 = vector.load %arg4[%376, %c0_189, %c0_190] : memref<64x32x32xbf16, #tpu.memory_space<vmem>>, vector<1x32x32xbf16>
    %378 = vector.shape_cast %377 : vector<1x32x32xbf16> to vector<32x32xbf16>
    %cst_191 = arith.constant dense<0.000000e+00> : vector<2x32xf32>
    %379 = tpu.matmul %375, %378, %cst_191 {dimension_numbers = #tpu.dot_dimension_numbers<[1], [0], [0], [1], [0, 0, 1, 1], [], []>} : vector<2x32xbf16>, vector<32x32xbf16>, vector<2x32xf32> -> vector<2x32xf32>
    %380 = arith.addf %366, %379 : vector<2x32xf32>
    %c27_i32 = arith.constant 27 : i32
    %381 = arith.index_cast %c27_i32 : i32 to index
    %c0_192 = arith.constant 0 : index
    %c0_193 = arith.constant 0 : index
    %382 = vector.load %arg1[%381, %c0_192, %c0_193] : memref<64x2x36xbf16, #tpu.memory_space<vmem>>, vector<1x2x36xbf16>
    %383 = vector.shape_cast %382 : vector<1x2x36xbf16> to vector<2x36xbf16>
    %cst_194 = arith.constant dense<0.000000e+00> : vector<2x32xf32>
    %384 = tpu.matmul %383, %0, %cst_194 {dimension_numbers = #tpu.dot_dimension_numbers<[1], [0], [0], [1], [0, 0, 1, 1], [], []>} : vector<2x36xbf16>, vector<36x32xbf16>, vector<2x32xf32> -> vector<2x32xf32>
    %385 = vector.broadcast %1 : vector<1x32xf32> to vector<2x32xf32>
    %386 = arith.addf %384, %385 : vector<2x32xf32>
    %cst_195 = arith.constant 0.000000e+00 : f32
    %387 = vector.broadcast %cst_195 : f32 to vector<2x32xf32>
    %388 = arith.maximumf %386, %387 : vector<2x32xf32>
    %389 = arith.truncf %388 : vector<2x32xf32> to vector<2x32xbf16>
    %390 = arith.index_cast %c27_i32 : i32 to index
    %c0_196 = arith.constant 0 : index
    %c0_197 = arith.constant 0 : index
    %391 = vector.load %arg4[%390, %c0_196, %c0_197] : memref<64x32x32xbf16, #tpu.memory_space<vmem>>, vector<1x32x32xbf16>
    %392 = vector.shape_cast %391 : vector<1x32x32xbf16> to vector<32x32xbf16>
    %cst_198 = arith.constant dense<0.000000e+00> : vector<2x32xf32>
    %393 = tpu.matmul %389, %392, %cst_198 {dimension_numbers = #tpu.dot_dimension_numbers<[1], [0], [0], [1], [0, 0, 1, 1], [], []>} : vector<2x32xbf16>, vector<32x32xbf16>, vector<2x32xf32> -> vector<2x32xf32>
    %394 = arith.addf %380, %393 : vector<2x32xf32>
    %c28_i32 = arith.constant 28 : i32
    %395 = arith.index_cast %c28_i32 : i32 to index
    %c0_199 = arith.constant 0 : index
    %c0_200 = arith.constant 0 : index
    %396 = vector.load %arg1[%395, %c0_199, %c0_200] : memref<64x2x36xbf16, #tpu.memory_space<vmem>>, vector<1x2x36xbf16>
    %397 = vector.shape_cast %396 : vector<1x2x36xbf16> to vector<2x36xbf16>
    %cst_201 = arith.constant dense<0.000000e+00> : vector<2x32xf32>
    %398 = tpu.matmul %397, %0, %cst_201 {dimension_numbers = #tpu.dot_dimension_numbers<[1], [0], [0], [1], [0, 0, 1, 1], [], []>} : vector<2x36xbf16>, vector<36x32xbf16>, vector<2x32xf32> -> vector<2x32xf32>
    %399 = vector.broadcast %1 : vector<1x32xf32> to vector<2x32xf32>
    %400 = arith.addf %398, %399 : vector<2x32xf32>
    %cst_202 = arith.constant 0.000000e+00 : f32
    %401 = vector.broadcast %cst_202 : f32 to vector<2x32xf32>
    %402 = arith.maximumf %400, %401 : vector<2x32xf32>
    %403 = arith.truncf %402 : vector<2x32xf32> to vector<2x32xbf16>
    %404 = arith.index_cast %c28_i32 : i32 to index
    %c0_203 = arith.constant 0 : index
    %c0_204 = arith.constant 0 : index
    %405 = vector.load %arg4[%404, %c0_203, %c0_204] : memref<64x32x32xbf16, #tpu.memory_space<vmem>>, vector<1x32x32xbf16>
    %406 = vector.shape_cast %405 : vector<1x32x32xbf16> to vector<32x32xbf16>
    %cst_205 = arith.constant dense<0.000000e+00> : vector<2x32xf32>
    %407 = tpu.matmul %403, %406, %cst_205 {dimension_numbers = #tpu.dot_dimension_numbers<[1], [0], [0], [1], [0, 0, 1, 1], [], []>} : vector<2x32xbf16>, vector<32x32xbf16>, vector<2x32xf32> -> vector<2x32xf32>
    %408 = arith.addf %394, %407 : vector<2x32xf32>
    %c29_i32 = arith.constant 29 : i32
    %409 = arith.index_cast %c29_i32 : i32 to index
    %c0_206 = arith.constant 0 : index
    %c0_207 = arith.constant 0 : index
    %410 = vector.load %arg1[%409, %c0_206, %c0_207] : memref<64x2x36xbf16, #tpu.memory_space<vmem>>, vector<1x2x36xbf16>
    %411 = vector.shape_cast %410 : vector<1x2x36xbf16> to vector<2x36xbf16>
    %cst_208 = arith.constant dense<0.000000e+00> : vector<2x32xf32>
    %412 = tpu.matmul %411, %0, %cst_208 {dimension_numbers = #tpu.dot_dimension_numbers<[1], [0], [0], [1], [0, 0, 1, 1], [], []>} : vector<2x36xbf16>, vector<36x32xbf16>, vector<2x32xf32> -> vector<2x32xf32>
    %413 = vector.broadcast %1 : vector<1x32xf32> to vector<2x32xf32>
    %414 = arith.addf %412, %413 : vector<2x32xf32>
    %cst_209 = arith.constant 0.000000e+00 : f32
    %415 = vector.broadcast %cst_209 : f32 to vector<2x32xf32>
    %416 = arith.maximumf %414, %415 : vector<2x32xf32>
    %417 = arith.truncf %416 : vector<2x32xf32> to vector<2x32xbf16>
    %418 = arith.index_cast %c29_i32 : i32 to index
    %c0_210 = arith.constant 0 : index
    %c0_211 = arith.constant 0 : index
    %419 = vector.load %arg4[%418, %c0_210, %c0_211] : memref<64x32x32xbf16, #tpu.memory_space<vmem>>, vector<1x32x32xbf16>
    %420 = vector.shape_cast %419 : vector<1x32x32xbf16> to vector<32x32xbf16>
    %cst_212 = arith.constant dense<0.000000e+00> : vector<2x32xf32>
    %421 = tpu.matmul %417, %420, %cst_212 {dimension_numbers = #tpu.dot_dimension_numbers<[1], [0], [0], [1], [0, 0, 1, 1], [], []>} : vector<2x32xbf16>, vector<32x32xbf16>, vector<2x32xf32> -> vector<2x32xf32>
    %422 = arith.addf %408, %421 : vector<2x32xf32>
    %c30_i32 = arith.constant 30 : i32
    %423 = arith.index_cast %c30_i32 : i32 to index
    %c0_213 = arith.constant 0 : index
    %c0_214 = arith.constant 0 : index
    %424 = vector.load %arg1[%423, %c0_213, %c0_214] : memref<64x2x36xbf16, #tpu.memory_space<vmem>>, vector<1x2x36xbf16>
    %425 = vector.shape_cast %424 : vector<1x2x36xbf16> to vector<2x36xbf16>
    %cst_215 = arith.constant dense<0.000000e+00> : vector<2x32xf32>
    %426 = tpu.matmul %425, %0, %cst_215 {dimension_numbers = #tpu.dot_dimension_numbers<[1], [0], [0], [1], [0, 0, 1, 1], [], []>} : vector<2x36xbf16>, vector<36x32xbf16>, vector<2x32xf32> -> vector<2x32xf32>
    %427 = vector.broadcast %1 : vector<1x32xf32> to vector<2x32xf32>
    %428 = arith.addf %426, %427 : vector<2x32xf32>
    %cst_216 = arith.constant 0.000000e+00 : f32
    %429 = vector.broadcast %cst_216 : f32 to vector<2x32xf32>
    %430 = arith.maximumf %428, %429 : vector<2x32xf32>
    %431 = arith.truncf %430 : vector<2x32xf32> to vector<2x32xbf16>
    %432 = arith.index_cast %c30_i32 : i32 to index
    %c0_217 = arith.constant 0 : index
    %c0_218 = arith.constant 0 : index
    %433 = vector.load %arg4[%432, %c0_217, %c0_218] : memref<64x32x32xbf16, #tpu.memory_space<vmem>>, vector<1x32x32xbf16>
    %434 = vector.shape_cast %433 : vector<1x32x32xbf16> to vector<32x32xbf16>
    %cst_219 = arith.constant dense<0.000000e+00> : vector<2x32xf32>
    %435 = tpu.matmul %431, %434, %cst_219 {dimension_numbers = #tpu.dot_dimension_numbers<[1], [0], [0], [1], [0, 0, 1, 1], [], []>} : vector<2x32xbf16>, vector<32x32xbf16>, vector<2x32xf32> -> vector<2x32xf32>
    %436 = arith.addf %422, %435 : vector<2x32xf32>
    %c31_i32 = arith.constant 31 : i32
    %437 = arith.index_cast %c31_i32 : i32 to index
    %c0_220 = arith.constant 0 : index
    %c0_221 = arith.constant 0 : index
    %438 = vector.load %arg1[%437, %c0_220, %c0_221] : memref<64x2x36xbf16, #tpu.memory_space<vmem>>, vector<1x2x36xbf16>
    %439 = vector.shape_cast %438 : vector<1x2x36xbf16> to vector<2x36xbf16>
    %cst_222 = arith.constant dense<0.000000e+00> : vector<2x32xf32>
    %440 = tpu.matmul %439, %0, %cst_222 {dimension_numbers = #tpu.dot_dimension_numbers<[1], [0], [0], [1], [0, 0, 1, 1], [], []>} : vector<2x36xbf16>, vector<36x32xbf16>, vector<2x32xf32> -> vector<2x32xf32>
    %441 = vector.broadcast %1 : vector<1x32xf32> to vector<2x32xf32>
    %442 = arith.addf %440, %441 : vector<2x32xf32>
    %cst_223 = arith.constant 0.000000e+00 : f32
    %443 = vector.broadcast %cst_223 : f32 to vector<2x32xf32>
    %444 = arith.maximumf %442, %443 : vector<2x32xf32>
    %445 = arith.truncf %444 : vector<2x32xf32> to vector<2x32xbf16>
    %446 = arith.index_cast %c31_i32 : i32 to index
    %c0_224 = arith.constant 0 : index
    %c0_225 = arith.constant 0 : index
    %447 = vector.load %arg4[%446, %c0_224, %c0_225] : memref<64x32x32xbf16, #tpu.memory_space<vmem>>, vector<1x32x32xbf16>
    %448 = vector.shape_cast %447 : vector<1x32x32xbf16> to vector<32x32xbf16>
    %cst_226 = arith.constant dense<0.000000e+00> : vector<2x32xf32>
    %449 = tpu.matmul %445, %448, %cst_226 {dimension_numbers = #tpu.dot_dimension_numbers<[1], [0], [0], [1], [0, 0, 1, 1], [], []>} : vector<2x32xbf16>, vector<32x32xbf16>, vector<2x32xf32> -> vector<2x32xf32>
    %450 = arith.addf %436, %449 : vector<2x32xf32>
    %c32_i32 = arith.constant 32 : i32
    %451 = arith.index_cast %c32_i32 : i32 to index
    %c0_227 = arith.constant 0 : index
    %c0_228 = arith.constant 0 : index
    %452 = vector.load %arg1[%451, %c0_227, %c0_228] : memref<64x2x36xbf16, #tpu.memory_space<vmem>>, vector<1x2x36xbf16>
    %453 = vector.shape_cast %452 : vector<1x2x36xbf16> to vector<2x36xbf16>
    %cst_229 = arith.constant dense<0.000000e+00> : vector<2x32xf32>
    %454 = tpu.matmul %453, %0, %cst_229 {dimension_numbers = #tpu.dot_dimension_numbers<[1], [0], [0], [1], [0, 0, 1, 1], [], []>} : vector<2x36xbf16>, vector<36x32xbf16>, vector<2x32xf32> -> vector<2x32xf32>
    %455 = vector.broadcast %1 : vector<1x32xf32> to vector<2x32xf32>
    %456 = arith.addf %454, %455 : vector<2x32xf32>
    %cst_230 = arith.constant 0.000000e+00 : f32
    %457 = vector.broadcast %cst_230 : f32 to vector<2x32xf32>
    %458 = arith.maximumf %456, %457 : vector<2x32xf32>
    %459 = arith.truncf %458 : vector<2x32xf32> to vector<2x32xbf16>
    %460 = arith.index_cast %c32_i32 : i32 to index
    %c0_231 = arith.constant 0 : index
    %c0_232 = arith.constant 0 : index
    %461 = vector.load %arg4[%460, %c0_231, %c0_232] : memref<64x32x32xbf16, #tpu.memory_space<vmem>>, vector<1x32x32xbf16>
    %462 = vector.shape_cast %461 : vector<1x32x32xbf16> to vector<32x32xbf16>
    %cst_233 = arith.constant dense<0.000000e+00> : vector<2x32xf32>
    %463 = tpu.matmul %459, %462, %cst_233 {dimension_numbers = #tpu.dot_dimension_numbers<[1], [0], [0], [1], [0, 0, 1, 1], [], []>} : vector<2x32xbf16>, vector<32x32xbf16>, vector<2x32xf32> -> vector<2x32xf32>
    %464 = arith.addf %450, %463 : vector<2x32xf32>
    %c33_i32 = arith.constant 33 : i32
    %465 = arith.index_cast %c33_i32 : i32 to index
    %c0_234 = arith.constant 0 : index
    %c0_235 = arith.constant 0 : index
    %466 = vector.load %arg1[%465, %c0_234, %c0_235] : memref<64x2x36xbf16, #tpu.memory_space<vmem>>, vector<1x2x36xbf16>
    %467 = vector.shape_cast %466 : vector<1x2x36xbf16> to vector<2x36xbf16>
    %cst_236 = arith.constant dense<0.000000e+00> : vector<2x32xf32>
    %468 = tpu.matmul %467, %0, %cst_236 {dimension_numbers = #tpu.dot_dimension_numbers<[1], [0], [0], [1], [0, 0, 1, 1], [], []>} : vector<2x36xbf16>, vector<36x32xbf16>, vector<2x32xf32> -> vector<2x32xf32>
    %469 = vector.broadcast %1 : vector<1x32xf32> to vector<2x32xf32>
    %470 = arith.addf %468, %469 : vector<2x32xf32>
    %cst_237 = arith.constant 0.000000e+00 : f32
    %471 = vector.broadcast %cst_237 : f32 to vector<2x32xf32>
    %472 = arith.maximumf %470, %471 : vector<2x32xf32>
    %473 = arith.truncf %472 : vector<2x32xf32> to vector<2x32xbf16>
    %474 = arith.index_cast %c33_i32 : i32 to index
    %c0_238 = arith.constant 0 : index
    %c0_239 = arith.constant 0 : index
    %475 = vector.load %arg4[%474, %c0_238, %c0_239] : memref<64x32x32xbf16, #tpu.memory_space<vmem>>, vector<1x32x32xbf16>
    %476 = vector.shape_cast %475 : vector<1x32x32xbf16> to vector<32x32xbf16>
    %cst_240 = arith.constant dense<0.000000e+00> : vector<2x32xf32>
    %477 = tpu.matmul %473, %476, %cst_240 {dimension_numbers = #tpu.dot_dimension_numbers<[1], [0], [0], [1], [0, 0, 1, 1], [], []>} : vector<2x32xbf16>, vector<32x32xbf16>, vector<2x32xf32> -> vector<2x32xf32>
    %478 = arith.addf %464, %477 : vector<2x32xf32>
    %c34_i32 = arith.constant 34 : i32
    %479 = arith.index_cast %c34_i32 : i32 to index
    %c0_241 = arith.constant 0 : index
    %c0_242 = arith.constant 0 : index
    %480 = vector.load %arg1[%479, %c0_241, %c0_242] : memref<64x2x36xbf16, #tpu.memory_space<vmem>>, vector<1x2x36xbf16>
    %481 = vector.shape_cast %480 : vector<1x2x36xbf16> to vector<2x36xbf16>
    %cst_243 = arith.constant dense<0.000000e+00> : vector<2x32xf32>
    %482 = tpu.matmul %481, %0, %cst_243 {dimension_numbers = #tpu.dot_dimension_numbers<[1], [0], [0], [1], [0, 0, 1, 1], [], []>} : vector<2x36xbf16>, vector<36x32xbf16>, vector<2x32xf32> -> vector<2x32xf32>
    %483 = vector.broadcast %1 : vector<1x32xf32> to vector<2x32xf32>
    %484 = arith.addf %482, %483 : vector<2x32xf32>
    %cst_244 = arith.constant 0.000000e+00 : f32
    %485 = vector.broadcast %cst_244 : f32 to vector<2x32xf32>
    %486 = arith.maximumf %484, %485 : vector<2x32xf32>
    %487 = arith.truncf %486 : vector<2x32xf32> to vector<2x32xbf16>
    %488 = arith.index_cast %c34_i32 : i32 to index
    %c0_245 = arith.constant 0 : index
    %c0_246 = arith.constant 0 : index
    %489 = vector.load %arg4[%488, %c0_245, %c0_246] : memref<64x32x32xbf16, #tpu.memory_space<vmem>>, vector<1x32x32xbf16>
    %490 = vector.shape_cast %489 : vector<1x32x32xbf16> to vector<32x32xbf16>
    %cst_247 = arith.constant dense<0.000000e+00> : vector<2x32xf32>
    %491 = tpu.matmul %487, %490, %cst_247 {dimension_numbers = #tpu.dot_dimension_numbers<[1], [0], [0], [1], [0, 0, 1, 1], [], []>} : vector<2x32xbf16>, vector<32x32xbf16>, vector<2x32xf32> -> vector<2x32xf32>
    %492 = arith.addf %478, %491 : vector<2x32xf32>
    %c35_i32 = arith.constant 35 : i32
    %493 = arith.index_cast %c35_i32 : i32 to index
    %c0_248 = arith.constant 0 : index
    %c0_249 = arith.constant 0 : index
    %494 = vector.load %arg1[%493, %c0_248, %c0_249] : memref<64x2x36xbf16, #tpu.memory_space<vmem>>, vector<1x2x36xbf16>
    %495 = vector.shape_cast %494 : vector<1x2x36xbf16> to vector<2x36xbf16>
    %cst_250 = arith.constant dense<0.000000e+00> : vector<2x32xf32>
    %496 = tpu.matmul %495, %0, %cst_250 {dimension_numbers = #tpu.dot_dimension_numbers<[1], [0], [0], [1], [0, 0, 1, 1], [], []>} : vector<2x36xbf16>, vector<36x32xbf16>, vector<2x32xf32> -> vector<2x32xf32>
    %497 = vector.broadcast %1 : vector<1x32xf32> to vector<2x32xf32>
    %498 = arith.addf %496, %497 : vector<2x32xf32>
    %cst_251 = arith.constant 0.000000e+00 : f32
    %499 = vector.broadcast %cst_251 : f32 to vector<2x32xf32>
    %500 = arith.maximumf %498, %499 : vector<2x32xf32>
    %501 = arith.truncf %500 : vector<2x32xf32> to vector<2x32xbf16>
    %502 = arith.index_cast %c35_i32 : i32 to index
    %c0_252 = arith.constant 0 : index
    %c0_253 = arith.constant 0 : index
    %503 = vector.load %arg4[%502, %c0_252, %c0_253] : memref<64x32x32xbf16, #tpu.memory_space<vmem>>, vector<1x32x32xbf16>
    %504 = vector.shape_cast %503 : vector<1x32x32xbf16> to vector<32x32xbf16>
    %cst_254 = arith.constant dense<0.000000e+00> : vector<2x32xf32>
    %505 = tpu.matmul %501, %504, %cst_254 {dimension_numbers = #tpu.dot_dimension_numbers<[1], [0], [0], [1], [0, 0, 1, 1], [], []>} : vector<2x32xbf16>, vector<32x32xbf16>, vector<2x32xf32> -> vector<2x32xf32>
    %506 = arith.addf %492, %505 : vector<2x32xf32>
    %c36_i32 = arith.constant 36 : i32
    %507 = arith.index_cast %c36_i32 : i32 to index
    %c0_255 = arith.constant 0 : index
    %c0_256 = arith.constant 0 : index
    %508 = vector.load %arg1[%507, %c0_255, %c0_256] : memref<64x2x36xbf16, #tpu.memory_space<vmem>>, vector<1x2x36xbf16>
    %509 = vector.shape_cast %508 : vector<1x2x36xbf16> to vector<2x36xbf16>
    %cst_257 = arith.constant dense<0.000000e+00> : vector<2x32xf32>
    %510 = tpu.matmul %509, %0, %cst_257 {dimension_numbers = #tpu.dot_dimension_numbers<[1], [0], [0], [1], [0, 0, 1, 1], [], []>} : vector<2x36xbf16>, vector<36x32xbf16>, vector<2x32xf32> -> vector<2x32xf32>
    %511 = vector.broadcast %1 : vector<1x32xf32> to vector<2x32xf32>
    %512 = arith.addf %510, %511 : vector<2x32xf32>
    %cst_258 = arith.constant 0.000000e+00 : f32
    %513 = vector.broadcast %cst_258 : f32 to vector<2x32xf32>
    %514 = arith.maximumf %512, %513 : vector<2x32xf32>
    %515 = arith.truncf %514 : vector<2x32xf32> to vector<2x32xbf16>
    %516 = arith.index_cast %c36_i32 : i32 to index
    %c0_259 = arith.constant 0 : index
    %c0_260 = arith.constant 0 : index
    %517 = vector.load %arg4[%516, %c0_259, %c0_260] : memref<64x32x32xbf16, #tpu.memory_space<vmem>>, vector<1x32x32xbf16>
    %518 = vector.shape_cast %517 : vector<1x32x32xbf16> to vector<32x32xbf16>
    %cst_261 = arith.constant dense<0.000000e+00> : vector<2x32xf32>
    %519 = tpu.matmul %515, %518, %cst_261 {dimension_numbers = #tpu.dot_dimension_numbers<[1], [0], [0], [1], [0, 0, 1, 1], [], []>} : vector<2x32xbf16>, vector<32x32xbf16>, vector<2x32xf32> -> vector<2x32xf32>
    %520 = arith.addf %506, %519 : vector<2x32xf32>
    %c37_i32 = arith.constant 37 : i32
    %521 = arith.index_cast %c37_i32 : i32 to index
    %c0_262 = arith.constant 0 : index
    %c0_263 = arith.constant 0 : index
    %522 = vector.load %arg1[%521, %c0_262, %c0_263] : memref<64x2x36xbf16, #tpu.memory_space<vmem>>, vector<1x2x36xbf16>
    %523 = vector.shape_cast %522 : vector<1x2x36xbf16> to vector<2x36xbf16>
    %cst_264 = arith.constant dense<0.000000e+00> : vector<2x32xf32>
    %524 = tpu.matmul %523, %0, %cst_264 {dimension_numbers = #tpu.dot_dimension_numbers<[1], [0], [0], [1], [0, 0, 1, 1], [], []>} : vector<2x36xbf16>, vector<36x32xbf16>, vector<2x32xf32> -> vector<2x32xf32>
    %525 = vector.broadcast %1 : vector<1x32xf32> to vector<2x32xf32>
    %526 = arith.addf %524, %525 : vector<2x32xf32>
    %cst_265 = arith.constant 0.000000e+00 : f32
    %527 = vector.broadcast %cst_265 : f32 to vector<2x32xf32>
    %528 = arith.maximumf %526, %527 : vector<2x32xf32>
    %529 = arith.truncf %528 : vector<2x32xf32> to vector<2x32xbf16>
    %530 = arith.index_cast %c37_i32 : i32 to index
    %c0_266 = arith.constant 0 : index
    %c0_267 = arith.constant 0 : index
    %531 = vector.load %arg4[%530, %c0_266, %c0_267] : memref<64x32x32xbf16, #tpu.memory_space<vmem>>, vector<1x32x32xbf16>
    %532 = vector.shape_cast %531 : vector<1x32x32xbf16> to vector<32x32xbf16>
    %cst_268 = arith.constant dense<0.000000e+00> : vector<2x32xf32>
    %533 = tpu.matmul %529, %532, %cst_268 {dimension_numbers = #tpu.dot_dimension_numbers<[1], [0], [0], [1], [0, 0, 1, 1], [], []>} : vector<2x32xbf16>, vector<32x32xbf16>, vector<2x32xf32> -> vector<2x32xf32>
    %534 = arith.addf %520, %533 : vector<2x32xf32>
    %c38_i32 = arith.constant 38 : i32
    %535 = arith.index_cast %c38_i32 : i32 to index
    %c0_269 = arith.constant 0 : index
    %c0_270 = arith.constant 0 : index
    %536 = vector.load %arg1[%535, %c0_269, %c0_270] : memref<64x2x36xbf16, #tpu.memory_space<vmem>>, vector<1x2x36xbf16>
    %537 = vector.shape_cast %536 : vector<1x2x36xbf16> to vector<2x36xbf16>
    %cst_271 = arith.constant dense<0.000000e+00> : vector<2x32xf32>
    %538 = tpu.matmul %537, %0, %cst_271 {dimension_numbers = #tpu.dot_dimension_numbers<[1], [0], [0], [1], [0, 0, 1, 1], [], []>} : vector<2x36xbf16>, vector<36x32xbf16>, vector<2x32xf32> -> vector<2x32xf32>
    %539 = vector.broadcast %1 : vector<1x32xf32> to vector<2x32xf32>
    %540 = arith.addf %538, %539 : vector<2x32xf32>
    %cst_272 = arith.constant 0.000000e+00 : f32
    %541 = vector.broadcast %cst_272 : f32 to vector<2x32xf32>
    %542 = arith.maximumf %540, %541 : vector<2x32xf32>
    %543 = arith.truncf %542 : vector<2x32xf32> to vector<2x32xbf16>
    %544 = arith.index_cast %c38_i32 : i32 to index
    %c0_273 = arith.constant 0 : index
    %c0_274 = arith.constant 0 : index
    %545 = vector.load %arg4[%544, %c0_273, %c0_274] : memref<64x32x32xbf16, #tpu.memory_space<vmem>>, vector<1x32x32xbf16>
    %546 = vector.shape_cast %545 : vector<1x32x32xbf16> to vector<32x32xbf16>
    %cst_275 = arith.constant dense<0.000000e+00> : vector<2x32xf32>
    %547 = tpu.matmul %543, %546, %cst_275 {dimension_numbers = #tpu.dot_dimension_numbers<[1], [0], [0], [1], [0, 0, 1, 1], [], []>} : vector<2x32xbf16>, vector<32x32xbf16>, vector<2x32xf32> -> vector<2x32xf32>
    %548 = arith.addf %534, %547 : vector<2x32xf32>
    %c39_i32 = arith.constant 39 : i32
    %549 = arith.index_cast %c39_i32 : i32 to index
    %c0_276 = arith.constant 0 : index
    %c0_277 = arith.constant 0 : index
    %550 = vector.load %arg1[%549, %c0_276, %c0_277] : memref<64x2x36xbf16, #tpu.memory_space<vmem>>, vector<1x2x36xbf16>
    %551 = vector.shape_cast %550 : vector<1x2x36xbf16> to vector<2x36xbf16>
    %cst_278 = arith.constant dense<0.000000e+00> : vector<2x32xf32>
    %552 = tpu.matmul %551, %0, %cst_278 {dimension_numbers = #tpu.dot_dimension_numbers<[1], [0], [0], [1], [0, 0, 1, 1], [], []>} : vector<2x36xbf16>, vector<36x32xbf16>, vector<2x32xf32> -> vector<2x32xf32>
    %553 = vector.broadcast %1 : vector<1x32xf32> to vector<2x32xf32>
    %554 = arith.addf %552, %553 : vector<2x32xf32>
    %cst_279 = arith.constant 0.000000e+00 : f32
    %555 = vector.broadcast %cst_279 : f32 to vector<2x32xf32>
    %556 = arith.maximumf %554, %555 : vector<2x32xf32>
    %557 = arith.truncf %556 : vector<2x32xf32> to vector<2x32xbf16>
    %558 = arith.index_cast %c39_i32 : i32 to index
    %c0_280 = arith.constant 0 : index
    %c0_281 = arith.constant 0 : index
    %559 = vector.load %arg4[%558, %c0_280, %c0_281] : memref<64x32x32xbf16, #tpu.memory_space<vmem>>, vector<1x32x32xbf16>
    %560 = vector.shape_cast %559 : vector<1x32x32xbf16> to vector<32x32xbf16>
    %cst_282 = arith.constant dense<0.000000e+00> : vector<2x32xf32>
    %561 = tpu.matmul %557, %560, %cst_282 {dimension_numbers = #tpu.dot_dimension_numbers<[1], [0], [0], [1], [0, 0, 1, 1], [], []>} : vector<2x32xbf16>, vector<32x32xbf16>, vector<2x32xf32> -> vector<2x32xf32>
    %562 = arith.addf %548, %561 : vector<2x32xf32>
    %c40_i32 = arith.constant 40 : i32
    %563 = arith.index_cast %c40_i32 : i32 to index
    %c0_283 = arith.constant 0 : index
    %c0_284 = arith.constant 0 : index
    %564 = vector.load %arg1[%563, %c0_283, %c0_284] : memref<64x2x36xbf16, #tpu.memory_space<vmem>>, vector<1x2x36xbf16>
    %565 = vector.shape_cast %564 : vector<1x2x36xbf16> to vector<2x36xbf16>
    %cst_285 = arith.constant dense<0.000000e+00> : vector<2x32xf32>
    %566 = tpu.matmul %565, %0, %cst_285 {dimension_numbers = #tpu.dot_dimension_numbers<[1], [0], [0], [1], [0, 0, 1, 1], [], []>} : vector<2x36xbf16>, vector<36x32xbf16>, vector<2x32xf32> -> vector<2x32xf32>
    %567 = vector.broadcast %1 : vector<1x32xf32> to vector<2x32xf32>
    %568 = arith.addf %566, %567 : vector<2x32xf32>
    %cst_286 = arith.constant 0.000000e+00 : f32
    %569 = vector.broadcast %cst_286 : f32 to vector<2x32xf32>
    %570 = arith.maximumf %568, %569 : vector<2x32xf32>
    %571 = arith.truncf %570 : vector<2x32xf32> to vector<2x32xbf16>
    %572 = arith.index_cast %c40_i32 : i32 to index
    %c0_287 = arith.constant 0 : index
    %c0_288 = arith.constant 0 : index
    %573 = vector.load %arg4[%572, %c0_287, %c0_288] : memref<64x32x32xbf16, #tpu.memory_space<vmem>>, vector<1x32x32xbf16>
    %574 = vector.shape_cast %573 : vector<1x32x32xbf16> to vector<32x32xbf16>
    %cst_289 = arith.constant dense<0.000000e+00> : vector<2x32xf32>
    %575 = tpu.matmul %571, %574, %cst_289 {dimension_numbers = #tpu.dot_dimension_numbers<[1], [0], [0], [1], [0, 0, 1, 1], [], []>} : vector<2x32xbf16>, vector<32x32xbf16>, vector<2x32xf32> -> vector<2x32xf32>
    %576 = arith.addf %562, %575 : vector<2x32xf32>
    %c41_i32 = arith.constant 41 : i32
    %577 = arith.index_cast %c41_i32 : i32 to index
    %c0_290 = arith.constant 0 : index
    %c0_291 = arith.constant 0 : index
    %578 = vector.load %arg1[%577, %c0_290, %c0_291] : memref<64x2x36xbf16, #tpu.memory_space<vmem>>, vector<1x2x36xbf16>
    %579 = vector.shape_cast %578 : vector<1x2x36xbf16> to vector<2x36xbf16>
    %cst_292 = arith.constant dense<0.000000e+00> : vector<2x32xf32>
    %580 = tpu.matmul %579, %0, %cst_292 {dimension_numbers = #tpu.dot_dimension_numbers<[1], [0], [0], [1], [0, 0, 1, 1], [], []>} : vector<2x36xbf16>, vector<36x32xbf16>, vector<2x32xf32> -> vector<2x32xf32>
    %581 = vector.broadcast %1 : vector<1x32xf32> to vector<2x32xf32>
    %582 = arith.addf %580, %581 : vector<2x32xf32>
    %cst_293 = arith.constant 0.000000e+00 : f32
    %583 = vector.broadcast %cst_293 : f32 to vector<2x32xf32>
    %584 = arith.maximumf %582, %583 : vector<2x32xf32>
    %585 = arith.truncf %584 : vector<2x32xf32> to vector<2x32xbf16>
    %586 = arith.index_cast %c41_i32 : i32 to index
    %c0_294 = arith.constant 0 : index
    %c0_295 = arith.constant 0 : index
    %587 = vector.load %arg4[%586, %c0_294, %c0_295] : memref<64x32x32xbf16, #tpu.memory_space<vmem>>, vector<1x32x32xbf16>
    %588 = vector.shape_cast %587 : vector<1x32x32xbf16> to vector<32x32xbf16>
    %cst_296 = arith.constant dense<0.000000e+00> : vector<2x32xf32>
    %589 = tpu.matmul %585, %588, %cst_296 {dimension_numbers = #tpu.dot_dimension_numbers<[1], [0], [0], [1], [0, 0, 1, 1], [], []>} : vector<2x32xbf16>, vector<32x32xbf16>, vector<2x32xf32> -> vector<2x32xf32>
    %590 = arith.addf %576, %589 : vector<2x32xf32>
    %c42_i32 = arith.constant 42 : i32
    %591 = arith.index_cast %c42_i32 : i32 to index
    %c0_297 = arith.constant 0 : index
    %c0_298 = arith.constant 0 : index
    %592 = vector.load %arg1[%591, %c0_297, %c0_298] : memref<64x2x36xbf16, #tpu.memory_space<vmem>>, vector<1x2x36xbf16>
    %593 = vector.shape_cast %592 : vector<1x2x36xbf16> to vector<2x36xbf16>
    %cst_299 = arith.constant dense<0.000000e+00> : vector<2x32xf32>
    %594 = tpu.matmul %593, %0, %cst_299 {dimension_numbers = #tpu.dot_dimension_numbers<[1], [0], [0], [1], [0, 0, 1, 1], [], []>} : vector<2x36xbf16>, vector<36x32xbf16>, vector<2x32xf32> -> vector<2x32xf32>
    %595 = vector.broadcast %1 : vector<1x32xf32> to vector<2x32xf32>
    %596 = arith.addf %594, %595 : vector<2x32xf32>
    %cst_300 = arith.constant 0.000000e+00 : f32
    %597 = vector.broadcast %cst_300 : f32 to vector<2x32xf32>
    %598 = arith.maximumf %596, %597 : vector<2x32xf32>
    %599 = arith.truncf %598 : vector<2x32xf32> to vector<2x32xbf16>
    %600 = arith.index_cast %c42_i32 : i32 to index
    %c0_301 = arith.constant 0 : index
    %c0_302 = arith.constant 0 : index
    %601 = vector.load %arg4[%600, %c0_301, %c0_302] : memref<64x32x32xbf16, #tpu.memory_space<vmem>>, vector<1x32x32xbf16>
    %602 = vector.shape_cast %601 : vector<1x32x32xbf16> to vector<32x32xbf16>
    %cst_303 = arith.constant dense<0.000000e+00> : vector<2x32xf32>
    %603 = tpu.matmul %599, %602, %cst_303 {dimension_numbers = #tpu.dot_dimension_numbers<[1], [0], [0], [1], [0, 0, 1, 1], [], []>} : vector<2x32xbf16>, vector<32x32xbf16>, vector<2x32xf32> -> vector<2x32xf32>
    %604 = arith.addf %590, %603 : vector<2x32xf32>
    %c43_i32 = arith.constant 43 : i32
    %605 = arith.index_cast %c43_i32 : i32 to index
    %c0_304 = arith.constant 0 : index
    %c0_305 = arith.constant 0 : index
    %606 = vector.load %arg1[%605, %c0_304, %c0_305] : memref<64x2x36xbf16, #tpu.memory_space<vmem>>, vector<1x2x36xbf16>
    %607 = vector.shape_cast %606 : vector<1x2x36xbf16> to vector<2x36xbf16>
    %cst_306 = arith.constant dense<0.000000e+00> : vector<2x32xf32>
    %608 = tpu.matmul %607, %0, %cst_306 {dimension_numbers = #tpu.dot_dimension_numbers<[1], [0], [0], [1], [0, 0, 1, 1], [], []>} : vector<2x36xbf16>, vector<36x32xbf16>, vector<2x32xf32> -> vector<2x32xf32>
    %609 = vector.broadcast %1 : vector<1x32xf32> to vector<2x32xf32>
    %610 = arith.addf %608, %609 : vector<2x32xf32>
    %cst_307 = arith.constant 0.000000e+00 : f32
    %611 = vector.broadcast %cst_307 : f32 to vector<2x32xf32>
    %612 = arith.maximumf %610, %611 : vector<2x32xf32>
    %613 = arith.truncf %612 : vector<2x32xf32> to vector<2x32xbf16>
    %614 = arith.index_cast %c43_i32 : i32 to index
    %c0_308 = arith.constant 0 : index
    %c0_309 = arith.constant 0 : index
    %615 = vector.load %arg4[%614, %c0_308, %c0_309] : memref<64x32x32xbf16, #tpu.memory_space<vmem>>, vector<1x32x32xbf16>
    %616 = vector.shape_cast %615 : vector<1x32x32xbf16> to vector<32x32xbf16>
    %cst_310 = arith.constant dense<0.000000e+00> : vector<2x32xf32>
    %617 = tpu.matmul %613, %616, %cst_310 {dimension_numbers = #tpu.dot_dimension_numbers<[1], [0], [0], [1], [0, 0, 1, 1], [], []>} : vector<2x32xbf16>, vector<32x32xbf16>, vector<2x32xf32> -> vector<2x32xf32>
    %618 = arith.addf %604, %617 : vector<2x32xf32>
    %c44_i32 = arith.constant 44 : i32
    %619 = arith.index_cast %c44_i32 : i32 to index
    %c0_311 = arith.constant 0 : index
    %c0_312 = arith.constant 0 : index
    %620 = vector.load %arg1[%619, %c0_311, %c0_312] : memref<64x2x36xbf16, #tpu.memory_space<vmem>>, vector<1x2x36xbf16>
    %621 = vector.shape_cast %620 : vector<1x2x36xbf16> to vector<2x36xbf16>
    %cst_313 = arith.constant dense<0.000000e+00> : vector<2x32xf32>
    %622 = tpu.matmul %621, %0, %cst_313 {dimension_numbers = #tpu.dot_dimension_numbers<[1], [0], [0], [1], [0, 0, 1, 1], [], []>} : vector<2x36xbf16>, vector<36x32xbf16>, vector<2x32xf32> -> vector<2x32xf32>
    %623 = vector.broadcast %1 : vector<1x32xf32> to vector<2x32xf32>
    %624 = arith.addf %622, %623 : vector<2x32xf32>
    %cst_314 = arith.constant 0.000000e+00 : f32
    %625 = vector.broadcast %cst_314 : f32 to vector<2x32xf32>
    %626 = arith.maximumf %624, %625 : vector<2x32xf32>
    %627 = arith.truncf %626 : vector<2x32xf32> to vector<2x32xbf16>
    %628 = arith.index_cast %c44_i32 : i32 to index
    %c0_315 = arith.constant 0 : index
    %c0_316 = arith.constant 0 : index
    %629 = vector.load %arg4[%628, %c0_315, %c0_316] : memref<64x32x32xbf16, #tpu.memory_space<vmem>>, vector<1x32x32xbf16>
    %630 = vector.shape_cast %629 : vector<1x32x32xbf16> to vector<32x32xbf16>
    %cst_317 = arith.constant dense<0.000000e+00> : vector<2x32xf32>
    %631 = tpu.matmul %627, %630, %cst_317 {dimension_numbers = #tpu.dot_dimension_numbers<[1], [0], [0], [1], [0, 0, 1, 1], [], []>} : vector<2x32xbf16>, vector<32x32xbf16>, vector<2x32xf32> -> vector<2x32xf32>
    %632 = arith.addf %618, %631 : vector<2x32xf32>
    %c45_i32 = arith.constant 45 : i32
    %633 = arith.index_cast %c45_i32 : i32 to index
    %c0_318 = arith.constant 0 : index
    %c0_319 = arith.constant 0 : index
    %634 = vector.load %arg1[%633, %c0_318, %c0_319] : memref<64x2x36xbf16, #tpu.memory_space<vmem>>, vector<1x2x36xbf16>
    %635 = vector.shape_cast %634 : vector<1x2x36xbf16> to vector<2x36xbf16>
    %cst_320 = arith.constant dense<0.000000e+00> : vector<2x32xf32>
    %636 = tpu.matmul %635, %0, %cst_320 {dimension_numbers = #tpu.dot_dimension_numbers<[1], [0], [0], [1], [0, 0, 1, 1], [], []>} : vector<2x36xbf16>, vector<36x32xbf16>, vector<2x32xf32> -> vector<2x32xf32>
    %637 = vector.broadcast %1 : vector<1x32xf32> to vector<2x32xf32>
    %638 = arith.addf %636, %637 : vector<2x32xf32>
    %cst_321 = arith.constant 0.000000e+00 : f32
    %639 = vector.broadcast %cst_321 : f32 to vector<2x32xf32>
    %640 = arith.maximumf %638, %639 : vector<2x32xf32>
    %641 = arith.truncf %640 : vector<2x32xf32> to vector<2x32xbf16>
    %642 = arith.index_cast %c45_i32 : i32 to index
    %c0_322 = arith.constant 0 : index
    %c0_323 = arith.constant 0 : index
    %643 = vector.load %arg4[%642, %c0_322, %c0_323] : memref<64x32x32xbf16, #tpu.memory_space<vmem>>, vector<1x32x32xbf16>
    %644 = vector.shape_cast %643 : vector<1x32x32xbf16> to vector<32x32xbf16>
    %cst_324 = arith.constant dense<0.000000e+00> : vector<2x32xf32>
    %645 = tpu.matmul %641, %644, %cst_324 {dimension_numbers = #tpu.dot_dimension_numbers<[1], [0], [0], [1], [0, 0, 1, 1], [], []>} : vector<2x32xbf16>, vector<32x32xbf16>, vector<2x32xf32> -> vector<2x32xf32>
    %646 = arith.addf %632, %645 : vector<2x32xf32>
    %c46_i32 = arith.constant 46 : i32
    %647 = arith.index_cast %c46_i32 : i32 to index
    %c0_325 = arith.constant 0 : index
    %c0_326 = arith.constant 0 : index
    %648 = vector.load %arg1[%647, %c0_325, %c0_326] : memref<64x2x36xbf16, #tpu.memory_space<vmem>>, vector<1x2x36xbf16>
    %649 = vector.shape_cast %648 : vector<1x2x36xbf16> to vector<2x36xbf16>
    %cst_327 = arith.constant dense<0.000000e+00> : vector<2x32xf32>
    %650 = tpu.matmul %649, %0, %cst_327 {dimension_numbers = #tpu.dot_dimension_numbers<[1], [0], [0], [1], [0, 0, 1, 1], [], []>} : vector<2x36xbf16>, vector<36x32xbf16>, vector<2x32xf32> -> vector<2x32xf32>
    %651 = vector.broadcast %1 : vector<1x32xf32> to vector<2x32xf32>
    %652 = arith.addf %650, %651 : vector<2x32xf32>
    %cst_328 = arith.constant 0.000000e+00 : f32
    %653 = vector.broadcast %cst_328 : f32 to vector<2x32xf32>
    %654 = arith.maximumf %652, %653 : vector<2x32xf32>
    %655 = arith.truncf %654 : vector<2x32xf32> to vector<2x32xbf16>
    %656 = arith.index_cast %c46_i32 : i32 to index
    %c0_329 = arith.constant 0 : index
    %c0_330 = arith.constant 0 : index
    %657 = vector.load %arg4[%656, %c0_329, %c0_330] : memref<64x32x32xbf16, #tpu.memory_space<vmem>>, vector<1x32x32xbf16>
    %658 = vector.shape_cast %657 : vector<1x32x32xbf16> to vector<32x32xbf16>
    %cst_331 = arith.constant dense<0.000000e+00> : vector<2x32xf32>
    %659 = tpu.matmul %655, %658, %cst_331 {dimension_numbers = #tpu.dot_dimension_numbers<[1], [0], [0], [1], [0, 0, 1, 1], [], []>} : vector<2x32xbf16>, vector<32x32xbf16>, vector<2x32xf32> -> vector<2x32xf32>
    %660 = arith.addf %646, %659 : vector<2x32xf32>
    %c47_i32 = arith.constant 47 : i32
    %661 = arith.index_cast %c47_i32 : i32 to index
    %c0_332 = arith.constant 0 : index
    %c0_333 = arith.constant 0 : index
    %662 = vector.load %arg1[%661, %c0_332, %c0_333] : memref<64x2x36xbf16, #tpu.memory_space<vmem>>, vector<1x2x36xbf16>
    %663 = vector.shape_cast %662 : vector<1x2x36xbf16> to vector<2x36xbf16>
    %cst_334 = arith.constant dense<0.000000e+00> : vector<2x32xf32>
    %664 = tpu.matmul %663, %0, %cst_334 {dimension_numbers = #tpu.dot_dimension_numbers<[1], [0], [0], [1], [0, 0, 1, 1], [], []>} : vector<2x36xbf16>, vector<36x32xbf16>, vector<2x32xf32> -> vector<2x32xf32>
    %665 = vector.broadcast %1 : vector<1x32xf32> to vector<2x32xf32>
    %666 = arith.addf %664, %665 : vector<2x32xf32>
    %cst_335 = arith.constant 0.000000e+00 : f32
    %667 = vector.broadcast %cst_335 : f32 to vector<2x32xf32>
    %668 = arith.maximumf %666, %667 : vector<2x32xf32>
    %669 = arith.truncf %668 : vector<2x32xf32> to vector<2x32xbf16>
    %670 = arith.index_cast %c47_i32 : i32 to index
    %c0_336 = arith.constant 0 : index
    %c0_337 = arith.constant 0 : index
    %671 = vector.load %arg4[%670, %c0_336, %c0_337] : memref<64x32x32xbf16, #tpu.memory_space<vmem>>, vector<1x32x32xbf16>
    %672 = vector.shape_cast %671 : vector<1x32x32xbf16> to vector<32x32xbf16>
    %cst_338 = arith.constant dense<0.000000e+00> : vector<2x32xf32>
    %673 = tpu.matmul %669, %672, %cst_338 {dimension_numbers = #tpu.dot_dimension_numbers<[1], [0], [0], [1], [0, 0, 1, 1], [], []>} : vector<2x32xbf16>, vector<32x32xbf16>, vector<2x32xf32> -> vector<2x32xf32>
    %674 = arith.addf %660, %673 : vector<2x32xf32>
    %c48_i32 = arith.constant 48 : i32
    %675 = arith.index_cast %c48_i32 : i32 to index
    %c0_339 = arith.constant 0 : index
    %c0_340 = arith.constant 0 : index
    %676 = vector.load %arg1[%675, %c0_339, %c0_340] : memref<64x2x36xbf16, #tpu.memory_space<vmem>>, vector<1x2x36xbf16>
    %677 = vector.shape_cast %676 : vector<1x2x36xbf16> to vector<2x36xbf16>
    %cst_341 = arith.constant dense<0.000000e+00> : vector<2x32xf32>
    %678 = tpu.matmul %677, %0, %cst_341 {dimension_numbers = #tpu.dot_dimension_numbers<[1], [0], [0], [1], [0, 0, 1, 1], [], []>} : vector<2x36xbf16>, vector<36x32xbf16>, vector<2x32xf32> -> vector<2x32xf32>
    %679 = vector.broadcast %1 : vector<1x32xf32> to vector<2x32xf32>
    %680 = arith.addf %678, %679 : vector<2x32xf32>
    %cst_342 = arith.constant 0.000000e+00 : f32
    %681 = vector.broadcast %cst_342 : f32 to vector<2x32xf32>
    %682 = arith.maximumf %680, %681 : vector<2x32xf32>
    %683 = arith.truncf %682 : vector<2x32xf32> to vector<2x32xbf16>
    %684 = arith.index_cast %c48_i32 : i32 to index
    %c0_343 = arith.constant 0 : index
    %c0_344 = arith.constant 0 : index
    %685 = vector.load %arg4[%684, %c0_343, %c0_344] : memref<64x32x32xbf16, #tpu.memory_space<vmem>>, vector<1x32x32xbf16>
    %686 = vector.shape_cast %685 : vector<1x32x32xbf16> to vector<32x32xbf16>
    %cst_345 = arith.constant dense<0.000000e+00> : vector<2x32xf32>
    %687 = tpu.matmul %683, %686, %cst_345 {dimension_numbers = #tpu.dot_dimension_numbers<[1], [0], [0], [1], [0, 0, 1, 1], [], []>} : vector<2x32xbf16>, vector<32x32xbf16>, vector<2x32xf32> -> vector<2x32xf32>
    %688 = arith.addf %674, %687 : vector<2x32xf32>
    %c49_i32 = arith.constant 49 : i32
    %689 = arith.index_cast %c49_i32 : i32 to index
    %c0_346 = arith.constant 0 : index
    %c0_347 = arith.constant 0 : index
    %690 = vector.load %arg1[%689, %c0_346, %c0_347] : memref<64x2x36xbf16, #tpu.memory_space<vmem>>, vector<1x2x36xbf16>
    %691 = vector.shape_cast %690 : vector<1x2x36xbf16> to vector<2x36xbf16>
    %cst_348 = arith.constant dense<0.000000e+00> : vector<2x32xf32>
    %692 = tpu.matmul %691, %0, %cst_348 {dimension_numbers = #tpu.dot_dimension_numbers<[1], [0], [0], [1], [0, 0, 1, 1], [], []>} : vector<2x36xbf16>, vector<36x32xbf16>, vector<2x32xf32> -> vector<2x32xf32>
    %693 = vector.broadcast %1 : vector<1x32xf32> to vector<2x32xf32>
    %694 = arith.addf %692, %693 : vector<2x32xf32>
    %cst_349 = arith.constant 0.000000e+00 : f32
    %695 = vector.broadcast %cst_349 : f32 to vector<2x32xf32>
    %696 = arith.maximumf %694, %695 : vector<2x32xf32>
    %697 = arith.truncf %696 : vector<2x32xf32> to vector<2x32xbf16>
    %698 = arith.index_cast %c49_i32 : i32 to index
    %c0_350 = arith.constant 0 : index
    %c0_351 = arith.constant 0 : index
    %699 = vector.load %arg4[%698, %c0_350, %c0_351] : memref<64x32x32xbf16, #tpu.memory_space<vmem>>, vector<1x32x32xbf16>
    %700 = vector.shape_cast %699 : vector<1x32x32xbf16> to vector<32x32xbf16>
    %cst_352 = arith.constant dense<0.000000e+00> : vector<2x32xf32>
    %701 = tpu.matmul %697, %700, %cst_352 {dimension_numbers = #tpu.dot_dimension_numbers<[1], [0], [0], [1], [0, 0, 1, 1], [], []>} : vector<2x32xbf16>, vector<32x32xbf16>, vector<2x32xf32> -> vector<2x32xf32>
    %702 = arith.addf %688, %701 : vector<2x32xf32>
    %c50_i32 = arith.constant 50 : i32
    %703 = arith.index_cast %c50_i32 : i32 to index
    %c0_353 = arith.constant 0 : index
    %c0_354 = arith.constant 0 : index
    %704 = vector.load %arg1[%703, %c0_353, %c0_354] : memref<64x2x36xbf16, #tpu.memory_space<vmem>>, vector<1x2x36xbf16>
    %705 = vector.shape_cast %704 : vector<1x2x36xbf16> to vector<2x36xbf16>
    %cst_355 = arith.constant dense<0.000000e+00> : vector<2x32xf32>
    %706 = tpu.matmul %705, %0, %cst_355 {dimension_numbers = #tpu.dot_dimension_numbers<[1], [0], [0], [1], [0, 0, 1, 1], [], []>} : vector<2x36xbf16>, vector<36x32xbf16>, vector<2x32xf32> -> vector<2x32xf32>
    %707 = vector.broadcast %1 : vector<1x32xf32> to vector<2x32xf32>
    %708 = arith.addf %706, %707 : vector<2x32xf32>
    %cst_356 = arith.constant 0.000000e+00 : f32
    %709 = vector.broadcast %cst_356 : f32 to vector<2x32xf32>
    %710 = arith.maximumf %708, %709 : vector<2x32xf32>
    %711 = arith.truncf %710 : vector<2x32xf32> to vector<2x32xbf16>
    %712 = arith.index_cast %c50_i32 : i32 to index
    %c0_357 = arith.constant 0 : index
    %c0_358 = arith.constant 0 : index
    %713 = vector.load %arg4[%712, %c0_357, %c0_358] : memref<64x32x32xbf16, #tpu.memory_space<vmem>>, vector<1x32x32xbf16>
    %714 = vector.shape_cast %713 : vector<1x32x32xbf16> to vector<32x32xbf16>
    %cst_359 = arith.constant dense<0.000000e+00> : vector<2x32xf32>
    %715 = tpu.matmul %711, %714, %cst_359 {dimension_numbers = #tpu.dot_dimension_numbers<[1], [0], [0], [1], [0, 0, 1, 1], [], []>} : vector<2x32xbf16>, vector<32x32xbf16>, vector<2x32xf32> -> vector<2x32xf32>
    %716 = arith.addf %702, %715 : vector<2x32xf32>
    %c51_i32 = arith.constant 51 : i32
    %717 = arith.index_cast %c51_i32 : i32 to index
    %c0_360 = arith.constant 0 : index
    %c0_361 = arith.constant 0 : index
    %718 = vector.load %arg1[%717, %c0_360, %c0_361] : memref<64x2x36xbf16, #tpu.memory_space<vmem>>, vector<1x2x36xbf16>
    %719 = vector.shape_cast %718 : vector<1x2x36xbf16> to vector<2x36xbf16>
    %cst_362 = arith.constant dense<0.000000e+00> : vector<2x32xf32>
    %720 = tpu.matmul %719, %0, %cst_362 {dimension_numbers = #tpu.dot_dimension_numbers<[1], [0], [0], [1], [0, 0, 1, 1], [], []>} : vector<2x36xbf16>, vector<36x32xbf16>, vector<2x32xf32> -> vector<2x32xf32>
    %721 = vector.broadcast %1 : vector<1x32xf32> to vector<2x32xf32>
    %722 = arith.addf %720, %721 : vector<2x32xf32>
    %cst_363 = arith.constant 0.000000e+00 : f32
    %723 = vector.broadcast %cst_363 : f32 to vector<2x32xf32>
    %724 = arith.maximumf %722, %723 : vector<2x32xf32>
    %725 = arith.truncf %724 : vector<2x32xf32> to vector<2x32xbf16>
    %726 = arith.index_cast %c51_i32 : i32 to index
    %c0_364 = arith.constant 0 : index
    %c0_365 = arith.constant 0 : index
    %727 = vector.load %arg4[%726, %c0_364, %c0_365] : memref<64x32x32xbf16, #tpu.memory_space<vmem>>, vector<1x32x32xbf16>
    %728 = vector.shape_cast %727 : vector<1x32x32xbf16> to vector<32x32xbf16>
    %cst_366 = arith.constant dense<0.000000e+00> : vector<2x32xf32>
    %729 = tpu.matmul %725, %728, %cst_366 {dimension_numbers = #tpu.dot_dimension_numbers<[1], [0], [0], [1], [0, 0, 1, 1], [], []>} : vector<2x32xbf16>, vector<32x32xbf16>, vector<2x32xf32> -> vector<2x32xf32>
    %730 = arith.addf %716, %729 : vector<2x32xf32>
    %c52_i32 = arith.constant 52 : i32
    %731 = arith.index_cast %c52_i32 : i32 to index
    %c0_367 = arith.constant 0 : index
    %c0_368 = arith.constant 0 : index
    %732 = vector.load %arg1[%731, %c0_367, %c0_368] : memref<64x2x36xbf16, #tpu.memory_space<vmem>>, vector<1x2x36xbf16>
    %733 = vector.shape_cast %732 : vector<1x2x36xbf16> to vector<2x36xbf16>
    %cst_369 = arith.constant dense<0.000000e+00> : vector<2x32xf32>
    %734 = tpu.matmul %733, %0, %cst_369 {dimension_numbers = #tpu.dot_dimension_numbers<[1], [0], [0], [1], [0, 0, 1, 1], [], []>} : vector<2x36xbf16>, vector<36x32xbf16>, vector<2x32xf32> -> vector<2x32xf32>
    %735 = vector.broadcast %1 : vector<1x32xf32> to vector<2x32xf32>
    %736 = arith.addf %734, %735 : vector<2x32xf32>
    %cst_370 = arith.constant 0.000000e+00 : f32
    %737 = vector.broadcast %cst_370 : f32 to vector<2x32xf32>
    %738 = arith.maximumf %736, %737 : vector<2x32xf32>
    %739 = arith.truncf %738 : vector<2x32xf32> to vector<2x32xbf16>
    %740 = arith.index_cast %c52_i32 : i32 to index
    %c0_371 = arith.constant 0 : index
    %c0_372 = arith.constant 0 : index
    %741 = vector.load %arg4[%740, %c0_371, %c0_372] : memref<64x32x32xbf16, #tpu.memory_space<vmem>>, vector<1x32x32xbf16>
    %742 = vector.shape_cast %741 : vector<1x32x32xbf16> to vector<32x32xbf16>
    %cst_373 = arith.constant dense<0.000000e+00> : vector<2x32xf32>
    %743 = tpu.matmul %739, %742, %cst_373 {dimension_numbers = #tpu.dot_dimension_numbers<[1], [0], [0], [1], [0, 0, 1, 1], [], []>} : vector<2x32xbf16>, vector<32x32xbf16>, vector<2x32xf32> -> vector<2x32xf32>
    %744 = arith.addf %730, %743 : vector<2x32xf32>
    %c53_i32 = arith.constant 53 : i32
    %745 = arith.index_cast %c53_i32 : i32 to index
    %c0_374 = arith.constant 0 : index
    %c0_375 = arith.constant 0 : index
    %746 = vector.load %arg1[%745, %c0_374, %c0_375] : memref<64x2x36xbf16, #tpu.memory_space<vmem>>, vector<1x2x36xbf16>
    %747 = vector.shape_cast %746 : vector<1x2x36xbf16> to vector<2x36xbf16>
    %cst_376 = arith.constant dense<0.000000e+00> : vector<2x32xf32>
    %748 = tpu.matmul %747, %0, %cst_376 {dimension_numbers = #tpu.dot_dimension_numbers<[1], [0], [0], [1], [0, 0, 1, 1], [], []>} : vector<2x36xbf16>, vector<36x32xbf16>, vector<2x32xf32> -> vector<2x32xf32>
    %749 = vector.broadcast %1 : vector<1x32xf32> to vector<2x32xf32>
    %750 = arith.addf %748, %749 : vector<2x32xf32>
    %cst_377 = arith.constant 0.000000e+00 : f32
    %751 = vector.broadcast %cst_377 : f32 to vector<2x32xf32>
    %752 = arith.maximumf %750, %751 : vector<2x32xf32>
    %753 = arith.truncf %752 : vector<2x32xf32> to vector<2x32xbf16>
    %754 = arith.index_cast %c53_i32 : i32 to index
    %c0_378 = arith.constant 0 : index
    %c0_379 = arith.constant 0 : index
    %755 = vector.load %arg4[%754, %c0_378, %c0_379] : memref<64x32x32xbf16, #tpu.memory_space<vmem>>, vector<1x32x32xbf16>
    %756 = vector.shape_cast %755 : vector<1x32x32xbf16> to vector<32x32xbf16>
    %cst_380 = arith.constant dense<0.000000e+00> : vector<2x32xf32>
    %757 = tpu.matmul %753, %756, %cst_380 {dimension_numbers = #tpu.dot_dimension_numbers<[1], [0], [0], [1], [0, 0, 1, 1], [], []>} : vector<2x32xbf16>, vector<32x32xbf16>, vector<2x32xf32> -> vector<2x32xf32>
    %758 = arith.addf %744, %757 : vector<2x32xf32>
    %c54_i32 = arith.constant 54 : i32
    %759 = arith.index_cast %c54_i32 : i32 to index
    %c0_381 = arith.constant 0 : index
    %c0_382 = arith.constant 0 : index
    %760 = vector.load %arg1[%759, %c0_381, %c0_382] : memref<64x2x36xbf16, #tpu.memory_space<vmem>>, vector<1x2x36xbf16>
    %761 = vector.shape_cast %760 : vector<1x2x36xbf16> to vector<2x36xbf16>
    %cst_383 = arith.constant dense<0.000000e+00> : vector<2x32xf32>
    %762 = tpu.matmul %761, %0, %cst_383 {dimension_numbers = #tpu.dot_dimension_numbers<[1], [0], [0], [1], [0, 0, 1, 1], [], []>} : vector<2x36xbf16>, vector<36x32xbf16>, vector<2x32xf32> -> vector<2x32xf32>
    %763 = vector.broadcast %1 : vector<1x32xf32> to vector<2x32xf32>
    %764 = arith.addf %762, %763 : vector<2x32xf32>
    %cst_384 = arith.constant 0.000000e+00 : f32
    %765 = vector.broadcast %cst_384 : f32 to vector<2x32xf32>
    %766 = arith.maximumf %764, %765 : vector<2x32xf32>
    %767 = arith.truncf %766 : vector<2x32xf32> to vector<2x32xbf16>
    %768 = arith.index_cast %c54_i32 : i32 to index
    %c0_385 = arith.constant 0 : index
    %c0_386 = arith.constant 0 : index
    %769 = vector.load %arg4[%768, %c0_385, %c0_386] : memref<64x32x32xbf16, #tpu.memory_space<vmem>>, vector<1x32x32xbf16>
    %770 = vector.shape_cast %769 : vector<1x32x32xbf16> to vector<32x32xbf16>
    %cst_387 = arith.constant dense<0.000000e+00> : vector<2x32xf32>
    %771 = tpu.matmul %767, %770, %cst_387 {dimension_numbers = #tpu.dot_dimension_numbers<[1], [0], [0], [1], [0, 0, 1, 1], [], []>} : vector<2x32xbf16>, vector<32x32xbf16>, vector<2x32xf32> -> vector<2x32xf32>
    %772 = arith.addf %758, %771 : vector<2x32xf32>
    %c55_i32 = arith.constant 55 : i32
    %773 = arith.index_cast %c55_i32 : i32 to index
    %c0_388 = arith.constant 0 : index
    %c0_389 = arith.constant 0 : index
    %774 = vector.load %arg1[%773, %c0_388, %c0_389] : memref<64x2x36xbf16, #tpu.memory_space<vmem>>, vector<1x2x36xbf16>
    %775 = vector.shape_cast %774 : vector<1x2x36xbf16> to vector<2x36xbf16>
    %cst_390 = arith.constant dense<0.000000e+00> : vector<2x32xf32>
    %776 = tpu.matmul %775, %0, %cst_390 {dimension_numbers = #tpu.dot_dimension_numbers<[1], [0], [0], [1], [0, 0, 1, 1], [], []>} : vector<2x36xbf16>, vector<36x32xbf16>, vector<2x32xf32> -> vector<2x32xf32>
    %777 = vector.broadcast %1 : vector<1x32xf32> to vector<2x32xf32>
    %778 = arith.addf %776, %777 : vector<2x32xf32>
    %cst_391 = arith.constant 0.000000e+00 : f32
    %779 = vector.broadcast %cst_391 : f32 to vector<2x32xf32>
    %780 = arith.maximumf %778, %779 : vector<2x32xf32>
    %781 = arith.truncf %780 : vector<2x32xf32> to vector<2x32xbf16>
    %782 = arith.index_cast %c55_i32 : i32 to index
    %c0_392 = arith.constant 0 : index
    %c0_393 = arith.constant 0 : index
    %783 = vector.load %arg4[%782, %c0_392, %c0_393] : memref<64x32x32xbf16, #tpu.memory_space<vmem>>, vector<1x32x32xbf16>
    %784 = vector.shape_cast %783 : vector<1x32x32xbf16> to vector<32x32xbf16>
    %cst_394 = arith.constant dense<0.000000e+00> : vector<2x32xf32>
    %785 = tpu.matmul %781, %784, %cst_394 {dimension_numbers = #tpu.dot_dimension_numbers<[1], [0], [0], [1], [0, 0, 1, 1], [], []>} : vector<2x32xbf16>, vector<32x32xbf16>, vector<2x32xf32> -> vector<2x32xf32>
    %786 = arith.addf %772, %785 : vector<2x32xf32>
    %c56_i32 = arith.constant 56 : i32
    %787 = arith.index_cast %c56_i32 : i32 to index
    %c0_395 = arith.constant 0 : index
    %c0_396 = arith.constant 0 : index
    %788 = vector.load %arg1[%787, %c0_395, %c0_396] : memref<64x2x36xbf16, #tpu.memory_space<vmem>>, vector<1x2x36xbf16>
    %789 = vector.shape_cast %788 : vector<1x2x36xbf16> to vector<2x36xbf16>
    %cst_397 = arith.constant dense<0.000000e+00> : vector<2x32xf32>
    %790 = tpu.matmul %789, %0, %cst_397 {dimension_numbers = #tpu.dot_dimension_numbers<[1], [0], [0], [1], [0, 0, 1, 1], [], []>} : vector<2x36xbf16>, vector<36x32xbf16>, vector<2x32xf32> -> vector<2x32xf32>
    %791 = vector.broadcast %1 : vector<1x32xf32> to vector<2x32xf32>
    %792 = arith.addf %790, %791 : vector<2x32xf32>
    %cst_398 = arith.constant 0.000000e+00 : f32
    %793 = vector.broadcast %cst_398 : f32 to vector<2x32xf32>
    %794 = arith.maximumf %792, %793 : vector<2x32xf32>
    %795 = arith.truncf %794 : vector<2x32xf32> to vector<2x32xbf16>
    %796 = arith.index_cast %c56_i32 : i32 to index
    %c0_399 = arith.constant 0 : index
    %c0_400 = arith.constant 0 : index
    %797 = vector.load %arg4[%796, %c0_399, %c0_400] : memref<64x32x32xbf16, #tpu.memory_space<vmem>>, vector<1x32x32xbf16>
    %798 = vector.shape_cast %797 : vector<1x32x32xbf16> to vector<32x32xbf16>
    %cst_401 = arith.constant dense<0.000000e+00> : vector<2x32xf32>
    %799 = tpu.matmul %795, %798, %cst_401 {dimension_numbers = #tpu.dot_dimension_numbers<[1], [0], [0], [1], [0, 0, 1, 1], [], []>} : vector<2x32xbf16>, vector<32x32xbf16>, vector<2x32xf32> -> vector<2x32xf32>
    %800 = arith.addf %786, %799 : vector<2x32xf32>
    %c57_i32 = arith.constant 57 : i32
    %801 = arith.index_cast %c57_i32 : i32 to index
    %c0_402 = arith.constant 0 : index
    %c0_403 = arith.constant 0 : index
    %802 = vector.load %arg1[%801, %c0_402, %c0_403] : memref<64x2x36xbf16, #tpu.memory_space<vmem>>, vector<1x2x36xbf16>
    %803 = vector.shape_cast %802 : vector<1x2x36xbf16> to vector<2x36xbf16>
    %cst_404 = arith.constant dense<0.000000e+00> : vector<2x32xf32>
    %804 = tpu.matmul %803, %0, %cst_404 {dimension_numbers = #tpu.dot_dimension_numbers<[1], [0], [0], [1], [0, 0, 1, 1], [], []>} : vector<2x36xbf16>, vector<36x32xbf16>, vector<2x32xf32> -> vector<2x32xf32>
    %805 = vector.broadcast %1 : vector<1x32xf32> to vector<2x32xf32>
    %806 = arith.addf %804, %805 : vector<2x32xf32>
    %cst_405 = arith.constant 0.000000e+00 : f32
    %807 = vector.broadcast %cst_405 : f32 to vector<2x32xf32>
    %808 = arith.maximumf %806, %807 : vector<2x32xf32>
    %809 = arith.truncf %808 : vector<2x32xf32> to vector<2x32xbf16>
    %810 = arith.index_cast %c57_i32 : i32 to index
    %c0_406 = arith.constant 0 : index
    %c0_407 = arith.constant 0 : index
    %811 = vector.load %arg4[%810, %c0_406, %c0_407] : memref<64x32x32xbf16, #tpu.memory_space<vmem>>, vector<1x32x32xbf16>
    %812 = vector.shape_cast %811 : vector<1x32x32xbf16> to vector<32x32xbf16>
    %cst_408 = arith.constant dense<0.000000e+00> : vector<2x32xf32>
    %813 = tpu.matmul %809, %812, %cst_408 {dimension_numbers = #tpu.dot_dimension_numbers<[1], [0], [0], [1], [0, 0, 1, 1], [], []>} : vector<2x32xbf16>, vector<32x32xbf16>, vector<2x32xf32> -> vector<2x32xf32>
    %814 = arith.addf %800, %813 : vector<2x32xf32>
    %c58_i32 = arith.constant 58 : i32
    %815 = arith.index_cast %c58_i32 : i32 to index
    %c0_409 = arith.constant 0 : index
    %c0_410 = arith.constant 0 : index
    %816 = vector.load %arg1[%815, %c0_409, %c0_410] : memref<64x2x36xbf16, #tpu.memory_space<vmem>>, vector<1x2x36xbf16>
    %817 = vector.shape_cast %816 : vector<1x2x36xbf16> to vector<2x36xbf16>
    %cst_411 = arith.constant dense<0.000000e+00> : vector<2x32xf32>
    %818 = tpu.matmul %817, %0, %cst_411 {dimension_numbers = #tpu.dot_dimension_numbers<[1], [0], [0], [1], [0, 0, 1, 1], [], []>} : vector<2x36xbf16>, vector<36x32xbf16>, vector<2x32xf32> -> vector<2x32xf32>
    %819 = vector.broadcast %1 : vector<1x32xf32> to vector<2x32xf32>
    %820 = arith.addf %818, %819 : vector<2x32xf32>
    %cst_412 = arith.constant 0.000000e+00 : f32
    %821 = vector.broadcast %cst_412 : f32 to vector<2x32xf32>
    %822 = arith.maximumf %820, %821 : vector<2x32xf32>
    %823 = arith.truncf %822 : vector<2x32xf32> to vector<2x32xbf16>
    %824 = arith.index_cast %c58_i32 : i32 to index
    %c0_413 = arith.constant 0 : index
    %c0_414 = arith.constant 0 : index
    %825 = vector.load %arg4[%824, %c0_413, %c0_414] : memref<64x32x32xbf16, #tpu.memory_space<vmem>>, vector<1x32x32xbf16>
    %826 = vector.shape_cast %825 : vector<1x32x32xbf16> to vector<32x32xbf16>
    %cst_415 = arith.constant dense<0.000000e+00> : vector<2x32xf32>
    %827 = tpu.matmul %823, %826, %cst_415 {dimension_numbers = #tpu.dot_dimension_numbers<[1], [0], [0], [1], [0, 0, 1, 1], [], []>} : vector<2x32xbf16>, vector<32x32xbf16>, vector<2x32xf32> -> vector<2x32xf32>
    %828 = arith.addf %814, %827 : vector<2x32xf32>
    %c59_i32 = arith.constant 59 : i32
    %829 = arith.index_cast %c59_i32 : i32 to index
    %c0_416 = arith.constant 0 : index
    %c0_417 = arith.constant 0 : index
    %830 = vector.load %arg1[%829, %c0_416, %c0_417] : memref<64x2x36xbf16, #tpu.memory_space<vmem>>, vector<1x2x36xbf16>
    %831 = vector.shape_cast %830 : vector<1x2x36xbf16> to vector<2x36xbf16>
    %cst_418 = arith.constant dense<0.000000e+00> : vector<2x32xf32>
    %832 = tpu.matmul %831, %0, %cst_418 {dimension_numbers = #tpu.dot_dimension_numbers<[1], [0], [0], [1], [0, 0, 1, 1], [], []>} : vector<2x36xbf16>, vector<36x32xbf16>, vector<2x32xf32> -> vector<2x32xf32>
    %833 = vector.broadcast %1 : vector<1x32xf32> to vector<2x32xf32>
    %834 = arith.addf %832, %833 : vector<2x32xf32>
    %cst_419 = arith.constant 0.000000e+00 : f32
    %835 = vector.broadcast %cst_419 : f32 to vector<2x32xf32>
    %836 = arith.maximumf %834, %835 : vector<2x32xf32>
    %837 = arith.truncf %836 : vector<2x32xf32> to vector<2x32xbf16>
    %838 = arith.index_cast %c59_i32 : i32 to index
    %c0_420 = arith.constant 0 : index
    %c0_421 = arith.constant 0 : index
    %839 = vector.load %arg4[%838, %c0_420, %c0_421] : memref<64x32x32xbf16, #tpu.memory_space<vmem>>, vector<1x32x32xbf16>
    %840 = vector.shape_cast %839 : vector<1x32x32xbf16> to vector<32x32xbf16>
    %cst_422 = arith.constant dense<0.000000e+00> : vector<2x32xf32>
    %841 = tpu.matmul %837, %840, %cst_422 {dimension_numbers = #tpu.dot_dimension_numbers<[1], [0], [0], [1], [0, 0, 1, 1], [], []>} : vector<2x32xbf16>, vector<32x32xbf16>, vector<2x32xf32> -> vector<2x32xf32>
    %842 = arith.addf %828, %841 : vector<2x32xf32>
    %c60_i32 = arith.constant 60 : i32
    %843 = arith.index_cast %c60_i32 : i32 to index
    %c0_423 = arith.constant 0 : index
    %c0_424 = arith.constant 0 : index
    %844 = vector.load %arg1[%843, %c0_423, %c0_424] : memref<64x2x36xbf16, #tpu.memory_space<vmem>>, vector<1x2x36xbf16>
    %845 = vector.shape_cast %844 : vector<1x2x36xbf16> to vector<2x36xbf16>
    %cst_425 = arith.constant dense<0.000000e+00> : vector<2x32xf32>
    %846 = tpu.matmul %845, %0, %cst_425 {dimension_numbers = #tpu.dot_dimension_numbers<[1], [0], [0], [1], [0, 0, 1, 1], [], []>} : vector<2x36xbf16>, vector<36x32xbf16>, vector<2x32xf32> -> vector<2x32xf32>
    %847 = vector.broadcast %1 : vector<1x32xf32> to vector<2x32xf32>
    %848 = arith.addf %846, %847 : vector<2x32xf32>
    %cst_426 = arith.constant 0.000000e+00 : f32
    %849 = vector.broadcast %cst_426 : f32 to vector<2x32xf32>
    %850 = arith.maximumf %848, %849 : vector<2x32xf32>
    %851 = arith.truncf %850 : vector<2x32xf32> to vector<2x32xbf16>
    %852 = arith.index_cast %c60_i32 : i32 to index
    %c0_427 = arith.constant 0 : index
    %c0_428 = arith.constant 0 : index
    %853 = vector.load %arg4[%852, %c0_427, %c0_428] : memref<64x32x32xbf16, #tpu.memory_space<vmem>>, vector<1x32x32xbf16>
    %854 = vector.shape_cast %853 : vector<1x32x32xbf16> to vector<32x32xbf16>
    %cst_429 = arith.constant dense<0.000000e+00> : vector<2x32xf32>
    %855 = tpu.matmul %851, %854, %cst_429 {dimension_numbers = #tpu.dot_dimension_numbers<[1], [0], [0], [1], [0, 0, 1, 1], [], []>} : vector<2x32xbf16>, vector<32x32xbf16>, vector<2x32xf32> -> vector<2x32xf32>
    %856 = arith.addf %842, %855 : vector<2x32xf32>
    %c61_i32 = arith.constant 61 : i32
    %857 = arith.index_cast %c61_i32 : i32 to index
    %c0_430 = arith.constant 0 : index
    %c0_431 = arith.constant 0 : index
    %858 = vector.load %arg1[%857, %c0_430, %c0_431] : memref<64x2x36xbf16, #tpu.memory_space<vmem>>, vector<1x2x36xbf16>
    %859 = vector.shape_cast %858 : vector<1x2x36xbf16> to vector<2x36xbf16>
    %cst_432 = arith.constant dense<0.000000e+00> : vector<2x32xf32>
    %860 = tpu.matmul %859, %0, %cst_432 {dimension_numbers = #tpu.dot_dimension_numbers<[1], [0], [0], [1], [0, 0, 1, 1], [], []>} : vector<2x36xbf16>, vector<36x32xbf16>, vector<2x32xf32> -> vector<2x32xf32>
    %861 = vector.broadcast %1 : vector<1x32xf32> to vector<2x32xf32>
    %862 = arith.addf %860, %861 : vector<2x32xf32>
    %cst_433 = arith.constant 0.000000e+00 : f32
    %863 = vector.broadcast %cst_433 : f32 to vector<2x32xf32>
    %864 = arith.maximumf %862, %863 : vector<2x32xf32>
    %865 = arith.truncf %864 : vector<2x32xf32> to vector<2x32xbf16>
    %866 = arith.index_cast %c61_i32 : i32 to index
    %c0_434 = arith.constant 0 : index
    %c0_435 = arith.constant 0 : index
    %867 = vector.load %arg4[%866, %c0_434, %c0_435] : memref<64x32x32xbf16, #tpu.memory_space<vmem>>, vector<1x32x32xbf16>
    %868 = vector.shape_cast %867 : vector<1x32x32xbf16> to vector<32x32xbf16>
    %cst_436 = arith.constant dense<0.000000e+00> : vector<2x32xf32>
    %869 = tpu.matmul %865, %868, %cst_436 {dimension_numbers = #tpu.dot_dimension_numbers<[1], [0], [0], [1], [0, 0, 1, 1], [], []>} : vector<2x32xbf16>, vector<32x32xbf16>, vector<2x32xf32> -> vector<2x32xf32>
    %870 = arith.addf %856, %869 : vector<2x32xf32>
    %c62_i32 = arith.constant 62 : i32
    %871 = arith.index_cast %c62_i32 : i32 to index
    %c0_437 = arith.constant 0 : index
    %c0_438 = arith.constant 0 : index
    %872 = vector.load %arg1[%871, %c0_437, %c0_438] : memref<64x2x36xbf16, #tpu.memory_space<vmem>>, vector<1x2x36xbf16>
    %873 = vector.shape_cast %872 : vector<1x2x36xbf16> to vector<2x36xbf16>
    %cst_439 = arith.constant dense<0.000000e+00> : vector<2x32xf32>
    %874 = tpu.matmul %873, %0, %cst_439 {dimension_numbers = #tpu.dot_dimension_numbers<[1], [0], [0], [1], [0, 0, 1, 1], [], []>} : vector<2x36xbf16>, vector<36x32xbf16>, vector<2x32xf32> -> vector<2x32xf32>
    %875 = vector.broadcast %1 : vector<1x32xf32> to vector<2x32xf32>
    %876 = arith.addf %874, %875 : vector<2x32xf32>
    %cst_440 = arith.constant 0.000000e+00 : f32
    %877 = vector.broadcast %cst_440 : f32 to vector<2x32xf32>
    %878 = arith.maximumf %876, %877 : vector<2x32xf32>
    %879 = arith.truncf %878 : vector<2x32xf32> to vector<2x32xbf16>
    %880 = arith.index_cast %c62_i32 : i32 to index
    %c0_441 = arith.constant 0 : index
    %c0_442 = arith.constant 0 : index
    %881 = vector.load %arg4[%880, %c0_441, %c0_442] : memref<64x32x32xbf16, #tpu.memory_space<vmem>>, vector<1x32x32xbf16>
    %882 = vector.shape_cast %881 : vector<1x32x32xbf16> to vector<32x32xbf16>
    %cst_443 = arith.constant dense<0.000000e+00> : vector<2x32xf32>
    %883 = tpu.matmul %879, %882, %cst_443 {dimension_numbers = #tpu.dot_dimension_numbers<[1], [0], [0], [1], [0, 0, 1, 1], [], []>} : vector<2x32xbf16>, vector<32x32xbf16>, vector<2x32xf32> -> vector<2x32xf32>
    %884 = arith.addf %870, %883 : vector<2x32xf32>
    %c63_i32 = arith.constant 63 : i32
    %885 = arith.index_cast %c63_i32 : i32 to index
    %c0_444 = arith.constant 0 : index
    %c0_445 = arith.constant 0 : index
    %886 = vector.load %arg1[%885, %c0_444, %c0_445] : memref<64x2x36xbf16, #tpu.memory_space<vmem>>, vector<1x2x36xbf16>
    %887 = vector.shape_cast %886 : vector<1x2x36xbf16> to vector<2x36xbf16>
    %cst_446 = arith.constant dense<0.000000e+00> : vector<2x32xf32>
    %888 = tpu.matmul %887, %0, %cst_446 {dimension_numbers = #tpu.dot_dimension_numbers<[1], [0], [0], [1], [0, 0, 1, 1], [], []>} : vector<2x36xbf16>, vector<36x32xbf16>, vector<2x32xf32> -> vector<2x32xf32>
    %889 = vector.broadcast %1 : vector<1x32xf32> to vector<2x32xf32>
    %890 = arith.addf %888, %889 : vector<2x32xf32>
    %cst_447 = arith.constant 0.000000e+00 : f32
    %891 = vector.broadcast %cst_447 : f32 to vector<2x32xf32>
    %892 = arith.maximumf %890, %891 : vector<2x32xf32>
    %893 = arith.truncf %892 : vector<2x32xf32> to vector<2x32xbf16>
    %894 = arith.index_cast %c63_i32 : i32 to index
    %c0_448 = arith.constant 0 : index
    %c0_449 = arith.constant 0 : index
    %895 = vector.load %arg4[%894, %c0_448, %c0_449] : memref<64x32x32xbf16, #tpu.memory_space<vmem>>, vector<1x32x32xbf16>
    %896 = vector.shape_cast %895 : vector<1x32x32xbf16> to vector<32x32xbf16>
    %cst_450 = arith.constant dense<0.000000e+00> : vector<2x32xf32>
    %897 = tpu.matmul %893, %896, %cst_450 {dimension_numbers = #tpu.dot_dimension_numbers<[1], [0], [0], [1], [0, 0, 1, 1], [], []>} : vector<2x32xbf16>, vector<32x32xbf16>, vector<2x32xf32> -> vector<2x32xf32>
    %898 = arith.addf %884, %897 : vector<2x32xf32>
    %c64_i32 = arith.constant 64 : i32
    %c0_451 = arith.constant 0 : index
    %c0_452 = arith.constant 0 : index
    %899 = vector.load %arg5[%c0_451, %c0_452] : memref<1x32xf32, #tpu.memory_space<vmem>>, vector<1x32xf32>
    %900 = vector.broadcast %899 : vector<1x32xf32> to vector<2x32xf32>
    %901 = arith.addf %898, %900 : vector<2x32xf32>
    %cst_453 = arith.constant 0.000000e+00 : f32
    %902 = vector.broadcast %cst_453 : f32 to vector<2x32xf32>
    %903 = arith.maximumf %901, %902 : vector<2x32xf32>
    %904 = arith.truncf %903 : vector<2x32xf32> to vector<2x32xbf16>
    %c0_454 = arith.constant 0 : index
    %c0_455 = arith.constant 0 : index
    %905 = vector.load %arg6[%c0_454, %c0_455] : memref<32x128xbf16, #tpu.memory_space<vmem>>, vector<32x128xbf16>
    %cst_456 = arith.constant dense<0.000000e+00> : vector<2x128xf32>
    %906 = tpu.matmul %904, %905, %cst_456 {dimension_numbers = #tpu.dot_dimension_numbers<[1], [0], [0], [1], [0, 0, 1, 1], [], []>} : vector<2x32xbf16>, vector<32x128xbf16>, vector<2x128xf32> -> vector<2x128xf32>
    %c0_457 = arith.constant 0 : index
    %c0_458 = arith.constant 0 : index
    %907 = vector.load %arg7[%c0_457, %c0_458] : memref<1x128xf32, #tpu.memory_space<vmem>>, vector<1x128xf32>
    %908 = vector.broadcast %907 : vector<1x128xf32> to vector<2x128xf32>
    %909 = arith.addf %906, %908 : vector<2x128xf32>
    %c0_459 = arith.constant 0 : index
    %c0_460 = arith.constant 0 : index
    %910 = vector.load %arg8[%c0_459, %c0_460] : memref<2x128xf32, #tpu.memory_space<vmem>>, vector<2x128xf32>
    tpu.vector_store %arg8[%c0_459, %c0_460], %909 {strides = array<i32>} : memref<2x128xf32, #tpu.memory_space<vmem>>, vector<2x128xf32>,
    return
  }
  func.func @transform_0(%arg0: i32) -> (i32, i32, i32) {
    %c0_i32 = arith.constant 0 : i32
    %c0_i32_0 = arith.constant 0 : i32
    %c0_i32_1 = arith.constant 0 : i32
    %c0_i32_2 = arith.constant 0 : i32
    return %c0_i32, %c0_i32_0, %c0_i32_1 : i32, i32, i32
  }
  func.func @transform_1(%arg0: i32) -> (i32, i32) {
    %c0_i32 = arith.constant 0 : i32
    %c0_i32_0 = arith.constant 0 : i32
    %c0_i32_1 = arith.constant 0 : i32
    return %c0_i32, %c0_i32_0 : i32, i32
  }
  func.func @transform_2(%arg0: i32) -> (i32, i32) {
    %c0_i32 = arith.constant 0 : i32
    %c0_i32_0 = arith.constant 0 : i32
    %c0_i32_1 = arith.constant 0 : i32
    return %c0_i32, %c0_i32_0 : i32, i32
  }
  func.func @transform_3(%arg0: i32) -> (i32, i32, i32) {
    %c0_i32 = arith.constant 0 : i32
    %c0_i32_0 = arith.constant 0 : i32
    %c0_i32_1 = arith.constant 0 : i32
    %c0_i32_2 = arith.constant 0 : i32
    return %c0_i32, %c0_i32_0, %c0_i32_1 : i32, i32, i32
  }
  func.func @transform_4(%arg0: i32) -> (i32, i32) {
    %c0_i32 = arith.constant 0 : i32
    %c0_i32_0 = arith.constant 0 : i32
    %c0_i32_1 = arith.constant 0 : i32
    return %c0_i32, %c0_i32_0 : i32, i32
  }
  func.func @transform_5(%arg0: i32) -> (i32, i32) {
    %c0_i32 = arith.constant 0 : i32
    %c0_i32_0 = arith.constant 0 : i32
    %c0_i32_1 = arith.constant 0 : i32
    return %c0_i32, %c0_i32_0 : i32, i32
  }
  func.func @transform_6(%arg0: i32) -> (i32, i32) {
    %c0_i32 = arith.constant 0 : i32
    %c0_i32_0 = arith.constant 0 : i32
    %c0_i32_1 = arith.constant 0 : i32
    return %c0_i32, %c0_i32_0 : i32, i32
  }
  func.func @transform_7(%arg0: i32) -> (i32, i32) {
    %c0_i32 = arith.constant 0 : i32
    %c0_i32_0 = arith.constant 0 : i32
    %c0_i32_1 = arith.constant 0 : i32
    return %c0_i32, %c0_i32_0 : i32, i32
  }
}

</mosaic_0001>

<llo_original>
// kernel: mynet_forward.1
$region0: #{mynet_forward.1}
  #allocation0 [shape = 'u32[]', space=smem, size = 0x4, offset = 0x4, fixed_abs, tag = 'smem constant byte address 0x4 - core index']
  #allocation1 [shape = 'u32[144,128]{1,0:T(1,128)}', space=vmem, size = 0x12000, scoped, tag = 'internal scratch']
  %s0 = inlined_call_operand.hbm [shape: bf16[64,2,36], index: 0, kind: input, shape index: {}]
  %s1 = inlined_call_operand.hbm [shape: bf16[36,32], index: 1, kind: input, shape index: {}]
  %s2 = inlined_call_operand.hbm [shape: f32[1,32], index: 2, kind: input, shape index: {}]
  %s3 = inlined_call_operand.hbm [shape: bf16[64,32,32], index: 3, kind: input, shape index: {}]
  %s4 = inlined_call_operand.hbm [shape: f32[1,32], index: 4, kind: input, shape index: {}]
  %s5 = inlined_call_operand.hbm [shape: bf16[32,128], index: 5, kind: input, shape index: {}]
  %s6 = inlined_call_operand.hbm [shape: f32[1,128], index: 6, kind: input, shape index: {}]
  %s7 = inlined_call_operand.hbm [shape: f32[2,128], index: 7, kind: output, shape index: {}]
  %s8 = sld [smem:[#allocation0]]
  $region66: #{mynet_forward.1} parent=0
    _
  %s10 = ssub.s32 1, %s8
  %s11 = scalar_select 0, %s10, %s8
  $region1: #{mynet_forward.1} parent=0
    #allocation2 [shape = 'u8[32768]{0}', space=vmem, size = 0x8000, scoped, tag = 'input window, operand 0, single buffered']
    #allocation3 [shape = 's32[1]{0}', space=sflag, size = 0x4, scoped, tag = 'scoped memory for mynet_forward.1']
    #allocation4 [shape = 's32[1]{0}', space=sflag, size = 0x4, scoped, tag = 'scoped memory for mynet_forward.1']
    #allocation5 [shape = 'u8[10240]{0}', space=vmem, size = 0x2800, scoped, tag = 'input window, operand 1, single buffered']
    #allocation6 [shape = 's32[1]{0}', space=sflag, size = 0x4, scoped, tag = 'scoped memory for mynet_forward.1']
    #allocation7 [shape = 'u8[512]{0}', space=vmem, size = 0x400, scoped, tag = 'input window, operand 2, single buffered']
    #allocation8 [shape = 'u8[524288]{0}', space=vmem, size = 0x80000, scoped, tag = 'input window, operand 3, single buffered']
    #allocation9 [shape = 's32[1]{0}', space=sflag, size = 0x4, scoped, tag = 'scoped memory for mynet_forward.1']
    #allocation10 [shape = 'u8[512]{0}', space=vmem, size = 0x400, scoped, tag = 'input window, operand 4, single buffered']
    #allocation11 [shape = 'u8[8192]{0}', space=vmem, size = 0x2000, scoped, tag = 'input window, operand 5, single buffered']
    #allocation12 [shape = 's32[1]{0}', space=sflag, size = 0x4, scoped, tag = 'scoped memory for mynet_forward.1']
    #allocation13 [shape = 'u8[512]{0}', space=vmem, size = 0x400, scoped, tag = 'input window, operand 6, single buffered']
    #allocation14 [shape = 'u8[1024]{0}', space=vmem, size = 0x400, scoped, tag = 'output window, operand 0, single buffered']
    %12 = vsyncpa [#allocation3], 0
    %13 = vsyncpa [#allocation6], 0
    %14 = vsyncpa [#allocation9], 0
    %15 = vsyncpa [#allocation12], 0
    %16 = vsyncpa [#allocation4], 0
    // Predicated region
    $region2: #{mynet_forward.1} parent=1 // pred_check
      _
    $region3: #{mynet_forward.1} parent=1 // pred_check_branch
      %18 = sbr.rel (0) target = $region5
    $region4: #{mynet_forward.1} parent=1 // pred_region
      %s20 = ssub.s32 1024, 1024
      %21 = vsyncadd [#allocation3], %s20
      %s22 = sshll.u32 [#allocation2], 4
      %s23 = int_to_ptr.vmem [resolvable:$true] %s22
      %28 = dma.hbm_to_vmem [thread:$0]  %s0, 1024, %s23, [#allocation3], 16, 16, 1
    $region5: #{mynet_forward.1} parent=1 // pred_fallthru
      _
    // Predicated region
    $region6: #{mynet_forward.1} parent=1 // pred_check
      _
    $region7: #{mynet_forward.1} parent=1 // pred_check_branch
      %30 = sbr.rel (0) target = $region9
    $region8: #{mynet_forward.1} parent=1 // pred_region
      %s32 = ssub.s32 320, 320
      %33 = vsyncadd [#allocation6], %s32
      %s34 = sshll.u32 [#allocation5], 4
      %s35 = int_to_ptr.vmem [resolvable:$true] %s34
      %40 = dma.hbm_to_vmem [thread:$0]  %s1, 320, %s35, [#allocation6], 64, 64, 4
    $region9: #{mynet_forward.1} parent=1 // pred_fallthru
      _
    // Predicated region
    $region10: #{mynet_forward.1} parent=1 // pred_check
      _
    $region11: #{mynet_forward.1} parent=1 // pred_check_branch
      %42 = sbr.rel (0) target = $region13
    $region12: #{mynet_forward.1} parent=1 // pred_region
      %s44 = ssub.s32 16, 16
      %45 = vsyncadd [#allocation6], %s44
      %s47 = sshll.u32 [#allocation7], 4
      %s48 = int_to_ptr.vmem [resolvable:$true] %s47
      %50 = dma.hbm_to_vmem [thread:$0]  %s2, 16, %s48, [#allocation6]
    $region13: #{mynet_forward.1} parent=1 // pred_fallthru
      _
    // Predicated region
    $region14: #{mynet_forward.1} parent=1 // pred_check
      _
    $region15: #{mynet_forward.1} parent=1 // pred_check_branch
      %52 = sbr.rel (0) target = $region17
    $region16: #{mynet_forward.1} parent=1 // pred_region
      %s54 = ssub.s32 16384, 16384
      %55 = vsyncadd [#allocation9], %s54
      %s56 = sshll.u32 [#allocation8], 4
      %s57 = int_to_ptr.vmem [resolvable:$true] %s56
      %62 = dma.hbm_to_vmem [thread:$0]  %s3, 16384, %s57, [#allocation9], 64, 64, 4
    $region17: #{mynet_forward.1} parent=1 // pred_fallthru
      _
    // Predicated region
    $region18: #{mynet_forward.1} parent=1 // pred_check
      _
    $region19: #{mynet_forward.1} parent=1 // pred_check_branch
      %64 = sbr.rel (0) target = $region21
    $region20: #{mynet_forward.1} parent=1 // pred_region
      %s66 = ssub.s32 16, 16
      %67 = vsyncadd [#allocation9], %s66
      %s69 = sshll.u32 [#allocation10], 4
      %s70 = int_to_ptr.vmem [resolvable:$true] %s69
      %72 = dma.hbm_to_vmem [thread:$0]  %s4, 16, %s70, [#allocation9]
    $region21: #{mynet_forward.1} parent=1 // pred_fallthru
      _
    // Predicated region
    $region22: #{mynet_forward.1} parent=1 // pred_check
      _
    $region23: #{mynet_forward.1} parent=1 // pred_check_branch
      %74 = sbr.rel (0) target = $region25
    $region24: #{mynet_forward.1} parent=1 // pred_region
      %s76 = ssub.s32 256, 256
      %77 = vsyncadd [#allocation12], %s76
      %s78 = sshll.u32 [#allocation11], 4
      %s79 = int_to_ptr.vmem [resolvable:$true] %s78
      %84 = dma.hbm_to_vmem [thread:$0]  %s5, 256, %s79, [#allocation12], 64, 64, 4
    $region25: #{mynet_forward.1} parent=1 // pred_fallthru
      _
    // Predicated region
    $region26: #{mynet_forward.1} parent=1 // pred_check
      _
    $region27: #{mynet_forward.1} parent=1 // pred_check_branch
      %86 = sbr.rel (0) target = $region29
    $region28: #{mynet_forward.1} parent=1 // pred_region
      %s88 = ssub.s32 16, 16
      %89 = vsyncadd [#allocation12], %s88
      %s91 = sshll.u32 [#allocation13], 4
      %s92 = int_to_ptr.vmem [resolvable:$true] %s91
      %94 = dma.hbm_to_vmem [thread:$0]  %s6, 16, %s92, [#allocation12]
    $region29: #{mynet_forward.1} parent=1 // pred_fallthru
      _
    // Predicated region
    $region30: #{mynet_forward.1} parent=1 // pred_check
      _
    $region31: #{mynet_forward.1} parent=1 // pred_check_branch
      %96 = sbr.rel (0) target = $region33
    $region32: #{mynet_forward.1} parent=1 // pred_region
      %97 = dma.done [#allocation3], 1024
    $region33: #{mynet_forward.1} parent=1 // pred_fallthru
      _
    // Predicated region
    $region34: #{mynet_forward.1} parent=1 // pred_check
      _
    $region35: #{mynet_forward.1} parent=1 // pred_check_branch
      %99 = sbr.rel (0) target = $region37
    $region36: #{mynet_forward.1} parent=1 // pred_region
      %100 = dma.done [#allocation6], 320
    $region37: #{mynet_forward.1} parent=1 // pred_fallthru
      _
    // Predicated region
    $region38: #{mynet_forward.1} parent=1 // pred_check
      _
    $region39: #{mynet_forward.1} parent=1 // pred_check_branch
      %102 = sbr.rel (0) target = $region41
    $region40: #{mynet_forward.1} parent=1 // pred_region
      %103 = dma.done [#allocation6], 16
    $region41: #{mynet_forward.1} parent=1 // pred_fallthru
      _
    // Predicated region
    $region42: #{mynet_forward.1} parent=1 // pred_check
      _
    $region43: #{mynet_forward.1} parent=1 // pred_check_branch
      %105 = sbr.rel (0) target = $region45
    $region44: #{mynet_forward.1} parent=1 // pred_region
      %106 = dma.done [#allocation9], 16384
    $region45: #{mynet_forward.1} parent=1 // pred_fallthru
      _
    // Predicated region
    $region46: #{mynet_forward.1} parent=1 // pred_check
      _
    $region47: #{mynet_forward.1} parent=1 // pred_check_branch
      %108 = sbr.rel (0) target = $region49
    $region48: #{mynet_forward.1} parent=1 // pred_region
      %109 = dma.done [#allocation9], 16
    $region49: #{mynet_forward.1} parent=1 // pred_fallthru
      _
    // Predicated region
    $region50: #{mynet_forward.1} parent=1 // pred_check
      _
    $region51: #{mynet_forward.1} parent=1 // pred_check_branch
      %111 = sbr.rel (0) target = $region53
    $region52: #{mynet_forward.1} parent=1 // pred_region
      %112 = dma.done [#allocation12], 256
    $region53: #{mynet_forward.1} parent=1 // pred_fallthru
      _
    // Predicated region
    $region54: #{mynet_forward.1} parent=1 // pred_check
      _
    $region55: #{mynet_forward.1} parent=1 // pred_check_branch
      %114 = sbr.rel (0) target = $region57
    $region56: #{mynet_forward.1} parent=1 // pred_region
      %115 = dma.done [#allocation12], 16
    $region57: #{mynet_forward.1} parent=1 // pred_fallthru
      _
    %v117 = vld [vmem:[#allocation5] sm:$0xf]
    %v118 = vld [vmem:[#allocation5 + $0x4] sm:$0xf]
    %v119 = vld [vmem:[#allocation5 + $0x8] sm:$0xf]
    %v120 = vld [vmem:[#allocation5 + $0xc] sm:$0xf]
    %v121 = vld [vmem:[#allocation5 + $0x10] sm:$0x3]
    %v122 = vld [vmem:[#allocation7] sm:$0x1]
    %v123 = vld [vmem:[#allocation2] sm:$0x1]
    %v125 = vlaneseq
    %v126 = vshrl.u32 %v125, 7
    %v127 = vsub.s32 0, %v126
    %v128 = vrot.slane %v122, %v127
    %v135 = vunpack.c.l.b16 %v117
    %v136 = vunpack.c.l.b16 %v118
    %v137 = vunpack.c.l.b16 %v119
    %v138 = vunpack.c.l.b16 %v120
    %v139 = vunpack.c.l.b16 %v121
    %v140 = vpack.c.b16 %v136, %v135
    %v141 = vpack.c.b16 %v138, %v137
    %v142 = vpack.c.b16 %v139, %v139
    %vm145 = vcmask 293888
    %v147 = vsel %vm145, %v123, 0
    %vm149 = vcmask 1041408
    %v151 = vsel %vm149, %v142, 0
    %153 = vmatprep.subr.bf16.mxu0 0
    %154 = vmatpush1.bf16.msra.mxu0 %v140
    %155 = vmatprep.subr.bf16.mxu0 0
    %156 = vmatpush1.bf16.msra.mxu0 %v141
    %157 = vmatprep.subr.bf16.mxu0 0
    %158 = vmatpush1.bf16.msra.mxu0 %v151
    %159 = vmatprep.subr.bf16.mxu0 0
    %160 = vmatpush1.bf16.msra.mxu0 0
    %161 = vmatprep.subr.bf16.mxu0 0
    %162 = vmatpush1.bf16.msra.mxu0 0
    %163 = vmatprep.subr.bf16.mxu0 0
    %164 = vmatpush1.bf16.msra.mxu0 0
    %165 = vmatprep.subr.bf16.mxu0 0
    %166 = vmatpush1.bf16.msra.mxu0 0
    %167 = vmatprep.subr.bf16.mxu0 0
    %168 = vmatpush1.bf16.msra.mxu0 0
    %169 = vmatprep.subr.bf16.mxu0 0
    %170 = vmatpush1.bf16.msra.mxu0 0
    %171 = vmatprep.subr.bf16.mxu0 0
    %172 = vmatpush1.bf16.msra.mxu0 0
    %173 = vmatprep.subr.bf16.mxu0 0
    %174 = vmatpush1.bf16.msra.mxu0 0
    %175 = vmatprep.subr.bf16.mxu0 0
    %176 = vmatpush1.bf16.msra.mxu0 0
    %177 = vmatprep.subr.bf16.mxu0 0
    %178 = vmatpush1.bf16.msra.mxu0 0
    %179 = vmatprep.subr.bf16.mxu0 0
    %180 = vmatpush1.bf16.msra.mxu0 0
    %181 = vmatprep.subr.bf16.mxu0 0
    %182 = vmatpush1.bf16.msra.mxu0 0
    %183 = vmatprep.subr.bf16.mxu0 0
    %184 = vmatpush1.bf16.msra.mxu0 0
    %185 = vmatprep.mubr.bf16.mxu0 0
    %186 = vmatmul.mubr.bf16.gmra.mrb[0].mxu0 %v147
    %v187 = vpop.f32.mrb[0].mxu0
    %v188 = vadd.f32 %v128, %v187
    %v189 = vpop.f32.mrb[0].mxu0
    %v190 = vpop.f32.mrb[0].mxu0
    %v191 = vpop.f32.mrb[0].mxu0
    %192 = vdwg.mxu0
    %v193 = vmax.f32 %v188, 0.0
    %v194 = vpack.c.bf16 %v193, %v193
    %v195 = vld [vmem:[#allocation8] sm:$0xf]
    %v196 = vld [vmem:[#allocation8 + $0x4] sm:$0xf]
    %v197 = vld [vmem:[#allocation8 + $0x8] sm:$0xf]
    %v198 = vld [vmem:[#allocation8 + $0xc] sm:$0xf]
    %s199 = scalar_lea.vmem [#allocation2], 1
    %v200 = vld [vmem:[%s199] sm:$0x1]
    %v202 = vsel %vm145, %v200, 0
    %204 = vmatprep.subr.bf16.mxu0 0
    %205 = vmatpush1.bf16.msra.mxu0 %v140
    %206 = vmatprep.subr.bf16.mxu0 0
    %207 = vmatpush1.bf16.msra.mxu0 %v141
    %208 = vmatprep.subr.bf16.mxu0 0
    %209 = vmatpush1.bf16.msra.mxu0 %v151
    %210 = vmatprep.subr.bf16.mxu0 0
    %211 = vmatpush1.bf16.msra.mxu0 0
    %212 = vmatprep.subr.bf16.mxu0 0
    %213 = vmatpush1.bf16.msra.mxu0 0
    %214 = vmatprep.subr.bf16.mxu0 0
    %215 = vmatpush1.bf16.msra.mxu0 0
    %216 = vmatprep.subr.bf16.mxu0 0
    %217 = vmatpush1.bf16.msra.mxu0 0
    %218 = vmatprep.subr.bf16.mxu0 0
    %219 = vmatpush1.bf16.msra.mxu0 0
    %220 = vmatprep.subr.bf16.mxu0 0
    %221 = vmatpush1.bf16.msra.mxu0 0
    %222 = vmatprep.subr.bf16.mxu0 0
    %223 = vmatpush1.bf16.msra.mxu0 0
    %224 = vmatprep.subr.bf16.mxu0 0
    %225 = vmatpush1.bf16.msra.mxu0 0
    %226 = vmatprep.subr.bf16.mxu0 0
    %227 = vmatpush1.bf16.msra.mxu0 0
    %228 = vmatprep.subr.bf16.mxu0 0
    %229 = vmatpush1.bf16.msra.mxu0 0
    %230 = vmatprep.subr.bf16.mxu0 0
    %231 = vmatpush1.bf16.msra.mxu0 0
    %232 = vmatprep.subr.bf16.mxu0 0
    %233 = vmatpush1.bf16.msra.mxu0 0
    %234 = vmatprep.subr.bf16.mxu0 0
    %235 = vmatpush1.bf16.msra.mxu0 0
    %236 = vmatprep.mubr.bf16.mxu0 0
    %237 = vmatmul.mubr.bf16.gmra.mrb[0].mxu0 %v202
    %v238 = vpop.f32.mrb[0].mxu0
    %v239 = vadd.f32 %v128, %v238
    %v240 = vpop.f32.mrb[0].mxu0
    %v241 = vpop.f32.mrb[0].mxu0
    %v242 = vpop.f32.mrb[0].mxu0
    %243 = vdwg.mxu0
    %v244 = vmax.f32 %v239, 0.0
    %v245 = vpack.c.bf16 %v244, %v244
    %s246 = scalar_lea.vmem [#allocation8], 16
    %v247 = vld [vmem:[%s246] sm:$0xf]
    %v248 = vld [vmem:[%s246 + $0x4] sm:$0xf]
    %v249 = vld [vmem:[%s246 + $0x8] sm:$0xf]
    %v250 = vld [vmem:[%s246 + $0xc] sm:$0xf]
    %v255 = vunpack.c.l.b16 %v247
    %v256 = vunpack.c.l.b16 %v248
    %v257 = vunpack.c.l.b16 %v249
    %v258 = vunpack.c.l.b16 %v250
    %v259 = vpack.c.b16 %v256, %v255
    %v260 = vpack.c.b16 %v258, %v257
    %vm263 = vcmask 261120
    %v265 = vsel %vm263, %v245, 0
    %267 = vmatprep.subr.bf16.mxu0 0
    %268 = vmatpush1.bf16.msra.mxu0 %v259
    %269 = vmatprep.subr.bf16.mxu0 0
    %270 = vmatpush1.bf16.msra.mxu0 %v260
    %271 = vmatprep.subr.bf16.mxu0 0
    %272 = vmatpush1.bf16.msra.mxu0 0
    %273 = vmatprep.subr.bf16.mxu0 0
    %274 = vmatpush1.bf16.msra.mxu0 0
    %275 = vmatprep.subr.bf16.mxu0 0
    %276 = vmatpush1.bf16.msra.mxu0 0
    %277 = vmatprep.subr.bf16.mxu0 0
    %278 = vmatpush1.bf16.msra.mxu0 0
    %279 = vmatprep.subr.bf16.mxu0 0
    %280 = vmatpush1.bf16.msra.mxu0 0
    %281 = vmatprep.subr.bf16.mxu0 0
    %282 = vmatpush1.bf16.msra.mxu0 0
    %283 = vmatprep.subr.bf16.mxu0 0
    %284 = vmatpush1.bf16.msra.mxu0 0
    %285 = vmatprep.subr.bf16.mxu0 0
    %286 = vmatpush1.bf16.msra.mxu0 0
    %287 = vmatprep.subr.bf16.mxu0 0
    %288 = vmatpush1.bf16.msra.mxu0 0
    %289 = vmatprep.subr.bf16.mxu0 0
    %290 = vmatpush1.bf16.msra.mxu0 0
    %291 = vmatprep.subr.bf16.mxu0 0
    %292 = vmatpush1.bf16.msra.mxu0 0
    %293 = vmatprep.subr.bf16.mxu0 0
    %294 = vmatpush1.bf16.msra.mxu0 0
    %295 = vmatprep.subr.bf16.mxu0 0
    %296 = vmatpush1.bf16.msra.mxu0 0
    %297 = vmatprep.subr.bf16.mxu0 0
    %298 = vmatpush1.bf16.msra.mxu0 0
    %299 = vmatprep.mubr.bf16.mxu0 0
    %300 = vmatmul.mubr.bf16.gmra.mrb[0].mxu0 %v265
    %v301 = vpop.f32.mrb[0].mxu0
    %v302 = vadd.f32 0.0, %v301
    %v303 = vpop.f32.mrb[0].mxu0
    %v304 = vpop.f32.mrb[0].mxu0
    %v305 = vpop.f32.mrb[0].mxu0
    %306 = vdwg.mxu0
    %v311 = vunpack.c.l.b16 %v195
    %v312 = vunpack.c.l.b16 %v196
    %v313 = vunpack.c.l.b16 %v197
    %v314 = vunpack.c.l.b16 %v198
    %v315 = vpack.c.b16 %v312, %v311
    %v316 = vpack.c.b16 %v314, %v313
    %v320 = vsel %vm263, %v194, 0
    %322 = vmatprep.subr.bf16.mxu0 0
    %323 = vmatpush1.bf16.msra.mxu0 %v315
    %324 = vmatprep.subr.bf16.mxu0 0
    %325 = vmatpush1.bf16.msra.mxu0 %v316
    %326 = vmatprep.subr.bf16.mxu0 0
    %327 = vmatpush1.bf16.msra.mxu0 0
    %328 = vmatprep.subr.bf16.mxu0 0
    %329 = vmatpush1.bf16.msra.mxu0 0
    %330 = vmatprep.subr.bf16.mxu0 0
    %331 = vmatpush1.bf16.msra.mxu0 0
    %332 = vmatprep.subr.bf16.mxu0 0
    %333 = vmatpush1.bf16.msra.mxu0 0
    %334 = vmatprep.subr.bf16.mxu0 0
    %335 = vmatpush1.bf16.msra.mxu0 0
    %336 = vmatprep.subr.bf16.mxu0 0
    %337 = vmatpush1.bf16.msra.mxu0 0
    %338 = vmatprep.subr.bf16.mxu0 0
    %339 = vmatpush1.bf16.msra.mxu0 0
    %340 = vmatprep.subr.bf16.mxu0 0
    %341 = vmatpush1.bf16.msra.mxu0 0
    %342 = vmatprep.subr.bf16.mxu0 0
    %343 = vmatpush1.bf16.msra.mxu0 0
    %344 = vmatprep.subr.bf16.mxu0 0
    %345 = vmatpush1.bf16.msra.mxu0 0
    %346 = vmatprep.subr.bf16.mxu0 0
    %347 = vmatpush1.bf16.msra.mxu0 0
    %348 = vmatprep.subr.bf16.mxu0 0
    %349 = vmatpush1.bf16.msra.mxu0 0
    %350 = vmatprep.subr.bf16.mxu0 0
    %351 = vmatpush1.bf16.msra.mxu0 0
    %352 = vmatprep.subr.bf16.mxu0 0
    %353 = vmatpush1.bf16.msra.mxu0 0
    %354 = vmatprep.mubr.bf16.mxu0 0
    %355 = vmatmul.mubr.bf16.gmra.mrb[0].mxu0 %v320
    %v356 = vpop.f32.mrb[0].mxu0
    %v357 = vadd.f32 %v302, %v356
    %v358 = vpop.f32.mrb[0].mxu0
    %v359 = vpop.f32.mrb[0].mxu0
    %v360 = vpop.f32.mrb[0].mxu0
    %361 = vdwg.mxu0
    %s362 = scalar_lea.vmem [#allocation2], 2
    %v363 = vld [vmem:[%s362] sm:$0x1]
    %v365 = vsel %vm145, %v363, 0
    %367 = vmatprep.subr.bf16.mxu0 0
    %368 = vmatpush1.bf16.msra.mxu0 %v140
    %369 = vmatprep.subr.bf16.mxu0 0
    %370 = vmatpush1.bf16.msra.mxu0 %v141
    %371 = vmatprep.subr.bf16.mxu0 0
    %372 = vmatpush1.bf16.msra.mxu0 %v151
    %373 = vmatprep.subr.bf16.mxu0 0
    %374 = vmatpush1.bf16.msra.mxu0 0
    %375 = vmatprep.subr.bf16.mxu0 0
    %376 = vmatpush1.bf16.msra.mxu0 0
    %377 = vmatprep.subr.bf16.mxu0 0
    %378 = vmatpush1.bf16.msra.mxu0 0
    %379 = vmatprep.subr.bf16.mxu0 0
    %380 = vmatpush1.bf16.msra.mxu0 0
    %381 = vmatprep.subr.bf16.mxu0 0
    %382 = vmatpush1.bf16.msra.mxu0 0
    %383 = vmatprep.subr.bf16.mxu0 0
    %384 = vmatpush1.bf16.msra.mxu0 0
    %385 = vmatprep.subr.bf16.mxu0 0
    %386 = vmatpush1.bf16.msra.mxu0 0
    %387 = vmatprep.subr.bf16.mxu0 0
    %388 = vmatpush1.bf16.msra.mxu0 0
    %389 = vmatprep.subr.bf16.mxu0 0
    %390 = vmatpush1.bf16.msra.mxu0 0
    %391 = vmatprep.subr.bf16.mxu0 0
    %392 = vmatpush1.bf16.msra.mxu0 0
    %393 = vmatprep.subr.bf16.mxu0 0
    %394 = vmatpush1.bf16.msra.mxu0 0
    %395 = vmatprep.subr.bf16.mxu0 0
    %396 = vmatpush1.bf16.msra.mxu0 0
    %397 = vmatprep.subr.bf16.mxu0 0
    %398 = vmatpush1.bf16.msra.mxu0 0
    %399 = vmatprep.mubr.bf16.mxu0 0
    %400 = vmatmul.mubr.bf16.gmra.mrb[0].mxu0 %v365
    %v401 = vpop.f32.mrb[0].mxu0
    %v402 = vadd.f32 %v128, %v401
    %v403 = vpop.f32.mrb[0].mxu0
    %v404 = vpop.f32.mrb[0].mxu0
    %v405 = vpop.f32.mrb[0].mxu0
    %406 = vdwg.mxu0
    %v407 = vmax.f32 %v402, 0.0
    %v408 = vpack.c.bf16 %v407, %v407
    %s409 = scalar_lea.vmem [#allocation8], 32
    %v410 = vld [vmem:[%s409] sm:$0xf]
    %v411 = vld [vmem:[%s409 + $0x4] sm:$0xf]
    %v412 = vld [vmem:[%s409 + $0x8] sm:$0xf]
    %v413 = vld [vmem:[%s409 + $0xc] sm:$0xf]
    %v418 = vunpack.c.l.b16 %v410
    %v419 = vunpack.c.l.b16 %v411
    %v420 = vunpack.c.l.b16 %v412
    %v421 = vunpack.c.l.b16 %v413
    %v422 = vpack.c.b16 %v419, %v418
    %v423 = vpack.c.b16 %v421, %v420
    %v427 = vsel %vm263, %v408, 0
    %429 = vmatprep.subr.bf16.mxu0 0
    %430 = vmatpush1.bf16.msra.mxu0 %v422
    %431 = vmatprep.subr.bf16.mxu0 0
    %432 = vmatpush1.bf16.msra.mxu0 %v423
    %433 = vmatprep.subr.bf16.mxu0 0
    %434 = vmatpush1.bf16.msra.mxu0 0
    %435 = vmatprep.subr.bf16.mxu0 0
    %436 = vmatpush1.bf16.msra.mxu0 0
    %437 = vmatprep.subr.bf16.mxu0 0
    %438 = vmatpush1.bf16.msra.mxu0 0
    %439 = vmatprep.subr.bf16.mxu0 0
    %440 = vmatpush1.bf16.msra.mxu0 0
    %441 = vmatprep.subr.bf16.mxu0 0
    %442 = vmatpush1.bf16.msra.mxu0 0
    %443 = vmatprep.subr.bf16.mxu0 0
    %444 = vmatpush1.bf16.msra.mxu0 0
    %445 = vmatprep.subr.bf16.mxu0 0
    %446 = vmatpush1.bf16.msra.mxu0 0
    %447 = vmatprep.subr.bf16.mxu0 0
    %448 = vmatpush1.bf16.msra.mxu0 0
    %449 = vmatprep.subr.bf16.mxu0 0
    %450 = vmatpush1.bf16.msra.mxu0 0
    %451 = vmatprep.subr.bf16.mxu0 0
    %452 = vmatpush1.bf16.msra.mxu0 0
    %453 = vmatprep.subr.bf16.mxu0 0
    %454 = vmatpush1.bf16.msra.mxu0 0
    %455 = vmatprep.subr.bf16.mxu0 0
    %456 = vmatpush1.bf16.msra.mxu0 0
    %457 = vmatprep.subr.bf16.mxu0 0
    %458 = vmatpush1.bf16.msra.mxu0 0
    %459 = vmatprep.subr.bf16.mxu0 0
    %460 = vmatpush1.bf16.msra.mxu0 0
    %461 = vmatprep.mubr.bf16.mxu0 0
    %462 = vmatmul.mubr.bf16.gmra.mrb[0].mxu0 %v427
    %v463 = vpop.f32.mrb[0].mxu0
    %v464 = vadd.f32 0.0, %v463
    %v465 = vpop.f32.mrb[0].mxu0
    %v466 = vpop.f32.mrb[0].mxu0
    %v467 = vpop.f32.mrb[0].mxu0
    %468 = vdwg.mxu0
    %v469 = vadd.f32 %v357, %v464
    %s470 = scalar_lea.vmem [#allocation2], 3
    %v471 = vld [vmem:[%s470] sm:$0x1]
    %v473 = vsel %vm145, %v471, 0
    %475 = vmatprep.subr.bf16.mxu0 0
    %476 = vmatpush1.bf16.msra.mxu0 %v140
    %477 = vmatprep.subr.bf16.mxu0 0
    %478 = vmatpush1.bf16.msra.mxu0 %v141
    %479 = vmatprep.subr.bf16.mxu0 0
    %480 = vmatpush1.bf16.msra.mxu0 %v151
    %481 = vmatprep.subr.bf16.mxu0 0
    %482 = vmatpush1.bf16.msra.mxu0 0
    %483 = vmatprep.subr.bf16.mxu0 0
    %484 = vmatpush1.bf16.msra.mxu0 0
    %485 = vmatprep.subr.bf16.mxu0 0
    %486 = vmatpush1.bf16.msra.mxu0 0
    %487 = vmatprep.subr.bf16.mxu0 0
    %488 = vmatpush1.bf16.msra.mxu0 0
    %489 = vmatprep.subr.bf16.mxu0 0
    %490 = vmatpush1.bf16.msra.mxu0 0
    %491 = vmatprep.subr.bf16.mxu0 0
    %492 = vmatpush1.bf16.msra.mxu0 0
    %493 = vmatprep.subr.bf16.mxu0 0
    %494 = vmatpush1.bf16.msra.mxu0 0
    %495 = vmatprep.subr.bf16.mxu0 0
    %496 = vmatpush1.bf16.msra.mxu0 0
    %497 = vmatprep.subr.bf16.mxu0 0
    %498 = vmatpush1.bf16.msra.mxu0 0
    %499 = vmatprep.subr.bf16.mxu0 0
    %500 = vmatpush1.bf16.msra.mxu0 0
    %501 = vmatprep.subr.bf16.mxu0 0
    %502 = vmatpush1.bf16.msra.mxu0 0
    %503 = vmatprep.subr.bf16.mxu0 0
    %504 = vmatpush1.bf16.msra.mxu0 0
    %505 = vmatprep.subr.bf16.mxu0 0
    %506 = vmatpush1.bf16.msra.mxu0 0
    %507 = vmatprep.mubr.bf16.mxu0 0
    %508 = vmatmul.mubr.bf16.gmra.mrb[0].mxu0 %v473
    %v509 = vpop.f32.mrb[0].mxu0
    %v510 = vadd.f32 %v128, %v509
    %v511 = vpop.f32.mrb[0].mxu0
    %v512 = vpop.f32.mrb[0].mxu0
    %v513 = vpop.f32.mrb[0].mxu0
    %514 = vdwg.mxu0
    %v515 = vmax.f32 %v510, 0.0
    %v516 = vpack.c.bf16 %v515, %v515
    %s517 = scalar_lea.vmem [#allocation8], 48
    %v518 = vld [vmem:[%s517] sm:$0xf]
    %v519 = vld [vmem:[%s517 + $0x4] sm:$0xf]
    %v520 = vld [vmem:[%s517 + $0x8] sm:$0xf]
    %v521 = vld [vmem:[%s517 + $0xc] sm:$0xf]
    %v526 = vunpack.c.l.b16 %v518
    %v527 = vunpack.c.l.b16 %v519
    %v528 = vunpack.c.l.b16 %v520
    %v529 = vunpack.c.l.b16 %v521
    %v530 = vpack.c.b16 %v527, %v526
    %v531 = vpack.c.b16 %v529, %v528
    %v535 = vsel %vm263, %v516, 0
    %537 = vmatprep.subr.bf16.mxu0 0
    %538 = vmatpush1.bf16.msra.mxu0 %v530
    %539 = vmatprep.subr.bf16.mxu0 0
    %540 = vmatpush1.bf16.msra.mxu0 %v531
    %541 = vmatprep.subr.bf16.mxu0 0
    %542 = vmatpush1.bf16.msra.mxu0 0
    %543 = vmatprep.subr.bf16.mxu0 0
    %544 = vmatpush1.bf16.msra.mxu0 0
    %545 = vmatprep.subr.bf16.mxu0 0
    %546 = vmatpush1.bf16.msra.mxu0 0
    %547 = vmatprep.subr.bf16.mxu0 0
    %548 = vmatpush1.bf16.msra.mxu0 0
    %549 = vmatprep.subr.bf16.mxu0 0
    %550 = vmatpush1.bf16.msra.mxu0 0
    %551 = vmatprep.subr.bf16.mxu0 0
    %552 = vmatpush1.bf16.msra.mxu0 0
    %553 = vmatprep.subr.bf16.mxu0 0
    %554 = vmatpush1.bf16.msra.mxu0 0
    %555 = vmatprep.subr.bf16.mxu0 0
    %556 = vmatpush1.bf16.msra.mxu0 0
    %557 = vmatprep.subr.bf16.mxu0 0
    %558 = vmatpush1.bf16.msra.mxu0 0
    %559 = vmatprep.subr.bf16.mxu0 0
    %560 = vmatpush1.bf16.msra.mxu0 0
    %561 = vmatprep.subr.bf16.mxu0 0
    %562 = vmatpush1.bf16.msra.mxu0 0
    %563 = vmatprep.subr.bf16.mxu0 0
    %564 = vmatpush1.bf16.msra.mxu0 0
    %565 = vmatprep.subr.bf16.mxu0 0
    %566 = vmatpush1.bf16.msra.mxu0 0
    %567 = vmatprep.subr.bf16.mxu0 0
    %568 = vmatpush1.bf16.msra.mxu0 0
    %569 = vmatprep.mubr.bf16.mxu0 0
    %570 = vmatmul.mubr.bf16.gmra.mrb[0].mxu0 %v535
    %v571 = vpop.f32.mrb[0].mxu0
    %v572 = vadd.f32 0.0, %v571
    %v573 = vpop.f32.mrb[0].mxu0
    %v574 = vpop.f32.mrb[0].mxu0
    %v575 = vpop.f32.mrb[0].mxu0
    %576 = vdwg.mxu0
    %v577 = vadd.f32 %v469, %v572
    %s578 = scalar_lea.vmem [#allocation2], 4
    %v579 = vld [vmem:[%s578] sm:$0x1]
    %v581 = vsel %vm145, %v579, 0
    %583 = vmatprep.subr.bf16.mxu0 0
    %584 = vmatpush1.bf16.msra.mxu0 %v140
    %585 = vmatprep.subr.bf16.mxu0 0
    %586 = vmatpush1.bf16.msra.mxu0 %v141
    %587 = vmatprep.subr.bf16.mxu0 0
    %588 = vmatpush1.bf16.msra.mxu0 %v151
    %589 = vmatprep.subr.bf16.mxu0 0
    %590 = vmatpush1.bf16.msra.mxu0 0
    %591 = vmatprep.subr.bf16.mxu0 0
    %592 = vmatpush1.bf16.msra.mxu0 0
    %593 = vmatprep.subr.bf16.mxu0 0
    %594 = vmatpush1.bf16.msra.mxu0 0
    %595 = vmatprep.subr.bf16.mxu0 0
    %596 = vmatpush1.bf16.msra.mxu0 0
    %597 = vmatprep.subr.bf16.mxu0 0
    %598 = vmatpush1.bf16.msra.mxu0 0
    %599 = vmatprep.subr.bf16.mxu0 0
    %600 = vmatpush1.bf16.msra.mxu0 0
    %601 = vmatprep.subr.bf16.mxu0 0
    %602 = vmatpush1.bf16.msra.mxu0 0
    %603 = vmatprep.subr.bf16.mxu0 0
    %604 = vmatpush1.bf16.msra.mxu0 0
    %605 = vmatprep.subr.bf16.mxu0 0
    %606 = vmatpush1.bf16.msra.mxu0 0
    %607 = vmatprep.subr.bf16.mxu0 0
    %608 = vmatpush1.bf16.msra.mxu0 0
    %609 = vmatprep.subr.bf16.mxu0 0
    %610 = vmatpush1.bf16.msra.mxu0 0
    %611 = vmatprep.subr.bf16.mxu0 0
    %612 = vmatpush1.bf16.msra.mxu0 0
    %613 = vmatprep.subr.bf16.mxu0 0
    %614 = vmatpush1.bf16.msra.mxu0 0
    %615 = vmatprep.mubr.bf16.mxu0 0
    %616 = vmatmul.mubr.bf16.gmra.mrb[0].mxu0 %v581
    %v617 = vpop.f32.mrb[0].mxu0
    %v618 = vadd.f32 %v128, %v617
    %v619 = vpop.f32.mrb[0].mxu0
    %v620 = vpop.f32.mrb[0].mxu0
    %v621 = vpop.f32.mrb[0].mxu0
    %622 = vdwg.mxu0
    %v623 = vmax.f32 %v618, 0.0
    %v624 = vpack.c.bf16 %v623, %v623
    %s625 = scalar_lea.vmem [#allocation8], 64
    %v626 = vld [vmem:[%s625] sm:$0xf]
    %v627 = vld [vmem:[%s625 + $0x4] sm:$0xf]
    %v628 = vld [vmem:[%s625 + $0x8] sm:$0xf]
    %v629 = vld [vmem:[%s625 + $0xc] sm:$0xf]
    %v634 = vunpack.c.l.b16 %v626
    %v635 = vunpack.c.l.b16 %v627
    %v636 = vunpack.c.l.b16 %v628
    %v637 = vunpack.c.l.b16 %v629
    %v638 = vpack.c.b16 %v635, %v634
    %v639 = vpack.c.b16 %v637, %v636
    %v643 = vsel %vm263, %v624, 0
    %645 = vmatprep.subr.bf16.mxu0 0
    %646 = vmatpush1.bf16.msra.mxu0 %v638
    %647 = vmatprep.subr.bf16.mxu0 0
    %648 = vmatpush1.bf16.msra.mxu0 %v639
    %649 = vmatprep.subr.bf16.mxu0 0
    %650 = vmatpush1.bf16.msra.mxu0 0
    %651 = vmatprep.subr.bf16.mxu0 0
    %652 = vmatpush1.bf16.msra.mxu0 0
    %653 = vmatprep.subr.bf16.mxu0 0
    %654 = vmatpush1.bf16.msra.mxu0 0
    %655 = vmatprep.subr.bf16.mxu0 0
    %656 = vmatpush1.bf16.msra.mxu0 0
    %657 = vmatprep.subr.bf16.mxu0 0
    %658 = vmatpush1.bf16.msra.mxu0 0
    %659 = vmatprep.subr.bf16.mxu0 0
    %660 = vmatpush1.bf16.msra.mxu0 0
    %661 = vmatprep.subr.bf16.mxu0 0
    %662 = vmatpush1.bf16.msra.mxu0 0
    %663 = vmatprep.subr.bf16.mxu0 0
    %664 = vmatpush1.bf16.msra.mxu0 0
    %665 = vmatprep.subr.bf16.mxu0 0
    %666 = vmatpush1.bf16.msra.mxu0 0
    %667 = vmatprep.subr.bf16.mxu0 0
    %668 = vmatpush1.bf16.msra.mxu0 0
    %669 = vmatprep.subr.bf16.mxu0 0
    %670 = vmatpush1.bf16.msra.mxu0 0
    %671 = vmatprep.subr.bf16.mxu0 0
    %672 = vmatpush1.bf16.msra.mxu0 0
    %673 = vmatprep.subr.bf16.mxu0 0
    %674 = vmatpush1.bf16.msra.mxu0 0
    %675 = vmatprep.subr.bf16.mxu0 0
    %676 = vmatpush1.bf16.msra.mxu0 0
    %677 = vmatprep.mubr.bf16.mxu0 0
    %678 = vmatmul.mubr.bf16.gmra.mrb[0].mxu0 %v643
    %v679 = vpop.f32.mrb[0].mxu0
    %v680 = vadd.f32 0.0, %v679
    %v681 = vpop.f32.mrb[0].mxu0
    %v682 = vpop.f32.mrb[0].mxu0
    %v683 = vpop.f32.mrb[0].mxu0
    %684 = vdwg.mxu0
    %v685 = vadd.f32 %v577, %v680
    %s686 = scalar_lea.vmem [#allocation2], 5
    %v687 = vld [vmem:[%s686] sm:$0x1]
    %v689 = vsel %vm145, %v687, 0
    %691 = vmatprep.subr.bf16.mxu0 0
    %692 = vmatpush1.bf16.msra.mxu0 %v140
    %693 = vmatprep.subr.bf16.mxu0 0
    %694 = vmatpush1.bf16.msra.mxu0 %v141
    %695 = vmatprep.subr.bf16.mxu0 0
    %696 = vmatpush1.bf16.msra.mxu0 %v151
    %697 = vmatprep.subr.bf16.mxu0 0
    %698 = vmatpush1.bf16.msra.mxu0 0
    %699 = vmatprep.subr.bf16.mxu0 0
    %700 = vmatpush1.bf16.msra.mxu0 0
    %701 = vmatprep.subr.bf16.mxu0 0
    %702 = vmatpush1.bf16.msra.mxu0 0
    %703 = vmatprep.subr.bf16.mxu0 0
    %704 = vmatpush1.bf16.msra.mxu0 0
    %705 = vmatprep.subr.bf16.mxu0 0
    %706 = vmatpush1.bf16.msra.mxu0 0
    %707 = vmatprep.subr.bf16.mxu0 0
    %708 = vmatpush1.bf16.msra.mxu0 0
    %709 = vmatprep.subr.bf16.mxu0 0
    %710 = vmatpush1.bf16.msra.mxu0 0
    %711 = vmatprep.subr.bf16.mxu0 0
    %712 = vmatpush1.bf16.msra.mxu0 0
    %713 = vmatprep.subr.bf16.mxu0 0
    %714 = vmatpush1.bf16.msra.mxu0 0
    %715 = vmatprep.subr.bf16.mxu0 0
    %716 = vmatpush1.bf16.msra.mxu0 0
    %717 = vmatprep.subr.bf16.mxu0 0
    %718 = vmatpush1.bf16.msra.mxu0 0
    %719 = vmatprep.subr.bf16.mxu0 0
    %720 = vmatpush1.bf16.msra.mxu0 0
    %721 = vmatprep.subr.bf16.mxu0 0
    %722 = vmatpush1.bf16.msra.mxu0 0
    %723 = vmatprep.mubr.bf16.mxu0 0
    %724 = vmatmul.mubr.bf16.gmra.mrb[0].mxu0 %v689
    %v725 = vpop.f32.mrb[0].mxu0
    %v726 = vadd.f32 %v128, %v725
    %v727 = vpop.f32.mrb[0].mxu0
    %v728 = vpop.f32.mrb[0].mxu0
    %v729 = vpop.f32.mrb[0].mxu0
    %730 = vdwg.mxu0
    %v731 = vmax.f32 %v726, 0.0
    %v732 = vpack.c.bf16 %v731, %v731
    %s733 = scalar_lea.vmem [#allocation8], 80
    %v734 = vld [vmem:[%s733] sm:$0xf]
    %v735 = vld [vmem:[%s733 + $0x4] sm:$0xf]
    %v736 = vld [vmem:[%s733 + $0x8] sm:$0xf]
    %v737 = vld [vmem:[%s733 + $0xc] sm:$0xf]
    %v742 = vunpack.c.l.b16 %v734
    %v743 = vunpack.c.l.b16 %v735
    %v744 = vunpack.c.l.b16 %v736
    %v745 = vunpack.c.l.b16 %v737
    %v746 = vpack.c.b16 %v743, %v742
    %v747 = vpack.c.b16 %v745, %v744
    %v751 = vsel %vm263, %v732, 0
    %753 = vmatprep.subr.bf16.mxu0 0
    %754 = vmatpush1.bf16.msra.mxu0 %v746
    %755 = vmatprep.subr.bf16.mxu0 0
    %756 = vmatpush1.bf16.msra.mxu0 %v747
    %757 = vmatprep.subr.bf16.mxu0 0
    %758 = vmatpush1.bf16.msra.mxu0 0
    %759 = vmatprep.subr.bf16.mxu0 0
    %760 = vmatpush1.bf16.msra.mxu0 0
    %761 = vmatprep.subr.bf16.mxu0 0
    %762 = vmatpush1.bf16.msra.mxu0 0
    %763 = vmatprep.subr.bf16.mxu0 0
    %764 = vmatpush1.bf16.msra.mxu0 0
    %765 = vmatprep.subr.bf16.mxu0 0
    %766 = vmatpush1.bf16.msra.mxu0 0
    %767 = vmatprep.subr.bf16.mxu0 0
    %768 = vmatpush1.bf16.msra.mxu0 0
    %769 = vmatprep.subr.bf16.mxu0 0
    %770 = vmatpush1.bf16.msra.mxu0 0
    %771 = vmatprep.subr.bf16.mxu0 0
    %772 = vmatpush1.bf16.msra.mxu0 0
    %773 = vmatprep.subr.bf16.mxu0 0
    %774 = vmatpush1.bf16.msra.mxu0 0
    %775 = vmatprep.subr.bf16.mxu0 0
    %776 = vmatpush1.bf16.msra.mxu0 0
    %777 = vmatprep.subr.bf16.mxu0 0
    %778 = vmatpush1.bf16.msra.mxu0 0
    %779 = vmatprep.subr.bf16.mxu0 0
    %780 = vmatpush1.bf16.msra.mxu0 0
    %781 = vmatprep.subr.bf16.mxu0 0
    %782 = vmatpush1.bf16.msra.mxu0 0
    %783 = vmatprep.subr.bf16.mxu0 0
    %784 = vmatpush1.bf16.msra.mxu0 0
    %785 = vmatprep.mubr.bf16.mxu0 0
    %786 = vmatmul.mubr.bf16.gmra.mrb[0].mxu0 %v751
    %v787 = vpop.f32.mrb[0].mxu0
    %v788 = vadd.f32 0.0, %v787
    %v789 = vpop.f32.mrb[0].mxu0
    %v790 = vpop.f32.mrb[0].mxu0
    %v791 = vpop.f32.mrb[0].mxu0
    %792 = vdwg.mxu0
    %v793 = vadd.f32 %v685, %v788
    %s794 = scalar_lea.vmem [#allocation2], 6
    %v795 = vld [vmem:[%s794] sm:$0x1]
    %v797 = vsel %vm145, %v795, 0
    %799 = vmatprep.subr.bf16.mxu0 0
    %800 = vmatpush1.bf16.msra.mxu0 %v140
    %801 = vmatprep.subr.bf16.mxu0 0
    %802 = vmatpush1.bf16.msra.mxu0 %v141
    %803 = vmatprep.subr.bf16.mxu0 0
    %804 = vmatpush1.bf16.msra.mxu0 %v151
    %805 = vmatprep.subr.bf16.mxu0 0
    %806 = vmatpush1.bf16.msra.mxu0 0
    %807 = vmatprep.subr.bf16.mxu0 0
    %808 = vmatpush1.bf16.msra.mxu0 0
    %809 = vmatprep.subr.bf16.mxu0 0
    %810 = vmatpush1.bf16.msra.mxu0 0
    %811 = vmatprep.subr.bf16.mxu0 0
    %812 = vmatpush1.bf16.msra.mxu0 0
    %813 = vmatprep.subr.bf16.mxu0 0
    %814 = vmatpush1.bf16.msra.mxu0 0
    %815 = vmatprep.subr.bf16.mxu0 0
    %816 = vmatpush1.bf16.msra.mxu0 0
    %817 = vmatprep.subr.bf16.mxu0 0
    %818 = vmatpush1.bf16.msra.mxu0 0
    %819 = vmatprep.subr.bf16.mxu0 0
    %820 = vmatpush1.bf16.msra.mxu0 0
    %821 = vmatprep.subr.bf16.mxu0 0
    %822 = vmatpush1.bf16.msra.mxu0 0
    %823 = vmatprep.subr.bf16.mxu0 0
    %824 = vmatpush1.bf16.msra.mxu0 0
    %825 = vmatprep.subr.bf16.mxu0 0
    %826 = vmatpush1.bf16.msra.mxu0 0
    %827 = vmatprep.subr.bf16.mxu0 0
    %828 = vmatpush1.bf16.msra.mxu0 0
    %829 = vmatprep.subr.bf16.mxu0 0
    %830 = vmatpush1.bf16.msra.mxu0 0
    %831 = vmatprep.mubr.bf16.mxu0 0
    %832 = vmatmul.mubr.bf16.gmra.mrb[0].mxu0 %v797
    %v833 = vpop.f32.mrb[0].mxu0
    %v834 = vadd.f32 %v128, %v833
    %v835 = vpop.f32.mrb[0].mxu0
    %v836 = vpop.f32.mrb[0].mxu0
    %v837 = vpop.f32.mrb[0].mxu0
    %838 = vdwg.mxu0
    %v839 = vmax.f32 %v834, 0.0
    %v840 = vpack.c.bf16 %v839, %v839
    %s841 = scalar_lea.vmem [#allocation8], 96
    %v842 = vld [vmem:[%s841] sm:$0xf]
    %v843 = vld [vmem:[%s841 + $0x4] sm:$0xf]
    %v844 = vld [vmem:[%s841 + $0x8] sm:$0xf]
    %v845 = vld [vmem:[%s841 + $0xc] sm:$0xf]
    %v850 = vunpack.c.l.b16 %v842
    %v851 = vunpack.c.l.b16 %v843
    %v852 = vunpack.c.l.b16 %v844
    %v853 = vunpack.c.l.b16 %v845
    %v854 = vpack.c.b16 %v851, %v850
    %v855 = vpack.c.b16 %v853, %v852
    %v859 = vsel %vm263, %v840, 0
    %861 = vmatprep.subr.bf16.mxu0 0
    %862 = vmatpush1.bf16.msra.mxu0 %v854
    %863 = vmatprep.subr.bf16.mxu0 0
    %864 = vmatpush1.bf16.msra.mxu0 %v855
    %865 = vmatprep.subr.bf16.mxu0 0
    %866 = vmatpush1.bf16.msra.mxu0 0
    %867 = vmatprep.subr.bf16.mxu0 0
    %868 = vmatpush1.bf16.msra.mxu0 0
    %869 = vmatprep.subr.bf16.mxu0 0
    %870 = vmatpush1.bf16.msra.mxu0 0
    %871 = vmatprep.subr.bf16.mxu0 0
    %872 = vmatpush1.bf16.msra.mxu0 0
    %873 = vmatprep.subr.bf16.mxu0 0
    %874 = vmatpush1.bf16.msra.mxu0 0
    %875 = vmatprep.subr.bf16.mxu0 0
    %876 = vmatpush1.bf16.msra.mxu0 0
    %877 = vmatprep.subr.bf16.mxu0 0
    %878 = vmatpush1.bf16.msra.mxu0 0
    %879 = vmatprep.subr.bf16.mxu0 0
    %880 = vmatpush1.bf16.msra.mxu0 0
    %881 = vmatprep.subr.bf16.mxu0 0
    %882 = vmatpush1.bf16.msra.mxu0 0
    %883 = vmatprep.subr.bf16.mxu0 0
    %884 = vmatpush1.bf16.msra.mxu0 0
    %885 = vmatprep.subr.bf16.mxu0 0
    %886 = vmatpush1.bf16.msra.mxu0 0
    %887 = vmatprep.subr.bf16.mxu0 0
    %888 = vmatpush1.bf16.msra.mxu0 0
    %889 = vmatprep.subr.bf16.mxu0 0
    %890 = vmatpush1.bf16.msra.mxu0 0
    %891 = vmatprep.subr.bf16.mxu0 0
    %892 = vmatpush1.bf16.msra.mxu0 0
    %893 = vmatprep.mubr.bf16.mxu0 0
    %894 = vmatmul.mubr.bf16.gmra.mrb[0].mxu0 %v859
    %v895 = vpop.f32.mrb[0].mxu0
    %v896 = vadd.f32 0.0, %v895
    %v897 = vpop.f32.mrb[0].mxu0
    %v898 = vpop.f32.mrb[0].mxu0
    %v899 = vpop.f32.mrb[0].mxu0
    %900 = vdwg.mxu0
    %v901 = vadd.f32 %v793, %v896
    %s902 = scalar_lea.vmem [#allocation2], 7
    %v903 = vld [vmem:[%s902] sm:$0x1]
    %v905 = vsel %vm145, %v903, 0
    %907 = vmatprep.subr.bf16.mxu0 0
    %908 = vmatpush1.bf16.msra.mxu0 %v140
    %909 = vmatprep.subr.bf16.mxu0 0
    %910 = vmatpush1.bf16.msra.mxu0 %v141
    %911 = vmatprep.subr.bf16.mxu0 0
    %912 = vmatpush1.bf16.msra.mxu0 %v151
    %913 = vmatprep.subr.bf16.mxu0 0
    %914 = vmatpush1.bf16.msra.mxu0 0
    %915 = vmatprep.subr.bf16.mxu0 0
    %916 = vmatpush1.bf16.msra.mxu0 0
    %917 = vmatprep.subr.bf16.mxu0 0
    %918 = vmatpush1.bf16.msra.mxu0 0
    %919 = vmatprep.subr.bf16.mxu0 0
    %920 = vmatpush1.bf16.msra.mxu0 0
    %921 = vmatprep.subr.bf16.mxu0 0
    %922 = vmatpush1.bf16.msra.mxu0 0
    %923 = vmatprep.subr.bf16.mxu0 0
    %924 = vmatpush1.bf16.msra.mxu0 0
    %925 = vmatprep.subr.bf16.mxu0 0
    %926 = vmatpush1.bf16.msra.mxu0 0
    %927 = vmatprep.subr.bf16.mxu0 0
    %928 = vmatpush1.bf16.msra.mxu0 0
    %929 = vmatprep.subr.bf16.mxu0 0
    %930 = vmatpush1.bf16.msra.mxu0 0
    %931 = vmatprep.subr.bf16.mxu0 0
    %932 = vmatpush1.bf16.msra.mxu0 0
    %933 = vmatprep.subr.bf16.mxu0 0
    %934 = vmatpush1.bf16.msra.mxu0 0
    %935 = vmatprep.subr.bf16.mxu0 0
    %936 = vmatpush1.bf16.msra.mxu0 0
    %937 = vmatprep.subr.bf16.mxu0 0
    %938 = vmatpush1.bf16.msra.mxu0 0
    %939 = vmatprep.mubr.bf16.mxu0 0
    %940 = vmatmul.mubr.bf16.gmra.mrb[0].mxu0 %v905
    %v941 = vpop.f32.mrb[0].mxu0
    %v942 = vadd.f32 %v128, %v941
    %v943 = vpop.f32.mrb[0].mxu0
    %v944 = vpop.f32.mrb[0].mxu0
    %v945 = vpop.f32.mrb[0].mxu0
    %946 = vdwg.mxu0
    %v947 = vmax.f32 %v942, 0.0
    %v948 = vpack.c.bf16 %v947, %v947
    %s949 = scalar_lea.vmem [#allocation8], 112
    %v950 = vld [vmem:[%s949] sm:$0xf]
    %v951 = vld [vmem:[%s949 + $0x4] sm:$0xf]
    %v952 = vld [vmem:[%s949 + $0x8] sm:$0xf]
    %v953 = vld [vmem:[%s949 + $0xc] sm:$0xf]
    %v958 = vunpack.c.l.b16 %v950
    %v959 = vunpack.c.l.b16 %v951
    %v960 = vunpack.c.l.b16 %v952
    %v961 = vunpack.c.l.b16 %v953
    %v962 = vpack.c.b16 %v959, %v958
    %v963 = vpack.c.b16 %v961, %v960
    %v967 = vsel %vm263, %v948, 0
    %969 = vmatprep.subr.bf16.mxu0 0
    %970 = vmatpush1.bf16.msra.mxu0 %v962
    %971 = vmatprep.subr.bf16.mxu0 0
    %972 = vmatpush1.bf16.msra.mxu0 %v963
    %973 = vmatprep.subr.bf16.mxu0 0
    %974 = vmatpush1.bf16.msra.mxu0 0
    %975 = vmatprep.subr.bf16.mxu0 0
    %976 = vmatpush1.bf16.msra.mxu0 0
    %977 = vmatprep.subr.bf16.mxu0 0
    %978 = vmatpush1.bf16.msra.mxu0 0
    %979 = vmatprep.subr.bf16.mxu0 0
    %980 = vmatpush1.bf16.msra.mxu0 0
    %981 = vmatprep.subr.bf16.mxu0 0
    %982 = vmatpush1.bf16.msra.mxu0 0
    %983 = vmatprep.subr.bf16.mxu0 0
    %984 = vmatpush1.bf16.msra.mxu0 0
    %985 = vmatprep.subr.bf16.mxu0 0
    %986 = vmatpush1.bf16.msra.mxu0 0
    %987 = vmatprep.subr.bf16.mxu0 0
    %988 = vmatpush1.bf16.msra.mxu0 0
    %989 = vmatprep.subr.bf16.mxu0 0
    %990 = vmatpush1.bf16.msra.mxu0 0
    %991 = vmatprep.subr.bf16.mxu0 0
    %992 = vmatpush1.bf16.msra.mxu0 0
    %993 = vmatprep.subr.bf16.mxu0 0
    %994 = vmatpush1.bf16.msra.mxu0 0
    %995 = vmatprep.subr.bf16.mxu0 0
    %996 = vmatpush1.bf16.msra.mxu0 0
    %997 = vmatprep.subr.bf16.mxu0 0
    %998 = vmatpush1.bf16.msra.mxu0 0
    %999 = vmatprep.subr.bf16.mxu0 0
    %1000 = vmatpush1.bf16.msra.mxu0 0
    %1001 = vmatprep.mubr.bf16.mxu0 0
    %1002 = vmatmul.mubr.bf16.gmra.mrb[0].mxu0 %v967
    %v1003 = vpop.f32.mrb[0].mxu0
    %v1004 = vadd.f32 0.0, %v1003
    %v1005 = vpop.f32.mrb[0].mxu0
    %v1006 = vpop.f32.mrb[0].mxu0
    %v1007 = vpop.f32.mrb[0].mxu0
    %1008 = vdwg.mxu0
    %v1009 = vadd.f32 %v901, %v1004
    %s1010 = scalar_lea.vmem [#allocation2], 8
    %v1011 = vld [vmem:[%s1010] sm:$0x1]
    %v1013 = vsel %vm145, %v1011, 0
    %1015 = vmatprep.subr.bf16.mxu0 0
    %1016 = vmatpush1.bf16.msra.mxu0 %v140
    %1017 = vmatprep.subr.bf16.mxu0 0
    %1018 = vmatpush1.bf16.msra.mxu0 %v141
    %1019 = vmatprep.subr.bf16.mxu0 0
    %1020 = vmatpush1.bf16.msra.mxu0 %v151
    %1021 = vmatprep.subr.bf16.mxu0 0
    %1022 = vmatpush1.bf16.msra.mxu0 0
    %1023 = vmatprep.subr.bf16.mxu0 0
    %1024 = vmatpush1.bf16.msra.mxu0 0
    %1025 = vmatprep.subr.bf16.mxu0 0
    %1026 = vmatpush1.bf16.msra.mxu0 0
    %1027 = vmatprep.subr.bf16.mxu0 0
    %1028 = vmatpush1.bf16.msra.mxu0 0
    %1029 = vmatprep.subr.bf16.mxu0 0
    %1030 = vmatpush1.bf16.msra.mxu0 0
    %1031 = vmatprep.subr.bf16.mxu0 0
    %1032 = vmatpush1.bf16.msra.mxu0 0
    %1033 = vmatprep.subr.bf16.mxu0 0
    %1034 = vmatpush1.bf16.msra.mxu0 0
    %1035 = vmatprep.subr.bf16.mxu0 0
    %1036 = vmatpush1.bf16.msra.mxu0 0
    %1037 = vmatprep.subr.bf16.mxu0 0
    %1038 = vmatpush1.bf16.msra.mxu0 0
    %1039 = vmatprep.subr.bf16.mxu0 0
    %1040 = vmatpush1.bf16.msra.mxu0 0
    %1041 = vmatprep.subr.bf16.mxu0 0
    %1042 = vmatpush1.bf16.msra.mxu0 0
    %1043 = vmatprep.subr.bf16.mxu0 0
    %1044 = vmatpush1.bf16.msra.mxu0 0
    %1045 = vmatprep.subr.bf16.mxu0 0
    %1046 = vmatpush1.bf16.msra.mxu0 0
    %1047 = vmatprep.mubr.bf16.mxu0 0
    %1048 = vmatmul.mubr.bf16.gmra.mrb[0].mxu0 %v1013
    %v1049 = vpop.f32.mrb[0].mxu0
    %v1050 = vadd.f32 %v128, %v1049
    %v1051 = vpop.f32.mrb[0].mxu0
    %v1052 = vpop.f32.mrb[0].mxu0
    %v1053 = vpop.f32.mrb[0].mxu0
    %1054 = vdwg.mxu0
    %v1055 = vmax.f32 %v1050, 0.0
    %v1056 = vpack.c.bf16 %v1055, %v1055
    %s1057 = scalar_lea.vmem [#allocation8], 128
    %v1058 = vld [vmem:[%s1057] sm:$0xf]
    %v1059 = vld [vmem:[%s1057 + $0x4] sm:$0xf]
    %v1060 = vld [vmem:[%s1057 + $0x8] sm:$0xf]
    %v1061 = vld [vmem:[%s1057 + $0xc] sm:$0xf]
    %v1066 = vunpack.c.l.b16 %v1058
    %v1067 = vunpack.c.l.b16 %v1059
    %v1068 = vunpack.c.l.b16 %v1060
    %v1069 = vunpack.c.l.b16 %v1061
    %v1070 = vpack.c.b16 %v1067, %v1066
    %v1071 = vpack.c.b16 %v1069, %v1068
    %v1075 = vsel %vm263, %v1056, 0
    %1077 = vmatprep.subr.bf16.mxu0 0
    %1078 = vmatpush1.bf16.msra.mxu0 %v1070
    %1079 = vmatprep.subr.bf16.mxu0 0
    %1080 = vmatpush1.bf16.msra.mxu0 %v1071
    %1081 = vmatprep.subr.bf16.mxu0 0
    %1082 = vmatpush1.bf16.msra.mxu0 0
    %1083 = vmatprep.subr.bf16.mxu0 0
    %1084 = vmatpush1.bf16.msra.mxu0 0
    %1085 = vmatprep.subr.bf16.mxu0 0
    %1086 = vmatpush1.bf16.msra.mxu0 0
    %1087 = vmatprep.subr.bf16.mxu0 0
    %1088 = vmatpush1.bf16.msra.mxu0 0
    %1089 = vmatprep.subr.bf16.mxu0 0
    %1090 = vmatpush1.bf16.msra.mxu0 0
    %1091 = vmatprep.subr.bf16.mxu0 0
    %1092 = vmatpush1.bf16.msra.mxu0 0
    %1093 = vmatprep.subr.bf16.mxu0 0
    %1094 = vmatpush1.bf16.msra.mxu0 0
    %1095 = vmatprep.subr.bf16.mxu0 0
    %1096 = vmatpush1.bf16.msra.mxu0 0
    %1097 = vmatprep.subr.bf16.mxu0 0
    %1098 = vmatpush1.bf16.msra.mxu0 0
    %1099 = vmatprep.subr.bf16.mxu0 0
    %1100 = vmatpush1.bf16.msra.mxu0 0
    %1101 = vmatprep.subr.bf16.mxu0 0
    %1102 = vmatpush1.bf16.msra.mxu0 0
    %1103 = vmatprep.subr.bf16.mxu0 0
    %1104 = vmatpush1.bf16.msra.mxu0 0
    %1105 = vmatprep.subr.bf16.mxu0 0
    %1106 = vmatpush1.bf16.msra.mxu0 0
    %1107 = vmatprep.subr.bf16.mxu0 0
    %1108 = vmatpush1.bf16.msra.mxu0 0
    %1109 = vmatprep.mubr.bf16.mxu0 0
    %1110 = vmatmul.mubr.bf16.gmra.mrb[0].mxu0 %v1075
    %v1111 = vpop.f32.mrb[0].mxu0
    %v1112 = vadd.f32 0.0, %v1111
    %v1113 = vpop.f32.mrb[0].mxu0
    %v1114 = vpop.f32.mrb[0].mxu0
    %v1115 = vpop.f32.mrb[0].mxu0
    %1116 = vdwg.mxu0
    %v1117 = vadd.f32 %v1009, %v1112
    %s1118 = scalar_lea.vmem [#allocation2], 9
    %v1119 = vld [vmem:[%s1118] sm:$0x1]
    %v1121 = vsel %vm145, %v1119, 0
    %1123 = vmatprep.subr.bf16.mxu0 0
    %1124 = vmatpush1.bf16.msra.mxu0 %v140
    %1125 = vmatprep.subr.bf16.mxu0 0
    %1126 = vmatpush1.bf16.msra.mxu0 %v141
    %1127 = vmatprep.subr.bf16.mxu0 0
    %1128 = vmatpush1.bf16.msra.mxu0 %v151
    %1129 = vmatprep.subr.bf16.mxu0 0
    %1130 = vmatpush1.bf16.msra.mxu0 0
    %1131 = vmatprep.subr.bf16.mxu0 0
    %1132 = vmatpush1.bf16.msra.mxu0 0
    %1133 = vmatprep.subr.bf16.mxu0 0
    %1134 = vmatpush1.bf16.msra.mxu0 0
    %1135 = vmatprep.subr.bf16.mxu0 0
    %1136 = vmatpush1.bf16.msra.mxu0 0
    %1137 = vmatprep.subr.bf16.mxu0 0
    %1138 = vmatpush1.bf16.msra.mxu0 0
    %1139 = vmatprep.subr.bf16.mxu0 0
    %1140 = vmatpush1.bf16.msra.mxu0 0
    %1141 = vmatprep.subr.bf16.mxu0 0
    %1142 = vmatpush1.bf16.msra.mxu0 0
    %1143 = vmatprep.subr.bf16.mxu0 0
    %1144 = vmatpush1.bf16.msra.mxu0 0
    %1145 = vmatprep.subr.bf16.mxu0 0
    %1146 = vmatpush1.bf16.msra.mxu0 0
    %1147 = vmatprep.subr.bf16.mxu0 0
    %1148 = vmatpush1.bf16.msra.mxu0 0
    %1149 = vmatprep.subr.bf16.mxu0 0
    %1150 = vmatpush1.bf16.msra.mxu0 0
    %1151 = vmatprep.subr.bf16.mxu0 0
    %1152 = vmatpush1.bf16.msra.mxu0 0
    %1153 = vmatprep.subr.bf16.mxu0 0
    %1154 = vmatpush1.bf16.msra.mxu0 0
    %1155 = vmatprep.mubr.bf16.mxu0 0
    %1156 = vmatmul.mubr.bf16.gmra.mrb[0].mxu0 %v1121
    %v1157 = vpop.f32.mrb[0].mxu0
    %v1158 = vadd.f32 %v128, %v1157
    %v1159 = vpop.f32.mrb[0].mxu0
    %v1160 = vpop.f32.mrb[0].mxu0
    %v1161 = vpop.f32.mrb[0].mxu0
    %1162 = vdwg.mxu0
    %v1163 = vmax.f32 %v1158, 0.0
    %v1164 = vpack.c.bf16 %v1163, %v1163
    %s1165 = scalar_lea.vmem [#allocation8], 144
    %v1166 = vld [vmem:[%s1165] sm:$0xf]
    %v1167 = vld [vmem:[%s1165 + $0x4] sm:$0xf]
    %v1168 = vld [vmem:[%s1165 + $0x8] sm:$0xf]
    %v1169 = vld [vmem:[%s1165 + $0xc] sm:$0xf]
    %v1174 = vunpack.c.l.b16 %v1166
    %v1175 = vunpack.c.l.b16 %v1167
    %v1176 = vunpack.c.l.b16 %v1168
    %v1177 = vunpack.c.l.b16 %v1169
    %v1178 = vpack.c.b16 %v1175, %v1174
    %v1179 = vpack.c.b16 %v1177, %v1176
    %v1183 = vsel %vm263, %v1164, 0
    %1185 = vmatprep.subr.bf16.mxu0 0
    %1186 = vmatpush1.bf16.msra.mxu0 %v1178
    %1187 = vmatprep.subr.bf16.mxu0 0
    %1188 = vmatpush1.bf16.msra.mxu0 %v1179
    %1189 = vmatprep.subr.bf16.mxu0 0
    %1190 = vmatpush1.bf16.msra.mxu0 0
    %1191 = vmatprep.subr.bf16.mxu0 0
    %1192 = vmatpush1.bf16.msra.mxu0 0
    %1193 = vmatprep.subr.bf16.mxu0 0
    %1194 = vmatpush1.bf16.msra.mxu0 0
    %1195 = vmatprep.subr.bf16.mxu0 0
    %1196 = vmatpush1.bf16.msra.mxu0 0
    %1197 = vmatprep.subr.bf16.mxu0 0
    %1198 = vmatpush1.bf16.msra.mxu0 0
    %1199 = vmatprep.subr.bf16.mxu0 0
    %1200 = vmatpush1.bf16.msra.mxu0 0
    %1201 = vmatprep.subr.bf16.mxu0 0
    %1202 = vmatpush1.bf16.msra.mxu0 0
    %1203 = vmatprep.subr.bf16.mxu0 0
    %1204 = vmatpush1.bf16.msra.mxu0 0
    %1205 = vmatprep.subr.bf16.mxu0 0
    %1206 = vmatpush1.bf16.msra.mxu0 0
    %1207 = vmatprep.subr.bf16.mxu0 0
    %1208 = vmatpush1.bf16.msra.mxu0 0
    %1209 = vmatprep.subr.bf16.mxu0 0
    %1210 = vmatpush1.bf16.msra.mxu0 0
    %1211 = vmatprep.subr.bf16.mxu0 0
    %1212 = vmatpush1.bf16.msra.mxu0 0
    %1213 = vmatprep.subr.bf16.mxu0 0
    %1214 = vmatpush1.bf16.msra.mxu0 0
    %1215 = vmatprep.subr.bf16.mxu0 0
    %1216 = vmatpush1.bf16.msra.mxu0 0
    %1217 = vmatprep.mubr.bf16.mxu0 0
    %1218 = vmatmul.mubr.bf16.gmra.mrb[0].mxu0 %v1183
    %v1219 = vpop.f32.mrb[0].mxu0
    %v1220 = vadd.f32 0.0, %v1219
    %v1221 = vpop.f32.mrb[0].mxu0
    %v1222 = vpop.f32.mrb[0].mxu0
    %v1223 = vpop.f32.mrb[0].mxu0
    %1224 = vdwg.mxu0
    %v1225 = vadd.f32 %v1117, %v1220
    %s1226 = scalar_lea.vmem [#allocation2], 10
    %v1227 = vld [vmem:[%s1226] sm:$0x1]
    %v1229 = vsel %vm145, %v1227, 0
    %1231 = vmatprep.subr.bf16.mxu0 0
    %1232 = vmatpush1.bf16.msra.mxu0 %v140
    %1233 = vmatprep.subr.bf16.mxu0 0
    %1234 = vmatpush1.bf16.msra.mxu0 %v141
    %1235 = vmatprep.subr.bf16.mxu0 0
    %1236 = vmatpush1.bf16.msra.mxu0 %v151
    %1237 = vmatprep.subr.bf16.mxu0 0
    %1238 = vmatpush1.bf16.msra.mxu0 0
    %1239 = vmatprep.subr.bf16.mxu0 0
    %1240 = vmatpush1.bf16.msra.mxu0 0
    %1241 = vmatprep.subr.bf16.mxu0 0
    %1242 = vmatpush1.bf16.msra.mxu0 0
    %1243 = vmatprep.subr.bf16.mxu0 0
    %1244 = vmatpush1.bf16.msra.mxu0 0
    %1245 = vmatprep.subr.bf16.mxu0 0
    %1246 = vmatpush1.bf16.msra.mxu0 0
    %1247 = vmatprep.subr.bf16.mxu0 0
    %1248 = vmatpush1.bf16.msra.mxu0 0
    %1249 = vmatprep.subr.bf16.mxu0 0
    %1250 = vmatpush1.bf16.msra.mxu0 0
    %1251 = vmatprep.subr.bf16.mxu0 0
    %1252 = vmatpush1.bf16.msra.mxu0 0
    %1253 = vmatprep.subr.bf16.mxu0 0
    %1254 = vmatpush1.bf16.msra.mxu0 0
    %1255 = vmatprep.subr.bf16.mxu0 0
    %1256 = vmatpush1.bf16.msra.mxu0 0
    %1257 = vmatprep.subr.bf16.mxu0 0
    %1258 = vmatpush1.bf16.msra.mxu0 0
    %1259 = vmatprep.subr.bf16.mxu0 0
    %1260 = vmatpush1.bf16.msra.mxu0 0
    %1261 = vmatprep.subr.bf16.mxu0 0
    %1262 = vmatpush1.bf16.msra.mxu0 0
    %1263 = vmatprep.mubr.bf16.mxu0 0
    %1264 = vmatmul.mubr.bf16.gmra.mrb[0].mxu0 %v1229
    %v1265 = vpop.f32.mrb[0].mxu0
    %v1266 = vadd.f32 %v128, %v1265
    %v1267 = vpop.f32.mrb[0].mxu0
    %v1268 = vpop.f32.mrb[0].mxu0
    %v1269 = vpop.f32.mrb[0].mxu0
    %1270 = vdwg.mxu0
    %v1271 = vmax.f32 %v1266, 0.0
    %v1272 = vpack.c.bf16 %v1271, %v1271
    %s1273 = scalar_lea.vmem [#allocation8], 160
    %v1274 = vld [vmem:[%s1273] sm:$0xf]
    %v1275 = vld [vmem:[%s1273 + $0x4] sm:$0xf]
    %v1276 = vld [vmem:[%s1273 + $0x8] sm:$0xf]
    %v1277 = vld [vmem:[%s1273 + $0xc] sm:$0xf]
    %v1282 = vunpack.c.l.b16 %v1274
    %v1283 = vunpack.c.l.b16 %v1275
    %v1284 = vunpack.c.l.b16 %v1276
    %v1285 = vunpack.c.l.b16 %v1277
    %v1286 = vpack.c.b16 %v1283, %v1282
    %v1287 = vpack.c.b16 %v1285, %v1284
    %v1291 = vsel %vm263, %v1272, 0
    %1293 = vmatprep.subr.bf16.mxu0 0
    %1294 = vmatpush1.bf16.msra.mxu0 %v1286
    %1295 = vmatprep.subr.bf16.mxu0 0
    %1296 = vmatpush1.bf16.msra.mxu0 %v1287
    %1297 = vmatprep.subr.bf16.mxu0 0
    %1298 = vmatpush1.bf16.msra.mxu0 0
    %1299 = vmatprep.subr.bf16.mxu0 0
    %1300 = vmatpush1.bf16.msra.mxu0 0
    %1301 = vmatprep.subr.bf16.mxu0 0
    %1302 = vmatpush1.bf16.msra.mxu0 0
    %1303 = vmatprep.subr.bf16.mxu0 0
    %1304 = vmatpush1.bf16.msra.mxu0 0
    %1305 = vmatprep.subr.bf16.mxu0 0
    %1306 = vmatpush1.bf16.msra.mxu0 0
    %1307 = vmatprep.subr.bf16.mxu0 0
    %1308 = vmatpush1.bf16.msra.mxu0 0
    %1309 = vmatprep.subr.bf16.mxu0 0
    %1310 = vmatpush1.bf16.msra.mxu0 0
    %1311 = vmatprep.subr.bf16.mxu0 0
    %1312 = vmatpush1.bf16.msra.mxu0 0
    %1313 = vmatprep.subr.bf16.mxu0 0
    %1314 = vmatpush1.bf16.msra.mxu0 0
    %1315 = vmatprep.subr.bf16.mxu0 0
    %1316 = vmatpush1.bf16.msra.mxu0 0
    %1317 = vmatprep.subr.bf16.mxu0 0
    %1318 = vmatpush1.bf16.msra.mxu0 0
    %1319 = vmatprep.subr.bf16.mxu0 0
    %1320 = vmatpush1.bf16.msra.mxu0 0
    %1321 = vmatprep.subr.bf16.mxu0 0
    %1322 = vmatpush1.bf16.msra.mxu0 0
    %1323 = vmatprep.subr.bf16.mxu0 0
    %1324 = vmatpush1.bf16.msra.mxu0 0
    %1325 = vmatprep.mubr.bf16.mxu0 0
    %1326 = vmatmul.mubr.bf16.gmra.mrb[0].mxu0 %v1291
    %v1327 = vpop.f32.mrb[0].mxu0
    %v1328 = vadd.f32 0.0, %v1327
    %v1329 = vpop.f32.mrb[0].mxu0
    %v1330 = vpop.f32.mrb[0].mxu0
    %v1331 = vpop.f32.mrb[0].mxu0
    %1332 = vdwg.mxu0
    %v1333 = vadd.f32 %v1225, %v1328
    %s1334 = scalar_lea.vmem [#allocation2], 11
    %v1335 = vld [vmem:[%s1334] sm:$0x1]
    %v1337 = vsel %vm145, %v1335, 0
    %1339 = vmatprep.subr.bf16.mxu0 0
    %1340 = vmatpush1.bf16.msra.mxu0 %v140
    %1341 = vmatprep.subr.bf16.mxu0 0
    %1342 = vmatpush1.bf16.msra.mxu0 %v141
    %1343 = vmatprep.subr.bf16.mxu0 0
    %1344 = vmatpush1.bf16.msra.mxu0 %v151
    %1345 = vmatprep.subr.bf16.mxu0 0
    %1346 = vmatpush1.bf16.msra.mxu0 0
    %1347 = vmatprep.subr.bf16.mxu0 0
    %1348 = vmatpush1.bf16.msra.mxu0 0
    %1349 = vmatprep.subr.bf16.mxu0 0
    %1350 = vmatpush1.bf16.msra.mxu0 0
    %1351 = vmatprep.subr.bf16.mxu0 0
    %1352 = vmatpush1.bf16.msra.mxu0 0
    %1353 = vmatprep.subr.bf16.mxu0 0
    %1354 = vmatpush1.bf16.msra.mxu0 0
    %1355 = vmatprep.subr.bf16.mxu0 0
    %1356 = vmatpush1.bf16.msra.mxu0 0
    %1357 = vmatprep.subr.bf16.mxu0 0
    %1358 = vmatpush1.bf16.msra.mxu0 0
    %1359 = vmatprep.subr.bf16.mxu0 0
    %1360 = vmatpush1.bf16.msra.mxu0 0
    %1361 = vmatprep.subr.bf16.mxu0 0
    %1362 = vmatpush1.bf16.msra.mxu0 0
    %1363 = vmatprep.subr.bf16.mxu0 0
    %1364 = vmatpush1.bf16.msra.mxu0 0
    %1365 = vmatprep.subr.bf16.mxu0 0
    %1366 = vmatpush1.bf16.msra.mxu0 0
    %1367 = vmatprep.subr.bf16.mxu0 0
    %1368 = vmatpush1.bf16.msra.mxu0 0
    %1369 = vmatprep.subr.bf16.mxu0 0
    %1370 = vmatpush1.bf16.msra.mxu0 0
    %1371 = vmatprep.mubr.bf16.mxu0 0
    %1372 = vmatmul.mubr.bf16.gmra.mrb[0].mxu0 %v1337
    %v1373 = vpop.f32.mrb[0].mxu0
    %v1374 = vadd.f32 %v128, %v1373
    %v1375 = vpop.f32.mrb[0].mxu0
    %v1376 = vpop.f32.mrb[0].mxu0
    %v1377 = vpop.f32.mrb[0].mxu0
    %1378 = vdwg.mxu0
    %v1379 = vmax.f32 %v1374, 0.0
    %v1380 = vpack.c.bf16 %v1379, %v1379
    %s1381 = scalar_lea.vmem [#allocation8], 176
    %v1382 = vld [vmem:[%s1381] sm:$0xf]
    %v1383 = vld [vmem:[%s1381 + $0x4] sm:$0xf]
    %v1384 = vld [vmem:[%s1381 + $0x8] sm:$0xf]
    %v1385 = vld [vmem:[%s1381 + $0xc] sm:$0xf]
    %v1390 = vunpack.c.l.b16 %v1382
    %v1391 = vunpack.c.l.b16 %v1383
    %v1392 = vunpack.c.l.b16 %v1384
    %v1393 = vunpack.c.l.b16 %v1385
    %v1394 = vpack.c.b16 %v1391, %v1390
    %v1395 = vpack.c.b16 %v1393, %v1392
    %v1399 = vsel %vm263, %v1380, 0
    %1401 = vmatprep.subr.bf16.mxu0 0
    %1402 = vmatpush1.bf16.msra.mxu0 %v1394
    %1403 = vmatprep.subr.bf16.mxu0 0
    %1404 = vmatpush1.bf16.msra.mxu0 %v1395
    %1405 = vmatprep.subr.bf16.mxu0 0
    %1406 = vmatpush1.bf16.msra.mxu0 0
    %1407 = vmatprep.subr.bf16.mxu0 0
    %1408 = vmatpush1.bf16.msra.mxu0 0
    %1409 = vmatprep.subr.bf16.mxu0 0
    %1410 = vmatpush1.bf16.msra.mxu0 0
    %1411 = vmatprep.subr.bf16.mxu0 0
    %1412 = vmatpush1.bf16.msra.mxu0 0
    %1413 = vmatprep.subr.bf16.mxu0 0
    %1414 = vmatpush1.bf16.msra.mxu0 0
    %1415 = vmatprep.subr.bf16.mxu0 0
    %1416 = vmatpush1.bf16.msra.mxu0 0
    %1417 = vmatprep.subr.bf16.mxu0 0
    %1418 = vmatpush1.bf16.msra.mxu0 0
    %1419 = vmatprep.subr.bf16.mxu0 0
    %1420 = vmatpush1.bf16.msra.mxu0 0
    %1421 = vmatprep.subr.bf16.mxu0 0
    %1422 = vmatpush1.bf16.msra.mxu0 0
    %1423 = vmatprep.subr.bf16.mxu0 0
    %1424 = vmatpush1.bf16.msra.mxu0 0
    %1425 = vmatprep.subr.bf16.mxu0 0
    %1426 = vmatpush1.bf16.msra.mxu0 0
    %1427 = vmatprep.subr.bf16.mxu0 0
    %1428 = vmatpush1.bf16.msra.mxu0 0
    %1429 = vmatprep.subr.bf16.mxu0 0
    %1430 = vmatpush1.bf16.msra.mxu0 0
    %1431 = vmatprep.subr.bf16.mxu0 0
    %1432 = vmatpush1.bf16.msra.mxu0 0
    %1433 = vmatprep.mubr.bf16.mxu0 0
    %1434 = vmatmul.mubr.bf16.gmra.mrb[0].mxu0 %v1399
    %v1435 = vpop.f32.mrb[0].mxu0
    %v1436 = vadd.f32 0.0, %v1435
    %v1437 = vpop.f32.mrb[0].mxu0
    %v1438 = vpop.f32.mrb[0].mxu0
    %v1439 = vpop.f32.mrb[0].mxu0
    %1440 = vdwg.mxu0
    %v1441 = vadd.f32 %v1333, %v1436
    %s1442 = scalar_lea.vmem [#allocation2], 12
    %v1443 = vld [vmem:[%s1442] sm:$0x1]
    %v1445 = vsel %vm145, %v1443, 0
    %1447 = vmatprep.subr.bf16.mxu0 0
    %1448 = vmatpush1.bf16.msra.mxu0 %v140
    %1449 = vmatprep.subr.bf16.mxu0 0
    %1450 = vmatpush1.bf16.msra.mxu0 %v141
    %1451 = vmatprep.subr.bf16.mxu0 0
    %1452 = vmatpush1.bf16.msra.mxu0 %v151
    %1453 = vmatprep.subr.bf16.mxu0 0
    %1454 = vmatpush1.bf16.msra.mxu0 0
    %1455 = vmatprep.subr.bf16.mxu0 0
    %1456 = vmatpush1.bf16.msra.mxu0 0
    %1457 = vmatprep.subr.bf16.mxu0 0
    %1458 = vmatpush1.bf16.msra.mxu0 0
    %1459 = vmatprep.subr.bf16.mxu0 0
    %1460 = vmatpush1.bf16.msra.mxu0 0
    %1461 = vmatprep.subr.bf16.mxu0 0
    %1462 = vmatpush1.bf16.msra.mxu0 0
    %1463 = vmatprep.subr.bf16.mxu0 0
    %1464 = vmatpush1.bf16.msra.mxu0 0
    %1465 = vmatprep.subr.bf16.mxu0 0
    %1466 = vmatpush1.bf16.msra.mxu0 0
    %1467 = vmatprep.subr.bf16.mxu0 0
    %1468 = vmatpush1.bf16.msra.mxu0 0
    %1469 = vmatprep.subr.bf16.mxu0 0
    %1470 = vmatpush1.bf16.msra.mxu0 0
    %1471 = vmatprep.subr.bf16.mxu0 0
    %1472 = vmatpush1.bf16.msra.mxu0 0
    %1473 = vmatprep.subr.bf16.mxu0 0
    %1474 = vmatpush1.bf16.msra.mxu0 0
    %1475 = vmatprep.subr.bf16.mxu0 0
    %1476 = vmatpush1.bf16.msra.mxu0 0
    %1477 = vmatprep.subr.bf16.mxu0 0
    %1478 = vmatpush1.bf16.msra.mxu0 0
    %1479 = vmatprep.mubr.bf16.mxu0 0
    %1480 = vmatmul.mubr.bf16.gmra.mrb[0].mxu0 %v1445
    %v1481 = vpop.f32.mrb[0].mxu0
    %v1482 = vadd.f32 %v128, %v1481
    %v1483 = vpop.f32.mrb[0].mxu0
    %v1484 = vpop.f32.mrb[0].mxu0
    %v1485 = vpop.f32.mrb[0].mxu0
    %1486 = vdwg.mxu0
    %v1487 = vmax.f32 %v1482, 0.0
    %v1488 = vpack.c.bf16 %v1487, %v1487
    %s1489 = scalar_lea.vmem [#allocation8], 192
    %v1490 = vld [vmem:[%s1489] sm:$0xf]
    %v1491 = vld [vmem:[%s1489 + $0x4] sm:$0xf]
    %v1492 = vld [vmem:[%s1489 + $0x8] sm:$0xf]
    %v1493 = vld [vmem:[%s1489 + $0xc] sm:$0xf]
    %v1498 = vunpack.c.l.b16 %v1490
    %v1499 = vunpack.c.l.b16 %v1491
    %v1500 = vunpack.c.l.b16 %v1492
    %v1501 = vunpack.c.l.b16 %v1493
    %v1502 = vpack.c.b16 %v1499, %v1498
    %v1503 = vpack.c.b16 %v1501, %v1500
    %v1507 = vsel %vm263, %v1488, 0
    %1509 = vmatprep.subr.bf16.mxu0 0
    %1510 = vmatpush1.bf16.msra.mxu0 %v1502
    %1511 = vmatprep.subr.bf16.mxu0 0
    %1512 = vmatpush1.bf16.msra.mxu0 %v1503
    %1513 = vmatprep.subr.bf16.mxu0 0
    %1514 = vmatpush1.bf16.msra.mxu0 0
    %1515 = vmatprep.subr.bf16.mxu0 0
    %1516 = vmatpush1.bf16.msra.mxu0 0
    %1517 = vmatprep.subr.bf16.mxu0 0
    %1518 = vmatpush1.bf16.msra.mxu0 0
    %1519 = vmatprep.subr.bf16.mxu0 0
    %1520 = vmatpush1.bf16.msra.mxu0 0
    %1521 = vmatprep.subr.bf16.mxu0 0
    %1522 = vmatpush1.bf16.msra.mxu0 0
    %1523 = vmatprep.subr.bf16.mxu0 0
    %1524 = vmatpush1.bf16.msra.mxu0 0
    %1525 = vmatprep.subr.bf16.mxu0 0
    %1526 = vmatpush1.bf16.msra.mxu0 0
    %1527 = vmatprep.subr.bf16.mxu0 0
    %1528 = vmatpush1.bf16.msra.mxu0 0
    %1529 = vmatprep.subr.bf16.mxu0 0
    %1530 = vmatpush1.bf16.msra.mxu0 0
    %1531 = vmatprep.subr.bf16.mxu0 0
    %1532 = vmatpush1.bf16.msra.mxu0 0
    %1533 = vmatprep.subr.bf16.mxu0 0
    %1534 = vmatpush1.bf16.msra.mxu0 0
    %1535 = vmatprep.subr.bf16.mxu0 0
    %1536 = vmatpush1.bf16.msra.mxu0 0
    %1537 = vmatprep.subr.bf16.mxu0 0
    %1538 = vmatpush1.bf16.msra.mxu0 0
    %1539 = vmatprep.subr.bf16.mxu0 0
    %1540 = vmatpush1.bf16.msra.mxu0 0
    %1541 = vmatprep.mubr.bf16.mxu0 0
    %1542 = vmatmul.mubr.bf16.gmra.mrb[0].mxu0 %v1507
    %v1543 = vpop.f32.mrb[0].mxu0
    %v1544 = vadd.f32 0.0, %v1543
    %v1545 = vpop.f32.mrb[0].mxu0
    %v1546 = vpop.f32.mrb[0].mxu0
    %v1547 = vpop.f32.mrb[0].mxu0
    %1548 = vdwg.mxu0
    %v1549 = vadd.f32 %v1441, %v1544
    %s1550 = scalar_lea.vmem [#allocation2], 13
    %v1551 = vld [vmem:[%s1550] sm:$0x1]
    %v1553 = vsel %vm145, %v1551, 0
    %1555 = vmatprep.subr.bf16.mxu0 0
    %1556 = vmatpush1.bf16.msra.mxu0 %v140
    %1557 = vmatprep.subr.bf16.mxu0 0
    %1558 = vmatpush1.bf16.msra.mxu0 %v141
    %1559 = vmatprep.subr.bf16.mxu0 0
    %1560 = vmatpush1.bf16.msra.mxu0 %v151
    %1561 = vmatprep.subr.bf16.mxu0 0
    %1562 = vmatpush1.bf16.msra.mxu0 0
    %1563 = vmatprep.subr.bf16.mxu0 0
    %1564 = vmatpush1.bf16.msra.mxu0 0
    %1565 = vmatprep.subr.bf16.mxu0 0
    %1566 = vmatpush1.bf16.msra.mxu0 0
    %1567 = vmatprep.subr.bf16.mxu0 0
    %1568 = vmatpush1.bf16.msra.mxu0 0
    %1569 = vmatprep.subr.bf16.mxu0 0
    %1570 = vmatpush1.bf16.msra.mxu0 0
    %1571 = vmatprep.subr.bf16.mxu0 0
    %1572 = vmatpush1.bf16.msra.mxu0 0
    %1573 = vmatprep.subr.bf16.mxu0 0
    %1574 = vmatpush1.bf16.msra.mxu0 0
    %1575 = vmatprep.subr.bf16.mxu0 0
    %1576 = vmatpush1.bf16.msra.mxu0 0
    %1577 = vmatprep.subr.bf16.mxu0 0
    %1578 = vmatpush1.bf16.msra.mxu0 0
    %1579 = vmatprep.subr.bf16.mxu0 0
    %1580 = vmatpush1.bf16.msra.mxu0 0
    %1581 = vmatprep.subr.bf16.mxu0 0
    %1582 = vmatpush1.bf16.msra.mxu0 0
    %1583 = vmatprep.subr.bf16.mxu0 0
    %1584 = vmatpush1.bf16.msra.mxu0 0
    %1585 = vmatprep.subr.bf16.mxu0 0
    %1586 = vmatpush1.bf16.msra.mxu0 0
    %1587 = vmatprep.mubr.bf16.mxu0 0
    %1588 = vmatmul.mubr.bf16.gmra.mrb[0].mxu0 %v1553
    %v1589 = vpop.f32.mrb[0].mxu0
    %v1590 = vadd.f32 %v128, %v1589
    %v1591 = vpop.f32.mrb[0].mxu0
    %v1592 = vpop.f32.mrb[0].mxu0
    %v1593 = vpop.f32.mrb[0].mxu0
    %1594 = vdwg.mxu0
    %v1595 = vmax.f32 %v1590, 0.0
    %v1596 = vpack.c.bf16 %v1595, %v1595
    %s1597 = scalar_lea.vmem [#allocation8], 208
    %v1598 = vld [vmem:[%s1597] sm:$0xf]
    %v1599 = vld [vmem:[%s1597 + $0x4] sm:$0xf]
    %v1600 = vld [vmem:[%s1597 + $0x8] sm:$0xf]
    %v1601 = vld [vmem:[%s1597 + $0xc] sm:$0xf]
    %v1606 = vunpack.c.l.b16 %v1598
    %v1607 = vunpack.c.l.b16 %v1599
    %v1608 = vunpack.c.l.b16 %v1600
    %v1609 = vunpack.c.l.b16 %v1601
    %v1610 = vpack.c.b16 %v1607, %v1606
    %v1611 = vpack.c.b16 %v1609, %v1608
    %v1615 = vsel %vm263, %v1596, 0
    %1617 = vmatprep.subr.bf16.mxu0 0
    %1618 = vmatpush1.bf16.msra.mxu0 %v1610
    %1619 = vmatprep.subr.bf16.mxu0 0
    %1620 = vmatpush1.bf16.msra.mxu0 %v1611
    %1621 = vmatprep.subr.bf16.mxu0 0
    %1622 = vmatpush1.bf16.msra.mxu0 0
    %1623 = vmatprep.subr.bf16.mxu0 0
    %1624 = vmatpush1.bf16.msra.mxu0 0
    %1625 = vmatprep.subr.bf16.mxu0 0
    %1626 = vmatpush1.bf16.msra.mxu0 0
    %1627 = vmatprep.subr.bf16.mxu0 0
    %1628 = vmatpush1.bf16.msra.mxu0 0
    %1629 = vmatprep.subr.bf16.mxu0 0
    %1630 = vmatpush1.bf16.msra.mxu0 0
    %1631 = vmatprep.subr.bf16.mxu0 0
    %1632 = vmatpush1.bf16.msra.mxu0 0
    %1633 = vmatprep.subr.bf16.mxu0 0
    %1634 = vmatpush1.bf16.msra.mxu0 0
    %1635 = vmatprep.subr.bf16.mxu0 0
    %1636 = vmatpush1.bf16.msra.mxu0 0
    %1637 = vmatprep.subr.bf16.mxu0 0
    %1638 = vmatpush1.bf16.msra.mxu0 0
    %1639 = vmatprep.subr.bf16.mxu0 0
    %1640 = vmatpush1.bf16.msra.mxu0 0
    %1641 = vmatprep.subr.bf16.mxu0 0
    %1642 = vmatpush1.bf16.msra.mxu0 0
    %1643 = vmatprep.subr.bf16.mxu0 0
    %1644 = vmatpush1.bf16.msra.mxu0 0
    %1645 = vmatprep.subr.bf16.mxu0 0
    %1646 = vmatpush1.bf16.msra.mxu0 0
    %1647 = vmatprep.subr.bf16.mxu0 0
    %1648 = vmatpush1.bf16.msra.mxu0 0
    %1649 = vmatprep.mubr.bf16.mxu0 0
    %1650 = vmatmul.mubr.bf16.gmra.mrb[0].mxu0 %v1615
    %v1651 = vpop.f32.mrb[0].mxu0
    %v1652 = vadd.f32 0.0, %v1651
    %v1653 = vpop.f32.mrb[0].mxu0
    %v1654 = vpop.f32.mrb[0].mxu0
    %v1655 = vpop.f32.mrb[0].mxu0
    %1656 = vdwg.mxu0
    %v1657 = vadd.f32 %v1549, %v1652
    %s1658 = scalar_lea.vmem [#allocation2], 14
    %v1659 = vld [vmem:[%s1658] sm:$0x1]
    %v1661 = vsel %vm145, %v1659, 0
    %1663 = vmatprep.subr.bf16.mxu0 0
    %1664 = vmatpush1.bf16.msra.mxu0 %v140
    %1665 = vmatprep.subr.bf16.mxu0 0
    %1666 = vmatpush1.bf16.msra.mxu0 %v141
    %1667 = vmatprep.subr.bf16.mxu0 0
    %1668 = vmatpush1.bf16.msra.mxu0 %v151
    %1669 = vmatprep.subr.bf16.mxu0 0
    %1670 = vmatpush1.bf16.msra.mxu0 0
    %1671 = vmatprep.subr.bf16.mxu0 0
    %1672 = vmatpush1.bf16.msra.mxu0 0
    %1673 = vmatprep.subr.bf16.mxu0 0
    %1674 = vmatpush1.bf16.msra.mxu0 0
    %1675 = vmatprep.subr.bf16.mxu0 0
    %1676 = vmatpush1.bf16.msra.mxu0 0
    %1677 = vmatprep.subr.bf16.mxu0 0
    %1678 = vmatpush1.bf16.msra.mxu0 0
    %1679 = vmatprep.subr.bf16.mxu0 0
    %1680 = vmatpush1.bf16.msra.mxu0 0
    %1681 = vmatprep.subr.bf16.mxu0 0
    %1682 = vmatpush1.bf16.msra.mxu0 0
    %1683 = vmatprep.subr.bf16.mxu0 0
    %1684 = vmatpush1.bf16.msra.mxu0 0
    %1685 = vmatprep.subr.bf16.mxu0 0
    %1686 = vmatpush1.bf16.msra.mxu0 0
    %1687 = vmatprep.subr.bf16.mxu0 0
    %1688 = vmatpush1.bf16.msra.mxu0 0
    %1689 = vmatprep.subr.bf16.mxu0 0
    %1690 = vmatpush1.bf16.msra.mxu0 0
    %1691 = vmatprep.subr.bf16.mxu0 0
    %1692 = vmatpush1.bf16.msra.mxu0 0
    %1693 = vmatprep.subr.bf16.mxu0 0
    %1694 = vmatpush1.bf16.msra.mxu0 0
    %1695 = vmatprep.mubr.bf16.mxu0 0
    %1696 = vmatmul.mubr.bf16.gmra.mrb[0].mxu0 %v1661
    %v1697 = vpop.f32.mrb[0].mxu0
    %v1698 = vadd.f32 %v128, %v1697
    %v1699 = vpop.f32.mrb[0].mxu0
    %v1700 = vpop.f32.mrb[0].mxu0
    %v1701 = vpop.f32.mrb[0].mxu0
    %1702 = vdwg.mxu0
    %v1703 = vmax.f32 %v1698, 0.0
    %v1704 = vpack.c.bf16 %v1703, %v1703
    %s1705 = scalar_lea.vmem [#allocation8], 224
    %v1706 = vld [vmem:[%s1705] sm:$0xf]
    %v1707 = vld [vmem:[%s1705 + $0x4] sm:$0xf]
    %v1708 = vld [vmem:[%s1705 + $0x8] sm:$0xf]
    %v1709 = vld [vmem:[%s1705 + $0xc] sm:$0xf]
    %v1714 = vunpack.c.l.b16 %v1706
    %v1715 = vunpack.c.l.b16 %v1707
    %v1716 = vunpack.c.l.b16 %v1708
    %v1717 = vunpack.c.l.b16 %v1709
    %v1718 = vpack.c.b16 %v1715, %v1714
    %v1719 = vpack.c.b16 %v1717, %v1716
    %v1723 = vsel %vm263, %v1704, 0
    %1725 = vmatprep.subr.bf16.mxu0 0
    %1726 = vmatpush1.bf16.msra.mxu0 %v1718
    %1727 = vmatprep.subr.bf16.mxu0 0
    %1728 = vmatpush1.bf16.msra.mxu0 %v1719
    %1729 = vmatprep.subr.bf16.mxu0 0
    %1730 = vmatpush1.bf16.msra.mxu0 0
    %1731 = vmatprep.subr.bf16.mxu0 0
    %1732 = vmatpush1.bf16.msra.mxu0 0
    %1733 = vmatprep.subr.bf16.mxu0 0
    %1734 = vmatpush1.bf16.msra.mxu0 0
    %1735 = vmatprep.subr.bf16.mxu0 0
    %1736 = vmatpush1.bf16.msra.mxu0 0
    %1737 = vmatprep.subr.bf16.mxu0 0
    %1738 = vmatpush1.bf16.msra.mxu0 0
    %1739 = vmatprep.subr.bf16.mxu0 0
    %1740 = vmatpush1.bf16.msra.mxu0 0
    %1741 = vmatprep.subr.bf16.mxu0 0
    %1742 = vmatpush1.bf16.msra.mxu0 0
    %1743 = vmatprep.subr.bf16.mxu0 0
    %1744 = vmatpush1.bf16.msra.mxu0 0
    %1745 = vmatprep.subr.bf16.mxu0 0
    %1746 = vmatpush1.bf16.msra.mxu0 0
    %1747 = vmatprep.subr.bf16.mxu0 0
    %1748 = vmatpush1.bf16.msra.mxu0 0
    %1749 = vmatprep.subr.bf16.mxu0 0
    %1750 = vmatpush1.bf16.msra.mxu0 0
    %1751 = vmatprep.subr.bf16.mxu0 0
    %1752 = vmatpush1.bf16.msra.mxu0 0
    %1753 = vmatprep.subr.bf16.mxu0 0
    %1754 = vmatpush1.bf16.msra.mxu0 0
    %1755 = vmatprep.subr.bf16.mxu0 0
    %1756 = vmatpush1.bf16.msra.mxu0 0
    %1757 = vmatprep.mubr.bf16.mxu0 0
    %1758 = vmatmul.mubr.bf16.gmra.mrb[0].mxu0 %v1723
    %v1759 = vpop.f32.mrb[0].mxu0
    %v1760 = vadd.f32 0.0, %v1759
    %v1761 = vpop.f32.mrb[0].mxu0
    %v1762 = vpop.f32.mrb[0].mxu0
    %v1763 = vpop.f32.mrb[0].mxu0
    %1764 = vdwg.mxu0
    %v1765 = vadd.f32 %v1657, %v1760
    %s1766 = scalar_lea.vmem [#allocation2], 15
    %v1767 = vld [vmem:[%s1766] sm:$0x1]
    %v1769 = vsel %vm145, %v1767, 0
    %1771 = vmatprep.subr.bf16.mxu0 0
    %1772 = vmatpush1.bf16.msra.mxu0 %v140
    %1773 = vmatprep.subr.bf16.mxu0 0
    %1774 = vmatpush1.bf16.msra.mxu0 %v141
    %1775 = vmatprep.subr.bf16.mxu0 0
    %1776 = vmatpush1.bf16.msra.mxu0 %v151
    %1777 = vmatprep.subr.bf16.mxu0 0
    %1778 = vmatpush1.bf16.msra.mxu0 0
    %1779 = vmatprep.subr.bf16.mxu0 0
    %1780 = vmatpush1.bf16.msra.mxu0 0
    %1781 = vmatprep.subr.bf16.mxu0 0
    %1782 = vmatpush1.bf16.msra.mxu0 0
    %1783 = vmatprep.subr.bf16.mxu0 0
    %1784 = vmatpush1.bf16.msra.mxu0 0
    %1785 = vmatprep.subr.bf16.mxu0 0
    %1786 = vmatpush1.bf16.msra.mxu0 0
    %1787 = vmatprep.subr.bf16.mxu0 0
    %1788 = vmatpush1.bf16.msra.mxu0 0
    %1789 = vmatprep.subr.bf16.mxu0 0
    %1790 = vmatpush1.bf16.msra.mxu0 0
    %1791 = vmatprep.subr.bf16.mxu0 0
    %1792 = vmatpush1.bf16.msra.mxu0 0
    %1793 = vmatprep.subr.bf16.mxu0 0
    %1794 = vmatpush1.bf16.msra.mxu0 0
    %1795 = vmatprep.subr.bf16.mxu0 0
    %1796 = vmatpush1.bf16.msra.mxu0 0
    %1797 = vmatprep.subr.bf16.mxu0 0
    %1798 = vmatpush1.bf16.msra.mxu0 0
    %1799 = vmatprep.subr.bf16.mxu0 0
    %1800 = vmatpush1.bf16.msra.mxu0 0
    %1801 = vmatprep.subr.bf16.mxu0 0
    %1802 = vmatpush1.bf16.msra.mxu0 0
    %1803 = vmatprep.mubr.bf16.mxu0 0
    %1804 = vmatmul.mubr.bf16.gmra.mrb[0].mxu0 %v1769
    %v1805 = vpop.f32.mrb[0].mxu0
    %v1806 = vadd.f32 %v128, %v1805
    %v1807 = vpop.f32.mrb[0].mxu0
    %v1808 = vpop.f32.mrb[0].mxu0
    %v1809 = vpop.f32.mrb[0].mxu0
    %1810 = vdwg.mxu0
    %v1811 = vmax.f32 %v1806, 0.0
    %v1812 = vpack.c.bf16 %v1811, %v1811
    %s1813 = scalar_lea.vmem [#allocation8], 240
    %v1814 = vld [vmem:[%s1813] sm:$0xf]
    %v1815 = vld [vmem:[%s1813 + $0x4] sm:$0xf]
    %v1816 = vld [vmem:[%s1813 + $0x8] sm:$0xf]
    %v1817 = vld [vmem:[%s1813 + $0xc] sm:$0xf]
    %v1822 = vunpack.c.l.b16 %v1814
    %v1823 = vunpack.c.l.b16 %v1815
    %v1824 = vunpack.c.l.b16 %v1816
    %v1825 = vunpack.c.l.b16 %v1817
    %v1826 = vpack.c.b16 %v1823, %v1822
    %v1827 = vpack.c.b16 %v1825, %v1824
    %v1831 = vsel %vm263, %v1812, 0
    %1833 = vmatprep.subr.bf16.mxu0 0
    %1834 = vmatpush1.bf16.msra.mxu0 %v1826
    %1835 = vmatprep.subr.bf16.mxu0 0
    %1836 = vmatpush1.bf16.msra.mxu0 %v1827
    %1837 = vmatprep.subr.bf16.mxu0 0
    %1838 = vmatpush1.bf16.msra.mxu0 0
    %1839 = vmatprep.subr.bf16.mxu0 0
    %1840 = vmatpush1.bf16.msra.mxu0 0
    %1841 = vmatprep.subr.bf16.mxu0 0
    %1842 = vmatpush1.bf16.msra.mxu0 0
    %1843 = vmatprep.subr.bf16.mxu0 0
    %1844 = vmatpush1.bf16.msra.mxu0 0
    %1845 = vmatprep.subr.bf16.mxu0 0
    %1846 = vmatpush1.bf16.msra.mxu0 0
    %1847 = vmatprep.subr.bf16.mxu0 0
    %1848 = vmatpush1.bf16.msra.mxu0 0
    %1849 = vmatprep.subr.bf16.mxu0 0
    %1850 = vmatpush1.bf16.msra.mxu0 0
    %1851 = vmatprep.subr.bf16.mxu0 0
    %1852 = vmatpush1.bf16.msra.mxu0 0
    %1853 = vmatprep.subr.bf16.mxu0 0
    %1854 = vmatpush1.bf16.msra.mxu0 0
    %1855 = vmatprep.subr.bf16.mxu0 0
    %1856 = vmatpush1.bf16.msra.mxu0 0
    %1857 = vmatprep.subr.bf16.mxu0 0
    %1858 = vmatpush1.bf16.msra.mxu0 0
    %1859 = vmatprep.subr.bf16.mxu0 0
    %1860 = vmatpush1.bf16.msra.mxu0 0
    %1861 = vmatprep.subr.bf16.mxu0 0
    %1862 = vmatpush1.bf16.msra.mxu0 0
    %1863 = vmatprep.subr.bf16.mxu0 0
    %1864 = vmatpush1.bf16.msra.mxu0 0
    %1865 = vmatprep.mubr.bf16.mxu0 0
    %1866 = vmatmul.mubr.bf16.gmra.mrb[0].mxu0 %v1831
    %v1867 = vpop.f32.mrb[0].mxu0
    %v1868 = vadd.f32 0.0, %v1867
    %v1869 = vpop.f32.mrb[0].mxu0
    %v1870 = vpop.f32.mrb[0].mxu0
    %v1871 = vpop.f32.mrb[0].mxu0
    %1872 = vdwg.mxu0
    %v1873 = vadd.f32 %v1765, %v1868
    %s1874 = scalar_lea.vmem [#allocation2], 16
    %v1875 = vld [vmem:[%s1874] sm:$0x1]
    %v1877 = vsel %vm145, %v1875, 0
    %1879 = vmatprep.subr.bf16.mxu0 0
    %1880 = vmatpush1.bf16.msra.mxu0 %v140
    %1881 = vmatprep.subr.bf16.mxu0 0
    %1882 = vmatpush1.bf16.msra.mxu0 %v141
    %1883 = vmatprep.subr.bf16.mxu0 0
    %1884 = vmatpush1.bf16.msra.mxu0 %v151
    %1885 = vmatprep.subr.bf16.mxu0 0
    %1886 = vmatpush1.bf16.msra.mxu0 0
    %1887 = vmatprep.subr.bf16.mxu0 0
    %1888 = vmatpush1.bf16.msra.mxu0 0
    %1889 = vmatprep.subr.bf16.mxu0 0
    %1890 = vmatpush1.bf16.msra.mxu0 0
    %1891 = vmatprep.subr.bf16.mxu0 0
    %1892 = vmatpush1.bf16.msra.mxu0 0
    %1893 = vmatprep.subr.bf16.mxu0 0
    %1894 = vmatpush1.bf16.msra.mxu0 0
    %1895 = vmatprep.subr.bf16.mxu0 0
    %1896 = vmatpush1.bf16.msra.mxu0 0
    %1897 = vmatprep.subr.bf16.mxu0 0
    %1898 = vmatpush1.bf16.msra.mxu0 0
    %1899 = vmatprep.subr.bf16.mxu0 0
    %1900 = vmatpush1.bf16.msra.mxu0 0
    %1901 = vmatprep.subr.bf16.mxu0 0
    %1902 = vmatpush1.bf16.msra.mxu0 0
    %1903 = vmatprep.subr.bf16.mxu0 0
    %1904 = vmatpush1.bf16.msra.mxu0 0
    %1905 = vmatprep.subr.bf16.mxu0 0
    %1906 = vmatpush1.bf16.msra.mxu0 0
    %1907 = vmatprep.subr.bf16.mxu0 0
    %1908 = vmatpush1.bf16.msra.mxu0 0
    %1909 = vmatprep.subr.bf16.mxu0 0
    %1910 = vmatpush1.bf16.msra.mxu0 0
    %1911 = vmatprep.mubr.bf16.mxu0 0
    %1912 = vmatmul.mubr.bf16.gmra.mrb[0].mxu0 %v1877
    %v1913 = vpop.f32.mrb[0].mxu0
    %v1914 = vadd.f32 %v128, %v1913
    %v1915 = vpop.f32.mrb[0].mxu0
    %v1916 = vpop.f32.mrb[0].mxu0
    %v1917 = vpop.f32.mrb[0].mxu0
    %1918 = vdwg.mxu0
    %v1919 = vmax.f32 %v1914, 0.0
    %v1920 = vpack.c.bf16 %v1919, %v1919
    %s1921 = scalar_lea.vmem [#allocation8], 256
    %v1922 = vld [vmem:[%s1921] sm:$0xf]
    %v1923 = vld [vmem:[%s1921 + $0x4] sm:$0xf]
    %v1924 = vld [vmem:[%s1921 + $0x8] sm:$0xf]
    %v1925 = vld [vmem:[%s1921 + $0xc] sm:$0xf]
    %v1930 = vunpack.c.l.b16 %v1922
    %v1931 = vunpack.c.l.b16 %v1923
    %v1932 = vunpack.c.l.b16 %v1924
    %v1933 = vunpack.c.l.b16 %v1925
    %v1934 = vpack.c.b16 %v1931, %v1930
    %v1935 = vpack.c.b16 %v1933, %v1932
    %v1939 = vsel %vm263, %v1920, 0
    %1941 = vmatprep.subr.bf16.mxu0 0
    %1942 = vmatpush1.bf16.msra.mxu0 %v1934
    %1943 = vmatprep.subr.bf16.mxu0 0
    %1944 = vmatpush1.bf16.msra.mxu0 %v1935
    %1945 = vmatprep.subr.bf16.mxu0 0
    %1946 = vmatpush1.bf16.msra.mxu0 0
    %1947 = vmatprep.subr.bf16.mxu0 0
    %1948 = vmatpush1.bf16.msra.mxu0 0
    %1949 = vmatprep.subr.bf16.mxu0 0
    %1950 = vmatpush1.bf16.msra.mxu0 0
    %1951 = vmatprep.subr.bf16.mxu0 0
    %1952 = vmatpush1.bf16.msra.mxu0 0
    %1953 = vmatprep.subr.bf16.mxu0 0
    %1954 = vmatpush1.bf16.msra.mxu0 0
    %1955 = vmatprep.subr.bf16.mxu0 0
    %1956 = vmatpush1.bf16.msra.mxu0 0
    %1957 = vmatprep.subr.bf16.mxu0 0
    %1958 = vmatpush1.bf16.msra.mxu0 0
    %1959 = vmatprep.subr.bf16.mxu0 0
    %1960 = vmatpush1.bf16.msra.mxu0 0
    %1961 = vmatprep.subr.bf16.mxu0 0
    %1962 = vmatpush1.bf16.msra.mxu0 0
    %1963 = vmatprep.subr.bf16.mxu0 0
    %1964 = vmatpush1.bf16.msra.mxu0 0
    %1965 = vmatprep.subr.bf16.mxu0 0
    %1966 = vmatpush1.bf16.msra.mxu0 0
    %1967 = vmatprep.subr.bf16.mxu0 0
    %1968 = vmatpush1.bf16.msra.mxu0 0
    %1969 = vmatprep.subr.bf16.mxu0 0
    %1970 = vmatpush1.bf16.msra.mxu0 0
    %1971 = vmatprep.subr.bf16.mxu0 0
    %1972 = vmatpush1.bf16.msra.mxu0 0
    %1973 = vmatprep.mubr.bf16.mxu0 0
    %1974 = vmatmul.mubr.bf16.gmra.mrb[0].mxu0 %v1939
    %v1975 = vpop.f32.mrb[0].mxu0
    %v1976 = vadd.f32 0.0, %v1975
    %v1977 = vpop.f32.mrb[0].mxu0
    %v1978 = vpop.f32.mrb[0].mxu0
    %v1979 = vpop.f32.mrb[0].mxu0
    %1980 = vdwg.mxu0
    %v1981 = vadd.f32 %v1873, %v1976
    %s1982 = scalar_lea.vmem [#allocation2], 17
    %v1983 = vld [vmem:[%s1982] sm:$0x1]
    %v1985 = vsel %vm145, %v1983, 0
    %1987 = vmatprep.subr.bf16.mxu0 0
    %1988 = vmatpush1.bf16.msra.mxu0 %v140
    %1989 = vmatprep.subr.bf16.mxu0 0
    %1990 = vmatpush1.bf16.msra.mxu0 %v141
    %1991 = vmatprep.subr.bf16.mxu0 0
    %1992 = vmatpush1.bf16.msra.mxu0 %v151
    %1993 = vmatprep.subr.bf16.mxu0 0
    %1994 = vmatpush1.bf16.msra.mxu0 0
    %1995 = vmatprep.subr.bf16.mxu0 0
    %1996 = vmatpush1.bf16.msra.mxu0 0
    %1997 = vmatprep.subr.bf16.mxu0 0
    %1998 = vmatpush1.bf16.msra.mxu0 0
    %1999 = vmatprep.subr.bf16.mxu0 0
    %2000 = vmatpush1.bf16.msra.mxu0 0
    %2001 = vmatprep.subr.bf16.mxu0 0
    %2002 = vmatpush1.bf16.msra.mxu0 0
    %2003 = vmatprep.subr.bf16.mxu0 0
    %2004 = vmatpush1.bf16.msra.mxu0 0
    %2005 = vmatprep.subr.bf16.mxu0 0
    %2006 = vmatpush1.bf16.msra.mxu0 0
    %2007 = vmatprep.subr.bf16.mxu0 0
    %2008 = vmatpush1.bf16.msra.mxu0 0
    %2009 = vmatprep.subr.bf16.mxu0 0
    %2010 = vmatpush1.bf16.msra.mxu0 0
    %2011 = vmatprep.subr.bf16.mxu0 0
    %2012 = vmatpush1.bf16.msra.mxu0 0
    %2013 = vmatprep.subr.bf16.mxu0 0
    %2014 = vmatpush1.bf16.msra.mxu0 0
    %2015 = vmatprep.subr.bf16.mxu0 0
    %2016 = vmatpush1.bf16.msra.mxu0 0
    %2017 = vmatprep.subr.bf16.mxu0 0
    %2018 = vmatpush1.bf16.msra.mxu0 0
    %2019 = vmatprep.mubr.bf16.mxu0 0
    %2020 = vmatmul.mubr.bf16.gmra.mrb[0].mxu0 %v1985
    %v2021 = vpop.f32.mrb[0].mxu0
    %v2022 = vadd.f32 %v128, %v2021
    %v2023 = vpop.f32.mrb[0].mxu0
    %v2024 = vpop.f32.mrb[0].mxu0
    %v2025 = vpop.f32.mrb[0].mxu0
    %2026 = vdwg.mxu0
    %v2027 = vmax.f32 %v2022, 0.0
    %v2028 = vpack.c.bf16 %v2027, %v2027
    %s2029 = scalar_lea.vmem [#allocation8], 272
    %v2030 = vld [vmem:[%s2029] sm:$0xf]
    %v2031 = vld [vmem:[%s2029 + $0x4] sm:$0xf]
    %v2032 = vld [vmem:[%s2029 + $0x8] sm:$0xf]
    %v2033 = vld [vmem:[%s2029 + $0xc] sm:$0xf]
    %v2038 = vunpack.c.l.b16 %v2030
    %v2039 = vunpack.c.l.b16 %v2031
    %v2040 = vunpack.c.l.b16 %v2032
    %v2041 = vunpack.c.l.b16 %v2033
    %v2042 = vpack.c.b16 %v2039, %v2038
    %v2043 = vpack.c.b16 %v2041, %v2040
    %v2047 = vsel %vm263, %v2028, 0
    %2049 = vmatprep.subr.bf16.mxu0 0
    %2050 = vmatpush1.bf16.msra.mxu0 %v2042
    %2051 = vmatprep.subr.bf16.mxu0 0
    %2052 = vmatpush1.bf16.msra.mxu0 %v2043
    %2053 = vmatprep.subr.bf16.mxu0 0
    %2054 = vmatpush1.bf16.msra.mxu0 0
    %2055 = vmatprep.subr.bf16.mxu0 0
    %2056 = vmatpush1.bf16.msra.mxu0 0
    %2057 = vmatprep.subr.bf16.mxu0 0
    %2058 = vmatpush1.bf16.msra.mxu0 0
    %2059 = vmatprep.subr.bf16.mxu0 0
    %2060 = vmatpush1.bf16.msra.mxu0 0
    %2061 = vmatprep.subr.bf16.mxu0 0
    %2062 = vmatpush1.bf16.msra.mxu0 0
    %2063 = vmatprep.subr.bf16.mxu0 0
    %2064 = vmatpush1.bf16.msra.mxu0 0
    %2065 = vmatprep.subr.bf16.mxu0 0
    %2066 = vmatpush1.bf16.msra.mxu0 0
    %2067 = vmatprep.subr.bf16.mxu0 0
    %2068 = vmatpush1.bf16.msra.mxu0 0
    %2069 = vmatprep.subr.bf16.mxu0 0
    %2070 = vmatpush1.bf16.msra.mxu0 0
    %2071 = vmatprep.subr.bf16.mxu0 0
    %2072 = vmatpush1.bf16.msra.mxu0 0
    %2073 = vmatprep.subr.bf16.mxu0 0
    %2074 = vmatpush1.bf16.msra.mxu0 0
    %2075 = vmatprep.subr.bf16.mxu0 0
    %2076 = vmatpush1.bf16.msra.mxu0 0
    %2077 = vmatprep.subr.bf16.mxu0 0
    %2078 = vmatpush1.bf16.msra.mxu0 0
    %2079 = vmatprep.subr.bf16.mxu0 0
    %2080 = vmatpush1.bf16.msra.mxu0 0
    %2081 = vmatprep.mubr.bf16.mxu0 0
    %2082 = vmatmul.mubr.bf16.gmra.mrb[0].mxu0 %v2047
    %v2083 = vpop.f32.mrb[0].mxu0
    %v2084 = vadd.f32 0.0, %v2083
    %v2085 = vpop.f32.mrb[0].mxu0
    %v2086 = vpop.f32.mrb[0].mxu0
    %v2087 = vpop.f32.mrb[0].mxu0
    %2088 = vdwg.mxu0
    %v2089 = vadd.f32 %v1981, %v2084
    %s2090 = scalar_lea.vmem [#allocation2], 18
    %v2091 = vld [vmem:[%s2090] sm:$0x1]
    %v2093 = vsel %vm145, %v2091, 0
    %2095 = vmatprep.subr.bf16.mxu0 0
    %2096 = vmatpush1.bf16.msra.mxu0 %v140
    %2097 = vmatprep.subr.bf16.mxu0 0
    %2098 = vmatpush1.bf16.msra.mxu0 %v141
    %2099 = vmatprep.subr.bf16.mxu0 0
    %2100 = vmatpush1.bf16.msra.mxu0 %v151
    %2101 = vmatprep.subr.bf16.mxu0 0
    %2102 = vmatpush1.bf16.msra.mxu0 0
    %2103 = vmatprep.subr.bf16.mxu0 0
    %2104 = vmatpush1.bf16.msra.mxu0 0
    %2105 = vmatprep.subr.bf16.mxu0 0
    %2106 = vmatpush1.bf16.msra.mxu0 0
    %2107 = vmatprep.subr.bf16.mxu0 0
    %2108 = vmatpush1.bf16.msra.mxu0 0
    %2109 = vmatprep.subr.bf16.mxu0 0
    %2110 = vmatpush1.bf16.msra.mxu0 0
    %2111 = vmatprep.subr.bf16.mxu0 0
    %2112 = vmatpush1.bf16.msra.mxu0 0
    %2113 = vmatprep.subr.bf16.mxu0 0
    %2114 = vmatpush1.bf16.msra.mxu0 0
    %2115 = vmatprep.subr.bf16.mxu0 0
    %2116 = vmatpush1.bf16.msra.mxu0 0
    %2117 = vmatprep.subr.bf16.mxu0 0
    %2118 = vmatpush1.bf16.msra.mxu0 0
    %2119 = vmatprep.subr.bf16.mxu0 0
    %2120 = vmatpush1.bf16.msra.mxu0 0
    %2121 = vmatprep.subr.bf16.mxu0 0
    %2122 = vmatpush1.bf16.msra.mxu0 0
    %2123 = vmatprep.subr.bf16.mxu0 0
    %2124 = vmatpush1.bf16.msra.mxu0 0
    %2125 = vmatprep.subr.bf16.mxu0 0
    %2126 = vmatpush1.bf16.msra.mxu0 0
    %2127 = vmatprep.mubr.bf16.mxu0 0
    %2128 = vmatmul.mubr.bf16.gmra.mrb[0].mxu0 %v2093
    %v2129 = vpop.f32.mrb[0].mxu0
    %v2130 = vadd.f32 %v128, %v2129
    %v2131 = vpop.f32.mrb[0].mxu0
    %v2132 = vpop.f32.mrb[0].mxu0
    %v2133 = vpop.f32.mrb[0].mxu0
    %2134 = vdwg.mxu0
    %v2135 = vmax.f32 %v2130, 0.0
    %v2136 = vpack.c.bf16 %v2135, %v2135
    %s2137 = scalar_lea.vmem [#allocation8], 288
    %v2138 = vld [vmem:[%s2137] sm:$0xf]
    %v2139 = vld [vmem:[%s2137 + $0x4] sm:$0xf]
    %v2140 = vld [vmem:[%s2137 + $0x8] sm:$0xf]
    %v2141 = vld [vmem:[%s2137 + $0xc] sm:$0xf]
    %v2146 = vunpack.c.l.b16 %v2138
    %v2147 = vunpack.c.l.b16 %v2139
    %v2148 = vunpack.c.l.b16 %v2140
    %v2149 = vunpack.c.l.b16 %v2141
    %v2150 = vpack.c.b16 %v2147, %v2146
    %v2151 = vpack.c.b16 %v2149, %v2148
    %v2155 = vsel %vm263, %v2136, 0
    %2157 = vmatprep.subr.bf16.mxu0 0
    %2158 = vmatpush1.bf16.msra.mxu0 %v2150
    %2159 = vmatprep.subr.bf16.mxu0 0
    %2160 = vmatpush1.bf16.msra.mxu0 %v2151
    %2161 = vmatprep.subr.bf16.mxu0 0
    %2162 = vmatpush1.bf16.msra.mxu0 0
    %2163 = vmatprep.subr.bf16.mxu0 0
    %2164 = vmatpush1.bf16.msra.mxu0 0
    %2165 = vmatprep.subr.bf16.mxu0 0
    %2166 = vmatpush1.bf16.msra.mxu0 0
    %2167 = vmatprep.subr.bf16.mxu0 0
    %2168 = vmatpush1.bf16.msra.mxu0 0
    %2169 = vmatprep.subr.bf16.mxu0 0
    %2170 = vmatpush1.bf16.msra.mxu0 0
    %2171 = vmatprep.subr.bf16.mxu0 0
    %2172 = vmatpush1.bf16.msra.mxu0 0
    %2173 = vmatprep.subr.bf16.mxu0 0
    %2174 = vmatpush1.bf16.msra.mxu0 0
    %2175 = vmatprep.subr.bf16.mxu0 0
    %2176 = vmatpush1.bf16.msra.mxu0 0
    %2177 = vmatprep.subr.bf16.mxu0 0
    %2178 = vmatpush1.bf16.msra.mxu0 0
    %2179 = vmatprep.subr.bf16.mxu0 0
    %2180 = vmatpush1.bf16.msra.mxu0 0
    %2181 = vmatprep.subr.bf16.mxu0 0
    %2182 = vmatpush1.bf16.msra.mxu0 0
    %2183 = vmatprep.subr.bf16.mxu0 0
    %2184 = vmatpush1.bf16.msra.mxu0 0
    %2185 = vmatprep.subr.bf16.mxu0 0
    %2186 = vmatpush1.bf16.msra.mxu0 0
    %2187 = vmatprep.subr.bf16.mxu0 0
    %2188 = vmatpush1.bf16.msra.mxu0 0
    %2189 = vmatprep.mubr.bf16.mxu0 0
    %2190 = vmatmul.mubr.bf16.gmra.mrb[0].mxu0 %v2155
    %v2191 = vpop.f32.mrb[0].mxu0
    %v2192 = vadd.f32 0.0, %v2191
    %v2193 = vpop.f32.mrb[0].mxu0
    %v2194 = vpop.f32.mrb[0].mxu0
    %v2195 = vpop.f32.mrb[0].mxu0
    %2196 = vdwg.mxu0
    %v2197 = vadd.f32 %v2089, %v2192
    %s2198 = scalar_lea.vmem [#allocation2], 19
    %v2199 = vld [vmem:[%s2198] sm:$0x1]
    %v2201 = vsel %vm145, %v2199, 0
    %2203 = vmatprep.subr.bf16.mxu0 0
    %2204 = vmatpush1.bf16.msra.mxu0 %v140
    %2205 = vmatprep.subr.bf16.mxu0 0
    %2206 = vmatpush1.bf16.msra.mxu0 %v141
    %2207 = vmatprep.subr.bf16.mxu0 0
    %2208 = vmatpush1.bf16.msra.mxu0 %v151
    %2209 = vmatprep.subr.bf16.mxu0 0
    %2210 = vmatpush1.bf16.msra.mxu0 0
    %2211 = vmatprep.subr.bf16.mxu0 0
    %2212 = vmatpush1.bf16.msra.mxu0 0
    %2213 = vmatprep.subr.bf16.mxu0 0
    %2214 = vmatpush1.bf16.msra.mxu0 0
    %2215 = vmatprep.subr.bf16.mxu0 0
    %2216 = vmatpush1.bf16.msra.mxu0 0
    %2217 = vmatprep.subr.bf16.mxu0 0
    %2218 = vmatpush1.bf16.msra.mxu0 0
    %2219 = vmatprep.subr.bf16.mxu0 0
    %2220 = vmatpush1.bf16.msra.mxu0 0
    %2221 = vmatprep.subr.bf16.mxu0 0
    %2222 = vmatpush1.bf16.msra.mxu0 0
    %2223 = vmatprep.subr.bf16.mxu0 0
    %2224 = vmatpush1.bf16.msra.mxu0 0
    %2225 = vmatprep.subr.bf16.mxu0 0
    %2226 = vmatpush1.bf16.msra.mxu0 0
    %2227 = vmatprep.subr.bf16.mxu0 0
    %2228 = vmatpush1.bf16.msra.mxu0 0
    %2229 = vmatprep.subr.bf16.mxu0 0
    %2230 = vmatpush1.bf16.msra.mxu0 0
    %2231 = vmatprep.subr.bf16.mxu0 0
    %2232 = vmatpush1.bf16.msra.mxu0 0
    %2233 = vmatprep.subr.bf16.mxu0 0
    %2234 = vmatpush1.bf16.msra.mxu0 0
    %2235 = vmatprep.mubr.bf16.mxu0 0
    %2236 = vmatmul.mubr.bf16.gmra.mrb[0].mxu0 %v2201
    %v2237 = vpop.f32.mrb[0].mxu0
    %v2238 = vadd.f32 %v128, %v2237
    %v2239 = vpop.f32.mrb[0].mxu0
    %v2240 = vpop.f32.mrb[0].mxu0
    %v2241 = vpop.f32.mrb[0].mxu0
    %2242 = vdwg.mxu0
    %v2243 = vmax.f32 %v2238, 0.0
    %v2244 = vpack.c.bf16 %v2243, %v2243
    %s2245 = scalar_lea.vmem [#allocation8], 304
    %v2246 = vld [vmem:[%s2245] sm:$0xf]
    %v2247 = vld [vmem:[%s2245 + $0x4] sm:$0xf]
    %v2248 = vld [vmem:[%s2245 + $0x8] sm:$0xf]
    %v2249 = vld [vmem:[%s2245 + $0xc] sm:$0xf]
    %v2254 = vunpack.c.l.b16 %v2246
    %v2255 = vunpack.c.l.b16 %v2247
    %v2256 = vunpack.c.l.b16 %v2248
    %v2257 = vunpack.c.l.b16 %v2249
    %v2258 = vpack.c.b16 %v2255, %v2254
    %v2259 = vpack.c.b16 %v2257, %v2256
    %v2263 = vsel %vm263, %v2244, 0
    %2265 = vmatprep.subr.bf16.mxu0 0
    %2266 = vmatpush1.bf16.msra.mxu0 %v2258
    %2267 = vmatprep.subr.bf16.mxu0 0
    %2268 = vmatpush1.bf16.msra.mxu0 %v2259
    %2269 = vmatprep.subr.bf16.mxu0 0
    %2270 = vmatpush1.bf16.msra.mxu0 0
    %2271 = vmatprep.subr.bf16.mxu0 0
    %2272 = vmatpush1.bf16.msra.mxu0 0
    %2273 = vmatprep.subr.bf16.mxu0 0
    %2274 = vmatpush1.bf16.msra.mxu0 0
    %2275 = vmatprep.subr.bf16.mxu0 0
    %2276 = vmatpush1.bf16.msra.mxu0 0
    %2277 = vmatprep.subr.bf16.mxu0 0
    %2278 = vmatpush1.bf16.msra.mxu0 0
    %2279 = vmatprep.subr.bf16.mxu0 0
    %2280 = vmatpush1.bf16.msra.mxu0 0
    %2281 = vmatprep.subr.bf16.mxu0 0
    %2282 = vmatpush1.bf16.msra.mxu0 0
    %2283 = vmatprep.subr.bf16.mxu0 0
    %2284 = vmatpush1.bf16.msra.mxu0 0
    %2285 = vmatprep.subr.bf16.mxu0 0
    %2286 = vmatpush1.bf16.msra.mxu0 0
    %2287 = vmatprep.subr.bf16.mxu0 0
    %2288 = vmatpush1.bf16.msra.mxu0 0
    %2289 = vmatprep.subr.bf16.mxu0 0
    %2290 = vmatpush1.bf16.msra.mxu0 0
    %2291 = vmatprep.subr.bf16.mxu0 0
    %2292 = vmatpush1.bf16.msra.mxu0 0
    %2293 = vmatprep.subr.bf16.mxu0 0
    %2294 = vmatpush1.bf16.msra.mxu0 0
    %2295 = vmatprep.subr.bf16.mxu0 0
    %2296 = vmatpush1.bf16.msra.mxu0 0
    %2297 = vmatprep.mubr.bf16.mxu0 0
    %2298 = vmatmul.mubr.bf16.gmra.mrb[0].mxu0 %v2263
    %v2299 = vpop.f32.mrb[0].mxu0
    %v2300 = vadd.f32 0.0, %v2299
    %v2301 = vpop.f32.mrb[0].mxu0
    %v2302 = vpop.f32.mrb[0].mxu0
    %v2303 = vpop.f32.mrb[0].mxu0
    %2304 = vdwg.mxu0
    %v2305 = vadd.f32 %v2197, %v2300
    %s2306 = scalar_lea.vmem [#allocation2], 20
    %v2307 = vld [vmem:[%s2306] sm:$0x1]
    %v2309 = vsel %vm145, %v2307, 0
    %2311 = vmatprep.subr.bf16.mxu0 0
    %2312 = vmatpush1.bf16.msra.mxu0 %v140
    %2313 = vmatprep.subr.bf16.mxu0 0
    %2314 = vmatpush1.bf16.msra.mxu0 %v141
    %2315 = vmatprep.subr.bf16.mxu0 0
    %2316 = vmatpush1.bf16.msra.mxu0 %v151
    %2317 = vmatprep.subr.bf16.mxu0 0
    %2318 = vmatpush1.bf16.msra.mxu0 0
    %2319 = vmatprep.subr.bf16.mxu0 0
    %2320 = vmatpush1.bf16.msra.mxu0 0
    %2321 = vmatprep.subr.bf16.mxu0 0
    %2322 = vmatpush1.bf16.msra.mxu0 0
    %2323 = vmatprep.subr.bf16.mxu0 0
    %2324 = vmatpush1.bf16.msra.mxu0 0
    %2325 = vmatprep.subr.bf16.mxu0 0
    %2326 = vmatpush1.bf16.msra.mxu0 0
    %2327 = vmatprep.subr.bf16.mxu0 0
    %2328 = vmatpush1.bf16.msra.mxu0 0
    %2329 = vmatprep.subr.bf16.mxu0 0
    %2330 = vmatpush1.bf16.msra.mxu0 0
    %2331 = vmatprep.subr.bf16.mxu0 0
    %2332 = vmatpush1.bf16.msra.mxu0 0
    %2333 = vmatprep.subr.bf16.mxu0 0
    %2334 = vmatpush1.bf16.msra.mxu0 0
    %2335 = vmatprep.subr.bf16.mxu0 0
    %2336 = vmatpush1.bf16.msra.mxu0 0
    %2337 = vmatprep.subr.bf16.mxu0 0
    %2338 = vmatpush1.bf16.msra.mxu0 0
    %2339 = vmatprep.subr.bf16.mxu0 0
    %2340 = vmatpush1.bf16.msra.mxu0 0
    %2341 = vmatprep.subr.bf16.mxu0 0
    %2342 = vmatpush1.bf16.msra.mxu0 0
    %2343 = vmatprep.mubr.bf16.mxu0 0
    %2344 = vmatmul.mubr.bf16.gmra.mrb[0].mxu0 %v2309
    %v2345 = vpop.f32.mrb[0].mxu0
    %v2346 = vadd.f32 %v128, %v2345
    %v2347 = vpop.f32.mrb[0].mxu0
    %v2348 = vpop.f32.mrb[0].mxu0
    %v2349 = vpop.f32.mrb[0].mxu0
    %2350 = vdwg.mxu0
    %v2351 = vmax.f32 %v2346, 0.0
    %v2352 = vpack.c.bf16 %v2351, %v2351
    %s2353 = scalar_lea.vmem [#allocation8], 320
    %v2354 = vld [vmem:[%s2353] sm:$0xf]
    %v2355 = vld [vmem:[%s2353 + $0x4] sm:$0xf]
    %v2356 = vld [vmem:[%s2353 + $0x8] sm:$0xf]
    %v2357 = vld [vmem:[%s2353 + $0xc] sm:$0xf]
    %v2362 = vunpack.c.l.b16 %v2354
    %v2363 = vunpack.c.l.b16 %v2355
    %v2364 = vunpack.c.l.b16 %v2356
    %v2365 = vunpack.c.l.b16 %v2357
    %v2366 = vpack.c.b16 %v2363, %v2362
    %v2367 = vpack.c.b16 %v2365, %v2364
    %v2371 = vsel %vm263, %v2352, 0
    %2373 = vmatprep.subr.bf16.mxu0 0
    %2374 = vmatpush1.bf16.msra.mxu0 %v2366
    %2375 = vmatprep.subr.bf16.mxu0 0
    %2376 = vmatpush1.bf16.msra.mxu0 %v2367
    %2377 = vmatprep.subr.bf16.mxu0 0
    %2378 = vmatpush1.bf16.msra.mxu0 0
    %2379 = vmatprep.subr.bf16.mxu0 0
    %2380 = vmatpush1.bf16.msra.mxu0 0
    %2381 = vmatprep.subr.bf16.mxu0 0
    %2382 = vmatpush1.bf16.msra.mxu0 0
    %2383 = vmatprep.subr.bf16.mxu0 0
    %2384 = vmatpush1.bf16.msra.mxu0 0
    %2385 = vmatprep.subr.bf16.mxu0 0
    %2386 = vmatpush1.bf16.msra.mxu0 0
    %2387 = vmatprep.subr.bf16.mxu0 0
    %2388 = vmatpush1.bf16.msra.mxu0 0
    %2389 = vmatprep.subr.bf16.mxu0 0
    %2390 = vmatpush1.bf16.msra.mxu0 0
    %2391 = vmatprep.subr.bf16.mxu0 0
    %2392 = vmatpush1.bf16.msra.mxu0 0
    %2393 = vmatprep.subr.bf16.mxu0 0
    %2394 = vmatpush1.bf16.msra.mxu0 0
    %2395 = vmatprep.subr.bf16.mxu0 0
    %2396 = vmatpush1.bf16.msra.mxu0 0
    %2397 = vmatprep.subr.bf16.mxu0 0
    %2398 = vmatpush1.bf16.msra.mxu0 0
    %2399 = vmatprep.subr.bf16.mxu0 0
    %2400 = vmatpush1.bf16.msra.mxu0 0
    %2401 = vmatprep.subr.bf16.mxu0 0
    %2402 = vmatpush1.bf16.msra.mxu0 0
    %2403 = vmatprep.subr.bf16.mxu0 0
    %2404 = vmatpush1.bf16.msra.mxu0 0
    %2405 = vmatprep.mubr.bf16.mxu0 0
    %2406 = vmatmul.mubr.bf16.gmra.mrb[0].mxu0 %v2371
    %v2407 = vpop.f32.mrb[0].mxu0
    %v2408 = vadd.f32 0.0, %v2407
    %v2409 = vpop.f32.mrb[0].mxu0
    %v2410 = vpop.f32.mrb[0].mxu0
    %v2411 = vpop.f32.mrb[0].mxu0
    %2412 = vdwg.mxu0
    %v2413 = vadd.f32 %v2305, %v2408
    %s2414 = scalar_lea.vmem [#allocation2], 21
    %v2415 = vld [vmem:[%s2414] sm:$0x1]
    %v2417 = vsel %vm145, %v2415, 0
    %2419 = vmatprep.subr.bf16.mxu0 0
    %2420 = vmatpush1.bf16.msra.mxu0 %v140
    %2421 = vmatprep.subr.bf16.mxu0 0
    %2422 = vmatpush1.bf16.msra.mxu0 %v141
    %2423 = vmatprep.subr.bf16.mxu0 0
    %2424 = vmatpush1.bf16.msra.mxu0 %v151
    %2425 = vmatprep.subr.bf16.mxu0 0
    %2426 = vmatpush1.bf16.msra.mxu0 0
    %2427 = vmatprep.subr.bf16.mxu0 0
    %2428 = vmatpush1.bf16.msra.mxu0 0
    %2429 = vmatprep.subr.bf16.mxu0 0
    %2430 = vmatpush1.bf16.msra.mxu0 0
    %2431 = vmatprep.subr.bf16.mxu0 0
    %2432 = vmatpush1.bf16.msra.mxu0 0
    %2433 = vmatprep.subr.bf16.mxu0 0
    %2434 = vmatpush1.bf16.msra.mxu0 0
    %2435 = vmatprep.subr.bf16.mxu0 0
    %2436 = vmatpush1.bf16.msra.mxu0 0
    %2437 = vmatprep.subr.bf16.mxu0 0
    %2438 = vmatpush1.bf16.msra.mxu0 0
    %2439 = vmatprep.subr.bf16.mxu0 0
    %2440 = vmatpush1.bf16.msra.mxu0 0
    %2441 = vmatprep.subr.bf16.mxu0 0
    %2442 = vmatpush1.bf16.msra.mxu0 0
    %2443 = vmatprep.subr.bf16.mxu0 0
    %2444 = vmatpush1.bf16.msra.mxu0 0
    %2445 = vmatprep.subr.bf16.mxu0 0
    %2446 = vmatpush1.bf16.msra.mxu0 0
    %2447 = vmatprep.subr.bf16.mxu0 0
    %2448 = vmatpush1.bf16.msra.mxu0 0
    %2449 = vmatprep.subr.bf16.mxu0 0
    %2450 = vmatpush1.bf16.msra.mxu0 0
    %2451 = vmatprep.mubr.bf16.mxu0 0
    %2452 = vmatmul.mubr.bf16.gmra.mrb[0].mxu0 %v2417
    %v2453 = vpop.f32.mrb[0].mxu0
    %v2454 = vadd.f32 %v128, %v2453
    %v2455 = vpop.f32.mrb[0].mxu0
    %v2456 = vpop.f32.mrb[0].mxu0
    %v2457 = vpop.f32.mrb[0].mxu0
    %2458 = vdwg.mxu0
    %v2459 = vmax.f32 %v2454, 0.0
    %v2460 = vpack.c.bf16 %v2459, %v2459
    %s2461 = scalar_lea.vmem [#allocation8], 336
    %v2462 = vld [vmem:[%s2461] sm:$0xf]
    %v2463 = vld [vmem:[%s2461 + $0x4] sm:$0xf]
    %v2464 = vld [vmem:[%s2461 + $0x8] sm:$0xf]
    %v2465 = vld [vmem:[%s2461 + $0xc] sm:$0xf]
    %v2470 = vunpack.c.l.b16 %v2462
    %v2471 = vunpack.c.l.b16 %v2463
    %v2472 = vunpack.c.l.b16 %v2464
    %v2473 = vunpack.c.l.b16 %v2465
    %v2474 = vpack.c.b16 %v2471, %v2470
    %v2475 = vpack.c.b16 %v2473, %v2472
    %v2479 = vsel %vm263, %v2460, 0
    %2481 = vmatprep.subr.bf16.mxu0 0
    %2482 = vmatpush1.bf16.msra.mxu0 %v2474
    %2483 = vmatprep.subr.bf16.mxu0 0
    %2484 = vmatpush1.bf16.msra.mxu0 %v2475
    %2485 = vmatprep.subr.bf16.mxu0 0
    %2486 = vmatpush1.bf16.msra.mxu0 0
    %2487 = vmatprep.subr.bf16.mxu0 0
    %2488 = vmatpush1.bf16.msra.mxu0 0
    %2489 = vmatprep.subr.bf16.mxu0 0
    %2490 = vmatpush1.bf16.msra.mxu0 0
    %2491 = vmatprep.subr.bf16.mxu0 0
    %2492 = vmatpush1.bf16.msra.mxu0 0
    %2493 = vmatprep.subr.bf16.mxu0 0
    %2494 = vmatpush1.bf16.msra.mxu0 0
    %2495 = vmatprep.subr.bf16.mxu0 0
    %2496 = vmatpush1.bf16.msra.mxu0 0
    %2497 = vmatprep.subr.bf16.mxu0 0
    %2498 = vmatpush1.bf16.msra.mxu0 0
    %2499 = vmatprep.subr.bf16.mxu0 0
    %2500 = vmatpush1.bf16.msra.mxu0 0
    %2501 = vmatprep.subr.bf16.mxu0 0
    %2502 = vmatpush1.bf16.msra.mxu0 0
    %2503 = vmatprep.subr.bf16.mxu0 0
    %2504 = vmatpush1.bf16.msra.mxu0 0
    %2505 = vmatprep.subr.bf16.mxu0 0
    %2506 = vmatpush1.bf16.msra.mxu0 0
    %2507 = vmatprep.subr.bf16.mxu0 0
    %2508 = vmatpush1.bf16.msra.mxu0 0
    %2509 = vmatprep.subr.bf16.mxu0 0
    %2510 = vmatpush1.bf16.msra.mxu0 0
    %2511 = vmatprep.subr.bf16.mxu0 0
    %2512 = vmatpush1.bf16.msra.mxu0 0
    %2513 = vmatprep.mubr.bf16.mxu0 0
    %2514 = vmatmul.mubr.bf16.gmra.mrb[0].mxu0 %v2479
    %v2515 = vpop.f32.mrb[0].mxu0
    %v2516 = vadd.f32 0.0, %v2515
    %v2517 = vpop.f32.mrb[0].mxu0
    %v2518 = vpop.f32.mrb[0].mxu0
    %v2519 = vpop.f32.mrb[0].mxu0
    %2520 = vdwg.mxu0
    %v2521 = vadd.f32 %v2413, %v2516
    %s2522 = scalar_lea.vmem [#allocation2], 22
    %v2523 = vld [vmem:[%s2522] sm:$0x1]
    %v2525 = vsel %vm145, %v2523, 0
    %2527 = vmatprep.subr.bf16.mxu0 0
    %2528 = vmatpush1.bf16.msra.mxu0 %v140
    %2529 = vmatprep.subr.bf16.mxu0 0
    %2530 = vmatpush1.bf16.msra.mxu0 %v141
    %2531 = vmatprep.subr.bf16.mxu0 0
    %2532 = vmatpush1.bf16.msra.mxu0 %v151
    %2533 = vmatprep.subr.bf16.mxu0 0
    %2534 = vmatpush1.bf16.msra.mxu0 0
    %2535 = vmatprep.subr.bf16.mxu0 0
    %2536 = vmatpush1.bf16.msra.mxu0 0
    %2537 = vmatprep.subr.bf16.mxu0 0
    %2538 = vmatpush1.bf16.msra.mxu0 0
    %2539 = vmatprep.subr.bf16.mxu0 0
    %2540 = vmatpush1.bf16.msra.mxu0 0
    %2541 = vmatprep.subr.bf16.mxu0 0
    %2542 = vmatpush1.bf16.msra.mxu0 0
    %2543 = vmatprep.subr.bf16.mxu0 0
    %2544 = vmatpush1.bf16.msra.mxu0 0
    %2545 = vmatprep.subr.bf16.mxu0 0
    %2546 = vmatpush1.bf16.msra.mxu0 0
    %2547 = vmatprep.subr.bf16.mxu0 0
    %2548 = vmatpush1.bf16.msra.mxu0 0
    %2549 = vmatprep.subr.bf16.mxu0 0
    %2550 = vmatpush1.bf16.msra.mxu0 0
    %2551 = vmatprep.subr.bf16.mxu0 0
    %2552 = vmatpush1.bf16.msra.mxu0 0
    %2553 = vmatprep.subr.bf16.mxu0 0
    %2554 = vmatpush1.bf16.msra.mxu0 0
    %2555 = vmatprep.subr.bf16.mxu0 0
    %2556 = vmatpush1.bf16.msra.mxu0 0
    %2557 = vmatprep.subr.bf16.mxu0 0
    %2558 = vmatpush1.bf16.msra.mxu0 0
    %2559 = vmatprep.mubr.bf16.mxu0 0
    %2560 = vmatmul.mubr.bf16.gmra.mrb[0].mxu0 %v2525
    %v2561 = vpop.f32.mrb[0].mxu0
    %v2562 = vadd.f32 %v128, %v2561
    %v2563 = vpop.f32.mrb[0].mxu0
    %v2564 = vpop.f32.mrb[0].mxu0
    %v2565 = vpop.f32.mrb[0].mxu0
    %2566 = vdwg.mxu0
    %v2567 = vmax.f32 %v2562, 0.0
    %v2568 = vpack.c.bf16 %v2567, %v2567
    %s2569 = scalar_lea.vmem [#allocation8], 352
    %v2570 = vld [vmem:[%s2569] sm:$0xf]
    %v2571 = vld [vmem:[%s2569 + $0x4] sm:$0xf]
    %v2572 = vld [vmem:[%s2569 + $0x8] sm:$0xf]
    %v2573 = vld [vmem:[%s2569 + $0xc] sm:$0xf]
    %v2578 = vunpack.c.l.b16 %v2570
    %v2579 = vunpack.c.l.b16 %v2571
    %v2580 = vunpack.c.l.b16 %v2572
    %v2581 = vunpack.c.l.b16 %v2573
    %v2582 = vpack.c.b16 %v2579, %v2578
    %v2583 = vpack.c.b16 %v2581, %v2580
    %v2587 = vsel %vm263, %v2568, 0
    %2589 = vmatprep.subr.bf16.mxu0 0
    %2590 = vmatpush1.bf16.msra.mxu0 %v2582
    %2591 = vmatprep.subr.bf16.mxu0 0
    %2592 = vmatpush1.bf16.msra.mxu0 %v2583
    %2593 = vmatprep.subr.bf16.mxu0 0
    %2594 = vmatpush1.bf16.msra.mxu0 0
    %2595 = vmatprep.subr.bf16.mxu0 0
    %2596 = vmatpush1.bf16.msra.mxu0 0
    %2597 = vmatprep.subr.bf16.mxu0 0
    %2598 = vmatpush1.bf16.msra.mxu0 0
    %2599 = vmatprep.subr.bf16.mxu0 0
    %2600 = vmatpush1.bf16.msra.mxu0 0
    %2601 = vmatprep.subr.bf16.mxu0 0
    %2602 = vmatpush1.bf16.msra.mxu0 0
    %2603 = vmatprep.subr.bf16.mxu0 0
    %2604 = vmatpush1.bf16.msra.mxu0 0
    %2605 = vmatprep.subr.bf16.mxu0 0
    %2606 = vmatpush1.bf16.msra.mxu0 0
    %2607 = vmatprep.subr.bf16.mxu0 0
    %2608 = vmatpush1.bf16.msra.mxu0 0
    %2609 = vmatprep.subr.bf16.mxu0 0
    %2610 = vmatpush1.bf16.msra.mxu0 0
    %2611 = vmatprep.subr.bf16.mxu0 0
    %2612 = vmatpush1.bf16.msra.mxu0 0
    %2613 = vmatprep.subr.bf16.mxu0 0
    %2614 = vmatpush1.bf16.msra.mxu0 0
    %2615 = vmatprep.subr.bf16.mxu0 0
    %2616 = vmatpush1.bf16.msra.mxu0 0
    %2617 = vmatprep.subr.bf16.mxu0 0
    %2618 = vmatpush1.bf16.msra.mxu0 0
    %2619 = vmatprep.subr.bf16.mxu0 0
    %2620 = vmatpush1.bf16.msra.mxu0 0
    %2621 = vmatprep.mubr.bf16.mxu0 0
    %2622 = vmatmul.mubr.bf16.gmra.mrb[0].mxu0 %v2587
    %v2623 = vpop.f32.mrb[0].mxu0
    %v2624 = vadd.f32 0.0, %v2623
    %v2625 = vpop.f32.mrb[0].mxu0
    %v2626 = vpop.f32.mrb[0].mxu0
    %v2627 = vpop.f32.mrb[0].mxu0
    %2628 = vdwg.mxu0
    %v2629 = vadd.f32 %v2521, %v2624
    %s2630 = scalar_lea.vmem [#allocation2], 23
    %v2631 = vld [vmem:[%s2630] sm:$0x1]
    %v2633 = vsel %vm145, %v2631, 0
    %2635 = vmatprep.subr.bf16.mxu0 0
    %2636 = vmatpush1.bf16.msra.mxu0 %v140
    %2637 = vmatprep.subr.bf16.mxu0 0
    %2638 = vmatpush1.bf16.msra.mxu0 %v141
    %2639 = vmatprep.subr.bf16.mxu0 0
    %2640 = vmatpush1.bf16.msra.mxu0 %v151
    %2641 = vmatprep.subr.bf16.mxu0 0
    %2642 = vmatpush1.bf16.msra.mxu0 0
    %2643 = vmatprep.subr.bf16.mxu0 0
    %2644 = vmatpush1.bf16.msra.mxu0 0
    %2645 = vmatprep.subr.bf16.mxu0 0
    %2646 = vmatpush1.bf16.msra.mxu0 0
    %2647 = vmatprep.subr.bf16.mxu0 0
    %2648 = vmatpush1.bf16.msra.mxu0 0
    %2649 = vmatprep.subr.bf16.mxu0 0
    %2650 = vmatpush1.bf16.msra.mxu0 0
    %2651 = vmatprep.subr.bf16.mxu0 0
    %2652 = vmatpush1.bf16.msra.mxu0 0
    %2653 = vmatprep.subr.bf16.mxu0 0
    %2654 = vmatpush1.bf16.msra.mxu0 0
    %2655 = vmatprep.subr.bf16.mxu0 0
    %2656 = vmatpush1.bf16.msra.mxu0 0
    %2657 = vmatprep.subr.bf16.mxu0 0
    %2658 = vmatpush1.bf16.msra.mxu0 0
    %2659 = vmatprep.subr.bf16.mxu0 0
    %2660 = vmatpush1.bf16.msra.mxu0 0
    %2661 = vmatprep.subr.bf16.mxu0 0
    %2662 = vmatpush1.bf16.msra.mxu0 0
    %2663 = vmatprep.subr.bf16.mxu0 0
    %2664 = vmatpush1.bf16.msra.mxu0 0
    %2665 = vmatprep.subr.bf16.mxu0 0
    %2666 = vmatpush1.bf16.msra.mxu0 0
    %2667 = vmatprep.mubr.bf16.mxu0 0
    %2668 = vmatmul.mubr.bf16.gmra.mrb[0].mxu0 %v2633
    %v2669 = vpop.f32.mrb[0].mxu0
    %v2670 = vadd.f32 %v128, %v2669
    %v2671 = vpop.f32.mrb[0].mxu0
    %v2672 = vpop.f32.mrb[0].mxu0
    %v2673 = vpop.f32.mrb[0].mxu0
    %2674 = vdwg.mxu0
    %v2675 = vmax.f32 %v2670, 0.0
    %v2676 = vpack.c.bf16 %v2675, %v2675
    %s2677 = scalar_lea.vmem [#allocation8], 368
    %v2678 = vld [vmem:[%s2677] sm:$0xf]
    %v2679 = vld [vmem:[%s2677 + $0x4] sm:$0xf]
    %v2680 = vld [vmem:[%s2677 + $0x8] sm:$0xf]
    %v2681 = vld [vmem:[%s2677 + $0xc] sm:$0xf]
    %v2686 = vunpack.c.l.b16 %v2678
    %v2687 = vunpack.c.l.b16 %v2679
    %v2688 = vunpack.c.l.b16 %v2680
    %v2689 = vunpack.c.l.b16 %v2681
    %v2690 = vpack.c.b16 %v2687, %v2686
    %v2691 = vpack.c.b16 %v2689, %v2688
    %v2695 = vsel %vm263, %v2676, 0
    %2697 = vmatprep.subr.bf16.mxu0 0
    %2698 = vmatpush1.bf16.msra.mxu0 %v2690
    %2699 = vmatprep.subr.bf16.mxu0 0
    %2700 = vmatpush1.bf16.msra.mxu0 %v2691
    %2701 = vmatprep.subr.bf16.mxu0 0
    %2702 = vmatpush1.bf16.msra.mxu0 0
    %2703 = vmatprep.subr.bf16.mxu0 0
    %2704 = vmatpush1.bf16.msra.mxu0 0
    %2705 = vmatprep.subr.bf16.mxu0 0
    %2706 = vmatpush1.bf16.msra.mxu0 0
    %2707 = vmatprep.subr.bf16.mxu0 0
    %2708 = vmatpush1.bf16.msra.mxu0 0
    %2709 = vmatprep.subr.bf16.mxu0 0
    %2710 = vmatpush1.bf16.msra.mxu0 0
    %2711 = vmatprep.subr.bf16.mxu0 0
    %2712 = vmatpush1.bf16.msra.mxu0 0
    %2713 = vmatprep.subr.bf16.mxu0 0
    %2714 = vmatpush1.bf16.msra.mxu0 0
    %2715 = vmatprep.subr.bf16.mxu0 0
    %2716 = vmatpush1.bf16.msra.mxu0 0
    %2717 = vmatprep.subr.bf16.mxu0 0
    %2718 = vmatpush1.bf16.msra.mxu0 0
    %2719 = vmatprep.subr.bf16.mxu0 0
    %2720 = vmatpush1.bf16.msra.mxu0 0
    %2721 = vmatprep.subr.bf16.mxu0 0
    %2722 = vmatpush1.bf16.msra.mxu0 0
    %2723 = vmatprep.subr.bf16.mxu0 0
    %2724 = vmatpush1.bf16.msra.mxu0 0
    %2725 = vmatprep.subr.bf16.mxu0 0
    %2726 = vmatpush1.bf16.msra.mxu0 0
    %2727 = vmatprep.subr.bf16.mxu0 0
    %2728 = vmatpush1.bf16.msra.mxu0 0
    %2729 = vmatprep.mubr.bf16.mxu0 0
    %2730 = vmatmul.mubr.bf16.gmra.mrb[0].mxu0 %v2695
    %v2731 = vpop.f32.mrb[0].mxu0
    %v2732 = vadd.f32 0.0, %v2731
    %v2733 = vpop.f32.mrb[0].mxu0
    %v2734 = vpop.f32.mrb[0].mxu0
    %v2735 = vpop.f32.mrb[0].mxu0
    %2736 = vdwg.mxu0
    %v2737 = vadd.f32 %v2629, %v2732
    %s2738 = scalar_lea.vmem [#allocation2], 24
    %v2739 = vld [vmem:[%s2738] sm:$0x1]
    %v2741 = vsel %vm145, %v2739, 0
    %2743 = vmatprep.subr.bf16.mxu0 0
    %2744 = vmatpush1.bf16.msra.mxu0 %v140
    %2745 = vmatprep.subr.bf16.mxu0 0
    %2746 = vmatpush1.bf16.msra.mxu0 %v141
    %2747 = vmatprep.subr.bf16.mxu0 0
    %2748 = vmatpush1.bf16.msra.mxu0 %v151
    %2749 = vmatprep.subr.bf16.mxu0 0
    %2750 = vmatpush1.bf16.msra.mxu0 0
    %2751 = vmatprep.subr.bf16.mxu0 0
    %2752 = vmatpush1.bf16.msra.mxu0 0
    %2753 = vmatprep.subr.bf16.mxu0 0
    %2754 = vmatpush1.bf16.msra.mxu0 0
    %2755 = vmatprep.subr.bf16.mxu0 0
    %2756 = vmatpush1.bf16.msra.mxu0 0
    %2757 = vmatprep.subr.bf16.mxu0 0
    %2758 = vmatpush1.bf16.msra.mxu0 0
    %2759 = vmatprep.subr.bf16.mxu0 0
    %2760 = vmatpush1.bf16.msra.mxu0 0
    %2761 = vmatprep.subr.bf16.mxu0 0
    %2762 = vmatpush1.bf16.msra.mxu0 0
    %2763 = vmatprep.subr.bf16.mxu0 0
    %2764 = vmatpush1.bf16.msra.mxu0 0
    %2765 = vmatprep.subr.bf16.mxu0 0
    %2766 = vmatpush1.bf16.msra.mxu0 0
    %2767 = vmatprep.subr.bf16.mxu0 0
    %2768 = vmatpush1.bf16.msra.mxu0 0
    %2769 = vmatprep.subr.bf16.mxu0 0
    %2770 = vmatpush1.bf16.msra.mxu0 0
    %2771 = vmatprep.subr.bf16.mxu0 0
    %2772 = vmatpush1.bf16.msra.mxu0 0
    %2773 = vmatprep.subr.bf16.mxu0 0
    %2774 = vmatpush1.bf16.msra.mxu0 0
    %2775 = vmatprep.mubr.bf16.mxu0 0
    %2776 = vmatmul.mubr.bf16.gmra.mrb[0].mxu0 %v2741
    %v2777 = vpop.f32.mrb[0].mxu0
    %v2778 = vadd.f32 %v128, %v2777
    %v2779 = vpop.f32.mrb[0].mxu0
    %v2780 = vpop.f32.mrb[0].mxu0
    %v2781 = vpop.f32.mrb[0].mxu0
    %2782 = vdwg.mxu0
    %v2783 = vmax.f32 %v2778, 0.0
    %v2784 = vpack.c.bf16 %v2783, %v2783
    %s2785 = scalar_lea.vmem [#allocation8], 384
    %v2786 = vld [vmem:[%s2785] sm:$0xf]
    %v2787 = vld [vmem:[%s2785 + $0x4] sm:$0xf]
    %v2788 = vld [vmem:[%s2785 + $0x8] sm:$0xf]
    %v2789 = vld [vmem:[%s2785 + $0xc] sm:$0xf]
    %v2794 = vunpack.c.l.b16 %v2786
    %v2795 = vunpack.c.l.b16 %v2787
    %v2796 = vunpack.c.l.b16 %v2788
    %v2797 = vunpack.c.l.b16 %v2789
    %v2798 = vpack.c.b16 %v2795, %v2794
    %v2799 = vpack.c.b16 %v2797, %v2796
    %v2803 = vsel %vm263, %v2784, 0
    %2805 = vmatprep.subr.bf16.mxu0 0
    %2806 = vmatpush1.bf16.msra.mxu0 %v2798
    %2807 = vmatprep.subr.bf16.mxu0 0
    %2808 = vmatpush1.bf16.msra.mxu0 %v2799
    %2809 = vmatprep.subr.bf16.mxu0 0
    %2810 = vmatpush1.bf16.msra.mxu0 0
    %2811 = vmatprep.subr.bf16.mxu0 0
    %2812 = vmatpush1.bf16.msra.mxu0 0
    %2813 = vmatprep.subr.bf16.mxu0 0
    %2814 = vmatpush1.bf16.msra.mxu0 0
    %2815 = vmatprep.subr.bf16.mxu0 0
    %2816 = vmatpush1.bf16.msra.mxu0 0
    %2817 = vmatprep.subr.bf16.mxu0 0
    %2818 = vmatpush1.bf16.msra.mxu0 0
    %2819 = vmatprep.subr.bf16.mxu0 0
    %2820 = vmatpush1.bf16.msra.mxu0 0
    %2821 = vmatprep.subr.bf16.mxu0 0
    %2822 = vmatpush1.bf16.msra.mxu0 0
    %2823 = vmatprep.subr.bf16.mxu0 0
    %2824 = vmatpush1.bf16.msra.mxu0 0
    %2825 = vmatprep.subr.bf16.mxu0 0
    %2826 = vmatpush1.bf16.msra.mxu0 0
    %2827 = vmatprep.subr.bf16.mxu0 0
    %2828 = vmatpush1.bf16.msra.mxu0 0
    %2829 = vmatprep.subr.bf16.mxu0 0
    %2830 = vmatpush1.bf16.msra.mxu0 0
    %2831 = vmatprep.subr.bf16.mxu0 0
    %2832 = vmatpush1.bf16.msra.mxu0 0
    %2833 = vmatprep.subr.bf16.mxu0 0
    %2834 = vmatpush1.bf16.msra.mxu0 0
    %2835 = vmatprep.subr.bf16.mxu0 0
    %2836 = vmatpush1.bf16.msra.mxu0 0
    %2837 = vmatprep.mubr.bf16.mxu0 0
    %2838 = vmatmul.mubr.bf16.gmra.mrb[0].mxu0 %v2803
    %v2839 = vpop.f32.mrb[0].mxu0
    %v2840 = vadd.f32 0.0, %v2839
    %v2841 = vpop.f32.mrb[0].mxu0
    %v2842 = vpop.f32.mrb[0].mxu0
    %v2843 = vpop.f32.mrb[0].mxu0
    %2844 = vdwg.mxu0
    %v2845 = vadd.f32 %v2737, %v2840
    %s2846 = scalar_lea.vmem [#allocation2], 25
    %v2847 = vld [vmem:[%s2846] sm:$0x1]
    %v2849 = vsel %vm145, %v2847, 0
    %2851 = vmatprep.subr.bf16.mxu0 0
    %2852 = vmatpush1.bf16.msra.mxu0 %v140
    %2853 = vmatprep.subr.bf16.mxu0 0
    %2854 = vmatpush1.bf16.msra.mxu0 %v141
    %2855 = vmatprep.subr.bf16.mxu0 0
    %2856 = vmatpush1.bf16.msra.mxu0 %v151
    %2857 = vmatprep.subr.bf16.mxu0 0
    %2858 = vmatpush1.bf16.msra.mxu0 0
    %2859 = vmatprep.subr.bf16.mxu0 0
    %2860 = vmatpush1.bf16.msra.mxu0 0
    %2861 = vmatprep.subr.bf16.mxu0 0
    %2862 = vmatpush1.bf16.msra.mxu0 0
    %2863 = vmatprep.subr.bf16.mxu0 0
    %2864 = vmatpush1.bf16.msra.mxu0 0
    %2865 = vmatprep.subr.bf16.mxu0 0
    %2866 = vmatpush1.bf16.msra.mxu0 0
    %2867 = vmatprep.subr.bf16.mxu0 0
    %2868 = vmatpush1.bf16.msra.mxu0 0
    %2869 = vmatprep.subr.bf16.mxu0 0
    %2870 = vmatpush1.bf16.msra.mxu0 0
    %2871 = vmatprep.subr.bf16.mxu0 0
    %2872 = vmatpush1.bf16.msra.mxu0 0
    %2873 = vmatprep.subr.bf16.mxu0 0
    %2874 = vmatpush1.bf16.msra.mxu0 0
    %2875 = vmatprep.subr.bf16.mxu0 0
    %2876 = vmatpush1.bf16.msra.mxu0 0
    %2877 = vmatprep.subr.bf16.mxu0 0
    %2878 = vmatpush1.bf16.msra.mxu0 0
    %2879 = vmatprep.subr.bf16.mxu0 0
    %2880 = vmatpush1.bf16.msra.mxu0 0
    %2881 = vmatprep.subr.bf16.mxu0 0
    %2882 = vmatpush1.bf16.msra.mxu0 0
    %2883 = vmatprep.mubr.bf16.mxu0 0
    %2884 = vmatmul.mubr.bf16.gmra.mrb[0].mxu0 %v2849
    %v2885 = vpop.f32.mrb[0].mxu0
    %v2886 = vadd.f32 %v128, %v2885
    %v2887 = vpop.f32.mrb[0].mxu0
    %v2888 = vpop.f32.mrb[0].mxu0
    %v2889 = vpop.f32.mrb[0].mxu0
    %2890 = vdwg.mxu0
    %v2891 = vmax.f32 %v2886, 0.0
    %v2892 = vpack.c.bf16 %v2891, %v2891
    %s2893 = scalar_lea.vmem [#allocation8], 400
    %v2894 = vld [vmem:[%s2893] sm:$0xf]
    %v2895 = vld [vmem:[%s2893 + $0x4] sm:$0xf]
    %v2896 = vld [vmem:[%s2893 + $0x8] sm:$0xf]
    %v2897 = vld [vmem:[%s2893 + $0xc] sm:$0xf]
    %v2902 = vunpack.c.l.b16 %v2894
    %v2903 = vunpack.c.l.b16 %v2895
    %v2904 = vunpack.c.l.b16 %v2896
    %v2905 = vunpack.c.l.b16 %v2897
    %v2906 = vpack.c.b16 %v2903, %v2902
    %v2907 = vpack.c.b16 %v2905, %v2904
    %v2911 = vsel %vm263, %v2892, 0
    %2913 = vmatprep.subr.bf16.mxu0 0
    %2914 = vmatpush1.bf16.msra.mxu0 %v2906
    %2915 = vmatprep.subr.bf16.mxu0 0
    %2916 = vmatpush1.bf16.msra.mxu0 %v2907
    %2917 = vmatprep.subr.bf16.mxu0 0
    %2918 = vmatpush1.bf16.msra.mxu0 0
    %2919 = vmatprep.subr.bf16.mxu0 0
    %2920 = vmatpush1.bf16.msra.mxu0 0
    %2921 = vmatprep.subr.bf16.mxu0 0
    %2922 = vmatpush1.bf16.msra.mxu0 0
    %2923 = vmatprep.subr.bf16.mxu0 0
    %2924 = vmatpush1.bf16.msra.mxu0 0
    %2925 = vmatprep.subr.bf16.mxu0 0
    %2926 = vmatpush1.bf16.msra.mxu0 0
    %2927 = vmatprep.subr.bf16.mxu0 0
    %2928 = vmatpush1.bf16.msra.mxu0 0
    %2929 = vmatprep.subr.bf16.mxu0 0
    %2930 = vmatpush1.bf16.msra.mxu0 0
    %2931 = vmatprep.subr.bf16.mxu0 0
    %2932 = vmatpush1.bf16.msra.mxu0 0
    %2933 = vmatprep.subr.bf16.mxu0 0
    %2934 = vmatpush1.bf16.msra.mxu0 0
    %2935 = vmatprep.subr.bf16.mxu0 0
    %2936 = vmatpush1.bf16.msra.mxu0 0
    %2937 = vmatprep.subr.bf16.mxu0 0
    %2938 = vmatpush1.bf16.msra.mxu0 0
    %2939 = vmatprep.subr.bf16.mxu0 0
    %2940 = vmatpush1.bf16.msra.mxu0 0
    %2941 = vmatprep.subr.bf16.mxu0 0
    %2942 = vmatpush1.bf16.msra.mxu0 0
    %2943 = vmatprep.subr.bf16.mxu0 0
    %2944 = vmatpush1.bf16.msra.mxu0 0
    %2945 = vmatprep.mubr.bf16.mxu0 0
    %2946 = vmatmul.mubr.bf16.gmra.mrb[0].mxu0 %v2911
    %v2947 = vpop.f32.mrb[0].mxu0
    %v2948 = vadd.f32 0.0, %v2947
    %v2949 = vpop.f32.mrb[0].mxu0
    %v2950 = vpop.f32.mrb[0].mxu0
    %v2951 = vpop.f32.mrb[0].mxu0
    %2952 = vdwg.mxu0
    %v2953 = vadd.f32 %v2845, %v2948
    %s2954 = scalar_lea.vmem [#allocation2], 26
    %v2955 = vld [vmem:[%s2954] sm:$0x1]
    %v2957 = vsel %vm145, %v2955, 0
    %2959 = vmatprep.subr.bf16.mxu0 0
    %2960 = vmatpush1.bf16.msra.mxu0 %v140
    %2961 = vmatprep.subr.bf16.mxu0 0
    %2962 = vmatpush1.bf16.msra.mxu0 %v141
    %2963 = vmatprep.subr.bf16.mxu0 0
    %2964 = vmatpush1.bf16.msra.mxu0 %v151
    %2965 = vmatprep.subr.bf16.mxu0 0
    %2966 = vmatpush1.bf16.msra.mxu0 0
    %2967 = vmatprep.subr.bf16.mxu0 0
    %2968 = vmatpush1.bf16.msra.mxu0 0
    %2969 = vmatprep.subr.bf16.mxu0 0
    %2970 = vmatpush1.bf16.msra.mxu0 0
    %2971 = vmatprep.subr.bf16.mxu0 0
    %2972 = vmatpush1.bf16.msra.mxu0 0
    %2973 = vmatprep.subr.bf16.mxu0 0
    %2974 = vmatpush1.bf16.msra.mxu0 0
    %2975 = vmatprep.subr.bf16.mxu0 0
    %2976 = vmatpush1.bf16.msra.mxu0 0
    %2977 = vmatprep.subr.bf16.mxu0 0
    %2978 = vmatpush1.bf16.msra.mxu0 0
    %2979 = vmatprep.subr.bf16.mxu0 0
    %2980 = vmatpush1.bf16.msra.mxu0 0
    %2981 = vmatprep.subr.bf16.mxu0 0
    %2982 = vmatpush1.bf16.msra.mxu0 0
    %2983 = vmatprep.subr.bf16.mxu0 0
    %2984 = vmatpush1.bf16.msra.mxu0 0
    %2985 = vmatprep.subr.bf16.mxu0 0
    %2986 = vmatpush1.bf16.msra.mxu0 0
    %2987 = vmatprep.subr.bf16.mxu0 0
    %2988 = vmatpush1.bf16.msra.mxu0 0
    %2989 = vmatprep.subr.bf16.mxu0 0
    %2990 = vmatpush1.bf16.msra.mxu0 0
    %2991 = vmatprep.mubr.bf16.mxu0 0
    %2992 = vmatmul.mubr.bf16.gmra.mrb[0].mxu0 %v2957
    %v2993 = vpop.f32.mrb[0].mxu0
    %v2994 = vadd.f32 %v128, %v2993
    %v2995 = vpop.f32.mrb[0].mxu0
    %v2996 = vpop.f32.mrb[0].mxu0
    %v2997 = vpop.f32.mrb[0].mxu0
    %2998 = vdwg.mxu0
    %v2999 = vmax.f32 %v2994, 0.0
    %v3000 = vpack.c.bf16 %v2999, %v2999
    %s3001 = scalar_lea.vmem [#allocation8], 416
    %v3002 = vld [vmem:[%s3001] sm:$0xf]
    %v3003 = vld [vmem:[%s3001 + $0x4] sm:$0xf]
    %v3004 = vld [vmem:[%s3001 + $0x8] sm:$0xf]
    %v3005 = vld [vmem:[%s3001 + $0xc] sm:$0xf]
    %v3010 = vunpack.c.l.b16 %v3002
    %v3011 = vunpack.c.l.b16 %v3003
    %v3012 = vunpack.c.l.b16 %v3004
    %v3013 = vunpack.c.l.b16 %v3005
    %v3014 = vpack.c.b16 %v3011, %v3010
    %v3015 = vpack.c.b16 %v3013, %v3012
    %v3019 = vsel %vm263, %v3000, 0
    %3021 = vmatprep.subr.bf16.mxu0 0
    %3022 = vmatpush1.bf16.msra.mxu0 %v3014
    %3023 = vmatprep.subr.bf16.mxu0 0
    %3024 = vmatpush1.bf16.msra.mxu0 %v3015
    %3025 = vmatprep.subr.bf16.mxu0 0
    %3026 = vmatpush1.bf16.msra.mxu0 0
    %3027 = vmatprep.subr.bf16.mxu0 0
    %3028 = vmatpush1.bf16.msra.mxu0 0
    %3029 = vmatprep.subr.bf16.mxu0 0
    %3030 = vmatpush1.bf16.msra.mxu0 0
    %3031 = vmatprep.subr.bf16.mxu0 0
    %3032 = vmatpush1.bf16.msra.mxu0 0
    %3033 = vmatprep.subr.bf16.mxu0 0
    %3034 = vmatpush1.bf16.msra.mxu0 0
    %3035 = vmatprep.subr.bf16.mxu0 0
    %3036 = vmatpush1.bf16.msra.mxu0 0
    %3037 = vmatprep.subr.bf16.mxu0 0
    %3038 = vmatpush1.bf16.msra.mxu0 0
    %3039 = vmatprep.subr.bf16.mxu0 0
    %3040 = vmatpush1.bf16.msra.mxu0 0
    %3041 = vmatprep.subr.bf16.mxu0 0
    %3042 = vmatpush1.bf16.msra.mxu0 0
    %3043 = vmatprep.subr.bf16.mxu0 0
    %3044 = vmatpush1.bf16.msra.mxu0 0
    %3045 = vmatprep.subr.bf16.mxu0 0
    %3046 = vmatpush1.bf16.msra.mxu0 0
    %3047 = vmatprep.subr.bf16.mxu0 0
    %3048 = vmatpush1.bf16.msra.mxu0 0
    %3049 = vmatprep.subr.bf16.mxu0 0
    %3050 = vmatpush1.bf16.msra.mxu0 0
    %3051 = vmatprep.subr.bf16.mxu0 0
    %3052 = vmatpush1.bf16.msra.mxu0 0
    %3053 = vmatprep.mubr.bf16.mxu0 0
    %3054 = vmatmul.mubr.bf16.gmra.mrb[0].mxu0 %v3019
    %v3055 = vpop.f32.mrb[0].mxu0
    %v3056 = vadd.f32 0.0, %v3055
    %v3057 = vpop.f32.mrb[0].mxu0
    %v3058 = vpop.f32.mrb[0].mxu0
    %v3059 = vpop.f32.mrb[0].mxu0
    %3060 = vdwg.mxu0
    %v3061 = vadd.f32 %v2953, %v3056
    %s3062 = scalar_lea.vmem [#allocation2], 27
    %v3063 = vld [vmem:[%s3062] sm:$0x1]
    %v3065 = vsel %vm145, %v3063, 0
    %3067 = vmatprep.subr.bf16.mxu0 0
    %3068 = vmatpush1.bf16.msra.mxu0 %v140
    %3069 = vmatprep.subr.bf16.mxu0 0
    %3070 = vmatpush1.bf16.msra.mxu0 %v141
    %3071 = vmatprep.subr.bf16.mxu0 0
    %3072 = vmatpush1.bf16.msra.mxu0 %v151
    %3073 = vmatprep.subr.bf16.mxu0 0
    %3074 = vmatpush1.bf16.msra.mxu0 0
    %3075 = vmatprep.subr.bf16.mxu0 0
    %3076 = vmatpush1.bf16.msra.mxu0 0
    %3077 = vmatprep.subr.bf16.mxu0 0
    %3078 = vmatpush1.bf16.msra.mxu0 0
    %3079 = vmatprep.subr.bf16.mxu0 0
    %3080 = vmatpush1.bf16.msra.mxu0 0
    %3081 = vmatprep.subr.bf16.mxu0 0
    %3082 = vmatpush1.bf16.msra.mxu0 0
    %3083 = vmatprep.subr.bf16.mxu0 0
    %3084 = vmatpush1.bf16.msra.mxu0 0
    %3085 = vmatprep.subr.bf16.mxu0 0
    %3086 = vmatpush1.bf16.msra.mxu0 0
    %3087 = vmatprep.subr.bf16.mxu0 0
    %3088 = vmatpush1.bf16.msra.mxu0 0
    %3089 = vmatprep.subr.bf16.mxu0 0
    %3090 = vmatpush1.bf16.msra.mxu0 0
    %3091 = vmatprep.subr.bf16.mxu0 0
    %3092 = vmatpush1.bf16.msra.mxu0 0
    %3093 = vmatprep.subr.bf16.mxu0 0
    %3094 = vmatpush1.bf16.msra.mxu0 0
    %3095 = vmatprep.subr.bf16.mxu0 0
    %3096 = vmatpush1.bf16.msra.mxu0 0
    %3097 = vmatprep.subr.bf16.mxu0 0
    %3098 = vmatpush1.bf16.msra.mxu0 0
    %3099 = vmatprep.mubr.bf16.mxu0 0
    %3100 = vmatmul.mubr.bf16.gmra.mrb[0].mxu0 %v3065
    %v3101 = vpop.f32.mrb[0].mxu0
    %v3102 = vadd.f32 %v128, %v3101
    %v3103 = vpop.f32.mrb[0].mxu0
    %v3104 = vpop.f32.mrb[0].mxu0
    %v3105 = vpop.f32.mrb[0].mxu0
    %3106 = vdwg.mxu0
    %v3107 = vmax.f32 %v3102, 0.0
    %v3108 = vpack.c.bf16 %v3107, %v3107
    %s3109 = scalar_lea.vmem [#allocation8], 432
    %v3110 = vld [vmem:[%s3109] sm:$0xf]
    %v3111 = vld [vmem:[%s3109 + $0x4] sm:$0xf]
    %v3112 = vld [vmem:[%s3109 + $0x8] sm:$0xf]
    %v3113 = vld [vmem:[%s3109 + $0xc] sm:$0xf]
    %v3118 = vunpack.c.l.b16 %v3110
    %v3119 = vunpack.c.l.b16 %v3111
    %v3120 = vunpack.c.l.b16 %v3112
    %v3121 = vunpack.c.l.b16 %v3113
    %v3122 = vpack.c.b16 %v3119, %v3118
    %v3123 = vpack.c.b16 %v3121, %v3120
    %v3127 = vsel %vm263, %v3108, 0
    %3129 = vmatprep.subr.bf16.mxu0 0
    %3130 = vmatpush1.bf16.msra.mxu0 %v3122
    %3131 = vmatprep.subr.bf16.mxu0 0
    %3132 = vmatpush1.bf16.msra.mxu0 %v3123
    %3133 = vmatprep.subr.bf16.mxu0 0
    %3134 = vmatpush1.bf16.msra.mxu0 0
    %3135 = vmatprep.subr.bf16.mxu0 0
    %3136 = vmatpush1.bf16.msra.mxu0 0
    %3137 = vmatprep.subr.bf16.mxu0 0
    %3138 = vmatpush1.bf16.msra.mxu0 0
    %3139 = vmatprep.subr.bf16.mxu0 0
    %3140 = vmatpush1.bf16.msra.mxu0 0
    %3141 = vmatprep.subr.bf16.mxu0 0
    %3142 = vmatpush1.bf16.msra.mxu0 0
    %3143 = vmatprep.subr.bf16.mxu0 0
    %3144 = vmatpush1.bf16.msra.mxu0 0
    %3145 = vmatprep.subr.bf16.mxu0 0
    %3146 = vmatpush1.bf16.msra.mxu0 0
    %3147 = vmatprep.subr.bf16.mxu0 0
    %3148 = vmatpush1.bf16.msra.mxu0 0
    %3149 = vmatprep.subr.bf16.mxu0 0
    %3150 = vmatpush1.bf16.msra.mxu0 0
    %3151 = vmatprep.subr.bf16.mxu0 0
    %3152 = vmatpush1.bf16.msra.mxu0 0
    %3153 = vmatprep.subr.bf16.mxu0 0
    %3154 = vmatpush1.bf16.msra.mxu0 0
    %3155 = vmatprep.subr.bf16.mxu0 0
    %3156 = vmatpush1.bf16.msra.mxu0 0
    %3157 = vmatprep.subr.bf16.mxu0 0
    %3158 = vmatpush1.bf16.msra.mxu0 0
    %3159 = vmatprep.subr.bf16.mxu0 0
    %3160 = vmatpush1.bf16.msra.mxu0 0
    %3161 = vmatprep.mubr.bf16.mxu0 0
    %3162 = vmatmul.mubr.bf16.gmra.mrb[0].mxu0 %v3127
    %v3163 = vpop.f32.mrb[0].mxu0
    %v3164 = vadd.f32 0.0, %v3163
    %v3165 = vpop.f32.mrb[0].mxu0
    %v3166 = vpop.f32.mrb[0].mxu0
    %v3167 = vpop.f32.mrb[0].mxu0
    %3168 = vdwg.mxu0
    %v3169 = vadd.f32 %v3061, %v3164
    %s3170 = scalar_lea.vmem [#allocation2], 28
    %v3171 = vld [vmem:[%s3170] sm:$0x1]
    %v3173 = vsel %vm145, %v3171, 0
    %3175 = vmatprep.subr.bf16.mxu0 0
    %3176 = vmatpush1.bf16.msra.mxu0 %v140
    %3177 = vmatprep.subr.bf16.mxu0 0
    %3178 = vmatpush1.bf16.msra.mxu0 %v141
    %3179 = vmatprep.subr.bf16.mxu0 0
    %3180 = vmatpush1.bf16.msra.mxu0 %v151
    %3181 = vmatprep.subr.bf16.mxu0 0
    %3182 = vmatpush1.bf16.msra.mxu0 0
    %3183 = vmatprep.subr.bf16.mxu0 0
    %3184 = vmatpush1.bf16.msra.mxu0 0
    %3185 = vmatprep.subr.bf16.mxu0 0
    %3186 = vmatpush1.bf16.msra.mxu0 0
    %3187 = vmatprep.subr.bf16.mxu0 0
    %3188 = vmatpush1.bf16.msra.mxu0 0
    %3189 = vmatprep.subr.bf16.mxu0 0
    %3190 = vmatpush1.bf16.msra.mxu0 0
    %3191 = vmatprep.subr.bf16.mxu0 0
    %3192 = vmatpush1.bf16.msra.mxu0 0
    %3193 = vmatprep.subr.bf16.mxu0 0
    %3194 = vmatpush1.bf16.msra.mxu0 0
    %3195 = vmatprep.subr.bf16.mxu0 0
    %3196 = vmatpush1.bf16.msra.mxu0 0
    %3197 = vmatprep.subr.bf16.mxu0 0
    %3198 = vmatpush1.bf16.msra.mxu0 0
    %3199 = vmatprep.subr.bf16.mxu0 0
    %3200 = vmatpush1.bf16.msra.mxu0 0
    %3201 = vmatprep.subr.bf16.mxu0 0
    %3202 = vmatpush1.bf16.msra.mxu0 0
    %3203 = vmatprep.subr.bf16.mxu0 0
    %3204 = vmatpush1.bf16.msra.mxu0 0
    %3205 = vmatprep.subr.bf16.mxu0 0
    %3206 = vmatpush1.bf16.msra.mxu0 0
    %3207 = vmatprep.mubr.bf16.mxu0 0
    %3208 = vmatmul.mubr.bf16.gmra.mrb[0].mxu0 %v3173
    %v3209 = vpop.f32.mrb[0].mxu0
    %v3210 = vadd.f32 %v128, %v3209
    %v3211 = vpop.f32.mrb[0].mxu0
    %v3212 = vpop.f32.mrb[0].mxu0
    %v3213 = vpop.f32.mrb[0].mxu0
    %3214 = vdwg.mxu0
    %v3215 = vmax.f32 %v3210, 0.0
    %v3216 = vpack.c.bf16 %v3215, %v3215
    %s3217 = scalar_lea.vmem [#allocation8], 448
    %v3218 = vld [vmem:[%s3217] sm:$0xf]
    %v3219 = vld [vmem:[%s3217 + $0x4] sm:$0xf]
    %v3220 = vld [vmem:[%s3217 + $0x8] sm:$0xf]
    %v3221 = vld [vmem:[%s3217 + $0xc] sm:$0xf]
    %v3226 = vunpack.c.l.b16 %v3218
    %v3227 = vunpack.c.l.b16 %v3219
    %v3228 = vunpack.c.l.b16 %v3220
    %v3229 = vunpack.c.l.b16 %v3221
    %v3230 = vpack.c.b16 %v3227, %v3226
    %v3231 = vpack.c.b16 %v3229, %v3228
    %v3235 = vsel %vm263, %v3216, 0
    %3237 = vmatprep.subr.bf16.mxu0 0
    %3238 = vmatpush1.bf16.msra.mxu0 %v3230
    %3239 = vmatprep.subr.bf16.mxu0 0
    %3240 = vmatpush1.bf16.msra.mxu0 %v3231
    %3241 = vmatprep.subr.bf16.mxu0 0
    %3242 = vmatpush1.bf16.msra.mxu0 0
    %3243 = vmatprep.subr.bf16.mxu0 0
    %3244 = vmatpush1.bf16.msra.mxu0 0
    %3245 = vmatprep.subr.bf16.mxu0 0
    %3246 = vmatpush1.bf16.msra.mxu0 0
    %3247 = vmatprep.subr.bf16.mxu0 0
    %3248 = vmatpush1.bf16.msra.mxu0 0
    %3249 = vmatprep.subr.bf16.mxu0 0
    %3250 = vmatpush1.bf16.msra.mxu0 0
    %3251 = vmatprep.subr.bf16.mxu0 0
    %3252 = vmatpush1.bf16.msra.mxu0 0
    %3253 = vmatprep.subr.bf16.mxu0 0
    %3254 = vmatpush1.bf16.msra.mxu0 0
    %3255 = vmatprep.subr.bf16.mxu0 0
    %3256 = vmatpush1.bf16.msra.mxu0 0
    %3257 = vmatprep.subr.bf16.mxu0 0
    %3258 = vmatpush1.bf16.msra.mxu0 0
    %3259 = vmatprep.subr.bf16.mxu0 0
    %3260 = vmatpush1.bf16.msra.mxu0 0
    %3261 = vmatprep.subr.bf16.mxu0 0
    %3262 = vmatpush1.bf16.msra.mxu0 0
    %3263 = vmatprep.subr.bf16.mxu0 0
    %3264 = vmatpush1.bf16.msra.mxu0 0
    %3265 = vmatprep.subr.bf16.mxu0 0
    %3266 = vmatpush1.bf16.msra.mxu0 0
    %3267 = vmatprep.subr.bf16.mxu0 0
    %3268 = vmatpush1.bf16.msra.mxu0 0
    %3269 = vmatprep.mubr.bf16.mxu0 0
    %3270 = vmatmul.mubr.bf16.gmra.mrb[0].mxu0 %v3235
    %v3271 = vpop.f32.mrb[0].mxu0
    %v3272 = vadd.f32 0.0, %v3271
    %v3273 = vpop.f32.mrb[0].mxu0
    %v3274 = vpop.f32.mrb[0].mxu0
    %v3275 = vpop.f32.mrb[0].mxu0
    %3276 = vdwg.mxu0
    %v3277 = vadd.f32 %v3169, %v3272
    %s3278 = scalar_lea.vmem [#allocation2], 29
    %v3279 = vld [vmem:[%s3278] sm:$0x1]
    %v3281 = vsel %vm145, %v3279, 0
    %3283 = vmatprep.subr.bf16.mxu0 0
    %3284 = vmatpush1.bf16.msra.mxu0 %v140
    %3285 = vmatprep.subr.bf16.mxu0 0
    %3286 = vmatpush1.bf16.msra.mxu0 %v141
    %3287 = vmatprep.subr.bf16.mxu0 0
    %3288 = vmatpush1.bf16.msra.mxu0 %v151
    %3289 = vmatprep.subr.bf16.mxu0 0
    %3290 = vmatpush1.bf16.msra.mxu0 0
    %3291 = vmatprep.subr.bf16.mxu0 0
    %3292 = vmatpush1.bf16.msra.mxu0 0
    %3293 = vmatprep.subr.bf16.mxu0 0
    %3294 = vmatpush1.bf16.msra.mxu0 0
    %3295 = vmatprep.subr.bf16.mxu0 0
    %3296 = vmatpush1.bf16.msra.mxu0 0
    %3297 = vmatprep.subr.bf16.mxu0 0
    %3298 = vmatpush1.bf16.msra.mxu0 0
    %3299 = vmatprep.subr.bf16.mxu0 0
    %3300 = vmatpush1.bf16.msra.mxu0 0
    %3301 = vmatprep.subr.bf16.mxu0 0
    %3302 = vmatpush1.bf16.msra.mxu0 0
    %3303 = vmatprep.subr.bf16.mxu0 0
    %3304 = vmatpush1.bf16.msra.mxu0 0
    %3305 = vmatprep.subr.bf16.mxu0 0
    %3306 = vmatpush1.bf16.msra.mxu0 0
    %3307 = vmatprep.subr.bf16.mxu0 0
    %3308 = vmatpush1.bf16.msra.mxu0 0
    %3309 = vmatprep.subr.bf16.mxu0 0
    %3310 = vmatpush1.bf16.msra.mxu0 0
    %3311 = vmatprep.subr.bf16.mxu0 0
    %3312 = vmatpush1.bf16.msra.mxu0 0
    %3313 = vmatprep.subr.bf16.mxu0 0
    %3314 = vmatpush1.bf16.msra.mxu0 0
    %3315 = vmatprep.mubr.bf16.mxu0 0
    %3316 = vmatmul.mubr.bf16.gmra.mrb[0].mxu0 %v3281
    %v3317 = vpop.f32.mrb[0].mxu0
    %v3318 = vadd.f32 %v128, %v3317
    %v3319 = vpop.f32.mrb[0].mxu0
    %v3320 = vpop.f32.mrb[0].mxu0
    %v3321 = vpop.f32.mrb[0].mxu0
    %3322 = vdwg.mxu0
    %v3323 = vmax.f32 %v3318, 0.0
    %v3324 = vpack.c.bf16 %v3323, %v3323
    %s3325 = scalar_lea.vmem [#allocation8], 464
    %v3326 = vld [vmem:[%s3325] sm:$0xf]
    %v3327 = vld [vmem:[%s3325 + $0x4] sm:$0xf]
    %v3328 = vld [vmem:[%s3325 + $0x8] sm:$0xf]
    %v3329 = vld [vmem:[%s3325 + $0xc] sm:$0xf]
    %v3334 = vunpack.c.l.b16 %v3326
    %v3335 = vunpack.c.l.b16 %v3327
    %v3336 = vunpack.c.l.b16 %v3328
    %v3337 = vunpack.c.l.b16 %v3329
    %v3338 = vpack.c.b16 %v3335, %v3334
    %v3339 = vpack.c.b16 %v3337, %v3336
    %v3343 = vsel %vm263, %v3324, 0
    %3345 = vmatprep.subr.bf16.mxu0 0
    %3346 = vmatpush1.bf16.msra.mxu0 %v3338
    %3347 = vmatprep.subr.bf16.mxu0 0
    %3348 = vmatpush1.bf16.msra.mxu0 %v3339
    %3349 = vmatprep.subr.bf16.mxu0 0
    %3350 = vmatpush1.bf16.msra.mxu0 0
    %3351 = vmatprep.subr.bf16.mxu0 0
    %3352 = vmatpush1.bf16.msra.mxu0 0
    %3353 = vmatprep.subr.bf16.mxu0 0
    %3354 = vmatpush1.bf16.msra.mxu0 0
    %3355 = vmatprep.subr.bf16.mxu0 0
    %3356 = vmatpush1.bf16.msra.mxu0 0
    %3357 = vmatprep.subr.bf16.mxu0 0
    %3358 = vmatpush1.bf16.msra.mxu0 0
    %3359 = vmatprep.subr.bf16.mxu0 0
    %3360 = vmatpush1.bf16.msra.mxu0 0
    %3361 = vmatprep.subr.bf16.mxu0 0
    %3362 = vmatpush1.bf16.msra.mxu0 0
    %3363 = vmatprep.subr.bf16.mxu0 0
    %3364 = vmatpush1.bf16.msra.mxu0 0
    %3365 = vmatprep.subr.bf16.mxu0 0
    %3366 = vmatpush1.bf16.msra.mxu0 0
    %3367 = vmatprep.subr.bf16.mxu0 0
    %3368 = vmatpush1.bf16.msra.mxu0 0
    %3369 = vmatprep.subr.bf16.mxu0 0
    %3370 = vmatpush1.bf16.msra.mxu0 0
    %3371 = vmatprep.subr.bf16.mxu0 0
    %3372 = vmatpush1.bf16.msra.mxu0 0
    %3373 = vmatprep.subr.bf16.mxu0 0
    %3374 = vmatpush1.bf16.msra.mxu0 0
    %3375 = vmatprep.subr.bf16.mxu0 0
    %3376 = vmatpush1.bf16.msra.mxu0 0
    %3377 = vmatprep.mubr.bf16.mxu0 0
    %3378 = vmatmul.mubr.bf16.gmra.mrb[0].mxu0 %v3343
    %v3379 = vpop.f32.mrb[0].mxu0
    %v3380 = vadd.f32 0.0, %v3379
    %v3381 = vpop.f32.mrb[0].mxu0
    %v3382 = vpop.f32.mrb[0].mxu0
    %v3383 = vpop.f32.mrb[0].mxu0
    %3384 = vdwg.mxu0
    %v3385 = vadd.f32 %v3277, %v3380
    %s3386 = scalar_lea.vmem [#allocation2], 30
    %v3387 = vld [vmem:[%s3386] sm:$0x1]
    %v3389 = vsel %vm145, %v3387, 0
    %3391 = vmatprep.subr.bf16.mxu0 0
    %3392 = vmatpush1.bf16.msra.mxu0 %v140
    %3393 = vmatprep.subr.bf16.mxu0 0
    %3394 = vmatpush1.bf16.msra.mxu0 %v141
    %3395 = vmatprep.subr.bf16.mxu0 0
    %3396 = vmatpush1.bf16.msra.mxu0 %v151
    %3397 = vmatprep.subr.bf16.mxu0 0
    %3398 = vmatpush1.bf16.msra.mxu0 0
    %3399 = vmatprep.subr.bf16.mxu0 0
    %3400 = vmatpush1.bf16.msra.mxu0 0
    %3401 = vmatprep.subr.bf16.mxu0 0
    %3402 = vmatpush1.bf16.msra.mxu0 0
    %3403 = vmatprep.subr.bf16.mxu0 0
    %3404 = vmatpush1.bf16.msra.mxu0 0
    %3405 = vmatprep.subr.bf16.mxu0 0
    %3406 = vmatpush1.bf16.msra.mxu0 0
    %3407 = vmatprep.subr.bf16.mxu0 0
    %3408 = vmatpush1.bf16.msra.mxu0 0
    %3409 = vmatprep.subr.bf16.mxu0 0
    %3410 = vmatpush1.bf16.msra.mxu0 0
    %3411 = vmatprep.subr.bf16.mxu0 0
    %3412 = vmatpush1.bf16.msra.mxu0 0
    %3413 = vmatprep.subr.bf16.mxu0 0
    %3414 = vmatpush1.bf16.msra.mxu0 0
    %3415 = vmatprep.subr.bf16.mxu0 0
    %3416 = vmatpush1.bf16.msra.mxu0 0
    %3417 = vmatprep.subr.bf16.mxu0 0
    %3418 = vmatpush1.bf16.msra.mxu0 0
    %3419 = vmatprep.subr.bf16.mxu0 0
    %3420 = vmatpush1.bf16.msra.mxu0 0
    %3421 = vmatprep.subr.bf16.mxu0 0
    %3422 = vmatpush1.bf16.msra.mxu0 0
    %3423 = vmatprep.mubr.bf16.mxu0 0
    %3424 = vmatmul.mubr.bf16.gmra.mrb[0].mxu0 %v3389
    %v3425 = vpop.f32.mrb[0].mxu0
    %v3426 = vadd.f32 %v128, %v3425
    %v3427 = vpop.f32.mrb[0].mxu0
    %v3428 = vpop.f32.mrb[0].mxu0
    %v3429 = vpop.f32.mrb[0].mxu0
    %3430 = vdwg.mxu0
    %v3431 = vmax.f32 %v3426, 0.0
    %v3432 = vpack.c.bf16 %v3431, %v3431
    %s3433 = scalar_lea.vmem [#allocation8], 480
    %v3434 = vld [vmem:[%s3433] sm:$0xf]
    %v3435 = vld [vmem:[%s3433 + $0x4] sm:$0xf]
    %v3436 = vld [vmem:[%s3433 + $0x8] sm:$0xf]
    %v3437 = vld [vmem:[%s3433 + $0xc] sm:$0xf]
    %v3442 = vunpack.c.l.b16 %v3434
    %v3443 = vunpack.c.l.b16 %v3435
    %v3444 = vunpack.c.l.b16 %v3436
    %v3445 = vunpack.c.l.b16 %v3437
    %v3446 = vpack.c.b16 %v3443, %v3442
    %v3447 = vpack.c.b16 %v3445, %v3444
    %v3451 = vsel %vm263, %v3432, 0
    %3453 = vmatprep.subr.bf16.mxu0 0
    %3454 = vmatpush1.bf16.msra.mxu0 %v3446
    %3455 = vmatprep.subr.bf16.mxu0 0
    %3456 = vmatpush1.bf16.msra.mxu0 %v3447
    %3457 = vmatprep.subr.bf16.mxu0 0
    %3458 = vmatpush1.bf16.msra.mxu0 0
    %3459 = vmatprep.subr.bf16.mxu0 0
    %3460 = vmatpush1.bf16.msra.mxu0 0
    %3461 = vmatprep.subr.bf16.mxu0 0
    %3462 = vmatpush1.bf16.msra.mxu0 0
    %3463 = vmatprep.subr.bf16.mxu0 0
    %3464 = vmatpush1.bf16.msra.mxu0 0
    %3465 = vmatprep.subr.bf16.mxu0 0
    %3466 = vmatpush1.bf16.msra.mxu0 0
    %3467 = vmatprep.subr.bf16.mxu0 0
    %3468 = vmatpush1.bf16.msra.mxu0 0
    %3469 = vmatprep.subr.bf16.mxu0 0
    %3470 = vmatpush1.bf16.msra.mxu0 0
    %3471 = vmatprep.subr.bf16.mxu0 0
    %3472 = vmatpush1.bf16.msra.mxu0 0
    %3473 = vmatprep.subr.bf16.mxu0 0
    %3474 = vmatpush1.bf16.msra.mxu0 0
    %3475 = vmatprep.subr.bf16.mxu0 0
    %3476 = vmatpush1.bf16.msra.mxu0 0
    %3477 = vmatprep.subr.bf16.mxu0 0
    %3478 = vmatpush1.bf16.msra.mxu0 0
    %3479 = vmatprep.subr.bf16.mxu0 0
    %3480 = vmatpush1.bf16.msra.mxu0 0
    %3481 = vmatprep.subr.bf16.mxu0 0
    %3482 = vmatpush1.bf16.msra.mxu0 0
    %3483 = vmatprep.subr.bf16.mxu0 0
    %3484 = vmatpush1.bf16.msra.mxu0 0
    %3485 = vmatprep.mubr.bf16.mxu0 0
    %3486 = vmatmul.mubr.bf16.gmra.mrb[0].mxu0 %v3451
    %v3487 = vpop.f32.mrb[0].mxu0
    %v3488 = vadd.f32 0.0, %v3487
    %v3489 = vpop.f32.mrb[0].mxu0
    %v3490 = vpop.f32.mrb[0].mxu0
    %v3491 = vpop.f32.mrb[0].mxu0
    %3492 = vdwg.mxu0
    %v3493 = vadd.f32 %v3385, %v3488
    %s3494 = scalar_lea.vmem [#allocation2], 31
    %v3495 = vld [vmem:[%s3494] sm:$0x1]
    %v3497 = vsel %vm145, %v3495, 0
    %3499 = vmatprep.subr.bf16.mxu0 0
    %3500 = vmatpush1.bf16.msra.mxu0 %v140
    %3501 = vmatprep.subr.bf16.mxu0 0
    %3502 = vmatpush1.bf16.msra.mxu0 %v141
    %3503 = vmatprep.subr.bf16.mxu0 0
    %3504 = vmatpush1.bf16.msra.mxu0 %v151
    %3505 = vmatprep.subr.bf16.mxu0 0
    %3506 = vmatpush1.bf16.msra.mxu0 0
    %3507 = vmatprep.subr.bf16.mxu0 0
    %3508 = vmatpush1.bf16.msra.mxu0 0
    %3509 = vmatprep.subr.bf16.mxu0 0
    %3510 = vmatpush1.bf16.msra.mxu0 0
    %3511 = vmatprep.subr.bf16.mxu0 0
    %3512 = vmatpush1.bf16.msra.mxu0 0
    %3513 = vmatprep.subr.bf16.mxu0 0
    %3514 = vmatpush1.bf16.msra.mxu0 0
    %3515 = vmatprep.subr.bf16.mxu0 0
    %3516 = vmatpush1.bf16.msra.mxu0 0
    %3517 = vmatprep.subr.bf16.mxu0 0
    %3518 = vmatpush1.bf16.msra.mxu0 0
    %3519 = vmatprep.subr.bf16.mxu0 0
    %3520 = vmatpush1.bf16.msra.mxu0 0
    %3521 = vmatprep.subr.bf16.mxu0 0
    %3522 = vmatpush1.bf16.msra.mxu0 0
    %3523 = vmatprep.subr.bf16.mxu0 0
    %3524 = vmatpush1.bf16.msra.mxu0 0
    %3525 = vmatprep.subr.bf16.mxu0 0
    %3526 = vmatpush1.bf16.msra.mxu0 0
    %3527 = vmatprep.subr.bf16.mxu0 0
    %3528 = vmatpush1.bf16.msra.mxu0 0
    %3529 = vmatprep.subr.bf16.mxu0 0
    %3530 = vmatpush1.bf16.msra.mxu0 0
    %3531 = vmatprep.mubr.bf16.mxu0 0
    %3532 = vmatmul.mubr.bf16.gmra.mrb[0].mxu0 %v3497
    %v3533 = vpop.f32.mrb[0].mxu0
    %v3534 = vadd.f32 %v128, %v3533
    %v3535 = vpop.f32.mrb[0].mxu0
    %v3536 = vpop.f32.mrb[0].mxu0
    %v3537 = vpop.f32.mrb[0].mxu0
    %3538 = vdwg.mxu0
    %v3539 = vmax.f32 %v3534, 0.0
    %v3540 = vpack.c.bf16 %v3539, %v3539
    %s3541 = scalar_lea.vmem [#allocation8], 496
    %v3542 = vld [vmem:[%s3541] sm:$0xf]
    %v3543 = vld [vmem:[%s3541 + $0x4] sm:$0xf]
    %v3544 = vld [vmem:[%s3541 + $0x8] sm:$0xf]
    %v3545 = vld [vmem:[%s3541 + $0xc] sm:$0xf]
    %v3550 = vunpack.c.l.b16 %v3542
    %v3551 = vunpack.c.l.b16 %v3543
    %v3552 = vunpack.c.l.b16 %v3544
    %v3553 = vunpack.c.l.b16 %v3545
    %v3554 = vpack.c.b16 %v3551, %v3550
    %v3555 = vpack.c.b16 %v3553, %v3552
    %v3559 = vsel %vm263, %v3540, 0
    %3561 = vmatprep.subr.bf16.mxu0 0
    %3562 = vmatpush1.bf16.msra.mxu0 %v3554
    %3563 = vmatprep.subr.bf16.mxu0 0
    %3564 = vmatpush1.bf16.msra.mxu0 %v3555
    %3565 = vmatprep.subr.bf16.mxu0 0
    %3566 = vmatpush1.bf16.msra.mxu0 0
    %3567 = vmatprep.subr.bf16.mxu0 0
    %3568 = vmatpush1.bf16.msra.mxu0 0
    %3569 = vmatprep.subr.bf16.mxu0 0
    %3570 = vmatpush1.bf16.msra.mxu0 0
    %3571 = vmatprep.subr.bf16.mxu0 0
    %3572 = vmatpush1.bf16.msra.mxu0 0
    %3573 = vmatprep.subr.bf16.mxu0 0
    %3574 = vmatpush1.bf16.msra.mxu0 0
    %3575 = vmatprep.subr.bf16.mxu0 0
    %3576 = vmatpush1.bf16.msra.mxu0 0
    %3577 = vmatprep.subr.bf16.mxu0 0
    %3578 = vmatpush1.bf16.msra.mxu0 0
    %3579 = vmatprep.subr.bf16.mxu0 0
    %3580 = vmatpush1.bf16.msra.mxu0 0
    %3581 = vmatprep.subr.bf16.mxu0 0
    %3582 = vmatpush1.bf16.msra.mxu0 0
    %3583 = vmatprep.subr.bf16.mxu0 0
    %3584 = vmatpush1.bf16.msra.mxu0 0
    %3585 = vmatprep.subr.bf16.mxu0 0
    %3586 = vmatpush1.bf16.msra.mxu0 0
    %3587 = vmatprep.subr.bf16.mxu0 0
    %3588 = vmatpush1.bf16.msra.mxu0 0
    %3589 = vmatprep.subr.bf16.mxu0 0
    %3590 = vmatpush1.bf16.msra.mxu0 0
    %3591 = vmatprep.subr.bf16.mxu0 0
    %3592 = vmatpush1.bf16.msra.mxu0 0
    %3593 = vmatprep.mubr.bf16.mxu0 0
    %3594 = vmatmul.mubr.bf16.gmra.mrb[0].mxu0 %v3559
    %v3595 = vpop.f32.mrb[0].mxu0
    %v3596 = vadd.f32 0.0, %v3595
    %v3597 = vpop.f32.mrb[0].mxu0
    %v3598 = vpop.f32.mrb[0].mxu0
    %v3599 = vpop.f32.mrb[0].mxu0
    %3600 = vdwg.mxu0
    %v3601 = vadd.f32 %v3493, %v3596
    %s3602 = scalar_lea.vmem [#allocation2], 32
    %v3603 = vld [vmem:[%s3602] sm:$0x1]
    %v3605 = vsel %vm145, %v3603, 0
    %3607 = vmatprep.subr.bf16.mxu0 0
    %3608 = vmatpush1.bf16.msra.mxu0 %v140
    %3609 = vmatprep.subr.bf16.mxu0 0
    %3610 = vmatpush1.bf16.msra.mxu0 %v141
    %3611 = vmatprep.subr.bf16.mxu0 0
    %3612 = vmatpush1.bf16.msra.mxu0 %v151
    %3613 = vmatprep.subr.bf16.mxu0 0
    %3614 = vmatpush1.bf16.msra.mxu0 0
    %3615 = vmatprep.subr.bf16.mxu0 0
    %3616 = vmatpush1.bf16.msra.mxu0 0
    %3617 = vmatprep.subr.bf16.mxu0 0
    %3618 = vmatpush1.bf16.msra.mxu0 0
    %3619 = vmatprep.subr.bf16.mxu0 0
    %3620 = vmatpush1.bf16.msra.mxu0 0
    %3621 = vmatprep.subr.bf16.mxu0 0
    %3622 = vmatpush1.bf16.msra.mxu0 0
    %3623 = vmatprep.subr.bf16.mxu0 0
    %3624 = vmatpush1.bf16.msra.mxu0 0
    %3625 = vmatprep.subr.bf16.mxu0 0
    %3626 = vmatpush1.bf16.msra.mxu0 0
    %3627 = vmatprep.subr.bf16.mxu0 0
    %3628 = vmatpush1.bf16.msra.mxu0 0
    %3629 = vmatprep.subr.bf16.mxu0 0
    %3630 = vmatpush1.bf16.msra.mxu0 0
    %3631 = vmatprep.subr.bf16.mxu0 0
    %3632 = vmatpush1.bf16.msra.mxu0 0
    %3633 = vmatprep.subr.bf16.mxu0 0
    %3634 = vmatpush1.bf16.msra.mxu0 0
    %3635 = vmatprep.subr.bf16.mxu0 0
    %3636 = vmatpush1.bf16.msra.mxu0 0
    %3637 = vmatprep.subr.bf16.mxu0 0
    %3638 = vmatpush1.bf16.msra.mxu0 0
    %3639 = vmatprep.mubr.bf16.mxu0 0
    %3640 = vmatmul.mubr.bf16.gmra.mrb[0].mxu0 %v3605
    %v3641 = vpop.f32.mrb[0].mxu0
    %v3642 = vadd.f32 %v128, %v3641
    %v3643 = vpop.f32.mrb[0].mxu0
    %v3644 = vpop.f32.mrb[0].mxu0
    %v3645 = vpop.f32.mrb[0].mxu0
    %3646 = vdwg.mxu0
    %v3647 = vmax.f32 %v3642, 0.0
    %v3648 = vpack.c.bf16 %v3647, %v3647
    %s3649 = scalar_lea.vmem [#allocation8], 512
    %v3650 = vld [vmem:[%s3649] sm:$0xf]
    %v3651 = vld [vmem:[%s3649 + $0x4] sm:$0xf]
    %v3652 = vld [vmem:[%s3649 + $0x8] sm:$0xf]
    %v3653 = vld [vmem:[%s3649 + $0xc] sm:$0xf]
    %v3658 = vunpack.c.l.b16 %v3650
    %v3659 = vunpack.c.l.b16 %v3651
    %v3660 = vunpack.c.l.b16 %v3652
    %v3661 = vunpack.c.l.b16 %v3653
    %v3662 = vpack.c.b16 %v3659, %v3658
    %v3663 = vpack.c.b16 %v3661, %v3660
    %v3667 = vsel %vm263, %v3648, 0
    %3669 = vmatprep.subr.bf16.mxu0 0
    %3670 = vmatpush1.bf16.msra.mxu0 %v3662
    %3671 = vmatprep.subr.bf16.mxu0 0
    %3672 = vmatpush1.bf16.msra.mxu0 %v3663
    %3673 = vmatprep.subr.bf16.mxu0 0
    %3674 = vmatpush1.bf16.msra.mxu0 0
    %3675 = vmatprep.subr.bf16.mxu0 0
    %3676 = vmatpush1.bf16.msra.mxu0 0
    %3677 = vmatprep.subr.bf16.mxu0 0
    %3678 = vmatpush1.bf16.msra.mxu0 0
    %3679 = vmatprep.subr.bf16.mxu0 0
    %3680 = vmatpush1.bf16.msra.mxu0 0
    %3681 = vmatprep.subr.bf16.mxu0 0
    %3682 = vmatpush1.bf16.msra.mxu0 0
    %3683 = vmatprep.subr.bf16.mxu0 0
    %3684 = vmatpush1.bf16.msra.mxu0 0
    %3685 = vmatprep.subr.bf16.mxu0 0
    %3686 = vmatpush1.bf16.msra.mxu0 0
    %3687 = vmatprep.subr.bf16.mxu0 0
    %3688 = vmatpush1.bf16.msra.mxu0 0
    %3689 = vmatprep.subr.bf16.mxu0 0
    %3690 = vmatpush1.bf16.msra.mxu0 0
    %3691 = vmatprep.subr.bf16.mxu0 0
    %3692 = vmatpush1.bf16.msra.mxu0 0
    %3693 = vmatprep.subr.bf16.mxu0 0
    %3694 = vmatpush1.bf16.msra.mxu0 0
    %3695 = vmatprep.subr.bf16.mxu0 0
    %3696 = vmatpush1.bf16.msra.mxu0 0
    %3697 = vmatprep.subr.bf16.mxu0 0
    %3698 = vmatpush1.bf16.msra.mxu0 0
    %3699 = vmatprep.subr.bf16.mxu0 0
    %3700 = vmatpush1.bf16.msra.mxu0 0
    %3701 = vmatprep.mubr.bf16.mxu0 0
    %3702 = vmatmul.mubr.bf16.gmra.mrb[0].mxu0 %v3667
    %v3703 = vpop.f32.mrb[0].mxu0
    %v3704 = vadd.f32 0.0, %v3703
    %v3705 = vpop.f32.mrb[0].mxu0
    %v3706 = vpop.f32.mrb[0].mxu0
    %v3707 = vpop.f32.mrb[0].mxu0
    %3708 = vdwg.mxu0
    %v3709 = vadd.f32 %v3601, %v3704
    %s3710 = scalar_lea.vmem [#allocation2], 33
    %v3711 = vld [vmem:[%s3710] sm:$0x1]
    %v3713 = vsel %vm145, %v3711, 0
    %3715 = vmatprep.subr.bf16.mxu0 0
    %3716 = vmatpush1.bf16.msra.mxu0 %v140
    %3717 = vmatprep.subr.bf16.mxu0 0
    %3718 = vmatpush1.bf16.msra.mxu0 %v141
    %3719 = vmatprep.subr.bf16.mxu0 0
    %3720 = vmatpush1.bf16.msra.mxu0 %v151
    %3721 = vmatprep.subr.bf16.mxu0 0
    %3722 = vmatpush1.bf16.msra.mxu0 0
    %3723 = vmatprep.subr.bf16.mxu0 0
    %3724 = vmatpush1.bf16.msra.mxu0 0
    %3725 = vmatprep.subr.bf16.mxu0 0
    %3726 = vmatpush1.bf16.msra.mxu0 0
    %3727 = vmatprep.subr.bf16.mxu0 0
    %3728 = vmatpush1.bf16.msra.mxu0 0
    %3729 = vmatprep.subr.bf16.mxu0 0
    %3730 = vmatpush1.bf16.msra.mxu0 0
    %3731 = vmatprep.subr.bf16.mxu0 0
    %3732 = vmatpush1.bf16.msra.mxu0 0
    %3733 = vmatprep.subr.bf16.mxu0 0
    %3734 = vmatpush1.bf16.msra.mxu0 0
    %3735 = vmatprep.subr.bf16.mxu0 0
    %3736 = vmatpush1.bf16.msra.mxu0 0
    %3737 = vmatprep.subr.bf16.mxu0 0
    %3738 = vmatpush1.bf16.msra.mxu0 0
    %3739 = vmatprep.subr.bf16.mxu0 0
    %3740 = vmatpush1.bf16.msra.mxu0 0
    %3741 = vmatprep.subr.bf16.mxu0 0
    %3742 = vmatpush1.bf16.msra.mxu0 0
    %3743 = vmatprep.subr.bf16.mxu0 0
    %3744 = vmatpush1.bf16.msra.mxu0 0
    %3745 = vmatprep.subr.bf16.mxu0 0
    %3746 = vmatpush1.bf16.msra.mxu0 0
    %3747 = vmatprep.mubr.bf16.mxu0 0
    %3748 = vmatmul.mubr.bf16.gmra.mrb[0].mxu0 %v3713
    %v3749 = vpop.f32.mrb[0].mxu0
    %v3750 = vadd.f32 %v128, %v3749
    %v3751 = vpop.f32.mrb[0].mxu0
    %v3752 = vpop.f32.mrb[0].mxu0
    %v3753 = vpop.f32.mrb[0].mxu0
    %3754 = vdwg.mxu0
    %v3755 = vmax.f32 %v3750, 0.0
    %v3756 = vpack.c.bf16 %v3755, %v3755
    %s3757 = scalar_lea.vmem [#allocation8], 528
    %v3758 = vld [vmem:[%s3757] sm:$0xf]
    %v3759 = vld [vmem:[%s3757 + $0x4] sm:$0xf]
    %v3760 = vld [vmem:[%s3757 + $0x8] sm:$0xf]
    %v3761 = vld [vmem:[%s3757 + $0xc] sm:$0xf]
    %v3766 = vunpack.c.l.b16 %v3758
    %v3767 = vunpack.c.l.b16 %v3759
    %v3768 = vunpack.c.l.b16 %v3760
    %v3769 = vunpack.c.l.b16 %v3761
    %v3770 = vpack.c.b16 %v3767, %v3766
    %v3771 = vpack.c.b16 %v3769, %v3768
    %v3775 = vsel %vm263, %v3756, 0
    %3777 = vmatprep.subr.bf16.mxu0 0
    %3778 = vmatpush1.bf16.msra.mxu0 %v3770
    %3779 = vmatprep.subr.bf16.mxu0 0
    %3780 = vmatpush1.bf16.msra.mxu0 %v3771
    %3781 = vmatprep.subr.bf16.mxu0 0
    %3782 = vmatpush1.bf16.msra.mxu0 0
    %3783 = vmatprep.subr.bf16.mxu0 0
    %3784 = vmatpush1.bf16.msra.mxu0 0
    %3785 = vmatprep.subr.bf16.mxu0 0
    %3786 = vmatpush1.bf16.msra.mxu0 0
    %3787 = vmatprep.subr.bf16.mxu0 0
    %3788 = vmatpush1.bf16.msra.mxu0 0
    %3789 = vmatprep.subr.bf16.mxu0 0
    %3790 = vmatpush1.bf16.msra.mxu0 0
    %3791 = vmatprep.subr.bf16.mxu0 0
    %3792 = vmatpush1.bf16.msra.mxu0 0
    %3793 = vmatprep.subr.bf16.mxu0 0
    %3794 = vmatpush1.bf16.msra.mxu0 0
    %3795 = vmatprep.subr.bf16.mxu0 0
    %3796 = vmatpush1.bf16.msra.mxu0 0
    %3797 = vmatprep.subr.bf16.mxu0 0
    %3798 = vmatpush1.bf16.msra.mxu0 0
    %3799 = vmatprep.subr.bf16.mxu0 0
    %3800 = vmatpush1.bf16.msra.mxu0 0
    %3801 = vmatprep.subr.bf16.mxu0 0
    %3802 = vmatpush1.bf16.msra.mxu0 0
    %3803 = vmatprep.subr.bf16.mxu0 0
    %3804 = vmatpush1.bf16.msra.mxu0 0
    %3805 = vmatprep.subr.bf16.mxu0 0
    %3806 = vmatpush1.bf16.msra.mxu0 0
    %3807 = vmatprep.subr.bf16.mxu0 0
    %3808 = vmatpush1.bf16.msra.mxu0 0
    %3809 = vmatprep.mubr.bf16.mxu0 0
    %3810 = vmatmul.mubr.bf16.gmra.mrb[0].mxu0 %v3775
    %v3811 = vpop.f32.mrb[0].mxu0
    %v3812 = vadd.f32 0.0, %v3811
    %v3813 = vpop.f32.mrb[0].mxu0
    %v3814 = vpop.f32.mrb[0].mxu0
    %v3815 = vpop.f32.mrb[0].mxu0
    %3816 = vdwg.mxu0
    %v3817 = vadd.f32 %v3709, %v3812
    %s3818 = scalar_lea.vmem [#allocation2], 34
    %v3819 = vld [vmem:[%s3818] sm:$0x1]
    %v3821 = vsel %vm145, %v3819, 0
    %3823 = vmatprep.subr.bf16.mxu0 0
    %3824 = vmatpush1.bf16.msra.mxu0 %v140
    %3825 = vmatprep.subr.bf16.mxu0 0
    %3826 = vmatpush1.bf16.msra.mxu0 %v141
    %3827 = vmatprep.subr.bf16.mxu0 0
    %3828 = vmatpush1.bf16.msra.mxu0 %v151
    %3829 = vmatprep.subr.bf16.mxu0 0
    %3830 = vmatpush1.bf16.msra.mxu0 0
    %3831 = vmatprep.subr.bf16.mxu0 0
    %3832 = vmatpush1.bf16.msra.mxu0 0
    %3833 = vmatprep.subr.bf16.mxu0 0
    %3834 = vmatpush1.bf16.msra.mxu0 0
    %3835 = vmatprep.subr.bf16.mxu0 0
    %3836 = vmatpush1.bf16.msra.mxu0 0
    %3837 = vmatprep.subr.bf16.mxu0 0
    %3838 = vmatpush1.bf16.msra.mxu0 0
    %3839 = vmatprep.subr.bf16.mxu0 0
    %3840 = vmatpush1.bf16.msra.mxu0 0
    %3841 = vmatprep.subr.bf16.mxu0 0
    %3842 = vmatpush1.bf16.msra.mxu0 0
    %3843 = vmatprep.subr.bf16.mxu0 0
    %3844 = vmatpush1.bf16.msra.mxu0 0
    %3845 = vmatprep.subr.bf16.mxu0 0
    %3846 = vmatpush1.bf16.msra.mxu0 0
    %3847 = vmatprep.subr.bf16.mxu0 0
    %3848 = vmatpush1.bf16.msra.mxu0 0
    %3849 = vmatprep.subr.bf16.mxu0 0
    %3850 = vmatpush1.bf16.msra.mxu0 0
    %3851 = vmatprep.subr.bf16.mxu0 0
    %3852 = vmatpush1.bf16.msra.mxu0 0
    %3853 = vmatprep.subr.bf16.mxu0 0
    %3854 = vmatpush1.bf16.msra.mxu0 0
    %3855 = vmatprep.mubr.bf16.mxu0 0
    %3856 = vmatmul.mubr.bf16.gmra.mrb[0].mxu0 %v3821
    %v3857 = vpop.f32.mrb[0].mxu0
    %v3858 = vadd.f32 %v128, %v3857
    %v3859 = vpop.f32.mrb[0].mxu0
    %v3860 = vpop.f32.mrb[0].mxu0
    %v3861 = vpop.f32.mrb[0].mxu0
    %3862 = vdwg.mxu0
    %v3863 = vmax.f32 %v3858, 0.0
    %v3864 = vpack.c.bf16 %v3863, %v3863
    %s3865 = scalar_lea.vmem [#allocation8], 544
    %v3866 = vld [vmem:[%s3865] sm:$0xf]
    %v3867 = vld [vmem:[%s3865 + $0x4] sm:$0xf]
    %v3868 = vld [vmem:[%s3865 + $0x8] sm:$0xf]
    %v3869 = vld [vmem:[%s3865 + $0xc] sm:$0xf]
    %v3874 = vunpack.c.l.b16 %v3866
    %v3875 = vunpack.c.l.b16 %v3867
    %v3876 = vunpack.c.l.b16 %v3868
    %v3877 = vunpack.c.l.b16 %v3869
    %v3878 = vpack.c.b16 %v3875, %v3874
    %v3879 = vpack.c.b16 %v3877, %v3876
    %v3883 = vsel %vm263, %v3864, 0
    %3885 = vmatprep.subr.bf16.mxu0 0
    %3886 = vmatpush1.bf16.msra.mxu0 %v3878
    %3887 = vmatprep.subr.bf16.mxu0 0
    %3888 = vmatpush1.bf16.msra.mxu0 %v3879
    %3889 = vmatprep.subr.bf16.mxu0 0
    %3890 = vmatpush1.bf16.msra.mxu0 0
    %3891 = vmatprep.subr.bf16.mxu0 0
    %3892 = vmatpush1.bf16.msra.mxu0 0
    %3893 = vmatprep.subr.bf16.mxu0 0
    %3894 = vmatpush1.bf16.msra.mxu0 0
    %3895 = vmatprep.subr.bf16.mxu0 0
    %3896 = vmatpush1.bf16.msra.mxu0 0
    %3897 = vmatprep.subr.bf16.mxu0 0
    %3898 = vmatpush1.bf16.msra.mxu0 0
    %3899 = vmatprep.subr.bf16.mxu0 0
    %3900 = vmatpush1.bf16.msra.mxu0 0
    %3901 = vmatprep.subr.bf16.mxu0 0
    %3902 = vmatpush1.bf16.msra.mxu0 0
    %3903 = vmatprep.subr.bf16.mxu0 0
    %3904 = vmatpush1.bf16.msra.mxu0 0
    %3905 = vmatprep.subr.bf16.mxu0 0
    %3906 = vmatpush1.bf16.msra.mxu0 0
    %3907 = vmatprep.subr.bf16.mxu0 0
    %3908 = vmatpush1.bf16.msra.mxu0 0
    %3909 = vmatprep.subr.bf16.mxu0 0
    %3910 = vmatpush1.bf16.msra.mxu0 0
    %3911 = vmatprep.subr.bf16.mxu0 0
    %3912 = vmatpush1.bf16.msra.mxu0 0
    %3913 = vmatprep.subr.bf16.mxu0 0
    %3914 = vmatpush1.bf16.msra.mxu0 0
    %3915 = vmatprep.subr.bf16.mxu0 0
    %3916 = vmatpush1.bf16.msra.mxu0 0
    %3917 = vmatprep.mubr.bf16.mxu0 0
    %3918 = vmatmul.mubr.bf16.gmra.mrb[0].mxu0 %v3883
    %v3919 = vpop.f32.mrb[0].mxu0
    %v3920 = vadd.f32 0.0, %v3919
    %v3921 = vpop.f32.mrb[0].mxu0
    %v3922 = vpop.f32.mrb[0].mxu0
    %v3923 = vpop.f32.mrb[0].mxu0
    %3924 = vdwg.mxu0
    %v3925 = vadd.f32 %v3817, %v3920
    %s3926 = scalar_lea.vmem [#allocation2], 35
    %v3927 = vld [vmem:[%s3926] sm:$0x1]
    %v3929 = vsel %vm145, %v3927, 0
    %3931 = vmatprep.subr.bf16.mxu0 0
    %3932 = vmatpush1.bf16.msra.mxu0 %v140
    %3933 = vmatprep.subr.bf16.mxu0 0
    %3934 = vmatpush1.bf16.msra.mxu0 %v141
    %3935 = vmatprep.subr.bf16.mxu0 0
    %3936 = vmatpush1.bf16.msra.mxu0 %v151
    %3937 = vmatprep.subr.bf16.mxu0 0
    %3938 = vmatpush1.bf16.msra.mxu0 0
    %3939 = vmatprep.subr.bf16.mxu0 0
    %3940 = vmatpush1.bf16.msra.mxu0 0
    %3941 = vmatprep.subr.bf16.mxu0 0
    %3942 = vmatpush1.bf16.msra.mxu0 0
    %3943 = vmatprep.subr.bf16.mxu0 0
    %3944 = vmatpush1.bf16.msra.mxu0 0
    %3945 = vmatprep.subr.bf16.mxu0 0
    %3946 = vmatpush1.bf16.msra.mxu0 0
    %3947 = vmatprep.subr.bf16.mxu0 0
    %3948 = vmatpush1.bf16.msra.mxu0 0
    %3949 = vmatprep.subr.bf16.mxu0 0
    %3950 = vmatpush1.bf16.msra.mxu0 0
    %3951 = vmatprep.subr.bf16.mxu0 0
    %3952 = vmatpush1.bf16.msra.mxu0 0
    %3953 = vmatprep.subr.bf16.mxu0 0
    %3954 = vmatpush1.bf16.msra.mxu0 0
    %3955 = vmatprep.subr.bf16.mxu0 0
    %3956 = vmatpush1.bf16.msra.mxu0 0
    %3957 = vmatprep.subr.bf16.mxu0 0
    %3958 = vmatpush1.bf16.msra.mxu0 0
    %3959 = vmatprep.subr.bf16.mxu0 0
    %3960 = vmatpush1.bf16.msra.mxu0 0
    %3961 = vmatprep.subr.bf16.mxu0 0
    %3962 = vmatpush1.bf16.msra.mxu0 0
    %3963 = vmatprep.mubr.bf16.mxu0 0
    %3964 = vmatmul.mubr.bf16.gmra.mrb[0].mxu0 %v3929
    %v3965 = vpop.f32.mrb[0].mxu0
    %v3966 = vadd.f32 %v128, %v3965
    %v3967 = vpop.f32.mrb[0].mxu0
    %v3968 = vpop.f32.mrb[0].mxu0
    %v3969 = vpop.f32.mrb[0].mxu0
    %3970 = vdwg.mxu0
    %v3971 = vmax.f32 %v3966, 0.0
    %v3972 = vpack.c.bf16 %v3971, %v3971
    %s3973 = scalar_lea.vmem [#allocation8], 560
    %v3974 = vld [vmem:[%s3973] sm:$0xf]
    %v3975 = vld [vmem:[%s3973 + $0x4] sm:$0xf]
    %v3976 = vld [vmem:[%s3973 + $0x8] sm:$0xf]
    %v3977 = vld [vmem:[%s3973 + $0xc] sm:$0xf]
    %v3982 = vunpack.c.l.b16 %v3974
    %v3983 = vunpack.c.l.b16 %v3975
    %v3984 = vunpack.c.l.b16 %v3976
    %v3985 = vunpack.c.l.b16 %v3977
    %v3986 = vpack.c.b16 %v3983, %v3982
    %v3987 = vpack.c.b16 %v3985, %v3984
    %v3991 = vsel %vm263, %v3972, 0
    %3993 = vmatprep.subr.bf16.mxu0 0
    %3994 = vmatpush1.bf16.msra.mxu0 %v3986
    %3995 = vmatprep.subr.bf16.mxu0 0
    %3996 = vmatpush1.bf16.msra.mxu0 %v3987
    %3997 = vmatprep.subr.bf16.mxu0 0
    %3998 = vmatpush1.bf16.msra.mxu0 0
    %3999 = vmatprep.subr.bf16.mxu0 0
    %4000 = vmatpush1.bf16.msra.mxu0 0
    %4001 = vmatprep.subr.bf16.mxu0 0
    %4002 = vmatpush1.bf16.msra.mxu0 0
    %4003 = vmatprep.subr.bf16.mxu0 0
    %4004 = vmatpush1.bf16.msra.mxu0 0
    %4005 = vmatprep.subr.bf16.mxu0 0
    %4006 = vmatpush1.bf16.msra.mxu0 0
    %4007 = vmatprep.subr.bf16.mxu0 0
    %4008 = vmatpush1.bf16.msra.mxu0 0
    %4009 = vmatprep.subr.bf16.mxu0 0
    %4010 = vmatpush1.bf16.msra.mxu0 0
    %4011 = vmatprep.subr.bf16.mxu0 0
    %4012 = vmatpush1.bf16.msra.mxu0 0
    %4013 = vmatprep.subr.bf16.mxu0 0
    %4014 = vmatpush1.bf16.msra.mxu0 0
    %4015 = vmatprep.subr.bf16.mxu0 0
    %4016 = vmatpush1.bf16.msra.mxu0 0
    %4017 = vmatprep.subr.bf16.mxu0 0
    %4018 = vmatpush1.bf16.msra.mxu0 0
    %4019 = vmatprep.subr.bf16.mxu0 0
    %4020 = vmatpush1.bf16.msra.mxu0 0
    %4021 = vmatprep.subr.bf16.mxu0 0
    %4022 = vmatpush1.bf16.msra.mxu0 0
    %4023 = vmatprep.subr.bf16.mxu0 0
    %4024 = vmatpush1.bf16.msra.mxu0 0
    %4025 = vmatprep.mubr.bf16.mxu0 0
    %4026 = vmatmul.mubr.bf16.gmra.mrb[0].mxu0 %v3991
    %v4027 = vpop.f32.mrb[0].mxu0
    %v4028 = vadd.f32 0.0, %v4027
    %v4029 = vpop.f32.mrb[0].mxu0
    %v4030 = vpop.f32.mrb[0].mxu0
    %v4031 = vpop.f32.mrb[0].mxu0
    %4032 = vdwg.mxu0
    %v4033 = vadd.f32 %v3925, %v4028
    %s4034 = scalar_lea.vmem [#allocation2], 36
    %v4035 = vld [vmem:[%s4034] sm:$0x1]
    %v4037 = vsel %vm145, %v4035, 0
    %4039 = vmatprep.subr.bf16.mxu0 0
    %4040 = vmatpush1.bf16.msra.mxu0 %v140
    %4041 = vmatprep.subr.bf16.mxu0 0
    %4042 = vmatpush1.bf16.msra.mxu0 %v141
    %4043 = vmatprep.subr.bf16.mxu0 0
    %4044 = vmatpush1.bf16.msra.mxu0 %v151
    %4045 = vmatprep.subr.bf16.mxu0 0
    %4046 = vmatpush1.bf16.msra.mxu0 0
    %4047 = vmatprep.subr.bf16.mxu0 0
    %4048 = vmatpush1.bf16.msra.mxu0 0
    %4049 = vmatprep.subr.bf16.mxu0 0
    %4050 = vmatpush1.bf16.msra.mxu0 0
    %4051 = vmatprep.subr.bf16.mxu0 0
    %4052 = vmatpush1.bf16.msra.mxu0 0
    %4053 = vmatprep.subr.bf16.mxu0 0
    %4054 = vmatpush1.bf16.msra.mxu0 0
    %4055 = vmatprep.subr.bf16.mxu0 0
    %4056 = vmatpush1.bf16.msra.mxu0 0
    %4057 = vmatprep.subr.bf16.mxu0 0
    %4058 = vmatpush1.bf16.msra.mxu0 0
    %4059 = vmatprep.subr.bf16.mxu0 0
    %4060 = vmatpush1.bf16.msra.mxu0 0
    %4061 = vmatprep.subr.bf16.mxu0 0
    %4062 = vmatpush1.bf16.msra.mxu0 0
    %4063 = vmatprep.subr.bf16.mxu0 0
    %4064 = vmatpush1.bf16.msra.mxu0 0
    %4065 = vmatprep.subr.bf16.mxu0 0
    %4066 = vmatpush1.bf16.msra.mxu0 0
    %4067 = vmatprep.subr.bf16.mxu0 0
    %4068 = vmatpush1.bf16.msra.mxu0 0
    %4069 = vmatprep.subr.bf16.mxu0 0
    %4070 = vmatpush1.bf16.msra.mxu0 0
    %4071 = vmatprep.mubr.bf16.mxu0 0
    %4072 = vmatmul.mubr.bf16.gmra.mrb[0].mxu0 %v4037
    %v4073 = vpop.f32.mrb[0].mxu0
    %v4074 = vadd.f32 %v128, %v4073
    %v4075 = vpop.f32.mrb[0].mxu0
    %v4076 = vpop.f32.mrb[0].mxu0
    %v4077 = vpop.f32.mrb[0].mxu0
    %4078 = vdwg.mxu0
    %v4079 = vmax.f32 %v4074, 0.0
    %v4080 = vpack.c.bf16 %v4079, %v4079
    %s4081 = scalar_lea.vmem [#allocation8], 576
    %v4082 = vld [vmem:[%s4081] sm:$0xf]
    %v4083 = vld [vmem:[%s4081 + $0x4] sm:$0xf]
    %v4084 = vld [vmem:[%s4081 + $0x8] sm:$0xf]
    %v4085 = vld [vmem:[%s4081 + $0xc] sm:$0xf]
    %v4090 = vunpack.c.l.b16 %v4082
    %v4091 = vunpack.c.l.b16 %v4083
    %v4092 = vunpack.c.l.b16 %v4084
    %v4093 = vunpack.c.l.b16 %v4085
    %v4094 = vpack.c.b16 %v4091, %v4090
    %v4095 = vpack.c.b16 %v4093, %v4092
    %v4099 = vsel %vm263, %v4080, 0
    %4101 = vmatprep.subr.bf16.mxu0 0
    %4102 = vmatpush1.bf16.msra.mxu0 %v4094
    %4103 = vmatprep.subr.bf16.mxu0 0
    %4104 = vmatpush1.bf16.msra.mxu0 %v4095
    %4105 = vmatprep.subr.bf16.mxu0 0
    %4106 = vmatpush1.bf16.msra.mxu0 0
    %4107 = vmatprep.subr.bf16.mxu0 0
    %4108 = vmatpush1.bf16.msra.mxu0 0
    %4109 = vmatprep.subr.bf16.mxu0 0
    %4110 = vmatpush1.bf16.msra.mxu0 0
    %4111 = vmatprep.subr.bf16.mxu0 0
    %4112 = vmatpush1.bf16.msra.mxu0 0
    %4113 = vmatprep.subr.bf16.mxu0 0
    %4114 = vmatpush1.bf16.msra.mxu0 0
    %4115 = vmatprep.subr.bf16.mxu0 0
    %4116 = vmatpush1.bf16.msra.mxu0 0
    %4117 = vmatprep.subr.bf16.mxu0 0
    %4118 = vmatpush1.bf16.msra.mxu0 0
    %4119 = vmatprep.subr.bf16.mxu0 0
    %4120 = vmatpush1.bf16.msra.mxu0 0
    %4121 = vmatprep.subr.bf16.mxu0 0
    %4122 = vmatpush1.bf16.msra.mxu0 0
    %4123 = vmatprep.subr.bf16.mxu0 0
    %4124 = vmatpush1.bf16.msra.mxu0 0
    %4125 = vmatprep.subr.bf16.mxu0 0
    %4126 = vmatpush1.bf16.msra.mxu0 0
    %4127 = vmatprep.subr.bf16.mxu0 0
    %4128 = vmatpush1.bf16.msra.mxu0 0
    %4129 = vmatprep.subr.bf16.mxu0 0
    %4130 = vmatpush1.bf16.msra.mxu0 0
    %4131 = vmatprep.subr.bf16.mxu0 0
    %4132 = vmatpush1.bf16.msra.mxu0 0
    %4133 = vmatprep.mubr.bf16.mxu0 0
    %4134 = vmatmul.mubr.bf16.gmra.mrb[0].mxu0 %v4099
    %v4135 = vpop.f32.mrb[0].mxu0
    %v4136 = vadd.f32 0.0, %v4135
    %v4137 = vpop.f32.mrb[0].mxu0
    %v4138 = vpop.f32.mrb[0].mxu0
    %v4139 = vpop.f32.mrb[0].mxu0
    %4140 = vdwg.mxu0
    %v4141 = vadd.f32 %v4033, %v4136
    %s4142 = scalar_lea.vmem [#allocation2], 37
    %v4143 = vld [vmem:[%s4142] sm:$0x1]
    %v4145 = vsel %vm145, %v4143, 0
    %4147 = vmatprep.subr.bf16.mxu0 0
    %4148 = vmatpush1.bf16.msra.mxu0 %v140
    %4149 = vmatprep.subr.bf16.mxu0 0
    %4150 = vmatpush1.bf16.msra.mxu0 %v141
    %4151 = vmatprep.subr.bf16.mxu0 0
    %4152 = vmatpush1.bf16.msra.mxu0 %v151
    %4153 = vmatprep.subr.bf16.mxu0 0
    %4154 = vmatpush1.bf16.msra.mxu0 0
    %4155 = vmatprep.subr.bf16.mxu0 0
    %4156 = vmatpush1.bf16.msra.mxu0 0
    %4157 = vmatprep.subr.bf16.mxu0 0
    %4158 = vmatpush1.bf16.msra.mxu0 0
    %4159 = vmatprep.subr.bf16.mxu0 0
    %4160 = vmatpush1.bf16.msra.mxu0 0
    %4161 = vmatprep.subr.bf16.mxu0 0
    %4162 = vmatpush1.bf16.msra.mxu0 0
    %4163 = vmatprep.subr.bf16.mxu0 0
    %4164 = vmatpush1.bf16.msra.mxu0 0
    %4165 = vmatprep.subr.bf16.mxu0 0
    %4166 = vmatpush1.bf16.msra.mxu0 0
    %4167 = vmatprep.subr.bf16.mxu0 0
    %4168 = vmatpush1.bf16.msra.mxu0 0
    %4169 = vmatprep.subr.bf16.mxu0 0
    %4170 = vmatpush1.bf16.msra.mxu0 0
    %4171 = vmatprep.subr.bf16.mxu0 0
    %4172 = vmatpush1.bf16.msra.mxu0 0
    %4173 = vmatprep.subr.bf16.mxu0 0
    %4174 = vmatpush1.bf16.msra.mxu0 0
    %4175 = vmatprep.subr.bf16.mxu0 0
    %4176 = vmatpush1.bf16.msra.mxu0 0
    %4177 = vmatprep.subr.bf16.mxu0 0
    %4178 = vmatpush1.bf16.msra.mxu0 0
    %4179 = vmatprep.mubr.bf16.mxu0 0
    %4180 = vmatmul.mubr.bf16.gmra.mrb[0].mxu0 %v4145
    %v4181 = vpop.f32.mrb[0].mxu0
    %v4182 = vadd.f32 %v128, %v4181
    %v4183 = vpop.f32.mrb[0].mxu0
    %v4184 = vpop.f32.mrb[0].mxu0
    %v4185 = vpop.f32.mrb[0].mxu0
    %4186 = vdwg.mxu0
    %v4187 = vmax.f32 %v4182, 0.0
    %v4188 = vpack.c.bf16 %v4187, %v4187
    %s4189 = scalar_lea.vmem [#allocation8], 592
    %v4190 = vld [vmem:[%s4189] sm:$0xf]
    %v4191 = vld [vmem:[%s4189 + $0x4] sm:$0xf]
    %v4192 = vld [vmem:[%s4189 + $0x8] sm:$0xf]
    %v4193 = vld [vmem:[%s4189 + $0xc] sm:$0xf]
    %v4198 = vunpack.c.l.b16 %v4190
    %v4199 = vunpack.c.l.b16 %v4191
    %v4200 = vunpack.c.l.b16 %v4192
    %v4201 = vunpack.c.l.b16 %v4193
    %v4202 = vpack.c.b16 %v4199, %v4198
    %v4203 = vpack.c.b16 %v4201, %v4200
    %v4207 = vsel %vm263, %v4188, 0
    %4209 = vmatprep.subr.bf16.mxu0 0
    %4210 = vmatpush1.bf16.msra.mxu0 %v4202
    %4211 = vmatprep.subr.bf16.mxu0 0
    %4212 = vmatpush1.bf16.msra.mxu0 %v4203
    %4213 = vmatprep.subr.bf16.mxu0 0
    %4214 = vmatpush1.bf16.msra.mxu0 0
    %4215 = vmatprep.subr.bf16.mxu0 0
    %4216 = vmatpush1.bf16.msra.mxu0 0
    %4217 = vmatprep.subr.bf16.mxu0 0
    %4218 = vmatpush1.bf16.msra.mxu0 0
    %4219 = vmatprep.subr.bf16.mxu0 0
    %4220 = vmatpush1.bf16.msra.mxu0 0
    %4221 = vmatprep.subr.bf16.mxu0 0
    %4222 = vmatpush1.bf16.msra.mxu0 0
    %4223 = vmatprep.subr.bf16.mxu0 0
    %4224 = vmatpush1.bf16.msra.mxu0 0
    %4225 = vmatprep.subr.bf16.mxu0 0
    %4226 = vmatpush1.bf16.msra.mxu0 0
    %4227 = vmatprep.subr.bf16.mxu0 0
    %4228 = vmatpush1.bf16.msra.mxu0 0
    %4229 = vmatprep.subr.bf16.mxu0 0
    %4230 = vmatpush1.bf16.msra.mxu0 0
    %4231 = vmatprep.subr.bf16.mxu0 0
    %4232 = vmatpush1.bf16.msra.mxu0 0
    %4233 = vmatprep.subr.bf16.mxu0 0
    %4234 = vmatpush1.bf16.msra.mxu0 0
    %4235 = vmatprep.subr.bf16.mxu0 0
    %4236 = vmatpush1.bf16.msra.mxu0 0
    %4237 = vmatprep.subr.bf16.mxu0 0
    %4238 = vmatpush1.bf16.msra.mxu0 0
    %4239 = vmatprep.subr.bf16.mxu0 0
    %4240 = vmatpush1.bf16.msra.mxu0 0
    %4241 = vmatprep.mubr.bf16.mxu0 0
    %4242 = vmatmul.mubr.bf16.gmra.mrb[0].mxu0 %v4207
    %v4243 = vpop.f32.mrb[0].mxu0
    %v4244 = vadd.f32 0.0, %v4243
    %v4245 = vpop.f32.mrb[0].mxu0
    %v4246 = vpop.f32.mrb[0].mxu0
    %v4247 = vpop.f32.mrb[0].mxu0
    %4248 = vdwg.mxu0
    %v4249 = vadd.f32 %v4141, %v4244
    %s4250 = scalar_lea.vmem [#allocation2], 38
    %v4251 = vld [vmem:[%s4250] sm:$0x1]
    %v4253 = vsel %vm145, %v4251, 0
    %4255 = vmatprep.subr.bf16.mxu0 0
    %4256 = vmatpush1.bf16.msra.mxu0 %v140
    %4257 = vmatprep.subr.bf16.mxu0 0
    %4258 = vmatpush1.bf16.msra.mxu0 %v141
    %4259 = vmatprep.subr.bf16.mxu0 0
    %4260 = vmatpush1.bf16.msra.mxu0 %v151
    %4261 = vmatprep.subr.bf16.mxu0 0
    %4262 = vmatpush1.bf16.msra.mxu0 0
    %4263 = vmatprep.subr.bf16.mxu0 0
    %4264 = vmatpush1.bf16.msra.mxu0 0
    %4265 = vmatprep.subr.bf16.mxu0 0
    %4266 = vmatpush1.bf16.msra.mxu0 0
    %4267 = vmatprep.subr.bf16.mxu0 0
    %4268 = vmatpush1.bf16.msra.mxu0 0
    %4269 = vmatprep.subr.bf16.mxu0 0
    %4270 = vmatpush1.bf16.msra.mxu0 0
    %4271 = vmatprep.subr.bf16.mxu0 0
    %4272 = vmatpush1.bf16.msra.mxu0 0
    %4273 = vmatprep.subr.bf16.mxu0 0
    %4274 = vmatpush1.bf16.msra.mxu0 0
    %4275 = vmatprep.subr.bf16.mxu0 0
    %4276 = vmatpush1.bf16.msra.mxu0 0
    %4277 = vmatprep.subr.bf16.mxu0 0
    %4278 = vmatpush1.bf16.msra.mxu0 0
    %4279 = vmatprep.subr.bf16.mxu0 0
    %4280 = vmatpush1.bf16.msra.mxu0 0
    %4281 = vmatprep.subr.bf16.mxu0 0
    %4282 = vmatpush1.bf16.msra.mxu0 0
    %4283 = vmatprep.subr.bf16.mxu0 0
    %4284 = vmatpush1.bf16.msra.mxu0 0
    %4285 = vmatprep.subr.bf16.mxu0 0
    %4286 = vmatpush1.bf16.msra.mxu0 0
    %4287 = vmatprep.mubr.bf16.mxu0 0
    %4288 = vmatmul.mubr.bf16.gmra.mrb[0].mxu0 %v4253
    %v4289 = vpop.f32.mrb[0].mxu0
    %v4290 = vadd.f32 %v128, %v4289
    %v4291 = vpop.f32.mrb[0].mxu0
    %v4292 = vpop.f32.mrb[0].mxu0
    %v4293 = vpop.f32.mrb[0].mxu0
    %4294 = vdwg.mxu0
    %v4295 = vmax.f32 %v4290, 0.0
    %v4296 = vpack.c.bf16 %v4295, %v4295
    %s4297 = scalar_lea.vmem [#allocation8], 608
    %v4298 = vld [vmem:[%s4297] sm:$0xf]
    %v4299 = vld [vmem:[%s4297 + $0x4] sm:$0xf]
    %v4300 = vld [vmem:[%s4297 + $0x8] sm:$0xf]
    %v4301 = vld [vmem:[%s4297 + $0xc] sm:$0xf]
    %v4306 = vunpack.c.l.b16 %v4298
    %v4307 = vunpack.c.l.b16 %v4299
    %v4308 = vunpack.c.l.b16 %v4300
    %v4309 = vunpack.c.l.b16 %v4301
    %v4310 = vpack.c.b16 %v4307, %v4306
    %v4311 = vpack.c.b16 %v4309, %v4308
    %v4315 = vsel %vm263, %v4296, 0
    %4317 = vmatprep.subr.bf16.mxu0 0
    %4318 = vmatpush1.bf16.msra.mxu0 %v4310
    %4319 = vmatprep.subr.bf16.mxu0 0
    %4320 = vmatpush1.bf16.msra.mxu0 %v4311
    %4321 = vmatprep.subr.bf16.mxu0 0
    %4322 = vmatpush1.bf16.msra.mxu0 0
    %4323 = vmatprep.subr.bf16.mxu0 0
    %4324 = vmatpush1.bf16.msra.mxu0 0
    %4325 = vmatprep.subr.bf16.mxu0 0
    %4326 = vmatpush1.bf16.msra.mxu0 0
    %4327 = vmatprep.subr.bf16.mxu0 0
    %4328 = vmatpush1.bf16.msra.mxu0 0
    %4329 = vmatprep.subr.bf16.mxu0 0
    %4330 = vmatpush1.bf16.msra.mxu0 0
    %4331 = vmatprep.subr.bf16.mxu0 0
    %4332 = vmatpush1.bf16.msra.mxu0 0
    %4333 = vmatprep.subr.bf16.mxu0 0
    %4334 = vmatpush1.bf16.msra.mxu0 0
    %4335 = vmatprep.subr.bf16.mxu0 0
    %4336 = vmatpush1.bf16.msra.mxu0 0
    %4337 = vmatprep.subr.bf16.mxu0 0
    %4338 = vmatpush1.bf16.msra.mxu0 0
    %4339 = vmatprep.subr.bf16.mxu0 0
    %4340 = vmatpush1.bf16.msra.mxu0 0
    %4341 = vmatprep.subr.bf16.mxu0 0
    %4342 = vmatpush1.bf16.msra.mxu0 0
    %4343 = vmatprep.subr.bf16.mxu0 0
    %4344 = vmatpush1.bf16.msra.mxu0 0
    %4345 = vmatprep.subr.bf16.mxu0 0
    %4346 = vmatpush1.bf16.msra.mxu0 0
    %4347 = vmatprep.subr.bf16.mxu0 0
    %4348 = vmatpush1.bf16.msra.mxu0 0
    %4349 = vmatprep.mubr.bf16.mxu0 0
    %4350 = vmatmul.mubr.bf16.gmra.mrb[0].mxu0 %v4315
    %v4351 = vpop.f32.mrb[0].mxu0
    %v4352 = vadd.f32 0.0, %v4351
    %v4353 = vpop.f32.mrb[0].mxu0
    %v4354 = vpop.f32.mrb[0].mxu0
    %v4355 = vpop.f32.mrb[0].mxu0
    %4356 = vdwg.mxu0
    %v4357 = vadd.f32 %v4249, %v4352
    %s4358 = scalar_lea.vmem [#allocation2], 39
    %v4359 = vld [vmem:[%s4358] sm:$0x1]
    %v4361 = vsel %vm145, %v4359, 0
    %4363 = vmatprep.subr.bf16.mxu0 0
    %4364 = vmatpush1.bf16.msra.mxu0 %v140
    %4365 = vmatprep.subr.bf16.mxu0 0
    %4366 = vmatpush1.bf16.msra.mxu0 %v141
    %4367 = vmatprep.subr.bf16.mxu0 0
    %4368 = vmatpush1.bf16.msra.mxu0 %v151
    %4369 = vmatprep.subr.bf16.mxu0 0
    %4370 = vmatpush1.bf16.msra.mxu0 0
    %4371 = vmatprep.subr.bf16.mxu0 0
    %4372 = vmatpush1.bf16.msra.mxu0 0
    %4373 = vmatprep.subr.bf16.mxu0 0
    %4374 = vmatpush1.bf16.msra.mxu0 0
    %4375 = vmatprep.subr.bf16.mxu0 0
    %4376 = vmatpush1.bf16.msra.mxu0 0
    %4377 = vmatprep.subr.bf16.mxu0 0
    %4378 = vmatpush1.bf16.msra.mxu0 0
    %4379 = vmatprep.subr.bf16.mxu0 0
    %4380 = vmatpush1.bf16.msra.mxu0 0
    %4381 = vmatprep.subr.bf16.mxu0 0
    %4382 = vmatpush1.bf16.msra.mxu0 0
    %4383 = vmatprep.subr.bf16.mxu0 0
    %4384 = vmatpush1.bf16.msra.mxu0 0
    %4385 = vmatprep.subr.bf16.mxu0 0
    %4386 = vmatpush1.bf16.msra.mxu0 0
    %4387 = vmatprep.subr.bf16.mxu0 0
    %4388 = vmatpush1.bf16.msra.mxu0 0
    %4389 = vmatprep.subr.bf16.mxu0 0
    %4390 = vmatpush1.bf16.msra.mxu0 0
    %4391 = vmatprep.subr.bf16.mxu0 0
    %4392 = vmatpush1.bf16.msra.mxu0 0
    %4393 = vmatprep.subr.bf16.mxu0 0
    %4394 = vmatpush1.bf16.msra.mxu0 0
    %4395 = vmatprep.mubr.bf16.mxu0 0
    %4396 = vmatmul.mubr.bf16.gmra.mrb[0].mxu0 %v4361
    %v4397 = vpop.f32.mrb[0].mxu0
    %v4398 = vadd.f32 %v128, %v4397
    %v4399 = vpop.f32.mrb[0].mxu0
    %v4400 = vpop.f32.mrb[0].mxu0
    %v4401 = vpop.f32.mrb[0].mxu0
    %4402 = vdwg.mxu0
    %v4403 = vmax.f32 %v4398, 0.0
    %v4404 = vpack.c.bf16 %v4403, %v4403
    %s4405 = scalar_lea.vmem [#allocation8], 624
    %v4406 = vld [vmem:[%s4405] sm:$0xf]
    %v4407 = vld [vmem:[%s4405 + $0x4] sm:$0xf]
    %v4408 = vld [vmem:[%s4405 + $0x8] sm:$0xf]
    %v4409 = vld [vmem:[%s4405 + $0xc] sm:$0xf]
    %v4414 = vunpack.c.l.b16 %v4406
    %v4415 = vunpack.c.l.b16 %v4407
    %v4416 = vunpack.c.l.b16 %v4408
    %v4417 = vunpack.c.l.b16 %v4409
    %v4418 = vpack.c.b16 %v4415, %v4414
    %v4419 = vpack.c.b16 %v4417, %v4416
    %v4423 = vsel %vm263, %v4404, 0
    %4425 = vmatprep.subr.bf16.mxu0 0
    %4426 = vmatpush1.bf16.msra.mxu0 %v4418
    %4427 = vmatprep.subr.bf16.mxu0 0
    %4428 = vmatpush1.bf16.msra.mxu0 %v4419
    %4429 = vmatprep.subr.bf16.mxu0 0
    %4430 = vmatpush1.bf16.msra.mxu0 0
    %4431 = vmatprep.subr.bf16.mxu0 0
    %4432 = vmatpush1.bf16.msra.mxu0 0
    %4433 = vmatprep.subr.bf16.mxu0 0
    %4434 = vmatpush1.bf16.msra.mxu0 0
    %4435 = vmatprep.subr.bf16.mxu0 0
    %4436 = vmatpush1.bf16.msra.mxu0 0
    %4437 = vmatprep.subr.bf16.mxu0 0
    %4438 = vmatpush1.bf16.msra.mxu0 0
    %4439 = vmatprep.subr.bf16.mxu0 0
    %4440 = vmatpush1.bf16.msra.mxu0 0
    %4441 = vmatprep.subr.bf16.mxu0 0
    %4442 = vmatpush1.bf16.msra.mxu0 0
    %4443 = vmatprep.subr.bf16.mxu0 0
    %4444 = vmatpush1.bf16.msra.mxu0 0
    %4445 = vmatprep.subr.bf16.mxu0 0
    %4446 = vmatpush1.bf16.msra.mxu0 0
    %4447 = vmatprep.subr.bf16.mxu0 0
    %4448 = vmatpush1.bf16.msra.mxu0 0
    %4449 = vmatprep.subr.bf16.mxu0 0
    %4450 = vmatpush1.bf16.msra.mxu0 0
    %4451 = vmatprep.subr.bf16.mxu0 0
    %4452 = vmatpush1.bf16.msra.mxu0 0
    %4453 = vmatprep.subr.bf16.mxu0 0
    %4454 = vmatpush1.bf16.msra.mxu0 0
    %4455 = vmatprep.subr.bf16.mxu0 0
    %4456 = vmatpush1.bf16.msra.mxu0 0
    %4457 = vmatprep.mubr.bf16.mxu0 0
    %4458 = vmatmul.mubr.bf16.gmra.mrb[0].mxu0 %v4423
    %v4459 = vpop.f32.mrb[0].mxu0
    %v4460 = vadd.f32 0.0, %v4459
    %v4461 = vpop.f32.mrb[0].mxu0
    %v4462 = vpop.f32.mrb[0].mxu0
    %v4463 = vpop.f32.mrb[0].mxu0
    %4464 = vdwg.mxu0
    %v4465 = vadd.f32 %v4357, %v4460
    %s4466 = scalar_lea.vmem [#allocation2], 40
    %v4467 = vld [vmem:[%s4466] sm:$0x1]
    %v4469 = vsel %vm145, %v4467, 0
    %4471 = vmatprep.subr.bf16.mxu0 0
    %4472 = vmatpush1.bf16.msra.mxu0 %v140
    %4473 = vmatprep.subr.bf16.mxu0 0
    %4474 = vmatpush1.bf16.msra.mxu0 %v141
    %4475 = vmatprep.subr.bf16.mxu0 0
    %4476 = vmatpush1.bf16.msra.mxu0 %v151
    %4477 = vmatprep.subr.bf16.mxu0 0
    %4478 = vmatpush1.bf16.msra.mxu0 0
    %4479 = vmatprep.subr.bf16.mxu0 0
    %4480 = vmatpush1.bf16.msra.mxu0 0
    %4481 = vmatprep.subr.bf16.mxu0 0
    %4482 = vmatpush1.bf16.msra.mxu0 0
    %4483 = vmatprep.subr.bf16.mxu0 0
    %4484 = vmatpush1.bf16.msra.mxu0 0
    %4485 = vmatprep.subr.bf16.mxu0 0
    %4486 = vmatpush1.bf16.msra.mxu0 0
    %4487 = vmatprep.subr.bf16.mxu0 0
    %4488 = vmatpush1.bf16.msra.mxu0 0
    %4489 = vmatprep.subr.bf16.mxu0 0
    %4490 = vmatpush1.bf16.msra.mxu0 0
    %4491 = vmatprep.subr.bf16.mxu0 0
    %4492 = vmatpush1.bf16.msra.mxu0 0
    %4493 = vmatprep.subr.bf16.mxu0 0
    %4494 = vmatpush1.bf16.msra.mxu0 0
    %4495 = vmatprep.subr.bf16.mxu0 0
    %4496 = vmatpush1.bf16.msra.mxu0 0
    %4497 = vmatprep.subr.bf16.mxu0 0
    %4498 = vmatpush1.bf16.msra.mxu0 0
    %4499 = vmatprep.subr.bf16.mxu0 0
    %4500 = vmatpush1.bf16.msra.mxu0 0
    %4501 = vmatprep.subr.bf16.mxu0 0
    %4502 = vmatpush1.bf16.msra.mxu0 0
    %4503 = vmatprep.mubr.bf16.mxu0 0
    %4504 = vmatmul.mubr.bf16.gmra.mrb[0].mxu0 %v4469
    %v4505 = vpop.f32.mrb[0].mxu0
    %v4506 = vadd.f32 %v128, %v4505
    %v4507 = vpop.f32.mrb[0].mxu0
    %v4508 = vpop.f32.mrb[0].mxu0
    %v4509 = vpop.f32.mrb[0].mxu0
    %4510 = vdwg.mxu0
    %v4511 = vmax.f32 %v4506, 0.0
    %v4512 = vpack.c.bf16 %v4511, %v4511
    %s4513 = scalar_lea.vmem [#allocation8], 640
    %v4514 = vld [vmem:[%s4513] sm:$0xf]
    %v4515 = vld [vmem:[%s4513 + $0x4] sm:$0xf]
    %v4516 = vld [vmem:[%s4513 + $0x8] sm:$0xf]
    %v4517 = vld [vmem:[%s4513 + $0xc] sm:$0xf]
    %v4522 = vunpack.c.l.b16 %v4514
    %v4523 = vunpack.c.l.b16 %v4515
    %v4524 = vunpack.c.l.b16 %v4516
    %v4525 = vunpack.c.l.b16 %v4517
    %v4526 = vpack.c.b16 %v4523, %v4522
    %v4527 = vpack.c.b16 %v4525, %v4524
    %v4531 = vsel %vm263, %v4512, 0
    %4533 = vmatprep.subr.bf16.mxu0 0
    %4534 = vmatpush1.bf16.msra.mxu0 %v4526
    %4535 = vmatprep.subr.bf16.mxu0 0
    %4536 = vmatpush1.bf16.msra.mxu0 %v4527
    %4537 = vmatprep.subr.bf16.mxu0 0
    %4538 = vmatpush1.bf16.msra.mxu0 0
    %4539 = vmatprep.subr.bf16.mxu0 0
    %4540 = vmatpush1.bf16.msra.mxu0 0
    %4541 = vmatprep.subr.bf16.mxu0 0
    %4542 = vmatpush1.bf16.msra.mxu0 0
    %4543 = vmatprep.subr.bf16.mxu0 0
    %4544 = vmatpush1.bf16.msra.mxu0 0
    %4545 = vmatprep.subr.bf16.mxu0 0
    %4546 = vmatpush1.bf16.msra.mxu0 0
    %4547 = vmatprep.subr.bf16.mxu0 0
    %4548 = vmatpush1.bf16.msra.mxu0 0
    %4549 = vmatprep.subr.bf16.mxu0 0
    %4550 = vmatpush1.bf16.msra.mxu0 0
    %4551 = vmatprep.subr.bf16.mxu0 0
    %4552 = vmatpush1.bf16.msra.mxu0 0
    %4553 = vmatprep.subr.bf16.mxu0 0
    %4554 = vmatpush1.bf16.msra.mxu0 0
    %4555 = vmatprep.subr.bf16.mxu0 0
    %4556 = vmatpush1.bf16.msra.mxu0 0
    %4557 = vmatprep.subr.bf16.mxu0 0
    %4558 = vmatpush1.bf16.msra.mxu0 0
    %4559 = vmatprep.subr.bf16.mxu0 0
    %4560 = vmatpush1.bf16.msra.mxu0 0
    %4561 = vmatprep.subr.bf16.mxu0 0
    %4562 = vmatpush1.bf16.msra.mxu0 0
    %4563 = vmatprep.subr.bf16.mxu0 0
    %4564 = vmatpush1.bf16.msra.mxu0 0
    %4565 = vmatprep.mubr.bf16.mxu0 0
    %4566 = vmatmul.mubr.bf16.gmra.mrb[0].mxu0 %v4531
    %v4567 = vpop.f32.mrb[0].mxu0
    %v4568 = vadd.f32 0.0, %v4567
    %v4569 = vpop.f32.mrb[0].mxu0
    %v4570 = vpop.f32.mrb[0].mxu0
    %v4571 = vpop.f32.mrb[0].mxu0
    %4572 = vdwg.mxu0
    %v4573 = vadd.f32 %v4465, %v4568
    %s4574 = scalar_lea.vmem [#allocation2], 41
    %v4575 = vld [vmem:[%s4574] sm:$0x1]
    %v4577 = vsel %vm145, %v4575, 0
    %4579 = vmatprep.subr.bf16.mxu0 0
    %4580 = vmatpush1.bf16.msra.mxu0 %v140
    %4581 = vmatprep.subr.bf16.mxu0 0
    %4582 = vmatpush1.bf16.msra.mxu0 %v141
    %4583 = vmatprep.subr.bf16.mxu0 0
    %4584 = vmatpush1.bf16.msra.mxu0 %v151
    %4585 = vmatprep.subr.bf16.mxu0 0
    %4586 = vmatpush1.bf16.msra.mxu0 0
    %4587 = vmatprep.subr.bf16.mxu0 0
    %4588 = vmatpush1.bf16.msra.mxu0 0
    %4589 = vmatprep.subr.bf16.mxu0 0
    %4590 = vmatpush1.bf16.msra.mxu0 0
    %4591 = vmatprep.subr.bf16.mxu0 0
    %4592 = vmatpush1.bf16.msra.mxu0 0
    %4593 = vmatprep.subr.bf16.mxu0 0
    %4594 = vmatpush1.bf16.msra.mxu0 0
    %4595 = vmatprep.subr.bf16.mxu0 0
    %4596 = vmatpush1.bf16.msra.mxu0 0
    %4597 = vmatprep.subr.bf16.mxu0 0
    %4598 = vmatpush1.bf16.msra.mxu0 0
    %4599 = vmatprep.subr.bf16.mxu0 0
    %4600 = vmatpush1.bf16.msra.mxu0 0
    %4601 = vmatprep.subr.bf16.mxu0 0
    %4602 = vmatpush1.bf16.msra.mxu0 0
    %4603 = vmatprep.subr.bf16.mxu0 0
    %4604 = vmatpush1.bf16.msra.mxu0 0
    %4605 = vmatprep.subr.bf16.mxu0 0
    %4606 = vmatpush1.bf16.msra.mxu0 0
    %4607 = vmatprep.subr.bf16.mxu0 0
    %4608 = vmatpush1.bf16.msra.mxu0 0
    %4609 = vmatprep.subr.bf16.mxu0 0
    %4610 = vmatpush1.bf16.msra.mxu0 0
    %4611 = vmatprep.mubr.bf16.mxu0 0
    %4612 = vmatmul.mubr.bf16.gmra.mrb[0].mxu0 %v4577
    %v4613 = vpop.f32.mrb[0].mxu0
    %v4614 = vadd.f32 %v128, %v4613
    %v4615 = vpop.f32.mrb[0].mxu0
    %v4616 = vpop.f32.mrb[0].mxu0
    %v4617 = vpop.f32.mrb[0].mxu0
    %4618 = vdwg.mxu0
    %v4619 = vmax.f32 %v4614, 0.0
    %v4620 = vpack.c.bf16 %v4619, %v4619
    %s4621 = scalar_lea.vmem [#allocation8], 656
    %v4622 = vld [vmem:[%s4621] sm:$0xf]
    %v4623 = vld [vmem:[%s4621 + $0x4] sm:$0xf]
    %v4624 = vld [vmem:[%s4621 + $0x8] sm:$0xf]
    %v4625 = vld [vmem:[%s4621 + $0xc] sm:$0xf]
    %v4630 = vunpack.c.l.b16 %v4622
    %v4631 = vunpack.c.l.b16 %v4623
    %v4632 = vunpack.c.l.b16 %v4624
    %v4633 = vunpack.c.l.b16 %v4625
    %v4634 = vpack.c.b16 %v4631, %v4630
    %v4635 = vpack.c.b16 %v4633, %v4632
    %v4639 = vsel %vm263, %v4620, 0
    %4641 = vmatprep.subr.bf16.mxu0 0
    %4642 = vmatpush1.bf16.msra.mxu0 %v4634
    %4643 = vmatprep.subr.bf16.mxu0 0
    %4644 = vmatpush1.bf16.msra.mxu0 %v4635
    %4645 = vmatprep.subr.bf16.mxu0 0
    %4646 = vmatpush1.bf16.msra.mxu0 0
    %4647 = vmatprep.subr.bf16.mxu0 0
    %4648 = vmatpush1.bf16.msra.mxu0 0
    %4649 = vmatprep.subr.bf16.mxu0 0
    %4650 = vmatpush1.bf16.msra.mxu0 0
    %4651 = vmatprep.subr.bf16.mxu0 0
    %4652 = vmatpush1.bf16.msra.mxu0 0
    %4653 = vmatprep.subr.bf16.mxu0 0
    %4654 = vmatpush1.bf16.msra.mxu0 0
    %4655 = vmatprep.subr.bf16.mxu0 0
    %4656 = vmatpush1.bf16.msra.mxu0 0
    %4657 = vmatprep.subr.bf16.mxu0 0
    %4658 = vmatpush1.bf16.msra.mxu0 0
    %4659 = vmatprep.subr.bf16.mxu0 0
    %4660 = vmatpush1.bf16.msra.mxu0 0
    %4661 = vmatprep.subr.bf16.mxu0 0
    %4662 = vmatpush1.bf16.msra.mxu0 0
    %4663 = vmatprep.subr.bf16.mxu0 0
    %4664 = vmatpush1.bf16.msra.mxu0 0
    %4665 = vmatprep.subr.bf16.mxu0 0
    %4666 = vmatpush1.bf16.msra.mxu0 0
    %4667 = vmatprep.subr.bf16.mxu0 0
    %4668 = vmatpush1.bf16.msra.mxu0 0
    %4669 = vmatprep.subr.bf16.mxu0 0
    %4670 = vmatpush1.bf16.msra.mxu0 0
    %4671 = vmatprep.subr.bf16.mxu0 0
    %4672 = vmatpush1.bf16.msra.mxu0 0
    %4673 = vmatprep.mubr.bf16.mxu0 0
    %4674 = vmatmul.mubr.bf16.gmra.mrb[0].mxu0 %v4639
    %v4675 = vpop.f32.mrb[0].mxu0
    %v4676 = vadd.f32 0.0, %v4675
    %v4677 = vpop.f32.mrb[0].mxu0
    %v4678 = vpop.f32.mrb[0].mxu0
    %v4679 = vpop.f32.mrb[0].mxu0
    %4680 = vdwg.mxu0
    %v4681 = vadd.f32 %v4573, %v4676
    %s4682 = scalar_lea.vmem [#allocation2], 42
    %v4683 = vld [vmem:[%s4682] sm:$0x1]
    %v4685 = vsel %vm145, %v4683, 0
    %4687 = vmatprep.subr.bf16.mxu0 0
    %4688 = vmatpush1.bf16.msra.mxu0 %v140
    %4689 = vmatprep.subr.bf16.mxu0 0
    %4690 = vmatpush1.bf16.msra.mxu0 %v141
    %4691 = vmatprep.subr.bf16.mxu0 0
    %4692 = vmatpush1.bf16.msra.mxu0 %v151
    %4693 = vmatprep.subr.bf16.mxu0 0
    %4694 = vmatpush1.bf16.msra.mxu0 0
    %4695 = vmatprep.subr.bf16.mxu0 0
    %4696 = vmatpush1.bf16.msra.mxu0 0
    %4697 = vmatprep.subr.bf16.mxu0 0
    %4698 = vmatpush1.bf16.msra.mxu0 0
    %4699 = vmatprep.subr.bf16.mxu0 0
    %4700 = vmatpush1.bf16.msra.mxu0 0
    %4701 = vmatprep.subr.bf16.mxu0 0
    %4702 = vmatpush1.bf16.msra.mxu0 0
    %4703 = vmatprep.subr.bf16.mxu0 0
    %4704 = vmatpush1.bf16.msra.mxu0 0
    %4705 = vmatprep.subr.bf16.mxu0 0
    %4706 = vmatpush1.bf16.msra.mxu0 0
    %4707 = vmatprep.subr.bf16.mxu0 0
    %4708 = vmatpush1.bf16.msra.mxu0 0
    %4709 = vmatprep.subr.bf16.mxu0 0
    %4710 = vmatpush1.bf16.msra.mxu0 0
    %4711 = vmatprep.subr.bf16.mxu0 0
    %4712 = vmatpush1.bf16.msra.mxu0 0
    %4713 = vmatprep.subr.bf16.mxu0 0
    %4714 = vmatpush1.bf16.msra.mxu0 0
    %4715 = vmatprep.subr.bf16.mxu0 0
    %4716 = vmatpush1.bf16.msra.mxu0 0
    %4717 = vmatprep.subr.bf16.mxu0 0
    %4718 = vmatpush1.bf16.msra.mxu0 0
    %4719 = vmatprep.mubr.bf16.mxu0 0
    %4720 = vmatmul.mubr.bf16.gmra.mrb[0].mxu0 %v4685
    %v4721 = vpop.f32.mrb[0].mxu0
    %v4722 = vadd.f32 %v128, %v4721
    %v4723 = vpop.f32.mrb[0].mxu0
    %v4724 = vpop.f32.mrb[0].mxu0
    %v4725 = vpop.f32.mrb[0].mxu0
    %4726 = vdwg.mxu0
    %v4727 = vmax.f32 %v4722, 0.0
    %v4728 = vpack.c.bf16 %v4727, %v4727
    %s4729 = scalar_lea.vmem [#allocation8], 672
    %v4730 = vld [vmem:[%s4729] sm:$0xf]
    %v4731 = vld [vmem:[%s4729 + $0x4] sm:$0xf]
    %v4732 = vld [vmem:[%s4729 + $0x8] sm:$0xf]
    %v4733 = vld [vmem:[%s4729 + $0xc] sm:$0xf]
    %v4738 = vunpack.c.l.b16 %v4730
    %v4739 = vunpack.c.l.b16 %v4731
    %v4740 = vunpack.c.l.b16 %v4732
    %v4741 = vunpack.c.l.b16 %v4733
    %v4742 = vpack.c.b16 %v4739, %v4738
    %v4743 = vpack.c.b16 %v4741, %v4740
    %v4747 = vsel %vm263, %v4728, 0
    %4749 = vmatprep.subr.bf16.mxu0 0
    %4750 = vmatpush1.bf16.msra.mxu0 %v4742
    %4751 = vmatprep.subr.bf16.mxu0 0
    %4752 = vmatpush1.bf16.msra.mxu0 %v4743
    %4753 = vmatprep.subr.bf16.mxu0 0
    %4754 = vmatpush1.bf16.msra.mxu0 0
    %4755 = vmatprep.subr.bf16.mxu0 0
    %4756 = vmatpush1.bf16.msra.mxu0 0
    %4757 = vmatprep.subr.bf16.mxu0 0
    %4758 = vmatpush1.bf16.msra.mxu0 0
    %4759 = vmatprep.subr.bf16.mxu0 0
    %4760 = vmatpush1.bf16.msra.mxu0 0
    %4761 = vmatprep.subr.bf16.mxu0 0
    %4762 = vmatpush1.bf16.msra.mxu0 0
    %4763 = vmatprep.subr.bf16.mxu0 0
    %4764 = vmatpush1.bf16.msra.mxu0 0
    %4765 = vmatprep.subr.bf16.mxu0 0
    %4766 = vmatpush1.bf16.msra.mxu0 0
    %4767 = vmatprep.subr.bf16.mxu0 0
    %4768 = vmatpush1.bf16.msra.mxu0 0
    %4769 = vmatprep.subr.bf16.mxu0 0
    %4770 = vmatpush1.bf16.msra.mxu0 0
    %4771 = vmatprep.subr.bf16.mxu0 0
    %4772 = vmatpush1.bf16.msra.mxu0 0
    %4773 = vmatprep.subr.bf16.mxu0 0
    %4774 = vmatpush1.bf16.msra.mxu0 0
    %4775 = vmatprep.subr.bf16.mxu0 0
    %4776 = vmatpush1.bf16.msra.mxu0 0
    %4777 = vmatprep.subr.bf16.mxu0 0
    %4778 = vmatpush1.bf16.msra.mxu0 0
    %4779 = vmatprep.subr.bf16.mxu0 0
    %4780 = vmatpush1.bf16.msra.mxu0 0
    %4781 = vmatprep.mubr.bf16.mxu0 0
    %4782 = vmatmul.mubr.bf16.gmra.mrb[0].mxu0 %v4747
    %v4783 = vpop.f32.mrb[0].mxu0
    %v4784 = vadd.f32 0.0, %v4783
    %v4785 = vpop.f32.mrb[0].mxu0
    %v4786 = vpop.f32.mrb[0].mxu0
    %v4787 = vpop.f32.mrb[0].mxu0
    %4788 = vdwg.mxu0
    %v4789 = vadd.f32 %v4681, %v4784
    %s4790 = scalar_lea.vmem [#allocation2], 43
    %v4791 = vld [vmem:[%s4790] sm:$0x1]
    %v4793 = vsel %vm145, %v4791, 0
    %4795 = vmatprep.subr.bf16.mxu0 0
    %4796 = vmatpush1.bf16.msra.mxu0 %v140
    %4797 = vmatprep.subr.bf16.mxu0 0
    %4798 = vmatpush1.bf16.msra.mxu0 %v141
    %4799 = vmatprep.subr.bf16.mxu0 0
    %4800 = vmatpush1.bf16.msra.mxu0 %v151
    %4801 = vmatprep.subr.bf16.mxu0 0
    %4802 = vmatpush1.bf16.msra.mxu0 0
    %4803 = vmatprep.subr.bf16.mxu0 0
    %4804 = vmatpush1.bf16.msra.mxu0 0
    %4805 = vmatprep.subr.bf16.mxu0 0
    %4806 = vmatpush1.bf16.msra.mxu0 0
    %4807 = vmatprep.subr.bf16.mxu0 0
    %4808 = vmatpush1.bf16.msra.mxu0 0
    %4809 = vmatprep.subr.bf16.mxu0 0
    %4810 = vmatpush1.bf16.msra.mxu0 0
    %4811 = vmatprep.subr.bf16.mxu0 0
    %4812 = vmatpush1.bf16.msra.mxu0 0
    %4813 = vmatprep.subr.bf16.mxu0 0
    %4814 = vmatpush1.bf16.msra.mxu0 0
    %4815 = vmatprep.subr.bf16.mxu0 0
    %4816 = vmatpush1.bf16.msra.mxu0 0
    %4817 = vmatprep.subr.bf16.mxu0 0
    %4818 = vmatpush1.bf16.msra.mxu0 0
    %4819 = vmatprep.subr.bf16.mxu0 0
    %4820 = vmatpush1.bf16.msra.mxu0 0
    %4821 = vmatprep.subr.bf16.mxu0 0
    %4822 = vmatpush1.bf16.msra.mxu0 0
    %4823 = vmatprep.subr.bf16.mxu0 0
    %4824 = vmatpush1.bf16.msra.mxu0 0
    %4825 = vmatprep.subr.bf16.mxu0 0
    %4826 = vmatpush1.bf16.msra.mxu0 0
    %4827 = vmatprep.mubr.bf16.mxu0 0
    %4828 = vmatmul.mubr.bf16.gmra.mrb[0].mxu0 %v4793
    %v4829 = vpop.f32.mrb[0].mxu0
    %v4830 = vadd.f32 %v128, %v4829
    %v4831 = vpop.f32.mrb[0].mxu0
    %v4832 = vpop.f32.mrb[0].mxu0
    %v4833 = vpop.f32.mrb[0].mxu0
    %4834 = vdwg.mxu0
    %v4835 = vmax.f32 %v4830, 0.0
    %v4836 = vpack.c.bf16 %v4835, %v4835
    %s4837 = scalar_lea.vmem [#allocation8], 688
    %v4838 = vld [vmem:[%s4837] sm:$0xf]
    %v4839 = vld [vmem:[%s4837 + $0x4] sm:$0xf]
    %v4840 = vld [vmem:[%s4837 + $0x8] sm:$0xf]
    %v4841 = vld [vmem:[%s4837 + $0xc] sm:$0xf]
    %v4846 = vunpack.c.l.b16 %v4838
    %v4847 = vunpack.c.l.b16 %v4839
    %v4848 = vunpack.c.l.b16 %v4840
    %v4849 = vunpack.c.l.b16 %v4841
    %v4850 = vpack.c.b16 %v4847, %v4846
    %v4851 = vpack.c.b16 %v4849, %v4848
    %v4855 = vsel %vm263, %v4836, 0
    %4857 = vmatprep.subr.bf16.mxu0 0
    %4858 = vmatpush1.bf16.msra.mxu0 %v4850
    %4859 = vmatprep.subr.bf16.mxu0 0
    %4860 = vmatpush1.bf16.msra.mxu0 %v4851
    %4861 = vmatprep.subr.bf16.mxu0 0
    %4862 = vmatpush1.bf16.msra.mxu0 0
    %4863 = vmatprep.subr.bf16.mxu0 0
    %4864 = vmatpush1.bf16.msra.mxu0 0
    %4865 = vmatprep.subr.bf16.mxu0 0
    %4866 = vmatpush1.bf16.msra.mxu0 0
    %4867 = vmatprep.subr.bf16.mxu0 0
    %4868 = vmatpush1.bf16.msra.mxu0 0
    %4869 = vmatprep.subr.bf16.mxu0 0
    %4870 = vmatpush1.bf16.msra.mxu0 0
    %4871 = vmatprep.subr.bf16.mxu0 0
    %4872 = vmatpush1.bf16.msra.mxu0 0
    %4873 = vmatprep.subr.bf16.mxu0 0
    %4874 = vmatpush1.bf16.msra.mxu0 0
    %4875 = vmatprep.subr.bf16.mxu0 0
    %4876 = vmatpush1.bf16.msra.mxu0 0
    %4877 = vmatprep.subr.bf16.mxu0 0
    %4878 = vmatpush1.bf16.msra.mxu0 0
    %4879 = vmatprep.subr.bf16.mxu0 0
    %4880 = vmatpush1.bf16.msra.mxu0 0
    %4881 = vmatprep.subr.bf16.mxu0 0
    %4882 = vmatpush1.bf16.msra.mxu0 0
    %4883 = vmatprep.subr.bf16.mxu0 0
    %4884 = vmatpush1.bf16.msra.mxu0 0
    %4885 = vmatprep.subr.bf16.mxu0 0
    %4886 = vmatpush1.bf16.msra.mxu0 0
    %4887 = vmatprep.subr.bf16.mxu0 0
    %4888 = vmatpush1.bf16.msra.mxu0 0
    %4889 = vmatprep.mubr.bf16.mxu0 0
    %4890 = vmatmul.mubr.bf16.gmra.mrb[0].mxu0 %v4855
    %v4891 = vpop.f32.mrb[0].mxu0
    %v4892 = vadd.f32 0.0, %v4891
    %v4893 = vpop.f32.mrb[0].mxu0
    %v4894 = vpop.f32.mrb[0].mxu0
    %v4895 = vpop.f32.mrb[0].mxu0
    %4896 = vdwg.mxu0
    %v4897 = vadd.f32 %v4789, %v4892
    %s4898 = scalar_lea.vmem [#allocation2], 44
    %v4899 = vld [vmem:[%s4898] sm:$0x1]
    %v4901 = vsel %vm145, %v4899, 0
    %4903 = vmatprep.subr.bf16.mxu0 0
    %4904 = vmatpush1.bf16.msra.mxu0 %v140
    %4905 = vmatprep.subr.bf16.mxu0 0
    %4906 = vmatpush1.bf16.msra.mxu0 %v141
    %4907 = vmatprep.subr.bf16.mxu0 0
    %4908 = vmatpush1.bf16.msra.mxu0 %v151
    %4909 = vmatprep.subr.bf16.mxu0 0
    %4910 = vmatpush1.bf16.msra.mxu0 0
    %4911 = vmatprep.subr.bf16.mxu0 0
    %4912 = vmatpush1.bf16.msra.mxu0 0
    %4913 = vmatprep.subr.bf16.mxu0 0
    %4914 = vmatpush1.bf16.msra.mxu0 0
    %4915 = vmatprep.subr.bf16.mxu0 0
    %4916 = vmatpush1.bf16.msra.mxu0 0
    %4917 = vmatprep.subr.bf16.mxu0 0
    %4918 = vmatpush1.bf16.msra.mxu0 0
    %4919 = vmatprep.subr.bf16.mxu0 0
    %4920 = vmatpush1.bf16.msra.mxu0 0
    %4921 = vmatprep.subr.bf16.mxu0 0
    %4922 = vmatpush1.bf16.msra.mxu0 0
    %4923 = vmatprep.subr.bf16.mxu0 0
    %4924 = vmatpush1.bf16.msra.mxu0 0
    %4925 = vmatprep.subr.bf16.mxu0 0
    %4926 = vmatpush1.bf16.msra.mxu0 0
    %4927 = vmatprep.subr.bf16.mxu0 0
    %4928 = vmatpush1.bf16.msra.mxu0 0
    %4929 = vmatprep.subr.bf16.mxu0 0
    %4930 = vmatpush1.bf16.msra.mxu0 0
    %4931 = vmatprep.subr.bf16.mxu0 0
    %4932 = vmatpush1.bf16.msra.mxu0 0
    %4933 = vmatprep.subr.bf16.mxu0 0
    %4934 = vmatpush1.bf16.msra.mxu0 0
    %4935 = vmatprep.mubr.bf16.mxu0 0
    %4936 = vmatmul.mubr.bf16.gmra.mrb[0].mxu0 %v4901
    %v4937 = vpop.f32.mrb[0].mxu0
    %v4938 = vadd.f32 %v128, %v4937
    %v4939 = vpop.f32.mrb[0].mxu0
    %v4940 = vpop.f32.mrb[0].mxu0
    %v4941 = vpop.f32.mrb[0].mxu0
    %4942 = vdwg.mxu0
    %v4943 = vmax.f32 %v4938, 0.0
    %v4944 = vpack.c.bf16 %v4943, %v4943
    %s4945 = scalar_lea.vmem [#allocation8], 704
    %v4946 = vld [vmem:[%s4945] sm:$0xf]
    %v4947 = vld [vmem:[%s4945 + $0x4] sm:$0xf]
    %v4948 = vld [vmem:[%s4945 + $0x8] sm:$0xf]
    %v4949 = vld [vmem:[%s4945 + $0xc] sm:$0xf]
    %v4954 = vunpack.c.l.b16 %v4946
    %v4955 = vunpack.c.l.b16 %v4947
    %v4956 = vunpack.c.l.b16 %v4948
    %v4957 = vunpack.c.l.b16 %v4949
    %v4958 = vpack.c.b16 %v4955, %v4954
    %v4959 = vpack.c.b16 %v4957, %v4956
    %v4963 = vsel %vm263, %v4944, 0
    %4965 = vmatprep.subr.bf16.mxu0 0
    %4966 = vmatpush1.bf16.msra.mxu0 %v4958
    %4967 = vmatprep.subr.bf16.mxu0 0
    %4968 = vmatpush1.bf16.msra.mxu0 %v4959
    %4969 = vmatprep.subr.bf16.mxu0 0
    %4970 = vmatpush1.bf16.msra.mxu0 0
    %4971 = vmatprep.subr.bf16.mxu0 0
    %4972 = vmatpush1.bf16.msra.mxu0 0
    %4973 = vmatprep.subr.bf16.mxu0 0
    %4974 = vmatpush1.bf16.msra.mxu0 0
    %4975 = vmatprep.subr.bf16.mxu0 0
    %4976 = vmatpush1.bf16.msra.mxu0 0
    %4977 = vmatprep.subr.bf16.mxu0 0
    %4978 = vmatpush1.bf16.msra.mxu0 0
    %4979 = vmatprep.subr.bf16.mxu0 0
    %4980 = vmatpush1.bf16.msra.mxu0 0
    %4981 = vmatprep.subr.bf16.mxu0 0
    %4982 = vmatpush1.bf16.msra.mxu0 0
    %4983 = vmatprep.subr.bf16.mxu0 0
    %4984 = vmatpush1.bf16.msra.mxu0 0
    %4985 = vmatprep.subr.bf16.mxu0 0
    %4986 = vmatpush1.bf16.msra.mxu0 0
    %4987 = vmatprep.subr.bf16.mxu0 0
    %4988 = vmatpush1.bf16.msra.mxu0 0
    %4989 = vmatprep.subr.bf16.mxu0 0
    %4990 = vmatpush1.bf16.msra.mxu0 0
    %4991 = vmatprep.subr.bf16.mxu0 0
    %4992 = vmatpush1.bf16.msra.mxu0 0
    %4993 = vmatprep.subr.bf16.mxu0 0
    %4994 = vmatpush1.bf16.msra.mxu0 0
    %4995 = vmatprep.subr.bf16.mxu0 0
    %4996 = vmatpush1.bf16.msra.mxu0 0
    %4997 = vmatprep.mubr.bf16.mxu0 0
    %4998 = vmatmul.mubr.bf16.gmra.mrb[0].mxu0 %v4963
    %v4999 = vpop.f32.mrb[0].mxu0
    %v5000 = vadd.f32 0.0, %v4999
    %v5001 = vpop.f32.mrb[0].mxu0
    %v5002 = vpop.f32.mrb[0].mxu0
    %v5003 = vpop.f32.mrb[0].mxu0
    %5004 = vdwg.mxu0
    %v5005 = vadd.f32 %v4897, %v5000
    %s5006 = scalar_lea.vmem [#allocation2], 45
    %v5007 = vld [vmem:[%s5006] sm:$0x1]
    %v5009 = vsel %vm145, %v5007, 0
    %5011 = vmatprep.subr.bf16.mxu0 0
    %5012 = vmatpush1.bf16.msra.mxu0 %v140
    %5013 = vmatprep.subr.bf16.mxu0 0
    %5014 = vmatpush1.bf16.msra.mxu0 %v141
    %5015 = vmatprep.subr.bf16.mxu0 0
    %5016 = vmatpush1.bf16.msra.mxu0 %v151
    %5017 = vmatprep.subr.bf16.mxu0 0
    %5018 = vmatpush1.bf16.msra.mxu0 0
    %5019 = vmatprep.subr.bf16.mxu0 0
    %5020 = vmatpush1.bf16.msra.mxu0 0
    %5021 = vmatprep.subr.bf16.mxu0 0
    %5022 = vmatpush1.bf16.msra.mxu0 0
    %5023 = vmatprep.subr.bf16.mxu0 0
    %5024 = vmatpush1.bf16.msra.mxu0 0
    %5025 = vmatprep.subr.bf16.mxu0 0
    %5026 = vmatpush1.bf16.msra.mxu0 0
    %5027 = vmatprep.subr.bf16.mxu0 0
    %5028 = vmatpush1.bf16.msra.mxu0 0
    %5029 = vmatprep.subr.bf16.mxu0 0
    %5030 = vmatpush1.bf16.msra.mxu0 0
    %5031 = vmatprep.subr.bf16.mxu0 0
    %5032 = vmatpush1.bf16.msra.mxu0 0
    %5033 = vmatprep.subr.bf16.mxu0 0
    %5034 = vmatpush1.bf16.msra.mxu0 0
    %5035 = vmatprep.subr.bf16.mxu0 0
    %5036 = vmatpush1.bf16.msra.mxu0 0
    %5037 = vmatprep.subr.bf16.mxu0 0
    %5038 = vmatpush1.bf16.msra.mxu0 0
    %5039 = vmatprep.subr.bf16.mxu0 0
    %5040 = vmatpush1.bf16.msra.mxu0 0
    %5041 = vmatprep.subr.bf16.mxu0 0
    %5042 = vmatpush1.bf16.msra.mxu0 0
    %5043 = vmatprep.mubr.bf16.mxu0 0
    %5044 = vmatmul.mubr.bf16.gmra.mrb[0].mxu0 %v5009
    %v5045 = vpop.f32.mrb[0].mxu0
    %v5046 = vadd.f32 %v128, %v5045
    %v5047 = vpop.f32.mrb[0].mxu0
    %v5048 = vpop.f32.mrb[0].mxu0
    %v5049 = vpop.f32.mrb[0].mxu0
    %5050 = vdwg.mxu0
    %v5051 = vmax.f32 %v5046, 0.0
    %v5052 = vpack.c.bf16 %v5051, %v5051
    %s5053 = scalar_lea.vmem [#allocation8], 720
    %v5054 = vld [vmem:[%s5053] sm:$0xf]
    %v5055 = vld [vmem:[%s5053 + $0x4] sm:$0xf]
    %v5056 = vld [vmem:[%s5053 + $0x8] sm:$0xf]
    %v5057 = vld [vmem:[%s5053 + $0xc] sm:$0xf]
    %v5062 = vunpack.c.l.b16 %v5054
    %v5063 = vunpack.c.l.b16 %v5055
    %v5064 = vunpack.c.l.b16 %v5056
    %v5065 = vunpack.c.l.b16 %v5057
    %v5066 = vpack.c.b16 %v5063, %v5062
    %v5067 = vpack.c.b16 %v5065, %v5064
    %v5071 = vsel %vm263, %v5052, 0
    %5073 = vmatprep.subr.bf16.mxu0 0
    %5074 = vmatpush1.bf16.msra.mxu0 %v5066
    %5075 = vmatprep.subr.bf16.mxu0 0
    %5076 = vmatpush1.bf16.msra.mxu0 %v5067
    %5077 = vmatprep.subr.bf16.mxu0 0
    %5078 = vmatpush1.bf16.msra.mxu0 0
    %5079 = vmatprep.subr.bf16.mxu0 0
    %5080 = vmatpush1.bf16.msra.mxu0 0
    %5081 = vmatprep.subr.bf16.mxu0 0
    %5082 = vmatpush1.bf16.msra.mxu0 0
    %5083 = vmatprep.subr.bf16.mxu0 0
    %5084 = vmatpush1.bf16.msra.mxu0 0
    %5085 = vmatprep.subr.bf16.mxu0 0
    %5086 = vmatpush1.bf16.msra.mxu0 0
    %5087 = vmatprep.subr.bf16.mxu0 0
    %5088 = vmatpush1.bf16.msra.mxu0 0
    %5089 = vmatprep.subr.bf16.mxu0 0
    %5090 = vmatpush1.bf16.msra.mxu0 0
    %5091 = vmatprep.subr.bf16.mxu0 0
    %5092 = vmatpush1.bf16.msra.mxu0 0
    %5093 = vmatprep.subr.bf16.mxu0 0
    %5094 = vmatpush1.bf16.msra.mxu0 0
    %5095 = vmatprep.subr.bf16.mxu0 0
    %5096 = vmatpush1.bf16.msra.mxu0 0
    %5097 = vmatprep.subr.bf16.mxu0 0
    %5098 = vmatpush1.bf16.msra.mxu0 0
    %5099 = vmatprep.subr.bf16.mxu0 0
    %5100 = vmatpush1.bf16.msra.mxu0 0
    %5101 = vmatprep.subr.bf16.mxu0 0
    %5102 = vmatpush1.bf16.msra.mxu0 0
    %5103 = vmatprep.subr.bf16.mxu0 0
    %5104 = vmatpush1.bf16.msra.mxu0 0
    %5105 = vmatprep.mubr.bf16.mxu0 0
    %5106 = vmatmul.mubr.bf16.gmra.mrb[0].mxu0 %v5071
    %v5107 = vpop.f32.mrb[0].mxu0
    %v5108 = vadd.f32 0.0, %v5107
    %v5109 = vpop.f32.mrb[0].mxu0
    %v5110 = vpop.f32.mrb[0].mxu0
    %v5111 = vpop.f32.mrb[0].mxu0
    %5112 = vdwg.mxu0
    %v5113 = vadd.f32 %v5005, %v5108
    %s5114 = scalar_lea.vmem [#allocation2], 46
    %v5115 = vld [vmem:[%s5114] sm:$0x1]
    %v5117 = vsel %vm145, %v5115, 0
    %5119 = vmatprep.subr.bf16.mxu0 0
    %5120 = vmatpush1.bf16.msra.mxu0 %v140
    %5121 = vmatprep.subr.bf16.mxu0 0
    %5122 = vmatpush1.bf16.msra.mxu0 %v141
    %5123 = vmatprep.subr.bf16.mxu0 0
    %5124 = vmatpush1.bf16.msra.mxu0 %v151
    %5125 = vmatprep.subr.bf16.mxu0 0
    %5126 = vmatpush1.bf16.msra.mxu0 0
    %5127 = vmatprep.subr.bf16.mxu0 0
    %5128 = vmatpush1.bf16.msra.mxu0 0
    %5129 = vmatprep.subr.bf16.mxu0 0
    %5130 = vmatpush1.bf16.msra.mxu0 0
    %5131 = vmatprep.subr.bf16.mxu0 0
    %5132 = vmatpush1.bf16.msra.mxu0 0
    %5133 = vmatprep.subr.bf16.mxu0 0
    %5134 = vmatpush1.bf16.msra.mxu0 0
    %5135 = vmatprep.subr.bf16.mxu0 0
    %5136 = vmatpush1.bf16.msra.mxu0 0
    %5137 = vmatprep.subr.bf16.mxu0 0
    %5138 = vmatpush1.bf16.msra.mxu0 0
    %5139 = vmatprep.subr.bf16.mxu0 0
    %5140 = vmatpush1.bf16.msra.mxu0 0
    %5141 = vmatprep.subr.bf16.mxu0 0
    %5142 = vmatpush1.bf16.msra.mxu0 0
    %5143 = vmatprep.subr.bf16.mxu0 0
    %5144 = vmatpush1.bf16.msra.mxu0 0
    %5145 = vmatprep.subr.bf16.mxu0 0
    %5146 = vmatpush1.bf16.msra.mxu0 0
    %5147 = vmatprep.subr.bf16.mxu0 0
    %5148 = vmatpush1.bf16.msra.mxu0 0
    %5149 = vmatprep.subr.bf16.mxu0 0
    %5150 = vmatpush1.bf16.msra.mxu0 0
    %5151 = vmatprep.mubr.bf16.mxu0 0
    %5152 = vmatmul.mubr.bf16.gmra.mrb[0].mxu0 %v5117
    %v5153 = vpop.f32.mrb[0].mxu0
    %v5154 = vadd.f32 %v128, %v5153
    %v5155 = vpop.f32.mrb[0].mxu0
    %v5156 = vpop.f32.mrb[0].mxu0
    %v5157 = vpop.f32.mrb[0].mxu0
    %5158 = vdwg.mxu0
    %v5159 = vmax.f32 %v5154, 0.0
    %v5160 = vpack.c.bf16 %v5159, %v5159
    %s5161 = scalar_lea.vmem [#allocation8], 736
    %v5162 = vld [vmem:[%s5161] sm:$0xf]
    %v5163 = vld [vmem:[%s5161 + $0x4] sm:$0xf]
    %v5164 = vld [vmem:[%s5161 + $0x8] sm:$0xf]
    %v5165 = vld [vmem:[%s5161 + $0xc] sm:$0xf]
    %v5170 = vunpack.c.l.b16 %v5162
    %v5171 = vunpack.c.l.b16 %v5163
    %v5172 = vunpack.c.l.b16 %v5164
    %v5173 = vunpack.c.l.b16 %v5165
    %v5174 = vpack.c.b16 %v5171, %v5170
    %v5175 = vpack.c.b16 %v5173, %v5172
    %v5179 = vsel %vm263, %v5160, 0
    %5181 = vmatprep.subr.bf16.mxu0 0
    %5182 = vmatpush1.bf16.msra.mxu0 %v5174
    %5183 = vmatprep.subr.bf16.mxu0 0
    %5184 = vmatpush1.bf16.msra.mxu0 %v5175
    %5185 = vmatprep.subr.bf16.mxu0 0
    %5186 = vmatpush1.bf16.msra.mxu0 0
    %5187 = vmatprep.subr.bf16.mxu0 0
    %5188 = vmatpush1.bf16.msra.mxu0 0
    %5189 = vmatprep.subr.bf16.mxu0 0
    %5190 = vmatpush1.bf16.msra.mxu0 0
    %5191 = vmatprep.subr.bf16.mxu0 0
    %5192 = vmatpush1.bf16.msra.mxu0 0
    %5193 = vmatprep.subr.bf16.mxu0 0
    %5194 = vmatpush1.bf16.msra.mxu0 0
    %5195 = vmatprep.subr.bf16.mxu0 0
    %5196 = vmatpush1.bf16.msra.mxu0 0
    %5197 = vmatprep.subr.bf16.mxu0 0
    %5198 = vmatpush1.bf16.msra.mxu0 0
    %5199 = vmatprep.subr.bf16.mxu0 0
    %5200 = vmatpush1.bf16.msra.mxu0 0
    %5201 = vmatprep.subr.bf16.mxu0 0
    %5202 = vmatpush1.bf16.msra.mxu0 0
    %5203 = vmatprep.subr.bf16.mxu0 0
    %5204 = vmatpush1.bf16.msra.mxu0 0
    %5205 = vmatprep.subr.bf16.mxu0 0
    %5206 = vmatpush1.bf16.msra.mxu0 0
    %5207 = vmatprep.subr.bf16.mxu0 0
    %5208 = vmatpush1.bf16.msra.mxu0 0
    %5209 = vmatprep.subr.bf16.mxu0 0
    %5210 = vmatpush1.bf16.msra.mxu0 0
    %5211 = vmatprep.subr.bf16.mxu0 0
    %5212 = vmatpush1.bf16.msra.mxu0 0
    %5213 = vmatprep.mubr.bf16.mxu0 0
    %5214 = vmatmul.mubr.bf16.gmra.mrb[0].mxu0 %v5179
    %v5215 = vpop.f32.mrb[0].mxu0
    %v5216 = vadd.f32 0.0, %v5215
    %v5217 = vpop.f32.mrb[0].mxu0
    %v5218 = vpop.f32.mrb[0].mxu0
    %v5219 = vpop.f32.mrb[0].mxu0
    %5220 = vdwg.mxu0
    %v5221 = vadd.f32 %v5113, %v5216
    %s5222 = scalar_lea.vmem [#allocation2], 47
    %v5223 = vld [vmem:[%s5222] sm:$0x1]
    %v5225 = vsel %vm145, %v5223, 0
    %5227 = vmatprep.subr.bf16.mxu0 0
    %5228 = vmatpush1.bf16.msra.mxu0 %v140
    %5229 = vmatprep.subr.bf16.mxu0 0
    %5230 = vmatpush1.bf16.msra.mxu0 %v141
    %5231 = vmatprep.subr.bf16.mxu0 0
    %5232 = vmatpush1.bf16.msra.mxu0 %v151
    %5233 = vmatprep.subr.bf16.mxu0 0
    %5234 = vmatpush1.bf16.msra.mxu0 0
    %5235 = vmatprep.subr.bf16.mxu0 0
    %5236 = vmatpush1.bf16.msra.mxu0 0
    %5237 = vmatprep.subr.bf16.mxu0 0
    %5238 = vmatpush1.bf16.msra.mxu0 0
    %5239 = vmatprep.subr.bf16.mxu0 0
    %5240 = vmatpush1.bf16.msra.mxu0 0
    %5241 = vmatprep.subr.bf16.mxu0 0
    %5242 = vmatpush1.bf16.msra.mxu0 0
    %5243 = vmatprep.subr.bf16.mxu0 0
    %5244 = vmatpush1.bf16.msra.mxu0 0
    %5245 = vmatprep.subr.bf16.mxu0 0
    %5246 = vmatpush1.bf16.msra.mxu0 0
    %5247 = vmatprep.subr.bf16.mxu0 0
    %5248 = vmatpush1.bf16.msra.mxu0 0
    %5249 = vmatprep.subr.bf16.mxu0 0
    %5250 = vmatpush1.bf16.msra.mxu0 0
    %5251 = vmatprep.subr.bf16.mxu0 0
    %5252 = vmatpush1.bf16.msra.mxu0 0
    %5253 = vmatprep.subr.bf16.mxu0 0
    %5254 = vmatpush1.bf16.msra.mxu0 0
    %5255 = vmatprep.subr.bf16.mxu0 0
    %5256 = vmatpush1.bf16.msra.mxu0 0
    %5257 = vmatprep.subr.bf16.mxu0 0
    %5258 = vmatpush1.bf16.msra.mxu0 0
    %5259 = vmatprep.mubr.bf16.mxu0 0
    %5260 = vmatmul.mubr.bf16.gmra.mrb[0].mxu0 %v5225
    %v5261 = vpop.f32.mrb[0].mxu0
    %v5262 = vadd.f32 %v128, %v5261
    %v5263 = vpop.f32.mrb[0].mxu0
    %v5264 = vpop.f32.mrb[0].mxu0
    %v5265 = vpop.f32.mrb[0].mxu0
    %5266 = vdwg.mxu0
    %v5267 = vmax.f32 %v5262, 0.0
    %v5268 = vpack.c.bf16 %v5267, %v5267
    %s5269 = scalar_lea.vmem [#allocation8], 752
    %v5270 = vld [vmem:[%s5269] sm:$0xf]
    %v5271 = vld [vmem:[%s5269 + $0x4] sm:$0xf]
    %v5272 = vld [vmem:[%s5269 + $0x8] sm:$0xf]
    %v5273 = vld [vmem:[%s5269 + $0xc] sm:$0xf]
    %v5278 = vunpack.c.l.b16 %v5270
    %v5279 = vunpack.c.l.b16 %v5271
    %v5280 = vunpack.c.l.b16 %v5272
    %v5281 = vunpack.c.l.b16 %v5273
    %v5282 = vpack.c.b16 %v5279, %v5278
    %v5283 = vpack.c.b16 %v5281, %v5280
    %v5287 = vsel %vm263, %v5268, 0
    %5289 = vmatprep.subr.bf16.mxu0 0
    %5290 = vmatpush1.bf16.msra.mxu0 %v5282
    %5291 = vmatprep.subr.bf16.mxu0 0
    %5292 = vmatpush1.bf16.msra.mxu0 %v5283
    %5293 = vmatprep.subr.bf16.mxu0 0
    %5294 = vmatpush1.bf16.msra.mxu0 0
    %5295 = vmatprep.subr.bf16.mxu0 0
    %5296 = vmatpush1.bf16.msra.mxu0 0
    %5297 = vmatprep.subr.bf16.mxu0 0
    %5298 = vmatpush1.bf16.msra.mxu0 0
    %5299 = vmatprep.subr.bf16.mxu0 0
    %5300 = vmatpush1.bf16.msra.mxu0 0
    %5301 = vmatprep.subr.bf16.mxu0 0
    %5302 = vmatpush1.bf16.msra.mxu0 0
    %5303 = vmatprep.subr.bf16.mxu0 0
    %5304 = vmatpush1.bf16.msra.mxu0 0
    %5305 = vmatprep.subr.bf16.mxu0 0
    %5306 = vmatpush1.bf16.msra.mxu0 0
    %5307 = vmatprep.subr.bf16.mxu0 0
    %5308 = vmatpush1.bf16.msra.mxu0 0
    %5309 = vmatprep.subr.bf16.mxu0 0
    %5310 = vmatpush1.bf16.msra.mxu0 0
    %5311 = vmatprep.subr.bf16.mxu0 0
    %5312 = vmatpush1.bf16.msra.mxu0 0
    %5313 = vmatprep.subr.bf16.mxu0 0
    %5314 = vmatpush1.bf16.msra.mxu0 0
    %5315 = vmatprep.subr.bf16.mxu0 0
    %5316 = vmatpush1.bf16.msra.mxu0 0
    %5317 = vmatprep.subr.bf16.mxu0 0
    %5318 = vmatpush1.bf16.msra.mxu0 0
    %5319 = vmatprep.subr.bf16.mxu0 0
    %5320 = vmatpush1.bf16.msra.mxu0 0
    %5321 = vmatprep.mubr.bf16.mxu0 0
    %5322 = vmatmul.mubr.bf16.gmra.mrb[0].mxu0 %v5287
    %v5323 = vpop.f32.mrb[0].mxu0
    %v5324 = vadd.f32 0.0, %v5323
    %v5325 = vpop.f32.mrb[0].mxu0
    %v5326 = vpop.f32.mrb[0].mxu0
    %v5327 = vpop.f32.mrb[0].mxu0
    %5328 = vdwg.mxu0
    %v5329 = vadd.f32 %v5221, %v5324
    %s5330 = scalar_lea.vmem [#allocation2], 48
    %v5331 = vld [vmem:[%s5330] sm:$0x1]
    %v5333 = vsel %vm145, %v5331, 0
    %5335 = vmatprep.subr.bf16.mxu0 0
    %5336 = vmatpush1.bf16.msra.mxu0 %v140
    %5337 = vmatprep.subr.bf16.mxu0 0
    %5338 = vmatpush1.bf16.msra.mxu0 %v141
    %5339 = vmatprep.subr.bf16.mxu0 0
    %5340 = vmatpush1.bf16.msra.mxu0 %v151
    %5341 = vmatprep.subr.bf16.mxu0 0
    %5342 = vmatpush1.bf16.msra.mxu0 0
    %5343 = vmatprep.subr.bf16.mxu0 0
    %5344 = vmatpush1.bf16.msra.mxu0 0
    %5345 = vmatprep.subr.bf16.mxu0 0
    %5346 = vmatpush1.bf16.msra.mxu0 0
    %5347 = vmatprep.subr.bf16.mxu0 0
    %5348 = vmatpush1.bf16.msra.mxu0 0
    %5349 = vmatprep.subr.bf16.mxu0 0
    %5350 = vmatpush1.bf16.msra.mxu0 0
    %5351 = vmatprep.subr.bf16.mxu0 0
    %5352 = vmatpush1.bf16.msra.mxu0 0
    %5353 = vmatprep.subr.bf16.mxu0 0
    %5354 = vmatpush1.bf16.msra.mxu0 0
    %5355 = vmatprep.subr.bf16.mxu0 0
    %5356 = vmatpush1.bf16.msra.mxu0 0
    %5357 = vmatprep.subr.bf16.mxu0 0
    %5358 = vmatpush1.bf16.msra.mxu0 0
    %5359 = vmatprep.subr.bf16.mxu0 0
    %5360 = vmatpush1.bf16.msra.mxu0 0
    %5361 = vmatprep.subr.bf16.mxu0 0
    %5362 = vmatpush1.bf16.msra.mxu0 0
    %5363 = vmatprep.subr.bf16.mxu0 0
    %5364 = vmatpush1.bf16.msra.mxu0 0
    %5365 = vmatprep.subr.bf16.mxu0 0
    %5366 = vmatpush1.bf16.msra.mxu0 0
    %5367 = vmatprep.mubr.bf16.mxu0 0
    %5368 = vmatmul.mubr.bf16.gmra.mrb[0].mxu0 %v5333
    %v5369 = vpop.f32.mrb[0].mxu0
    %v5370 = vadd.f32 %v128, %v5369
    %v5371 = vpop.f32.mrb[0].mxu0
    %v5372 = vpop.f32.mrb[0].mxu0
    %v5373 = vpop.f32.mrb[0].mxu0
    %5374 = vdwg.mxu0
    %v5375 = vmax.f32 %v5370, 0.0
    %v5376 = vpack.c.bf16 %v5375, %v5375
    %s5377 = scalar_lea.vmem [#allocation8], 768
    %v5378 = vld [vmem:[%s5377] sm:$0xf]
    %v5379 = vld [vmem:[%s5377 + $0x4] sm:$0xf]
    %v5380 = vld [vmem:[%s5377 + $0x8] sm:$0xf]
    %v5381 = vld [vmem:[%s5377 + $0xc] sm:$0xf]
    %v5386 = vunpack.c.l.b16 %v5378
    %v5387 = vunpack.c.l.b16 %v5379
    %v5388 = vunpack.c.l.b16 %v5380
    %v5389 = vunpack.c.l.b16 %v5381
    %v5390 = vpack.c.b16 %v5387, %v5386
    %v5391 = vpack.c.b16 %v5389, %v5388
    %v5395 = vsel %vm263, %v5376, 0
    %5397 = vmatprep.subr.bf16.mxu0 0
    %5398 = vmatpush1.bf16.msra.mxu0 %v5390
    %5399 = vmatprep.subr.bf16.mxu0 0
    %5400 = vmatpush1.bf16.msra.mxu0 %v5391
    %5401 = vmatprep.subr.bf16.mxu0 0
    %5402 = vmatpush1.bf16.msra.mxu0 0
    %5403 = vmatprep.subr.bf16.mxu0 0
    %5404 = vmatpush1.bf16.msra.mxu0 0
    %5405 = vmatprep.subr.bf16.mxu0 0
    %5406 = vmatpush1.bf16.msra.mxu0 0
    %5407 = vmatprep.subr.bf16.mxu0 0
    %5408 = vmatpush1.bf16.msra.mxu0 0
    %5409 = vmatprep.subr.bf16.mxu0 0
    %5410 = vmatpush1.bf16.msra.mxu0 0
    %5411 = vmatprep.subr.bf16.mxu0 0
    %5412 = vmatpush1.bf16.msra.mxu0 0
    %5413 = vmatprep.subr.bf16.mxu0 0
    %5414 = vmatpush1.bf16.msra.mxu0 0
    %5415 = vmatprep.subr.bf16.mxu0 0
    %5416 = vmatpush1.bf16.msra.mxu0 0
    %5417 = vmatprep.subr.bf16.mxu0 0
    %5418 = vmatpush1.bf16.msra.mxu0 0
    %5419 = vmatprep.subr.bf16.mxu0 0
    %5420 = vmatpush1.bf16.msra.mxu0 0
    %5421 = vmatprep.subr.bf16.mxu0 0
    %5422 = vmatpush1.bf16.msra.mxu0 0
    %5423 = vmatprep.subr.bf16.mxu0 0
    %5424 = vmatpush1.bf16.msra.mxu0 0
    %5425 = vmatprep.subr.bf16.mxu0 0
    %5426 = vmatpush1.bf16.msra.mxu0 0
    %5427 = vmatprep.subr.bf16.mxu0 0
    %5428 = vmatpush1.bf16.msra.mxu0 0
    %5429 = vmatprep.mubr.bf16.mxu0 0
    %5430 = vmatmul.mubr.bf16.gmra.mrb[0].mxu0 %v5395
    %v5431 = vpop.f32.mrb[0].mxu0
    %v5432 = vadd.f32 0.0, %v5431
    %v5433 = vpop.f32.mrb[0].mxu0
    %v5434 = vpop.f32.mrb[0].mxu0
    %v5435 = vpop.f32.mrb[0].mxu0
    %5436 = vdwg.mxu0
    %v5437 = vadd.f32 %v5329, %v5432
    %s5438 = scalar_lea.vmem [#allocation2], 49
    %v5439 = vld [vmem:[%s5438] sm:$0x1]
    %v5441 = vsel %vm145, %v5439, 0
    %5443 = vmatprep.subr.bf16.mxu0 0
    %5444 = vmatpush1.bf16.msra.mxu0 %v140
    %5445 = vmatprep.subr.bf16.mxu0 0
    %5446 = vmatpush1.bf16.msra.mxu0 %v141
    %5447 = vmatprep.subr.bf16.mxu0 0
    %5448 = vmatpush1.bf16.msra.mxu0 %v151
    %5449 = vmatprep.subr.bf16.mxu0 0
    %5450 = vmatpush1.bf16.msra.mxu0 0
    %5451 = vmatprep.subr.bf16.mxu0 0
    %5452 = vmatpush1.bf16.msra.mxu0 0
    %5453 = vmatprep.subr.bf16.mxu0 0
    %5454 = vmatpush1.bf16.msra.mxu0 0
    %5455 = vmatprep.subr.bf16.mxu0 0
    %5456 = vmatpush1.bf16.msra.mxu0 0
    %5457 = vmatprep.subr.bf16.mxu0 0
    %5458 = vmatpush1.bf16.msra.mxu0 0
    %5459 = vmatprep.subr.bf16.mxu0 0
    %5460 = vmatpush1.bf16.msra.mxu0 0
    %5461 = vmatprep.subr.bf16.mxu0 0
    %5462 = vmatpush1.bf16.msra.mxu0 0
    %5463 = vmatprep.subr.bf16.mxu0 0
    %5464 = vmatpush1.bf16.msra.mxu0 0
    %5465 = vmatprep.subr.bf16.mxu0 0
    %5466 = vmatpush1.bf16.msra.mxu0 0
    %5467 = vmatprep.subr.bf16.mxu0 0
    %5468 = vmatpush1.bf16.msra.mxu0 0
    %5469 = vmatprep.subr.bf16.mxu0 0
    %5470 = vmatpush1.bf16.msra.mxu0 0
    %5471 = vmatprep.subr.bf16.mxu0 0
    %5472 = vmatpush1.bf16.msra.mxu0 0
    %5473 = vmatprep.subr.bf16.mxu0 0
    %5474 = vmatpush1.bf16.msra.mxu0 0
    %5475 = vmatprep.mubr.bf16.mxu0 0
    %5476 = vmatmul.mubr.bf16.gmra.mrb[0].mxu0 %v5441
    %v5477 = vpop.f32.mrb[0].mxu0
    %v5478 = vadd.f32 %v128, %v5477
    %v5479 = vpop.f32.mrb[0].mxu0
    %v5480 = vpop.f32.mrb[0].mxu0
    %v5481 = vpop.f32.mrb[0].mxu0
    %5482 = vdwg.mxu0
    %v5483 = vmax.f32 %v5478, 0.0
    %v5484 = vpack.c.bf16 %v5483, %v5483
    %s5485 = scalar_lea.vmem [#allocation8], 784
    %v5486 = vld [vmem:[%s5485] sm:$0xf]
    %v5487 = vld [vmem:[%s5485 + $0x4] sm:$0xf]
    %v5488 = vld [vmem:[%s5485 + $0x8] sm:$0xf]
    %v5489 = vld [vmem:[%s5485 + $0xc] sm:$0xf]
    %v5494 = vunpack.c.l.b16 %v5486
    %v5495 = vunpack.c.l.b16 %v5487
    %v5496 = vunpack.c.l.b16 %v5488
    %v5497 = vunpack.c.l.b16 %v5489
    %v5498 = vpack.c.b16 %v5495, %v5494
    %v5499 = vpack.c.b16 %v5497, %v5496
    %v5503 = vsel %vm263, %v5484, 0
    %5505 = vmatprep.subr.bf16.mxu0 0
    %5506 = vmatpush1.bf16.msra.mxu0 %v5498
    %5507 = vmatprep.subr.bf16.mxu0 0
    %5508 = vmatpush1.bf16.msra.mxu0 %v5499
    %5509 = vmatprep.subr.bf16.mxu0 0
    %5510 = vmatpush1.bf16.msra.mxu0 0
    %5511 = vmatprep.subr.bf16.mxu0 0
    %5512 = vmatpush1.bf16.msra.mxu0 0
    %5513 = vmatprep.subr.bf16.mxu0 0
    %5514 = vmatpush1.bf16.msra.mxu0 0
    %5515 = vmatprep.subr.bf16.mxu0 0
    %5516 = vmatpush1.bf16.msra.mxu0 0
    %5517 = vmatprep.subr.bf16.mxu0 0
    %5518 = vmatpush1.bf16.msra.mxu0 0
    %5519 = vmatprep.subr.bf16.mxu0 0
    %5520 = vmatpush1.bf16.msra.mxu0 0
    %5521 = vmatprep.subr.bf16.mxu0 0
    %5522 = vmatpush1.bf16.msra.mxu0 0
    %5523 = vmatprep.subr.bf16.mxu0 0
    %5524 = vmatpush1.bf16.msra.mxu0 0
    %5525 = vmatprep.subr.bf16.mxu0 0
    %5526 = vmatpush1.bf16.msra.mxu0 0
    %5527 = vmatprep.subr.bf16.mxu0 0
    %5528 = vmatpush1.bf16.msra.mxu0 0
    %5529 = vmatprep.subr.bf16.mxu0 0
    %5530 = vmatpush1.bf16.msra.mxu0 0
    %5531 = vmatprep.subr.bf16.mxu0 0
    %5532 = vmatpush1.bf16.msra.mxu0 0
    %5533 = vmatprep.subr.bf16.mxu0 0
    %5534 = vmatpush1.bf16.msra.mxu0 0
    %5535 = vmatprep.subr.bf16.mxu0 0
    %5536 = vmatpush1.bf16.msra.mxu0 0
    %5537 = vmatprep.mubr.bf16.mxu0 0
    %5538 = vmatmul.mubr.bf16.gmra.mrb[0].mxu0 %v5503
    %v5539 = vpop.f32.mrb[0].mxu0
    %v5540 = vadd.f32 0.0, %v5539
    %v5541 = vpop.f32.mrb[0].mxu0
    %v5542 = vpop.f32.mrb[0].mxu0
    %v5543 = vpop.f32.mrb[0].mxu0
    %5544 = vdwg.mxu0
    %v5545 = vadd.f32 %v5437, %v5540
    %s5546 = scalar_lea.vmem [#allocation2], 50
    %v5547 = vld [vmem:[%s5546] sm:$0x1]
    %v5549 = vsel %vm145, %v5547, 0
    %5551 = vmatprep.subr.bf16.mxu0 0
    %5552 = vmatpush1.bf16.msra.mxu0 %v140
    %5553 = vmatprep.subr.bf16.mxu0 0
    %5554 = vmatpush1.bf16.msra.mxu0 %v141
    %5555 = vmatprep.subr.bf16.mxu0 0
    %5556 = vmatpush1.bf16.msra.mxu0 %v151
    %5557 = vmatprep.subr.bf16.mxu0 0
    %5558 = vmatpush1.bf16.msra.mxu0 0
    %5559 = vmatprep.subr.bf16.mxu0 0
    %5560 = vmatpush1.bf16.msra.mxu0 0
    %5561 = vmatprep.subr.bf16.mxu0 0
    %5562 = vmatpush1.bf16.msra.mxu0 0
    %5563 = vmatprep.subr.bf16.mxu0 0
    %5564 = vmatpush1.bf16.msra.mxu0 0
    %5565 = vmatprep.subr.bf16.mxu0 0
    %5566 = vmatpush1.bf16.msra.mxu0 0
    %5567 = vmatprep.subr.bf16.mxu0 0
    %5568 = vmatpush1.bf16.msra.mxu0 0
    %5569 = vmatprep.subr.bf16.mxu0 0
    %5570 = vmatpush1.bf16.msra.mxu0 0
    %5571 = vmatprep.subr.bf16.mxu0 0
    %5572 = vmatpush1.bf16.msra.mxu0 0
    %5573 = vmatprep.subr.bf16.mxu0 0
    %5574 = vmatpush1.bf16.msra.mxu0 0
    %5575 = vmatprep.subr.bf16.mxu0 0
    %5576 = vmatpush1.bf16.msra.mxu0 0
    %5577 = vmatprep.subr.bf16.mxu0 0
    %5578 = vmatpush1.bf16.msra.mxu0 0
    %5579 = vmatprep.subr.bf16.mxu0 0
    %5580 = vmatpush1.bf16.msra.mxu0 0
    %5581 = vmatprep.subr.bf16.mxu0 0
    %5582 = vmatpush1.bf16.msra.mxu0 0
    %5583 = vmatprep.mubr.bf16.mxu0 0
    %5584 = vmatmul.mubr.bf16.gmra.mrb[0].mxu0 %v5549
    %v5585 = vpop.f32.mrb[0].mxu0
    %v5586 = vadd.f32 %v128, %v5585
    %v5587 = vpop.f32.mrb[0].mxu0
    %v5588 = vpop.f32.mrb[0].mxu0
    %v5589 = vpop.f32.mrb[0].mxu0
    %5590 = vdwg.mxu0
    %v5591 = vmax.f32 %v5586, 0.0
    %v5592 = vpack.c.bf16 %v5591, %v5591
    %s5593 = scalar_lea.vmem [#allocation8], 800
    %v5594 = vld [vmem:[%s5593] sm:$0xf]
    %v5595 = vld [vmem:[%s5593 + $0x4] sm:$0xf]
    %v5596 = vld [vmem:[%s5593 + $0x8] sm:$0xf]
    %v5597 = vld [vmem:[%s5593 + $0xc] sm:$0xf]
    %v5602 = vunpack.c.l.b16 %v5594
    %v5603 = vunpack.c.l.b16 %v5595
    %v5604 = vunpack.c.l.b16 %v5596
    %v5605 = vunpack.c.l.b16 %v5597
    %v5606 = vpack.c.b16 %v5603, %v5602
    %v5607 = vpack.c.b16 %v5605, %v5604
    %v5611 = vsel %vm263, %v5592, 0
    %5613 = vmatprep.subr.bf16.mxu0 0
    %5614 = vmatpush1.bf16.msra.mxu0 %v5606
    %5615 = vmatprep.subr.bf16.mxu0 0
    %5616 = vmatpush1.bf16.msra.mxu0 %v5607
    %5617 = vmatprep.subr.bf16.mxu0 0
    %5618 = vmatpush1.bf16.msra.mxu0 0
    %5619 = vmatprep.subr.bf16.mxu0 0
    %5620 = vmatpush1.bf16.msra.mxu0 0
    %5621 = vmatprep.subr.bf16.mxu0 0
    %5622 = vmatpush1.bf16.msra.mxu0 0
    %5623 = vmatprep.subr.bf16.mxu0 0
    %5624 = vmatpush1.bf16.msra.mxu0 0
    %5625 = vmatprep.subr.bf16.mxu0 0
    %5626 = vmatpush1.bf16.msra.mxu0 0
    %5627 = vmatprep.subr.bf16.mxu0 0
    %5628 = vmatpush1.bf16.msra.mxu0 0
    %5629 = vmatprep.subr.bf16.mxu0 0
    %5630 = vmatpush1.bf16.msra.mxu0 0
    %5631 = vmatprep.subr.bf16.mxu0 0
    %5632 = vmatpush1.bf16.msra.mxu0 0
    %5633 = vmatprep.subr.bf16.mxu0 0
    %5634 = vmatpush1.bf16.msra.mxu0 0
    %5635 = vmatprep.subr.bf16.mxu0 0
    %5636 = vmatpush1.bf16.msra.mxu0 0
    %5637 = vmatprep.subr.bf16.mxu0 0
    %5638 = vmatpush1.bf16.msra.mxu0 0
    %5639 = vmatprep.subr.bf16.mxu0 0
    %5640 = vmatpush1.bf16.msra.mxu0 0
    %5641 = vmatprep.subr.bf16.mxu0 0
    %5642 = vmatpush1.bf16.msra.mxu0 0
    %5643 = vmatprep.subr.bf16.mxu0 0
    %5644 = vmatpush1.bf16.msra.mxu0 0
    %5645 = vmatprep.mubr.bf16.mxu0 0
    %5646 = vmatmul.mubr.bf16.gmra.mrb[0].mxu0 %v5611
    %v5647 = vpop.f32.mrb[0].mxu0
    %v5648 = vadd.f32 0.0, %v5647
    %v5649 = vpop.f32.mrb[0].mxu0
    %v5650 = vpop.f32.mrb[0].mxu0
    %v5651 = vpop.f32.mrb[0].mxu0
    %5652 = vdwg.mxu0
    %v5653 = vadd.f32 %v5545, %v5648
    %s5654 = scalar_lea.vmem [#allocation2], 51
    %v5655 = vld [vmem:[%s5654] sm:$0x1]
    %v5657 = vsel %vm145, %v5655, 0
    %5659 = vmatprep.subr.bf16.mxu0 0
    %5660 = vmatpush1.bf16.msra.mxu0 %v140
    %5661 = vmatprep.subr.bf16.mxu0 0
    %5662 = vmatpush1.bf16.msra.mxu0 %v141
    %5663 = vmatprep.subr.bf16.mxu0 0
    %5664 = vmatpush1.bf16.msra.mxu0 %v151
    %5665 = vmatprep.subr.bf16.mxu0 0
    %5666 = vmatpush1.bf16.msra.mxu0 0
    %5667 = vmatprep.subr.bf16.mxu0 0
    %5668 = vmatpush1.bf16.msra.mxu0 0
    %5669 = vmatprep.subr.bf16.mxu0 0
    %5670 = vmatpush1.bf16.msra.mxu0 0
    %5671 = vmatprep.subr.bf16.mxu0 0
    %5672 = vmatpush1.bf16.msra.mxu0 0
    %5673 = vmatprep.subr.bf16.mxu0 0
    %5674 = vmatpush1.bf16.msra.mxu0 0
    %5675 = vmatprep.subr.bf16.mxu0 0
    %5676 = vmatpush1.bf16.msra.mxu0 0
    %5677 = vmatprep.subr.bf16.mxu0 0
    %5678 = vmatpush1.bf16.msra.mxu0 0
    %5679 = vmatprep.subr.bf16.mxu0 0
    %5680 = vmatpush1.bf16.msra.mxu0 0
    %5681 = vmatprep.subr.bf16.mxu0 0
    %5682 = vmatpush1.bf16.msra.mxu0 0
    %5683 = vmatprep.subr.bf16.mxu0 0
    %5684 = vmatpush1.bf16.msra.mxu0 0
    %5685 = vmatprep.subr.bf16.mxu0 0
    %5686 = vmatpush1.bf16.msra.mxu0 0
    %5687 = vmatprep.subr.bf16.mxu0 0
    %5688 = vmatpush1.bf16.msra.mxu0 0
    %5689 = vmatprep.subr.bf16.mxu0 0
    %5690 = vmatpush1.bf16.msra.mxu0 0
    %5691 = vmatprep.mubr.bf16.mxu0 0
    %5692 = vmatmul.mubr.bf16.gmra.mrb[0].mxu0 %v5657
    %v5693 = vpop.f32.mrb[0].mxu0
    %v5694 = vadd.f32 %v128, %v5693
    %v5695 = vpop.f32.mrb[0].mxu0
    %v5696 = vpop.f32.mrb[0].mxu0
    %v5697 = vpop.f32.mrb[0].mxu0
    %5698 = vdwg.mxu0
    %v5699 = vmax.f32 %v5694, 0.0
    %v5700 = vpack.c.bf16 %v5699, %v5699
    %s5701 = scalar_lea.vmem [#allocation8], 816
    %v5702 = vld [vmem:[%s5701] sm:$0xf]
    %v5703 = vld [vmem:[%s5701 + $0x4] sm:$0xf]
    %v5704 = vld [vmem:[%s5701 + $0x8] sm:$0xf]
    %v5705 = vld [vmem:[%s5701 + $0xc] sm:$0xf]
    %v5710 = vunpack.c.l.b16 %v5702
    %v5711 = vunpack.c.l.b16 %v5703
    %v5712 = vunpack.c.l.b16 %v5704
    %v5713 = vunpack.c.l.b16 %v5705
    %v5714 = vpack.c.b16 %v5711, %v5710
    %v5715 = vpack.c.b16 %v5713, %v5712
    %v5719 = vsel %vm263, %v5700, 0
    %5721 = vmatprep.subr.bf16.mxu0 0
    %5722 = vmatpush1.bf16.msra.mxu0 %v5714
    %5723 = vmatprep.subr.bf16.mxu0 0
    %5724 = vmatpush1.bf16.msra.mxu0 %v5715
    %5725 = vmatprep.subr.bf16.mxu0 0
    %5726 = vmatpush1.bf16.msra.mxu0 0
    %5727 = vmatprep.subr.bf16.mxu0 0
    %5728 = vmatpush1.bf16.msra.mxu0 0
    %5729 = vmatprep.subr.bf16.mxu0 0
    %5730 = vmatpush1.bf16.msra.mxu0 0
    %5731 = vmatprep.subr.bf16.mxu0 0
    %5732 = vmatpush1.bf16.msra.mxu0 0
    %5733 = vmatprep.subr.bf16.mxu0 0
    %5734 = vmatpush1.bf16.msra.mxu0 0
    %5735 = vmatprep.subr.bf16.mxu0 0
    %5736 = vmatpush1.bf16.msra.mxu0 0
    %5737 = vmatprep.subr.bf16.mxu0 0
    %5738 = vmatpush1.bf16.msra.mxu0 0
    %5739 = vmatprep.subr.bf16.mxu0 0
    %5740 = vmatpush1.bf16.msra.mxu0 0
    %5741 = vmatprep.subr.bf16.mxu0 0
    %5742 = vmatpush1.bf16.msra.mxu0 0
    %5743 = vmatprep.subr.bf16.mxu0 0
    %5744 = vmatpush1.bf16.msra.mxu0 0
    %5745 = vmatprep.subr.bf16.mxu0 0
    %5746 = vmatpush1.bf16.msra.mxu0 0
    %5747 = vmatprep.subr.bf16.mxu0 0
    %5748 = vmatpush1.bf16.msra.mxu0 0
    %5749 = vmatprep.subr.bf16.mxu0 0
    %5750 = vmatpush1.bf16.msra.mxu0 0
    %5751 = vmatprep.subr.bf16.mxu0 0
    %5752 = vmatpush1.bf16.msra.mxu0 0
    %5753 = vmatprep.mubr.bf16.mxu0 0
    %5754 = vmatmul.mubr.bf16.gmra.mrb[0].mxu0 %v5719
    %v5755 = vpop.f32.mrb[0].mxu0
    %v5756 = vadd.f32 0.0, %v5755
    %v5757 = vpop.f32.mrb[0].mxu0
    %v5758 = vpop.f32.mrb[0].mxu0
    %v5759 = vpop.f32.mrb[0].mxu0
    %5760 = vdwg.mxu0
    %v5761 = vadd.f32 %v5653, %v5756
    %s5762 = scalar_lea.vmem [#allocation2], 52
    %v5763 = vld [vmem:[%s5762] sm:$0x1]
    %v5765 = vsel %vm145, %v5763, 0
    %5767 = vmatprep.subr.bf16.mxu0 0
    %5768 = vmatpush1.bf16.msra.mxu0 %v140
    %5769 = vmatprep.subr.bf16.mxu0 0
    %5770 = vmatpush1.bf16.msra.mxu0 %v141
    %5771 = vmatprep.subr.bf16.mxu0 0
    %5772 = vmatpush1.bf16.msra.mxu0 %v151
    %5773 = vmatprep.subr.bf16.mxu0 0
    %5774 = vmatpush1.bf16.msra.mxu0 0
    %5775 = vmatprep.subr.bf16.mxu0 0
    %5776 = vmatpush1.bf16.msra.mxu0 0
    %5777 = vmatprep.subr.bf16.mxu0 0
    %5778 = vmatpush1.bf16.msra.mxu0 0
    %5779 = vmatprep.subr.bf16.mxu0 0
    %5780 = vmatpush1.bf16.msra.mxu0 0
    %5781 = vmatprep.subr.bf16.mxu0 0
    %5782 = vmatpush1.bf16.msra.mxu0 0
    %5783 = vmatprep.subr.bf16.mxu0 0
    %5784 = vmatpush1.bf16.msra.mxu0 0
    %5785 = vmatprep.subr.bf16.mxu0 0
    %5786 = vmatpush1.bf16.msra.mxu0 0
    %5787 = vmatprep.subr.bf16.mxu0 0
    %5788 = vmatpush1.bf16.msra.mxu0 0
    %5789 = vmatprep.subr.bf16.mxu0 0
    %5790 = vmatpush1.bf16.msra.mxu0 0
    %5791 = vmatprep.subr.bf16.mxu0 0
    %5792 = vmatpush1.bf16.msra.mxu0 0
    %5793 = vmatprep.subr.bf16.mxu0 0
    %5794 = vmatpush1.bf16.msra.mxu0 0
    %5795 = vmatprep.subr.bf16.mxu0 0
    %5796 = vmatpush1.bf16.msra.mxu0 0
    %5797 = vmatprep.subr.bf16.mxu0 0
    %5798 = vmatpush1.bf16.msra.mxu0 0
    %5799 = vmatprep.mubr.bf16.mxu0 0
    %5800 = vmatmul.mubr.bf16.gmra.mrb[0].mxu0 %v5765
    %v5801 = vpop.f32.mrb[0].mxu0
    %v5802 = vadd.f32 %v128, %v5801
    %v5803 = vpop.f32.mrb[0].mxu0
    %v5804 = vpop.f32.mrb[0].mxu0
    %v5805 = vpop.f32.mrb[0].mxu0
    %5806 = vdwg.mxu0
    %v5807 = vmax.f32 %v5802, 0.0
    %v5808 = vpack.c.bf16 %v5807, %v5807
    %s5809 = scalar_lea.vmem [#allocation8], 832
    %v5810 = vld [vmem:[%s5809] sm:$0xf]
    %v5811 = vld [vmem:[%s5809 + $0x4] sm:$0xf]
    %v5812 = vld [vmem:[%s5809 + $0x8] sm:$0xf]
    %v5813 = vld [vmem:[%s5809 + $0xc] sm:$0xf]
    %v5818 = vunpack.c.l.b16 %v5810
    %v5819 = vunpack.c.l.b16 %v5811
    %v5820 = vunpack.c.l.b16 %v5812
    %v5821 = vunpack.c.l.b16 %v5813
    %v5822 = vpack.c.b16 %v5819, %v5818
    %v5823 = vpack.c.b16 %v5821, %v5820
    %v5827 = vsel %vm263, %v5808, 0
    %5829 = vmatprep.subr.bf16.mxu0 0
    %5830 = vmatpush1.bf16.msra.mxu0 %v5822
    %5831 = vmatprep.subr.bf16.mxu0 0
    %5832 = vmatpush1.bf16.msra.mxu0 %v5823
    %5833 = vmatprep.subr.bf16.mxu0 0
    %5834 = vmatpush1.bf16.msra.mxu0 0
    %5835 = vmatprep.subr.bf16.mxu0 0
    %5836 = vmatpush1.bf16.msra.mxu0 0
    %5837 = vmatprep.subr.bf16.mxu0 0
    %5838 = vmatpush1.bf16.msra.mxu0 0
    %5839 = vmatprep.subr.bf16.mxu0 0
    %5840 = vmatpush1.bf16.msra.mxu0 0
    %5841 = vmatprep.subr.bf16.mxu0 0
    %5842 = vmatpush1.bf16.msra.mxu0 0
    %5843 = vmatprep.subr.bf16.mxu0 0
    %5844 = vmatpush1.bf16.msra.mxu0 0
    %5845 = vmatprep.subr.bf16.mxu0 0
    %5846 = vmatpush1.bf16.msra.mxu0 0
    %5847 = vmatprep.subr.bf16.mxu0 0
    %5848 = vmatpush1.bf16.msra.mxu0 0
    %5849 = vmatprep.subr.bf16.mxu0 0
    %5850 = vmatpush1.bf16.msra.mxu0 0
    %5851 = vmatprep.subr.bf16.mxu0 0
    %5852 = vmatpush1.bf16.msra.mxu0 0
    %5853 = vmatprep.subr.bf16.mxu0 0
    %5854 = vmatpush1.bf16.msra.mxu0 0
    %5855 = vmatprep.subr.bf16.mxu0 0
    %5856 = vmatpush1.bf16.msra.mxu0 0
    %5857 = vmatprep.subr.bf16.mxu0 0
    %5858 = vmatpush1.bf16.msra.mxu0 0
    %5859 = vmatprep.subr.bf16.mxu0 0
    %5860 = vmatpush1.bf16.msra.mxu0 0
    %5861 = vmatprep.mubr.bf16.mxu0 0
    %5862 = vmatmul.mubr.bf16.gmra.mrb[0].mxu0 %v5827
    %v5863 = vpop.f32.mrb[0].mxu0
    %v5864 = vadd.f32 0.0, %v5863
    %v5865 = vpop.f32.mrb[0].mxu0
    %v5866 = vpop.f32.mrb[0].mxu0
    %v5867 = vpop.f32.mrb[0].mxu0
    %5868 = vdwg.mxu0
    %v5869 = vadd.f32 %v5761, %v5864
    %s5870 = scalar_lea.vmem [#allocation2], 53
    %v5871 = vld [vmem:[%s5870] sm:$0x1]
    %v5873 = vsel %vm145, %v5871, 0
    %5875 = vmatprep.subr.bf16.mxu0 0
    %5876 = vmatpush1.bf16.msra.mxu0 %v140
    %5877 = vmatprep.subr.bf16.mxu0 0
    %5878 = vmatpush1.bf16.msra.mxu0 %v141
    %5879 = vmatprep.subr.bf16.mxu0 0
    %5880 = vmatpush1.bf16.msra.mxu0 %v151
    %5881 = vmatprep.subr.bf16.mxu0 0
    %5882 = vmatpush1.bf16.msra.mxu0 0
    %5883 = vmatprep.subr.bf16.mxu0 0
    %5884 = vmatpush1.bf16.msra.mxu0 0
    %5885 = vmatprep.subr.bf16.mxu0 0
    %5886 = vmatpush1.bf16.msra.mxu0 0
    %5887 = vmatprep.subr.bf16.mxu0 0
    %5888 = vmatpush1.bf16.msra.mxu0 0
    %5889 = vmatprep.subr.bf16.mxu0 0
    %5890 = vmatpush1.bf16.msra.mxu0 0
    %5891 = vmatprep.subr.bf16.mxu0 0
    %5892 = vmatpush1.bf16.msra.mxu0 0
    %5893 = vmatprep.subr.bf16.mxu0 0
    %5894 = vmatpush1.bf16.msra.mxu0 0
    %5895 = vmatprep.subr.bf16.mxu0 0
    %5896 = vmatpush1.bf16.msra.mxu0 0
    %5897 = vmatprep.subr.bf16.mxu0 0
    %5898 = vmatpush1.bf16.msra.mxu0 0
    %5899 = vmatprep.subr.bf16.mxu0 0
    %5900 = vmatpush1.bf16.msra.mxu0 0
    %5901 = vmatprep.subr.bf16.mxu0 0
    %5902 = vmatpush1.bf16.msra.mxu0 0
    %5903 = vmatprep.subr.bf16.mxu0 0
    %5904 = vmatpush1.bf16.msra.mxu0 0
    %5905 = vmatprep.subr.bf16.mxu0 0
    %5906 = vmatpush1.bf16.msra.mxu0 0
    %5907 = vmatprep.mubr.bf16.mxu0 0
    %5908 = vmatmul.mubr.bf16.gmra.mrb[0].mxu0 %v5873
    %v5909 = vpop.f32.mrb[0].mxu0
    %v5910 = vadd.f32 %v128, %v5909
    %v5911 = vpop.f32.mrb[0].mxu0
    %v5912 = vpop.f32.mrb[0].mxu0
    %v5913 = vpop.f32.mrb[0].mxu0
    %5914 = vdwg.mxu0
    %v5915 = vmax.f32 %v5910, 0.0
    %v5916 = vpack.c.bf16 %v5915, %v5915
    %s5917 = scalar_lea.vmem [#allocation8], 848
    %v5918 = vld [vmem:[%s5917] sm:$0xf]
    %v5919 = vld [vmem:[%s5917 + $0x4] sm:$0xf]
    %v5920 = vld [vmem:[%s5917 + $0x8] sm:$0xf]
    %v5921 = vld [vmem:[%s5917 + $0xc] sm:$0xf]
    %v5926 = vunpack.c.l.b16 %v5918
    %v5927 = vunpack.c.l.b16 %v5919
    %v5928 = vunpack.c.l.b16 %v5920
    %v5929 = vunpack.c.l.b16 %v5921
    %v5930 = vpack.c.b16 %v5927, %v5926
    %v5931 = vpack.c.b16 %v5929, %v5928
    %v5935 = vsel %vm263, %v5916, 0
    %5937 = vmatprep.subr.bf16.mxu0 0
    %5938 = vmatpush1.bf16.msra.mxu0 %v5930
    %5939 = vmatprep.subr.bf16.mxu0 0
    %5940 = vmatpush1.bf16.msra.mxu0 %v5931
    %5941 = vmatprep.subr.bf16.mxu0 0
    %5942 = vmatpush1.bf16.msra.mxu0 0
    %5943 = vmatprep.subr.bf16.mxu0 0
    %5944 = vmatpush1.bf16.msra.mxu0 0
    %5945 = vmatprep.subr.bf16.mxu0 0
    %5946 = vmatpush1.bf16.msra.mxu0 0
    %5947 = vmatprep.subr.bf16.mxu0 0
    %5948 = vmatpush1.bf16.msra.mxu0 0
    %5949 = vmatprep.subr.bf16.mxu0 0
    %5950 = vmatpush1.bf16.msra.mxu0 0
    %5951 = vmatprep.subr.bf16.mxu0 0
    %5952 = vmatpush1.bf16.msra.mxu0 0
    %5953 = vmatprep.subr.bf16.mxu0 0
    %5954 = vmatpush1.bf16.msra.mxu0 0
    %5955 = vmatprep.subr.bf16.mxu0 0
    %5956 = vmatpush1.bf16.msra.mxu0 0
    %5957 = vmatprep.subr.bf16.mxu0 0
    %5958 = vmatpush1.bf16.msra.mxu0 0
    %5959 = vmatprep.subr.bf16.mxu0 0
    %5960 = vmatpush1.bf16.msra.mxu0 0
    %5961 = vmatprep.subr.bf16.mxu0 0
    %5962 = vmatpush1.bf16.msra.mxu0 0
    %5963 = vmatprep.subr.bf16.mxu0 0
    %5964 = vmatpush1.bf16.msra.mxu0 0
    %5965 = vmatprep.subr.bf16.mxu0 0
    %5966 = vmatpush1.bf16.msra.mxu0 0
    %5967 = vmatprep.subr.bf16.mxu0 0
    %5968 = vmatpush1.bf16.msra.mxu0 0
    %5969 = vmatprep.mubr.bf16.mxu0 0
    %5970 = vmatmul.mubr.bf16.gmra.mrb[0].mxu0 %v5935
    %v5971 = vpop.f32.mrb[0].mxu0
    %v5972 = vadd.f32 0.0, %v5971
    %v5973 = vpop.f32.mrb[0].mxu0
    %v5974 = vpop.f32.mrb[0].mxu0
    %v5975 = vpop.f32.mrb[0].mxu0
    %5976 = vdwg.mxu0
    %v5977 = vadd.f32 %v5869, %v5972
    %s5978 = scalar_lea.vmem [#allocation2], 54
    %v5979 = vld [vmem:[%s5978] sm:$0x1]
    %v5981 = vsel %vm145, %v5979, 0
    %5983 = vmatprep.subr.bf16.mxu0 0
    %5984 = vmatpush1.bf16.msra.mxu0 %v140
    %5985 = vmatprep.subr.bf16.mxu0 0
    %5986 = vmatpush1.bf16.msra.mxu0 %v141
    %5987 = vmatprep.subr.bf16.mxu0 0
    %5988 = vmatpush1.bf16.msra.mxu0 %v151
    %5989 = vmatprep.subr.bf16.mxu0 0
    %5990 = vmatpush1.bf16.msra.mxu0 0
    %5991 = vmatprep.subr.bf16.mxu0 0
    %5992 = vmatpush1.bf16.msra.mxu0 0
    %5993 = vmatprep.subr.bf16.mxu0 0
    %5994 = vmatpush1.bf16.msra.mxu0 0
    %5995 = vmatprep.subr.bf16.mxu0 0
    %5996 = vmatpush1.bf16.msra.mxu0 0
    %5997 = vmatprep.subr.bf16.mxu0 0
    %5998 = vmatpush1.bf16.msra.mxu0 0
    %5999 = vmatprep.subr.bf16.mxu0 0
    %6000 = vmatpush1.bf16.msra.mxu0 0
    %6001 = vmatprep.subr.bf16.mxu0 0
    %6002 = vmatpush1.bf16.msra.mxu0 0
    %6003 = vmatprep.subr.bf16.mxu0 0
    %6004 = vmatpush1.bf16.msra.mxu0 0
    %6005 = vmatprep.subr.bf16.mxu0 0
    %6006 = vmatpush1.bf16.msra.mxu0 0
    %6007 = vmatprep.subr.bf16.mxu0 0
    %6008 = vmatpush1.bf16.msra.mxu0 0
    %6009 = vmatprep.subr.bf16.mxu0 0
    %6010 = vmatpush1.bf16.msra.mxu0 0
    %6011 = vmatprep.subr.bf16.mxu0 0
    %6012 = vmatpush1.bf16.msra.mxu0 0
    %6013 = vmatprep.subr.bf16.mxu0 0
    %6014 = vmatpush1.bf16.msra.mxu0 0
    %6015 = vmatprep.mubr.bf16.mxu0 0
    %6016 = vmatmul.mubr.bf16.gmra.mrb[0].mxu0 %v5981
    %v6017 = vpop.f32.mrb[0].mxu0
    %v6018 = vadd.f32 %v128, %v6017
    %v6019 = vpop.f32.mrb[0].mxu0
    %v6020 = vpop.f32.mrb[0].mxu0
    %v6021 = vpop.f32.mrb[0].mxu0
    %6022 = vdwg.mxu0
    %v6023 = vmax.f32 %v6018, 0.0
    %v6024 = vpack.c.bf16 %v6023, %v6023
    %s6025 = scalar_lea.vmem [#allocation8], 864
    %v6026 = vld [vmem:[%s6025] sm:$0xf]
    %v6027 = vld [vmem:[%s6025 + $0x4] sm:$0xf]
    %v6028 = vld [vmem:[%s6025 + $0x8] sm:$0xf]
    %v6029 = vld [vmem:[%s6025 + $0xc] sm:$0xf]
    %v6034 = vunpack.c.l.b16 %v6026
    %v6035 = vunpack.c.l.b16 %v6027
    %v6036 = vunpack.c.l.b16 %v6028
    %v6037 = vunpack.c.l.b16 %v6029
    %v6038 = vpack.c.b16 %v6035, %v6034
    %v6039 = vpack.c.b16 %v6037, %v6036
    %v6043 = vsel %vm263, %v6024, 0
    %6045 = vmatprep.subr.bf16.mxu0 0
    %6046 = vmatpush1.bf16.msra.mxu0 %v6038
    %6047 = vmatprep.subr.bf16.mxu0 0
    %6048 = vmatpush1.bf16.msra.mxu0 %v6039
    %6049 = vmatprep.subr.bf16.mxu0 0
    %6050 = vmatpush1.bf16.msra.mxu0 0
    %6051 = vmatprep.subr.bf16.mxu0 0
    %6052 = vmatpush1.bf16.msra.mxu0 0
    %6053 = vmatprep.subr.bf16.mxu0 0
    %6054 = vmatpush1.bf16.msra.mxu0 0
    %6055 = vmatprep.subr.bf16.mxu0 0
    %6056 = vmatpush1.bf16.msra.mxu0 0
    %6057 = vmatprep.subr.bf16.mxu0 0
    %6058 = vmatpush1.bf16.msra.mxu0 0
    %6059 = vmatprep.subr.bf16.mxu0 0
    %6060 = vmatpush1.bf16.msra.mxu0 0
    %6061 = vmatprep.subr.bf16.mxu0 0
    %6062 = vmatpush1.bf16.msra.mxu0 0
    %6063 = vmatprep.subr.bf16.mxu0 0
    %6064 = vmatpush1.bf16.msra.mxu0 0
    %6065 = vmatprep.subr.bf16.mxu0 0
    %6066 = vmatpush1.bf16.msra.mxu0 0
    %6067 = vmatprep.subr.bf16.mxu0 0
    %6068 = vmatpush1.bf16.msra.mxu0 0
    %6069 = vmatprep.subr.bf16.mxu0 0
    %6070 = vmatpush1.bf16.msra.mxu0 0
    %6071 = vmatprep.subr.bf16.mxu0 0
    %6072 = vmatpush1.bf16.msra.mxu0 0
    %6073 = vmatprep.subr.bf16.mxu0 0
    %6074 = vmatpush1.bf16.msra.mxu0 0
    %6075 = vmatprep.subr.bf16.mxu0 0
    %6076 = vmatpush1.bf16.msra.mxu0 0
    %6077 = vmatprep.mubr.bf16.mxu0 0
    %6078 = vmatmul.mubr.bf16.gmra.mrb[0].mxu0 %v6043
    %v6079 = vpop.f32.mrb[0].mxu0
    %v6080 = vadd.f32 0.0, %v6079
    %v6081 = vpop.f32.mrb[0].mxu0
    %v6082 = vpop.f32.mrb[0].mxu0
    %v6083 = vpop.f32.mrb[0].mxu0
    %6084 = vdwg.mxu0
    %v6085 = vadd.f32 %v5977, %v6080
    %s6086 = scalar_lea.vmem [#allocation2], 55
    %v6087 = vld [vmem:[%s6086] sm:$0x1]
    %v6089 = vsel %vm145, %v6087, 0
    %6091 = vmatprep.subr.bf16.mxu0 0
    %6092 = vmatpush1.bf16.msra.mxu0 %v140
    %6093 = vmatprep.subr.bf16.mxu0 0
    %6094 = vmatpush1.bf16.msra.mxu0 %v141
    %6095 = vmatprep.subr.bf16.mxu0 0
    %6096 = vmatpush1.bf16.msra.mxu0 %v151
    %6097 = vmatprep.subr.bf16.mxu0 0
    %6098 = vmatpush1.bf16.msra.mxu0 0
    %6099 = vmatprep.subr.bf16.mxu0 0
    %6100 = vmatpush1.bf16.msra.mxu0 0
    %6101 = vmatprep.subr.bf16.mxu0 0
    %6102 = vmatpush1.bf16.msra.mxu0 0
    %6103 = vmatprep.subr.bf16.mxu0 0
    %6104 = vmatpush1.bf16.msra.mxu0 0
    %6105 = vmatprep.subr.bf16.mxu0 0
    %6106 = vmatpush1.bf16.msra.mxu0 0
    %6107 = vmatprep.subr.bf16.mxu0 0
    %6108 = vmatpush1.bf16.msra.mxu0 0
    %6109 = vmatprep.subr.bf16.mxu0 0
    %6110 = vmatpush1.bf16.msra.mxu0 0
    %6111 = vmatprep.subr.bf16.mxu0 0
    %6112 = vmatpush1.bf16.msra.mxu0 0
    %6113 = vmatprep.subr.bf16.mxu0 0
    %6114 = vmatpush1.bf16.msra.mxu0 0
    %6115 = vmatprep.subr.bf16.mxu0 0
    %6116 = vmatpush1.bf16.msra.mxu0 0
    %6117 = vmatprep.subr.bf16.mxu0 0
    %6118 = vmatpush1.bf16.msra.mxu0 0
    %6119 = vmatprep.subr.bf16.mxu0 0
    %6120 = vmatpush1.bf16.msra.mxu0 0
    %6121 = vmatprep.subr.bf16.mxu0 0
    %6122 = vmatpush1.bf16.msra.mxu0 0
    %6123 = vmatprep.mubr.bf16.mxu0 0
    %6124 = vmatmul.mubr.bf16.gmra.mrb[0].mxu0 %v6089
    %v6125 = vpop.f32.mrb[0].mxu0
    %v6126 = vadd.f32 %v128, %v6125
    %v6127 = vpop.f32.mrb[0].mxu0
    %v6128 = vpop.f32.mrb[0].mxu0
    %v6129 = vpop.f32.mrb[0].mxu0
    %6130 = vdwg.mxu0
    %v6131 = vmax.f32 %v6126, 0.0
    %v6132 = vpack.c.bf16 %v6131, %v6131
    %s6133 = scalar_lea.vmem [#allocation8], 880
    %v6134 = vld [vmem:[%s6133] sm:$0xf]
    %v6135 = vld [vmem:[%s6133 + $0x4] sm:$0xf]
    %v6136 = vld [vmem:[%s6133 + $0x8] sm:$0xf]
    %v6137 = vld [vmem:[%s6133 + $0xc] sm:$0xf]
    %v6142 = vunpack.c.l.b16 %v6134
    %v6143 = vunpack.c.l.b16 %v6135
    %v6144 = vunpack.c.l.b16 %v6136
    %v6145 = vunpack.c.l.b16 %v6137
    %v6146 = vpack.c.b16 %v6143, %v6142
    %v6147 = vpack.c.b16 %v6145, %v6144
    %v6151 = vsel %vm263, %v6132, 0
    %6153 = vmatprep.subr.bf16.mxu0 0
    %6154 = vmatpush1.bf16.msra.mxu0 %v6146
    %6155 = vmatprep.subr.bf16.mxu0 0
    %6156 = vmatpush1.bf16.msra.mxu0 %v6147
    %6157 = vmatprep.subr.bf16.mxu0 0
    %6158 = vmatpush1.bf16.msra.mxu0 0
    %6159 = vmatprep.subr.bf16.mxu0 0
    %6160 = vmatpush1.bf16.msra.mxu0 0
    %6161 = vmatprep.subr.bf16.mxu0 0
    %6162 = vmatpush1.bf16.msra.mxu0 0
    %6163 = vmatprep.subr.bf16.mxu0 0
    %6164 = vmatpush1.bf16.msra.mxu0 0
    %6165 = vmatprep.subr.bf16.mxu0 0
    %6166 = vmatpush1.bf16.msra.mxu0 0
    %6167 = vmatprep.subr.bf16.mxu0 0
    %6168 = vmatpush1.bf16.msra.mxu0 0
    %6169 = vmatprep.subr.bf16.mxu0 0
    %6170 = vmatpush1.bf16.msra.mxu0 0
    %6171 = vmatprep.subr.bf16.mxu0 0
    %6172 = vmatpush1.bf16.msra.mxu0 0
    %6173 = vmatprep.subr.bf16.mxu0 0
    %6174 = vmatpush1.bf16.msra.mxu0 0
    %6175 = vmatprep.subr.bf16.mxu0 0
    %6176 = vmatpush1.bf16.msra.mxu0 0
    %6177 = vmatprep.subr.bf16.mxu0 0
    %6178 = vmatpush1.bf16.msra.mxu0 0
    %6179 = vmatprep.subr.bf16.mxu0 0
    %6180 = vmatpush1.bf16.msra.mxu0 0
    %6181 = vmatprep.subr.bf16.mxu0 0
    %6182 = vmatpush1.bf16.msra.mxu0 0
    %6183 = vmatprep.subr.bf16.mxu0 0
    %6184 = vmatpush1.bf16.msra.mxu0 0
    %6185 = vmatprep.mubr.bf16.mxu0 0
    %6186 = vmatmul.mubr.bf16.gmra.mrb[0].mxu0 %v6151
    %v6187 = vpop.f32.mrb[0].mxu0
    %v6188 = vadd.f32 0.0, %v6187
    %v6189 = vpop.f32.mrb[0].mxu0
    %v6190 = vpop.f32.mrb[0].mxu0
    %v6191 = vpop.f32.mrb[0].mxu0
    %6192 = vdwg.mxu0
    %v6193 = vadd.f32 %v6085, %v6188
    %s6194 = scalar_lea.vmem [#allocation2], 56
    %v6195 = vld [vmem:[%s6194] sm:$0x1]
    %v6197 = vsel %vm145, %v6195, 0
    %6199 = vmatprep.subr.bf16.mxu0 0
    %6200 = vmatpush1.bf16.msra.mxu0 %v140
    %6201 = vmatprep.subr.bf16.mxu0 0
    %6202 = vmatpush1.bf16.msra.mxu0 %v141
    %6203 = vmatprep.subr.bf16.mxu0 0
    %6204 = vmatpush1.bf16.msra.mxu0 %v151
    %6205 = vmatprep.subr.bf16.mxu0 0
    %6206 = vmatpush1.bf16.msra.mxu0 0
    %6207 = vmatprep.subr.bf16.mxu0 0
    %6208 = vmatpush1.bf16.msra.mxu0 0
    %6209 = vmatprep.subr.bf16.mxu0 0
    %6210 = vmatpush1.bf16.msra.mxu0 0
    %6211 = vmatprep.subr.bf16.mxu0 0
    %6212 = vmatpush1.bf16.msra.mxu0 0
    %6213 = vmatprep.subr.bf16.mxu0 0
    %6214 = vmatpush1.bf16.msra.mxu0 0
    %6215 = vmatprep.subr.bf16.mxu0 0
    %6216 = vmatpush1.bf16.msra.mxu0 0
    %6217 = vmatprep.subr.bf16.mxu0 0
    %6218 = vmatpush1.bf16.msra.mxu0 0
    %6219 = vmatprep.subr.bf16.mxu0 0
    %6220 = vmatpush1.bf16.msra.mxu0 0
    %6221 = vmatprep.subr.bf16.mxu0 0
    %6222 = vmatpush1.bf16.msra.mxu0 0
    %6223 = vmatprep.subr.bf16.mxu0 0
    %6224 = vmatpush1.bf16.msra.mxu0 0
    %6225 = vmatprep.subr.bf16.mxu0 0
    %6226 = vmatpush1.bf16.msra.mxu0 0
    %6227 = vmatprep.subr.bf16.mxu0 0
    %6228 = vmatpush1.bf16.msra.mxu0 0
    %6229 = vmatprep.subr.bf16.mxu0 0
    %6230 = vmatpush1.bf16.msra.mxu0 0
    %6231 = vmatprep.mubr.bf16.mxu0 0
    %6232 = vmatmul.mubr.bf16.gmra.mrb[0].mxu0 %v6197
    %v6233 = vpop.f32.mrb[0].mxu0
    %v6234 = vadd.f32 %v128, %v6233
    %v6235 = vpop.f32.mrb[0].mxu0
    %v6236 = vpop.f32.mrb[0].mxu0
    %v6237 = vpop.f32.mrb[0].mxu0
    %6238 = vdwg.mxu0
    %v6239 = vmax.f32 %v6234, 0.0
    %v6240 = vpack.c.bf16 %v6239, %v6239
    %s6241 = scalar_lea.vmem [#allocation8], 896
    %v6242 = vld [vmem:[%s6241] sm:$0xf]
    %v6243 = vld [vmem:[%s6241 + $0x4] sm:$0xf]
    %v6244 = vld [vmem:[%s6241 + $0x8] sm:$0xf]
    %v6245 = vld [vmem:[%s6241 + $0xc] sm:$0xf]
    %v6250 = vunpack.c.l.b16 %v6242
    %v6251 = vunpack.c.l.b16 %v6243
    %v6252 = vunpack.c.l.b16 %v6244
    %v6253 = vunpack.c.l.b16 %v6245
    %v6254 = vpack.c.b16 %v6251, %v6250
    %v6255 = vpack.c.b16 %v6253, %v6252
    %v6259 = vsel %vm263, %v6240, 0
    %6261 = vmatprep.subr.bf16.mxu0 0
    %6262 = vmatpush1.bf16.msra.mxu0 %v6254
    %6263 = vmatprep.subr.bf16.mxu0 0
    %6264 = vmatpush1.bf16.msra.mxu0 %v6255
    %6265 = vmatprep.subr.bf16.mxu0 0
    %6266 = vmatpush1.bf16.msra.mxu0 0
    %6267 = vmatprep.subr.bf16.mxu0 0
    %6268 = vmatpush1.bf16.msra.mxu0 0
    %6269 = vmatprep.subr.bf16.mxu0 0
    %6270 = vmatpush1.bf16.msra.mxu0 0
    %6271 = vmatprep.subr.bf16.mxu0 0
    %6272 = vmatpush1.bf16.msra.mxu0 0
    %6273 = vmatprep.subr.bf16.mxu0 0
    %6274 = vmatpush1.bf16.msra.mxu0 0
    %6275 = vmatprep.subr.bf16.mxu0 0
    %6276 = vmatpush1.bf16.msra.mxu0 0
    %6277 = vmatprep.subr.bf16.mxu0 0
    %6278 = vmatpush1.bf16.msra.mxu0 0
    %6279 = vmatprep.subr.bf16.mxu0 0
    %6280 = vmatpush1.bf16.msra.mxu0 0
    %6281 = vmatprep.subr.bf16.mxu0 0
    %6282 = vmatpush1.bf16.msra.mxu0 0
    %6283 = vmatprep.subr.bf16.mxu0 0
    %6284 = vmatpush1.bf16.msra.mxu0 0
    %6285 = vmatprep.subr.bf16.mxu0 0
    %6286 = vmatpush1.bf16.msra.mxu0 0
    %6287 = vmatprep.subr.bf16.mxu0 0
    %6288 = vmatpush1.bf16.msra.mxu0 0
    %6289 = vmatprep.subr.bf16.mxu0 0
    %6290 = vmatpush1.bf16.msra.mxu0 0
    %6291 = vmatprep.subr.bf16.mxu0 0
    %6292 = vmatpush1.bf16.msra.mxu0 0
    %6293 = vmatprep.mubr.bf16.mxu0 0
    %6294 = vmatmul.mubr.bf16.gmra.mrb[0].mxu0 %v6259
    %v6295 = vpop.f32.mrb[0].mxu0
    %v6296 = vadd.f32 0.0, %v6295
    %v6297 = vpop.f32.mrb[0].mxu0
    %v6298 = vpop.f32.mrb[0].mxu0
    %v6299 = vpop.f32.mrb[0].mxu0
    %6300 = vdwg.mxu0
    %v6301 = vadd.f32 %v6193, %v6296
    %s6302 = scalar_lea.vmem [#allocation2], 57
    %v6303 = vld [vmem:[%s6302] sm:$0x1]
    %v6305 = vsel %vm145, %v6303, 0
    %6307 = vmatprep.subr.bf16.mxu0 0
    %6308 = vmatpush1.bf16.msra.mxu0 %v140
    %6309 = vmatprep.subr.bf16.mxu0 0
    %6310 = vmatpush1.bf16.msra.mxu0 %v141
    %6311 = vmatprep.subr.bf16.mxu0 0
    %6312 = vmatpush1.bf16.msra.mxu0 %v151
    %6313 = vmatprep.subr.bf16.mxu0 0
    %6314 = vmatpush1.bf16.msra.mxu0 0
    %6315 = vmatprep.subr.bf16.mxu0 0
    %6316 = vmatpush1.bf16.msra.mxu0 0
    %6317 = vmatprep.subr.bf16.mxu0 0
    %6318 = vmatpush1.bf16.msra.mxu0 0
    %6319 = vmatprep.subr.bf16.mxu0 0
    %6320 = vmatpush1.bf16.msra.mxu0 0
    %6321 = vmatprep.subr.bf16.mxu0 0
    %6322 = vmatpush1.bf16.msra.mxu0 0
    %6323 = vmatprep.subr.bf16.mxu0 0
    %6324 = vmatpush1.bf16.msra.mxu0 0
    %6325 = vmatprep.subr.bf16.mxu0 0
    %6326 = vmatpush1.bf16.msra.mxu0 0
    %6327 = vmatprep.subr.bf16.mxu0 0
    %6328 = vmatpush1.bf16.msra.mxu0 0
    %6329 = vmatprep.subr.bf16.mxu0 0
    %6330 = vmatpush1.bf16.msra.mxu0 0
    %6331 = vmatprep.subr.bf16.mxu0 0
    %6332 = vmatpush1.bf16.msra.mxu0 0
    %6333 = vmatprep.subr.bf16.mxu0 0
    %6334 = vmatpush1.bf16.msra.mxu0 0
    %6335 = vmatprep.subr.bf16.mxu0 0
    %6336 = vmatpush1.bf16.msra.mxu0 0
    %6337 = vmatprep.subr.bf16.mxu0 0
    %6338 = vmatpush1.bf16.msra.mxu0 0
    %6339 = vmatprep.mubr.bf16.mxu0 0
    %6340 = vmatmul.mubr.bf16.gmra.mrb[0].mxu0 %v6305
    %v6341 = vpop.f32.mrb[0].mxu0
    %v6342 = vadd.f32 %v128, %v6341
    %v6343 = vpop.f32.mrb[0].mxu0
    %v6344 = vpop.f32.mrb[0].mxu0
    %v6345 = vpop.f32.mrb[0].mxu0
    %6346 = vdwg.mxu0
    %v6347 = vmax.f32 %v6342, 0.0
    %v6348 = vpack.c.bf16 %v6347, %v6347
    %s6349 = scalar_lea.vmem [#allocation8], 912
    %v6350 = vld [vmem:[%s6349] sm:$0xf]
    %v6351 = vld [vmem:[%s6349 + $0x4] sm:$0xf]
    %v6352 = vld [vmem:[%s6349 + $0x8] sm:$0xf]
    %v6353 = vld [vmem:[%s6349 + $0xc] sm:$0xf]
    %v6358 = vunpack.c.l.b16 %v6350
    %v6359 = vunpack.c.l.b16 %v6351
    %v6360 = vunpack.c.l.b16 %v6352
    %v6361 = vunpack.c.l.b16 %v6353
    %v6362 = vpack.c.b16 %v6359, %v6358
    %v6363 = vpack.c.b16 %v6361, %v6360
    %v6367 = vsel %vm263, %v6348, 0
    %6369 = vmatprep.subr.bf16.mxu0 0
    %6370 = vmatpush1.bf16.msra.mxu0 %v6362
    %6371 = vmatprep.subr.bf16.mxu0 0
    %6372 = vmatpush1.bf16.msra.mxu0 %v6363
    %6373 = vmatprep.subr.bf16.mxu0 0
    %6374 = vmatpush1.bf16.msra.mxu0 0
    %6375 = vmatprep.subr.bf16.mxu0 0
    %6376 = vmatpush1.bf16.msra.mxu0 0
    %6377 = vmatprep.subr.bf16.mxu0 0
    %6378 = vmatpush1.bf16.msra.mxu0 0
    %6379 = vmatprep.subr.bf16.mxu0 0
    %6380 = vmatpush1.bf16.msra.mxu0 0
    %6381 = vmatprep.subr.bf16.mxu0 0
    %6382 = vmatpush1.bf16.msra.mxu0 0
    %6383 = vmatprep.subr.bf16.mxu0 0
    %6384 = vmatpush1.bf16.msra.mxu0 0
    %6385 = vmatprep.subr.bf16.mxu0 0
    %6386 = vmatpush1.bf16.msra.mxu0 0
    %6387 = vmatprep.subr.bf16.mxu0 0
    %6388 = vmatpush1.bf16.msra.mxu0 0
    %6389 = vmatprep.subr.bf16.mxu0 0
    %6390 = vmatpush1.bf16.msra.mxu0 0
    %6391 = vmatprep.subr.bf16.mxu0 0
    %6392 = vmatpush1.bf16.msra.mxu0 0
    %6393 = vmatprep.subr.bf16.mxu0 0
    %6394 = vmatpush1.bf16.msra.mxu0 0
    %6395 = vmatprep.subr.bf16.mxu0 0
    %6396 = vmatpush1.bf16.msra.mxu0 0
    %6397 = vmatprep.subr.bf16.mxu0 0
    %6398 = vmatpush1.bf16.msra.mxu0 0
    %6399 = vmatprep.subr.bf16.mxu0 0
    %6400 = vmatpush1.bf16.msra.mxu0 0
    %6401 = vmatprep.mubr.bf16.mxu0 0
    %6402 = vmatmul.mubr.bf16.gmra.mrb[0].mxu0 %v6367
    %v6403 = vpop.f32.mrb[0].mxu0
    %v6404 = vadd.f32 0.0, %v6403
    %v6405 = vpop.f32.mrb[0].mxu0
    %v6406 = vpop.f32.mrb[0].mxu0
    %v6407 = vpop.f32.mrb[0].mxu0
    %6408 = vdwg.mxu0
    %v6409 = vadd.f32 %v6301, %v6404
    %s6410 = scalar_lea.vmem [#allocation2], 58
    %v6411 = vld [vmem:[%s6410] sm:$0x1]
    %v6413 = vsel %vm145, %v6411, 0
    %6415 = vmatprep.subr.bf16.mxu0 0
    %6416 = vmatpush1.bf16.msra.mxu0 %v140
    %6417 = vmatprep.subr.bf16.mxu0 0
    %6418 = vmatpush1.bf16.msra.mxu0 %v141
    %6419 = vmatprep.subr.bf16.mxu0 0
    %6420 = vmatpush1.bf16.msra.mxu0 %v151
    %6421 = vmatprep.subr.bf16.mxu0 0
    %6422 = vmatpush1.bf16.msra.mxu0 0
    %6423 = vmatprep.subr.bf16.mxu0 0
    %6424 = vmatpush1.bf16.msra.mxu0 0
    %6425 = vmatprep.subr.bf16.mxu0 0
    %6426 = vmatpush1.bf16.msra.mxu0 0
    %6427 = vmatprep.subr.bf16.mxu0 0
    %6428 = vmatpush1.bf16.msra.mxu0 0
    %6429 = vmatprep.subr.bf16.mxu0 0
    %6430 = vmatpush1.bf16.msra.mxu0 0
    %6431 = vmatprep.subr.bf16.mxu0 0
    %6432 = vmatpush1.bf16.msra.mxu0 0
    %6433 = vmatprep.subr.bf16.mxu0 0
    %6434 = vmatpush1.bf16.msra.mxu0 0
    %6435 = vmatprep.subr.bf16.mxu0 0
    %6436 = vmatpush1.bf16.msra.mxu0 0
    %6437 = vmatprep.subr.bf16.mxu0 0
    %6438 = vmatpush1.bf16.msra.mxu0 0
    %6439 = vmatprep.subr.bf16.mxu0 0
    %6440 = vmatpush1.bf16.msra.mxu0 0
    %6441 = vmatprep.subr.bf16.mxu0 0
    %6442 = vmatpush1.bf16.msra.mxu0 0
    %6443 = vmatprep.subr.bf16.mxu0 0
    %6444 = vmatpush1.bf16.msra.mxu0 0
    %6445 = vmatprep.subr.bf16.mxu0 0
    %6446 = vmatpush1.bf16.msra.mxu0 0
    %6447 = vmatprep.mubr.bf16.mxu0 0
    %6448 = vmatmul.mubr.bf16.gmra.mrb[0].mxu0 %v6413
    %v6449 = vpop.f32.mrb[0].mxu0
    %v6450 = vadd.f32 %v128, %v6449
    %v6451 = vpop.f32.mrb[0].mxu0
    %v6452 = vpop.f32.mrb[0].mxu0
    %v6453 = vpop.f32.mrb[0].mxu0
    %6454 = vdwg.mxu0
    %v6455 = vmax.f32 %v6450, 0.0
    %v6456 = vpack.c.bf16 %v6455, %v6455
    %s6457 = scalar_lea.vmem [#allocation8], 928
    %v6458 = vld [vmem:[%s6457] sm:$0xf]
    %v6459 = vld [vmem:[%s6457 + $0x4] sm:$0xf]
    %v6460 = vld [vmem:[%s6457 + $0x8] sm:$0xf]
    %v6461 = vld [vmem:[%s6457 + $0xc] sm:$0xf]
    %v6466 = vunpack.c.l.b16 %v6458
    %v6467 = vunpack.c.l.b16 %v6459
    %v6468 = vunpack.c.l.b16 %v6460
    %v6469 = vunpack.c.l.b16 %v6461
    %v6470 = vpack.c.b16 %v6467, %v6466
    %v6471 = vpack.c.b16 %v6469, %v6468
    %v6475 = vsel %vm263, %v6456, 0
    %6477 = vmatprep.subr.bf16.mxu0 0
    %6478 = vmatpush1.bf16.msra.mxu0 %v6470
    %6479 = vmatprep.subr.bf16.mxu0 0
    %6480 = vmatpush1.bf16.msra.mxu0 %v6471
    %6481 = vmatprep.subr.bf16.mxu0 0
    %6482 = vmatpush1.bf16.msra.mxu0 0
    %6483 = vmatprep.subr.bf16.mxu0 0
    %6484 = vmatpush1.bf16.msra.mxu0 0
    %6485 = vmatprep.subr.bf16.mxu0 0
    %6486 = vmatpush1.bf16.msra.mxu0 0
    %6487 = vmatprep.subr.bf16.mxu0 0
    %6488 = vmatpush1.bf16.msra.mxu0 0
    %6489 = vmatprep.subr.bf16.mxu0 0
    %6490 = vmatpush1.bf16.msra.mxu0 0
    %6491 = vmatprep.subr.bf16.mxu0 0
    %6492 = vmatpush1.bf16.msra.mxu0 0
    %6493 = vmatprep.subr.bf16.mxu0 0
    %6494 = vmatpush1.bf16.msra.mxu0 0
    %6495 = vmatprep.subr.bf16.mxu0 0
    %6496 = vmatpush1.bf16.msra.mxu0 0
    %6497 = vmatprep.subr.bf16.mxu0 0
    %6498 = vmatpush1.bf16.msra.mxu0 0
    %6499 = vmatprep.subr.bf16.mxu0 0
    %6500 = vmatpush1.bf16.msra.mxu0 0
    %6501 = vmatprep.subr.bf16.mxu0 0
    %6502 = vmatpush1.bf16.msra.mxu0 0
    %6503 = vmatprep.subr.bf16.mxu0 0
    %6504 = vmatpush1.bf16.msra.mxu0 0
    %6505 = vmatprep.subr.bf16.mxu0 0
    %6506 = vmatpush1.bf16.msra.mxu0 0
    %6507 = vmatprep.subr.bf16.mxu0 0
    %6508 = vmatpush1.bf16.msra.mxu0 0
    %6509 = vmatprep.mubr.bf16.mxu0 0
    %6510 = vmatmul.mubr.bf16.gmra.mrb[0].mxu0 %v6475
    %v6511 = vpop.f32.mrb[0].mxu0
    %v6512 = vadd.f32 0.0, %v6511
    %v6513 = vpop.f32.mrb[0].mxu0
    %v6514 = vpop.f32.mrb[0].mxu0
    %v6515 = vpop.f32.mrb[0].mxu0
    %6516 = vdwg.mxu0
    %v6517 = vadd.f32 %v6409, %v6512
    %s6518 = scalar_lea.vmem [#allocation2], 59
    %v6519 = vld [vmem:[%s6518] sm:$0x1]
    %v6521 = vsel %vm145, %v6519, 0
    %6523 = vmatprep.subr.bf16.mxu0 0
    %6524 = vmatpush1.bf16.msra.mxu0 %v140
    %6525 = vmatprep.subr.bf16.mxu0 0
    %6526 = vmatpush1.bf16.msra.mxu0 %v141
    %6527 = vmatprep.subr.bf16.mxu0 0
    %6528 = vmatpush1.bf16.msra.mxu0 %v151
    %6529 = vmatprep.subr.bf16.mxu0 0
    %6530 = vmatpush1.bf16.msra.mxu0 0
    %6531 = vmatprep.subr.bf16.mxu0 0
    %6532 = vmatpush1.bf16.msra.mxu0 0
    %6533 = vmatprep.subr.bf16.mxu0 0
    %6534 = vmatpush1.bf16.msra.mxu0 0
    %6535 = vmatprep.subr.bf16.mxu0 0
    %6536 = vmatpush1.bf16.msra.mxu0 0
    %6537 = vmatprep.subr.bf16.mxu0 0
    %6538 = vmatpush1.bf16.msra.mxu0 0
    %6539 = vmatprep.subr.bf16.mxu0 0
    %6540 = vmatpush1.bf16.msra.mxu0 0
    %6541 = vmatprep.subr.bf16.mxu0 0
    %6542 = vmatpush1.bf16.msra.mxu0 0
    %6543 = vmatprep.subr.bf16.mxu0 0
    %6544 = vmatpush1.bf16.msra.mxu0 0
    %6545 = vmatprep.subr.bf16.mxu0 0
    %6546 = vmatpush1.bf16.msra.mxu0 0
    %6547 = vmatprep.subr.bf16.mxu0 0
    %6548 = vmatpush1.bf16.msra.mxu0 0
    %6549 = vmatprep.subr.bf16.mxu0 0
    %6550 = vmatpush1.bf16.msra.mxu0 0
    %6551 = vmatprep.subr.bf16.mxu0 0
    %6552 = vmatpush1.bf16.msra.mxu0 0
    %6553 = vmatprep.subr.bf16.mxu0 0
    %6554 = vmatpush1.bf16.msra.mxu0 0
    %6555 = vmatprep.mubr.bf16.mxu0 0
    %6556 = vmatmul.mubr.bf16.gmra.mrb[0].mxu0 %v6521
    %v6557 = vpop.f32.mrb[0].mxu0
    %v6558 = vadd.f32 %v128, %v6557
    %v6559 = vpop.f32.mrb[0].mxu0
    %v6560 = vpop.f32.mrb[0].mxu0
    %v6561 = vpop.f32.mrb[0].mxu0
    %6562 = vdwg.mxu0
    %v6563 = vmax.f32 %v6558, 0.0
    %v6564 = vpack.c.bf16 %v6563, %v6563
    %s6565 = scalar_lea.vmem [#allocation8], 944
    %v6566 = vld [vmem:[%s6565] sm:$0xf]
    %v6567 = vld [vmem:[%s6565 + $0x4] sm:$0xf]
    %v6568 = vld [vmem:[%s6565 + $0x8] sm:$0xf]
    %v6569 = vld [vmem:[%s6565 + $0xc] sm:$0xf]
    %v6574 = vunpack.c.l.b16 %v6566
    %v6575 = vunpack.c.l.b16 %v6567
    %v6576 = vunpack.c.l.b16 %v6568
    %v6577 = vunpack.c.l.b16 %v6569
    %v6578 = vpack.c.b16 %v6575, %v6574
    %v6579 = vpack.c.b16 %v6577, %v6576
    %v6583 = vsel %vm263, %v6564, 0
    %6585 = vmatprep.subr.bf16.mxu0 0
    %6586 = vmatpush1.bf16.msra.mxu0 %v6578
    %6587 = vmatprep.subr.bf16.mxu0 0
    %6588 = vmatpush1.bf16.msra.mxu0 %v6579
    %6589 = vmatprep.subr.bf16.mxu0 0
    %6590 = vmatpush1.bf16.msra.mxu0 0
    %6591 = vmatprep.subr.bf16.mxu0 0
    %6592 = vmatpush1.bf16.msra.mxu0 0
    %6593 = vmatprep.subr.bf16.mxu0 0
    %6594 = vmatpush1.bf16.msra.mxu0 0
    %6595 = vmatprep.subr.bf16.mxu0 0
    %6596 = vmatpush1.bf16.msra.mxu0 0
    %6597 = vmatprep.subr.bf16.mxu0 0
    %6598 = vmatpush1.bf16.msra.mxu0 0
    %6599 = vmatprep.subr.bf16.mxu0 0
    %6600 = vmatpush1.bf16.msra.mxu0 0
    %6601 = vmatprep.subr.bf16.mxu0 0
    %6602 = vmatpush1.bf16.msra.mxu0 0
    %6603 = vmatprep.subr.bf16.mxu0 0
    %6604 = vmatpush1.bf16.msra.mxu0 0
    %6605 = vmatprep.subr.bf16.mxu0 0
    %6606 = vmatpush1.bf16.msra.mxu0 0
    %6607 = vmatprep.subr.bf16.mxu0 0
    %6608 = vmatpush1.bf16.msra.mxu0 0
    %6609 = vmatprep.subr.bf16.mxu0 0
    %6610 = vmatpush1.bf16.msra.mxu0 0
    %6611 = vmatprep.subr.bf16.mxu0 0
    %6612 = vmatpush1.bf16.msra.mxu0 0
    %6613 = vmatprep.subr.bf16.mxu0 0
    %6614 = vmatpush1.bf16.msra.mxu0 0
    %6615 = vmatprep.subr.bf16.mxu0 0
    %6616 = vmatpush1.bf16.msra.mxu0 0
    %6617 = vmatprep.mubr.bf16.mxu0 0
    %6618 = vmatmul.mubr.bf16.gmra.mrb[0].mxu0 %v6583
    %v6619 = vpop.f32.mrb[0].mxu0
    %v6620 = vadd.f32 0.0, %v6619
    %v6621 = vpop.f32.mrb[0].mxu0
    %v6622 = vpop.f32.mrb[0].mxu0
    %v6623 = vpop.f32.mrb[0].mxu0
    %6624 = vdwg.mxu0
    %v6625 = vadd.f32 %v6517, %v6620
    %s6626 = scalar_lea.vmem [#allocation2], 60
    %v6627 = vld [vmem:[%s6626] sm:$0x1]
    %v6629 = vsel %vm145, %v6627, 0
    %6631 = vmatprep.subr.bf16.mxu0 0
    %6632 = vmatpush1.bf16.msra.mxu0 %v140
    %6633 = vmatprep.subr.bf16.mxu0 0
    %6634 = vmatpush1.bf16.msra.mxu0 %v141
    %6635 = vmatprep.subr.bf16.mxu0 0
    %6636 = vmatpush1.bf16.msra.mxu0 %v151
    %6637 = vmatprep.subr.bf16.mxu0 0
    %6638 = vmatpush1.bf16.msra.mxu0 0
    %6639 = vmatprep.subr.bf16.mxu0 0
    %6640 = vmatpush1.bf16.msra.mxu0 0
    %6641 = vmatprep.subr.bf16.mxu0 0
    %6642 = vmatpush1.bf16.msra.mxu0 0
    %6643 = vmatprep.subr.bf16.mxu0 0
    %6644 = vmatpush1.bf16.msra.mxu0 0
    %6645 = vmatprep.subr.bf16.mxu0 0
    %6646 = vmatpush1.bf16.msra.mxu0 0
    %6647 = vmatprep.subr.bf16.mxu0 0
    %6648 = vmatpush1.bf16.msra.mxu0 0
    %6649 = vmatprep.subr.bf16.mxu0 0
    %6650 = vmatpush1.bf16.msra.mxu0 0
    %6651 = vmatprep.subr.bf16.mxu0 0
    %6652 = vmatpush1.bf16.msra.mxu0 0
    %6653 = vmatprep.subr.bf16.mxu0 0
    %6654 = vmatpush1.bf16.msra.mxu0 0
    %6655 = vmatprep.subr.bf16.mxu0 0
    %6656 = vmatpush1.bf16.msra.mxu0 0
    %6657 = vmatprep.subr.bf16.mxu0 0
    %6658 = vmatpush1.bf16.msra.mxu0 0
    %6659 = vmatprep.subr.bf16.mxu0 0
    %6660 = vmatpush1.bf16.msra.mxu0 0
    %6661 = vmatprep.subr.bf16.mxu0 0
    %6662 = vmatpush1.bf16.msra.mxu0 0
    %6663 = vmatprep.mubr.bf16.mxu0 0
    %6664 = vmatmul.mubr.bf16.gmra.mrb[0].mxu0 %v6629
    %v6665 = vpop.f32.mrb[0].mxu0
    %v6666 = vadd.f32 %v128, %v6665
    %v6667 = vpop.f32.mrb[0].mxu0
    %v6668 = vpop.f32.mrb[0].mxu0
    %v6669 = vpop.f32.mrb[0].mxu0
    %6670 = vdwg.mxu0
    %v6671 = vmax.f32 %v6666, 0.0
    %v6672 = vpack.c.bf16 %v6671, %v6671
    %s6673 = scalar_lea.vmem [#allocation8], 960
    %v6674 = vld [vmem:[%s6673] sm:$0xf]
    %v6675 = vld [vmem:[%s6673 + $0x4] sm:$0xf]
    %v6676 = vld [vmem:[%s6673 + $0x8] sm:$0xf]
    %v6677 = vld [vmem:[%s6673 + $0xc] sm:$0xf]
    %v6682 = vunpack.c.l.b16 %v6674
    %v6683 = vunpack.c.l.b16 %v6675
    %v6684 = vunpack.c.l.b16 %v6676
    %v6685 = vunpack.c.l.b16 %v6677
    %v6686 = vpack.c.b16 %v6683, %v6682
    %v6687 = vpack.c.b16 %v6685, %v6684
    %v6691 = vsel %vm263, %v6672, 0
    %6693 = vmatprep.subr.bf16.mxu0 0
    %6694 = vmatpush1.bf16.msra.mxu0 %v6686
    %6695 = vmatprep.subr.bf16.mxu0 0
    %6696 = vmatpush1.bf16.msra.mxu0 %v6687
    %6697 = vmatprep.subr.bf16.mxu0 0
    %6698 = vmatpush1.bf16.msra.mxu0 0
    %6699 = vmatprep.subr.bf16.mxu0 0
    %6700 = vmatpush1.bf16.msra.mxu0 0
    %6701 = vmatprep.subr.bf16.mxu0 0
    %6702 = vmatpush1.bf16.msra.mxu0 0
    %6703 = vmatprep.subr.bf16.mxu0 0
    %6704 = vmatpush1.bf16.msra.mxu0 0
    %6705 = vmatprep.subr.bf16.mxu0 0
    %6706 = vmatpush1.bf16.msra.mxu0 0
    %6707 = vmatprep.subr.bf16.mxu0 0
    %6708 = vmatpush1.bf16.msra.mxu0 0
    %6709 = vmatprep.subr.bf16.mxu0 0
    %6710 = vmatpush1.bf16.msra.mxu0 0
    %6711 = vmatprep.subr.bf16.mxu0 0
    %6712 = vmatpush1.bf16.msra.mxu0 0
    %6713 = vmatprep.subr.bf16.mxu0 0
    %6714 = vmatpush1.bf16.msra.mxu0 0
    %6715 = vmatprep.subr.bf16.mxu0 0
    %6716 = vmatpush1.bf16.msra.mxu0 0
    %6717 = vmatprep.subr.bf16.mxu0 0
    %6718 = vmatpush1.bf16.msra.mxu0 0
    %6719 = vmatprep.subr.bf16.mxu0 0
    %6720 = vmatpush1.bf16.msra.mxu0 0
    %6721 = vmatprep.subr.bf16.mxu0 0
    %6722 = vmatpush1.bf16.msra.mxu0 0
    %6723 = vmatprep.subr.bf16.mxu0 0
    %6724 = vmatpush1.bf16.msra.mxu0 0
    %6725 = vmatprep.mubr.bf16.mxu0 0
    %6726 = vmatmul.mubr.bf16.gmra.mrb[0].mxu0 %v6691
    %v6727 = vpop.f32.mrb[0].mxu0
    %v6728 = vadd.f32 0.0, %v6727
    %v6729 = vpop.f32.mrb[0].mxu0
    %v6730 = vpop.f32.mrb[0].mxu0
    %v6731 = vpop.f32.mrb[0].mxu0
    %6732 = vdwg.mxu0
    %v6733 = vadd.f32 %v6625, %v6728
    %s6734 = scalar_lea.vmem [#allocation2], 61
    %v6735 = vld [vmem:[%s6734] sm:$0x1]
    %v6737 = vsel %vm145, %v6735, 0
    %6739 = vmatprep.subr.bf16.mxu0 0
    %6740 = vmatpush1.bf16.msra.mxu0 %v140
    %6741 = vmatprep.subr.bf16.mxu0 0
    %6742 = vmatpush1.bf16.msra.mxu0 %v141
    %6743 = vmatprep.subr.bf16.mxu0 0
    %6744 = vmatpush1.bf16.msra.mxu0 %v151
    %6745 = vmatprep.subr.bf16.mxu0 0
    %6746 = vmatpush1.bf16.msra.mxu0 0
    %6747 = vmatprep.subr.bf16.mxu0 0
    %6748 = vmatpush1.bf16.msra.mxu0 0
    %6749 = vmatprep.subr.bf16.mxu0 0
    %6750 = vmatpush1.bf16.msra.mxu0 0
    %6751 = vmatprep.subr.bf16.mxu0 0
    %6752 = vmatpush1.bf16.msra.mxu0 0
    %6753 = vmatprep.subr.bf16.mxu0 0
    %6754 = vmatpush1.bf16.msra.mxu0 0
    %6755 = vmatprep.subr.bf16.mxu0 0
    %6756 = vmatpush1.bf16.msra.mxu0 0
    %6757 = vmatprep.subr.bf16.mxu0 0
    %6758 = vmatpush1.bf16.msra.mxu0 0
    %6759 = vmatprep.subr.bf16.mxu0 0
    %6760 = vmatpush1.bf16.msra.mxu0 0
    %6761 = vmatprep.subr.bf16.mxu0 0
    %6762 = vmatpush1.bf16.msra.mxu0 0
    %6763 = vmatprep.subr.bf16.mxu0 0
    %6764 = vmatpush1.bf16.msra.mxu0 0
    %6765 = vmatprep.subr.bf16.mxu0 0
    %6766 = vmatpush1.bf16.msra.mxu0 0
    %6767 = vmatprep.subr.bf16.mxu0 0
    %6768 = vmatpush1.bf16.msra.mxu0 0
    %6769 = vmatprep.subr.bf16.mxu0 0
    %6770 = vmatpush1.bf16.msra.mxu0 0
    %6771 = vmatprep.mubr.bf16.mxu0 0
    %6772 = vmatmul.mubr.bf16.gmra.mrb[0].mxu0 %v6737
    %v6773 = vpop.f32.mrb[0].mxu0
    %v6774 = vadd.f32 %v128, %v6773
    %v6775 = vpop.f32.mrb[0].mxu0
    %v6776 = vpop.f32.mrb[0].mxu0
    %v6777 = vpop.f32.mrb[0].mxu0
    %6778 = vdwg.mxu0
    %v6779 = vmax.f32 %v6774, 0.0
    %v6780 = vpack.c.bf16 %v6779, %v6779
    %s6781 = scalar_lea.vmem [#allocation8], 976
    %v6782 = vld [vmem:[%s6781] sm:$0xf]
    %v6783 = vld [vmem:[%s6781 + $0x4] sm:$0xf]
    %v6784 = vld [vmem:[%s6781 + $0x8] sm:$0xf]
    %v6785 = vld [vmem:[%s6781 + $0xc] sm:$0xf]
    %v6790 = vunpack.c.l.b16 %v6782
    %v6791 = vunpack.c.l.b16 %v6783
    %v6792 = vunpack.c.l.b16 %v6784
    %v6793 = vunpack.c.l.b16 %v6785
    %v6794 = vpack.c.b16 %v6791, %v6790
    %v6795 = vpack.c.b16 %v6793, %v6792
    %v6799 = vsel %vm263, %v6780, 0
    %6801 = vmatprep.subr.bf16.mxu0 0
    %6802 = vmatpush1.bf16.msra.mxu0 %v6794
    %6803 = vmatprep.subr.bf16.mxu0 0
    %6804 = vmatpush1.bf16.msra.mxu0 %v6795
    %6805 = vmatprep.subr.bf16.mxu0 0
    %6806 = vmatpush1.bf16.msra.mxu0 0
    %6807 = vmatprep.subr.bf16.mxu0 0
    %6808 = vmatpush1.bf16.msra.mxu0 0
    %6809 = vmatprep.subr.bf16.mxu0 0
    %6810 = vmatpush1.bf16.msra.mxu0 0
    %6811 = vmatprep.subr.bf16.mxu0 0
    %6812 = vmatpush1.bf16.msra.mxu0 0
    %6813 = vmatprep.subr.bf16.mxu0 0
    %6814 = vmatpush1.bf16.msra.mxu0 0
    %6815 = vmatprep.subr.bf16.mxu0 0
    %6816 = vmatpush1.bf16.msra.mxu0 0
    %6817 = vmatprep.subr.bf16.mxu0 0
    %6818 = vmatpush1.bf16.msra.mxu0 0
    %6819 = vmatprep.subr.bf16.mxu0 0
    %6820 = vmatpush1.bf16.msra.mxu0 0
    %6821 = vmatprep.subr.bf16.mxu0 0
    %6822 = vmatpush1.bf16.msra.mxu0 0
    %6823 = vmatprep.subr.bf16.mxu0 0
    %6824 = vmatpush1.bf16.msra.mxu0 0
    %6825 = vmatprep.subr.bf16.mxu0 0
    %6826 = vmatpush1.bf16.msra.mxu0 0
    %6827 = vmatprep.subr.bf16.mxu0 0
    %6828 = vmatpush1.bf16.msra.mxu0 0
    %6829 = vmatprep.subr.bf16.mxu0 0
    %6830 = vmatpush1.bf16.msra.mxu0 0
    %6831 = vmatprep.subr.bf16.mxu0 0
    %6832 = vmatpush1.bf16.msra.mxu0 0
    %6833 = vmatprep.mubr.bf16.mxu0 0
    %6834 = vmatmul.mubr.bf16.gmra.mrb[0].mxu0 %v6799
    %v6835 = vpop.f32.mrb[0].mxu0
    %v6836 = vadd.f32 0.0, %v6835
    %v6837 = vpop.f32.mrb[0].mxu0
    %v6838 = vpop.f32.mrb[0].mxu0
    %v6839 = vpop.f32.mrb[0].mxu0
    %6840 = vdwg.mxu0
    %v6841 = vadd.f32 %v6733, %v6836
    %s6842 = scalar_lea.vmem [#allocation2], 62
    %v6843 = vld [vmem:[%s6842] sm:$0x1]
    %v6845 = vsel %vm145, %v6843, 0
    %6847 = vmatprep.subr.bf16.mxu0 0
    %6848 = vmatpush1.bf16.msra.mxu0 %v140
    %6849 = vmatprep.subr.bf16.mxu0 0
    %6850 = vmatpush1.bf16.msra.mxu0 %v141
    %6851 = vmatprep.subr.bf16.mxu0 0
    %6852 = vmatpush1.bf16.msra.mxu0 %v151
    %6853 = vmatprep.subr.bf16.mxu0 0
    %6854 = vmatpush1.bf16.msra.mxu0 0
    %6855 = vmatprep.subr.bf16.mxu0 0
    %6856 = vmatpush1.bf16.msra.mxu0 0
    %6857 = vmatprep.subr.bf16.mxu0 0
    %6858 = vmatpush1.bf16.msra.mxu0 0
    %6859 = vmatprep.subr.bf16.mxu0 0
    %6860 = vmatpush1.bf16.msra.mxu0 0
    %6861 = vmatprep.subr.bf16.mxu0 0
    %6862 = vmatpush1.bf16.msra.mxu0 0
    %6863 = vmatprep.subr.bf16.mxu0 0
    %6864 = vmatpush1.bf16.msra.mxu0 0
    %6865 = vmatprep.subr.bf16.mxu0 0
    %6866 = vmatpush1.bf16.msra.mxu0 0
    %6867 = vmatprep.subr.bf16.mxu0 0
    %6868 = vmatpush1.bf16.msra.mxu0 0
    %6869 = vmatprep.subr.bf16.mxu0 0
    %6870 = vmatpush1.bf16.msra.mxu0 0
    %6871 = vmatprep.subr.bf16.mxu0 0
    %6872 = vmatpush1.bf16.msra.mxu0 0
    %6873 = vmatprep.subr.bf16.mxu0 0
    %6874 = vmatpush1.bf16.msra.mxu0 0
    %6875 = vmatprep.subr.bf16.mxu0 0
    %6876 = vmatpush1.bf16.msra.mxu0 0
    %6877 = vmatprep.subr.bf16.mxu0 0
    %6878 = vmatpush1.bf16.msra.mxu0 0
    %6879 = vmatprep.mubr.bf16.mxu0 0
    %6880 = vmatmul.mubr.bf16.gmra.mrb[0].mxu0 %v6845
    %v6881 = vpop.f32.mrb[0].mxu0
    %v6882 = vadd.f32 %v128, %v6881
    %v6883 = vpop.f32.mrb[0].mxu0
    %v6884 = vpop.f32.mrb[0].mxu0
    %v6885 = vpop.f32.mrb[0].mxu0
    %6886 = vdwg.mxu0
    %v6887 = vmax.f32 %v6882, 0.0
    %v6888 = vpack.c.bf16 %v6887, %v6887
    %s6889 = scalar_lea.vmem [#allocation8], 992
    %v6890 = vld [vmem:[%s6889] sm:$0xf]
    %v6891 = vld [vmem:[%s6889 + $0x4] sm:$0xf]
    %v6892 = vld [vmem:[%s6889 + $0x8] sm:$0xf]
    %v6893 = vld [vmem:[%s6889 + $0xc] sm:$0xf]
    %v6898 = vunpack.c.l.b16 %v6890
    %v6899 = vunpack.c.l.b16 %v6891
    %v6900 = vunpack.c.l.b16 %v6892
    %v6901 = vunpack.c.l.b16 %v6893
    %v6902 = vpack.c.b16 %v6899, %v6898
    %v6903 = vpack.c.b16 %v6901, %v6900
    %v6907 = vsel %vm263, %v6888, 0
    %6909 = vmatprep.subr.bf16.mxu0 0
    %6910 = vmatpush1.bf16.msra.mxu0 %v6902
    %6911 = vmatprep.subr.bf16.mxu0 0
    %6912 = vmatpush1.bf16.msra.mxu0 %v6903
    %6913 = vmatprep.subr.bf16.mxu0 0
    %6914 = vmatpush1.bf16.msra.mxu0 0
    %6915 = vmatprep.subr.bf16.mxu0 0
    %6916 = vmatpush1.bf16.msra.mxu0 0
    %6917 = vmatprep.subr.bf16.mxu0 0
    %6918 = vmatpush1.bf16.msra.mxu0 0
    %6919 = vmatprep.subr.bf16.mxu0 0
    %6920 = vmatpush1.bf16.msra.mxu0 0
    %6921 = vmatprep.subr.bf16.mxu0 0
    %6922 = vmatpush1.bf16.msra.mxu0 0
    %6923 = vmatprep.subr.bf16.mxu0 0
    %6924 = vmatpush1.bf16.msra.mxu0 0
    %6925 = vmatprep.subr.bf16.mxu0 0
    %6926 = vmatpush1.bf16.msra.mxu0 0
    %6927 = vmatprep.subr.bf16.mxu0 0
    %6928 = vmatpush1.bf16.msra.mxu0 0
    %6929 = vmatprep.subr.bf16.mxu0 0
    %6930 = vmatpush1.bf16.msra.mxu0 0
    %6931 = vmatprep.subr.bf16.mxu0 0
    %6932 = vmatpush1.bf16.msra.mxu0 0
    %6933 = vmatprep.subr.bf16.mxu0 0
    %6934 = vmatpush1.bf16.msra.mxu0 0
    %6935 = vmatprep.subr.bf16.mxu0 0
    %6936 = vmatpush1.bf16.msra.mxu0 0
    %6937 = vmatprep.subr.bf16.mxu0 0
    %6938 = vmatpush1.bf16.msra.mxu0 0
    %6939 = vmatprep.subr.bf16.mxu0 0
    %6940 = vmatpush1.bf16.msra.mxu0 0
    %6941 = vmatprep.mubr.bf16.mxu0 0
    %6942 = vmatmul.mubr.bf16.gmra.mrb[0].mxu0 %v6907
    %v6943 = vpop.f32.mrb[0].mxu0
    %v6944 = vadd.f32 0.0, %v6943
    %v6945 = vpop.f32.mrb[0].mxu0
    %v6946 = vpop.f32.mrb[0].mxu0
    %v6947 = vpop.f32.mrb[0].mxu0
    %6948 = vdwg.mxu0
    %v6949 = vadd.f32 %v6841, %v6944
    %s6950 = scalar_lea.vmem [#allocation2], 63
    %v6951 = vld [vmem:[%s6950] sm:$0x1]
    %v6953 = vsel %vm145, %v6951, 0
    %6955 = vmatprep.subr.bf16.mxu0 0
    %6956 = vmatpush1.bf16.msra.mxu0 %v140
    %6957 = vmatprep.subr.bf16.mxu0 0
    %6958 = vmatpush1.bf16.msra.mxu0 %v141
    %6959 = vmatprep.subr.bf16.mxu0 0
    %6960 = vmatpush1.bf16.msra.mxu0 %v151
    %6961 = vmatprep.subr.bf16.mxu0 0
    %6962 = vmatpush1.bf16.msra.mxu0 0
    %6963 = vmatprep.subr.bf16.mxu0 0
    %6964 = vmatpush1.bf16.msra.mxu0 0
    %6965 = vmatprep.subr.bf16.mxu0 0
    %6966 = vmatpush1.bf16.msra.mxu0 0
    %6967 = vmatprep.subr.bf16.mxu0 0
    %6968 = vmatpush1.bf16.msra.mxu0 0
    %6969 = vmatprep.subr.bf16.mxu0 0
    %6970 = vmatpush1.bf16.msra.mxu0 0
    %6971 = vmatprep.subr.bf16.mxu0 0
    %6972 = vmatpush1.bf16.msra.mxu0 0
    %6973 = vmatprep.subr.bf16.mxu0 0
    %6974 = vmatpush1.bf16.msra.mxu0 0
    %6975 = vmatprep.subr.bf16.mxu0 0
    %6976 = vmatpush1.bf16.msra.mxu0 0
    %6977 = vmatprep.subr.bf16.mxu0 0
    %6978 = vmatpush1.bf16.msra.mxu0 0
    %6979 = vmatprep.subr.bf16.mxu0 0
    %6980 = vmatpush1.bf16.msra.mxu0 0
    %6981 = vmatprep.subr.bf16.mxu0 0
    %6982 = vmatpush1.bf16.msra.mxu0 0
    %6983 = vmatprep.subr.bf16.mxu0 0
    %6984 = vmatpush1.bf16.msra.mxu0 0
    %6985 = vmatprep.subr.bf16.mxu0 0
    %6986 = vmatpush1.bf16.msra.mxu0 0
    %6987 = vmatprep.mubr.bf16.mxu0 0
    %6988 = vmatmul.mubr.bf16.gmra.mrb[0].mxu0 %v6953
    %v6989 = vpop.f32.mrb[0].mxu0
    %v6990 = vadd.f32 %v128, %v6989
    %v6991 = vpop.f32.mrb[0].mxu0
    %v6992 = vpop.f32.mrb[0].mxu0
    %v6993 = vpop.f32.mrb[0].mxu0
    %6994 = vdwg.mxu0
    %v6995 = vmax.f32 %v6990, 0.0
    %v6996 = vpack.c.bf16 %v6995, %v6995
    %s6997 = scalar_lea.vmem [#allocation8], 1008
    %v6998 = vld [vmem:[%s6997] sm:$0xf]
    %v6999 = vld [vmem:[%s6997 + $0x4] sm:$0xf]
    %v7000 = vld [vmem:[%s6997 + $0x8] sm:$0xf]
    %v7001 = vld [vmem:[%s6997 + $0xc] sm:$0xf]
    %v7006 = vunpack.c.l.b16 %v6998
    %v7007 = vunpack.c.l.b16 %v6999
    %v7008 = vunpack.c.l.b16 %v7000
    %v7009 = vunpack.c.l.b16 %v7001
    %v7010 = vpack.c.b16 %v7007, %v7006
    %v7011 = vpack.c.b16 %v7009, %v7008
    %v7015 = vsel %vm263, %v6996, 0
    %7017 = vmatprep.subr.bf16.mxu0 0
    %7018 = vmatpush1.bf16.msra.mxu0 %v7010
    %7019 = vmatprep.subr.bf16.mxu0 0
    %7020 = vmatpush1.bf16.msra.mxu0 %v7011
    %7021 = vmatprep.subr.bf16.mxu0 0
    %7022 = vmatpush1.bf16.msra.mxu0 0
    %7023 = vmatprep.subr.bf16.mxu0 0
    %7024 = vmatpush1.bf16.msra.mxu0 0
    %7025 = vmatprep.subr.bf16.mxu0 0
    %7026 = vmatpush1.bf16.msra.mxu0 0
    %7027 = vmatprep.subr.bf16.mxu0 0
    %7028 = vmatpush1.bf16.msra.mxu0 0
    %7029 = vmatprep.subr.bf16.mxu0 0
    %7030 = vmatpush1.bf16.msra.mxu0 0
    %7031 = vmatprep.subr.bf16.mxu0 0
    %7032 = vmatpush1.bf16.msra.mxu0 0
    %7033 = vmatprep.subr.bf16.mxu0 0
    %7034 = vmatpush1.bf16.msra.mxu0 0
    %7035 = vmatprep.subr.bf16.mxu0 0
    %7036 = vmatpush1.bf16.msra.mxu0 0
    %7037 = vmatprep.subr.bf16.mxu0 0
    %7038 = vmatpush1.bf16.msra.mxu0 0
    %7039 = vmatprep.subr.bf16.mxu0 0
    %7040 = vmatpush1.bf16.msra.mxu0 0
    %7041 = vmatprep.subr.bf16.mxu0 0
    %7042 = vmatpush1.bf16.msra.mxu0 0
    %7043 = vmatprep.subr.bf16.mxu0 0
    %7044 = vmatpush1.bf16.msra.mxu0 0
    %7045 = vmatprep.subr.bf16.mxu0 0
    %7046 = vmatpush1.bf16.msra.mxu0 0
    %7047 = vmatprep.subr.bf16.mxu0 0
    %7048 = vmatpush1.bf16.msra.mxu0 0
    %7049 = vmatprep.mubr.bf16.mxu0 0
    %7050 = vmatmul.mubr.bf16.gmra.mrb[0].mxu0 %v7015
    %v7051 = vpop.f32.mrb[0].mxu0
    %v7052 = vadd.f32 0.0, %v7051
    %v7053 = vpop.f32.mrb[0].mxu0
    %v7054 = vpop.f32.mrb[0].mxu0
    %v7055 = vpop.f32.mrb[0].mxu0
    %7056 = vdwg.mxu0
    %v7057 = vadd.f32 %v6949, %v7052
    %v7058 = vld [vmem:[#allocation10] sm:$0x1]
    %v7060 = vlaneseq
    %v7061 = vshrl.u32 %v7060, 7
    %v7062 = vsub.s32 0, %v7061
    %v7063 = vrot.slane %v7058, %v7062
    %v7065 = vadd.f32 %v7057, %v7063
    %v7066 = vmax.f32 %v7065, 0.0
    %v7067 = vpack.c.bf16 %v7066, %v7066
    %v7068 = vld [vmem:[#allocation11] sm:$0xf]
    %v7069 = vld [vmem:[#allocation11 + $0x4] sm:$0xf]
    %v7070 = vld [vmem:[#allocation11 + $0x8] sm:$0xf]
    %v7071 = vld [vmem:[#allocation11 + $0xc] sm:$0xf]
    %v7072 = vld [vmem:[#allocation13] sm:$0x1]
    %v7074 = vlaneseq
    %v7075 = vshrl.u32 %v7074, 7
    %v7076 = vsub.s32 0, %v7075
    %v7077 = vrot.slane %v7072, %v7076
    %v7083 = vunpack.c.l.b16 %v7068
    %v7084 = vunpack.c.l.b16 %v7069
    %v7085 = vunpack.c.l.b16 %v7070
    %v7086 = vunpack.c.l.b16 %v7071
    %v7087 = vpack.c.b16 %v7084, %v7083
    %v7088 = vpack.c.b16 %v7086, %v7085
    %v7092 = vsel %vm263, %v7067, 0
    %7094 = vmatprep.subr.bf16.mxu0 0
    %7095 = vmatpush1.bf16.msra.mxu0 %v7087
    %7096 = vmatprep.subr.bf16.mxu0 0
    %7097 = vmatpush1.bf16.msra.mxu0 %v7088
    %7098 = vmatprep.subr.bf16.mxu0 0
    %7099 = vmatpush1.bf16.msra.mxu0 0
    %7100 = vmatprep.subr.bf16.mxu0 0
    %7101 = vmatpush1.bf16.msra.mxu0 0
    %7102 = vmatprep.subr.bf16.mxu0 0
    %7103 = vmatpush1.bf16.msra.mxu0 0
    %7104 = vmatprep.subr.bf16.mxu0 0
    %7105 = vmatpush1.bf16.msra.mxu0 0
    %7106 = vmatprep.subr.bf16.mxu0 0
    %7107 = vmatpush1.bf16.msra.mxu0 0
    %7108 = vmatprep.subr.bf16.mxu0 0
    %7109 = vmatpush1.bf16.msra.mxu0 0
    %7110 = vmatprep.subr.bf16.mxu0 0
    %7111 = vmatpush1.bf16.msra.mxu0 0
    %7112 = vmatprep.subr.bf16.mxu0 0
    %7113 = vmatpush1.bf16.msra.mxu0 0
    %7114 = vmatprep.subr.bf16.mxu0 0
    %7115 = vmatpush1.bf16.msra.mxu0 0
    %7116 = vmatprep.subr.bf16.mxu0 0
    %7117 = vmatpush1.bf16.msra.mxu0 0
    %7118 = vmatprep.subr.bf16.mxu0 0
    %7119 = vmatpush1.bf16.msra.mxu0 0
    %7120 = vmatprep.subr.bf16.mxu0 0
    %7121 = vmatpush1.bf16.msra.mxu0 0
    %7122 = vmatprep.subr.bf16.mxu0 0
    %7123 = vmatpush1.bf16.msra.mxu0 0
    %7124 = vmatprep.subr.bf16.mxu0 0
    %7125 = vmatpush1.bf16.msra.mxu0 0
    %7126 = vmatprep.mubr.bf16.mxu0 0
    %7127 = vmatmul.mubr.bf16.gmra.mrb[0].mxu0 %v7092
    %v7128 = vpop.f32.mrb[0].mxu0
    %v7129 = vadd.f32 %v7077, %v7128
    %v7130 = vpop.f32.mrb[0].mxu0
    %v7131 = vpop.f32.mrb[0].mxu0
    %v7132 = vpop.f32.mrb[0].mxu0
    %7133 = vdwg.mxu0
    %7134 = vst [vmem:[#allocation14] sm:$0x3] %v7129
    // Predicated region
    $region58: #{mynet_forward.1} parent=1 // pred_check
      _
    $region59: #{mynet_forward.1} parent=1 // pred_check_branch
      %7136 = sbr.rel (0) target = $region61
    $region60: #{mynet_forward.1} parent=1 // pred_region
      %s7138 = ssub.s32 32, 32
      %7139 = vsyncadd [#allocation4], %s7138
      %s7141 = sshll.u32 [#allocation14], 4
      %s7142 = int_to_ptr.vmem [resolvable:$true] %s7141
      %7144 = dma.vmem_to_hbm [thread:$0]  %s7142, 32, %s7, [#allocation4]
    $region61: #{mynet_forward.1} parent=1 // pred_fallthru
      _
    // Predicated region
    $region62: #{mynet_forward.1} parent=1 // pred_check
      _
    $region63: #{mynet_forward.1} parent=1 // pred_check_branch
      %7146 = sbr.rel (0) target = $region65
    $region64: #{mynet_forward.1} parent=1 // pred_region
      %7147 = dma.done [#allocation4], 32
    $region65: #{mynet_forward.1} parent=1 // pred_fallthru
      _
    %7148 = vsyncpa [#allocation3], 1
    %7149 = vsyncpa [#allocation6], 1
    %7150 = vsyncpa [#allocation9], 1
    %7151 = vsyncpa [#allocation12], 1
    %7152 = vsyncpa [#allocation4], 1

</llo_original>
